<compile_context>
chip_gen: v6e
topology: v6e:2x2x1
jax: 0.10.0
libtpu: 0.0.40
codegen_flags: <defaults>
</compile_context>

<pallas_src>
import functools

import jax
import jax.numpy as jnp
from jax.experimental import pallas as pl
from jax.experimental.pallas import tpu as pltpu


def _round_up(x, m):
    return (x + m - 1) // m * m


# ----------------------------------------------------------------------------
# Pallas kernel 1: single-K-step matmul + bias (+ optional ReLU)
# ----------------------------------------------------------------------------
def _matmul_bias_kernel(x_ref, w_ref, b_ref, o_ref, *, apply_relu):
    acc = jnp.dot(x_ref[...], w_ref[...], preferred_element_type=jnp.float32)
    acc = acc + b_ref[...]                      # bias once, in f32
    if apply_relu:
        acc = jnp.maximum(acc, 0.0)
    o_ref[...] = acc.astype(o_ref.dtype)


def matmul_bias(x, w_p, b_p, n_real, *, apply_relu=False, out_dtype=jnp.bfloat16):
    """x: (M, K) any float dtype.  w_p: (Kp, Np) bf16, pre-padded.  b_p: (1, Np) f32.

    Kp, Np are multiples of 128.  The whole K dimension is contracted in a
    single grid step (tk = Kp), so no accumulator scratch is needed.
    Returns (M, n_real) in out_dtype.
    """
    M, K = x.shape
    Kp, Np = w_p.shape
    assert K <= Kp and Kp % 128 == 0 and Np % 128 == 0

    # M tiling: one block when tiny; two blocks at medium sizes (feeds both
    # v7x TensorCores); 256-row blocks when large (conv1 im2col).
    Mp0 = _round_up(M, 16)
    if Mp0 <= 256:
        tm, Mp = Mp0, Mp0
    elif Mp0 <= 1024:
        tm = _round_up((Mp0 + 1) // 2, 16)
        Mp = 2 * tm
    else:
        tm, Mp = 256, _round_up(M, 256)

    # N tiling: 256 matches the v6e/v7x 256-wide MXU and gives fc1 a 2-wide
    # parallel N axis; otherwise the (already lane-dense) full 128.
    tn = 256 if Np % 256 == 0 else 128

    x_p = jnp.pad(x.astype(jnp.bfloat16), ((0, Mp - M), (0, Kp - K)))

    out = pl.pallas_call(
        functools.partial(_matmul_bias_kernel, apply_relu=apply_relu),
        out_shape=jax.ShapeDtypeStruct((Mp, Np), out_dtype),
        grid=(Mp // tm, Np // tn),
        in_specs=[
            pl.BlockSpec((tm, Kp), lambda i, j: (i, 0)),
            pl.BlockSpec((Kp, tn), lambda i, j: (0, j)),
            pl.BlockSpec((1, tn), lambda i, j: (0, j)),
        ],
        out_specs=pl.BlockSpec((tm, tn), lambda i, j: (i, j)),
        compiler_params=pltpu.CompilerParams(
            dimension_semantics=("parallel", "parallel")),
    )(x_p, w_p, b_p)
    return out[:M, :n_real]


# ----------------------------------------------------------------------------
# Pallas kernel 2: 2x2 max-pool, one call per pool over the whole NHWC slab
# ----------------------------------------------------------------------------
def _maxpool2x2_kernel(x_ref, o_ref):
    # x_ref: (1, Ho, 2, Wo, 2*C)   o_ref: (1, Ho, Wo, C)
    c = o_ref.shape[-1]
    a = x_ref[0, :, 0, :, pl.ds(0, c)]   # (h=2ho,   w=2wo)
    b = x_ref[0, :, 0, :, pl.ds(c, c)]   # (h=2ho,   w=2wo+1)
    d = x_ref[0, :, 1, :, pl.ds(0, c)]   # (h=2ho+1, w=2wo)
    e = x_ref[0, :, 1, :, pl.ds(c, c)]   # (h=2ho+1, w=2wo+1)
    o_ref[0] = jnp.maximum(jnp.maximum(a, b), jnp.maximum(d, e))


def maxpool2x2_nhwc(x):
    """MaxPool2d(2,2), floor mode, channel-last (B, H, W, C); C multiple of 128."""
    B, H, W, C = x.shape
    Ho, Wo = H // 2, W // 2
    if H != 2 * Ho or W != 2 * Wo:
        x = x[:, :2 * Ho, :2 * Wo, :]                    # floor mode: drop odd edge
    # Metadata-only row-major reshape; pairs adjacent W columns along lanes.
    xr = x.reshape(B, Ho, 2, Wo, 2 * C)

    return pl.pallas_call(
        _maxpool2x2_kernel,
        out_shape=jax.ShapeDtypeStruct((B, Ho, Wo, C), x.dtype),
        grid=(B,),
        in_specs=[pl.BlockSpec((1, Ho, 2, Wo, 2 * C),
                               lambda b: (b, 0, 0, 0, 0))],
        out_specs=pl.BlockSpec((1, Ho, Wo, C), lambda b: (b, 0, 0, 0)),
        compiler_params=pltpu.CompilerParams(dimension_semantics=("parallel",)),
    )(xr)


# ----------------------------------------------------------------------------
# Conv via im2col (channel-last, 128-lane slabs) + fused matmul/bias/ReLU
# ----------------------------------------------------------------------------
def conv2d_relu_nhwc(x, w_p, b_p, padding):
    """x: (B, H, W, Cin).  w_p: (Kp, 128) bf16, rows in (kh, kw, Cin) order
    (Cin pre-padded per tap when the activation carries padded lanes).

    Returns (B, Ho, Wo, 128) with the real Cout channels in the leading lanes
    and exact zeros in the padded lanes.
    """
    B, H, W, Cin = x.shape
    kh = kw = 3
    xp = jnp.pad(x, ((0, 0), (padding, padding), (padding, padding), (0, 0)))
    Ho = H + 2 * padding - kh + 1
    Wo = W + 2 * padding - kw + 1
    taps = [xp[:, i:i + Ho, j:j + Wo, :] for i in range(kh) for j in range(kw)]
    patches = jnp.concatenate(taps, axis=-1).reshape(B * Ho * Wo, kh * kw * Cin)
    Np = w_p.shape[1]
    out = matmul_bias(patches, w_p, b_p, n_real=Np, apply_relu=True)
    return out.reshape(B, Ho, Wo, Np)


# ----------------------------------------------------------------------------
# Parameters
# ----------------------------------------------------------------------------
def init_params(key):
    ks = jax.random.split(key, 8)

    def init(k, shape, fan_in):
        return jax.random.normal(k, shape, jnp.float32) * (2.0 / fan_in) ** 0.5

    return {
        "conv1_w": init(ks[0], (16, 1, 3, 3), 9),          # PyTorch (Cout,Cin,kh,kw)
        "conv1_b": init(ks[1], (16,), 9) * 0.1,
        "conv2_w": init(ks[2], (32, 16, 3, 3), 144),
        "conv2_b": init(ks[3], (32,), 144) * 0.1,
        "fc1_w": init(ks[4], (32 * 7 * 7, 512), 1568),      # (in,out), rows in (C,H,W) order
        "fc1_b": init(ks[5], (512,), 1568) * 0.1,
        "fc2_w": init(ks[6], (512, 64), 512),
        "fc2_b": init(ks[7], (64,), 512) * 0.1,
    }


def _prep_matmul_weight(w_kn, b_n):
    K, N = w_kn.shape
    Kp = _round_up(K, 128)                      # no over-padding (fc1: 1568 -> 1664)
    Np = _round_up(N, 128)
    w_p = jnp.pad(w_kn, ((0, Kp - K), (0, Np - N))).astype(jnp.bfloat16)
    b_p = jnp.pad(b_n, (0, Np - N)).reshape(1, Np).astype(jnp.float32)
    return w_p, b_p


def prepare_params(p):
    """One-time layout work; no per-forward weight transposes."""
    # conv1: (Cout,Cin,kh,kw) -> rows in (kh,kw,Cin) order, Cin = 1.
    c1 = p["conv1_w"].transpose(2, 3, 1, 0).reshape(9 * 1, 16)
    # conv2: activation keeps 128 padded lanes, so pad Cin 16 -> 128 per tap.
    c2 = p["conv2_w"].transpose(2, 3, 1, 0)                       # (3,3,16,32)
    c2 = jnp.pad(c2, ((0, 0), (0, 0), (0, 128 - 16), (0, 0))).reshape(9 * 128, 32)
    # fc1 rows: PyTorch flatten order (C,H,W) -> our NHWC flatten order (H,W,C).
    fc1 = p["fc1_w"].reshape(32, 7, 7, 512).transpose(1, 2, 0, 3).reshape(1568, 512)
    fc2 = p["fc2_w"]
    out = {}
    out["conv1_w"], out["conv1_b"] = _prep_matmul_weight(c1, p["conv1_b"])
    out["conv2_w"], out["conv2_b"] = _prep_matmul_weight(c2, p["conv2_b"])
    out["fc1_w"], out["fc1_b"] = _prep_matmul_weight(fc1, p["fc1_b"])
    out["fc2_w"], out["fc2_b"] = _prep_matmul_weight(fc2, p["fc2_b"])
    return out


# ----------------------------------------------------------------------------
# Forward
# ----------------------------------------------------------------------------
def hybrid_qnn_forward(params, x):
    # (B, 1, 28, 28) NCHW -> channel-last once.
    x = jnp.transpose(x, (0, 2, 3, 1))                                        # (B,28,28,1)
    x = conv2d_relu_nhwc(x, params["conv1_w"], params["conv1_b"], padding=2)  # (B,30,30,128)
    x = maxpool2x2_nhwc(x)                                                    # (B,15,15,128)
    # keep all 128 lanes through conv2 (zero lanes x zero weight rows)
    x = conv2d_relu_nhwc(x, params["conv2_w"], params["conv2_b"], padding=1)  # (B,15,15,128)
    x = maxpool2x2_nhwc(x)                                                    # (B,7,7,128)
    x = x[..., :32].reshape(x.shape[0], 7 * 7 * 32)       # NHWC flatten (fc1 rows pre-permuted)
    x = matmul_bias(x, params["fc1_w"], params["fc1_b"], n_real=512)          # (B,512)
    x = matmul_bias(x, params["fc2_w"], params["fc2_b"], n_real=64,
                    out_dtype=jnp.float32)                                    # (B,64)
    # TODO(synk): QNN(layers, qubits) / qml.probs() quantum layer has no Pallas
    # equivalent; return the 64-dim classical embedding that feeds the QNN.
    return x


if __name__ == "__main__":
    key = jax.random.PRNGKey(0)
    kp, kx = jax.random.split(key)
    raw_params = init_params(kp)
    params = prepare_params(raw_params)

    # MNIST-like input so the flattened feature size is exactly 32*7*7 = 1568.
    x = jax.random.normal(kx, (2, 1, 28, 28), jnp.float32)

    fwd = jax.jit(hybrid_qnn_forward)
    out = fwd(params, x)
    jax.block_until_ready(out)

    assert out.shape == (2, 64), out.shape
    assert bool(jnp.all(jnp.isfinite(out)))
    print("KERNEL_OK")
</pallas_src>

<mosaic_0001>
module attributes {stable_mosaic.version = 11 : i64} {
  func.func @_matmul_bias_kernel(%arg0: i32, %arg1: i32, %arg2: memref<256x128xbf16, #tpu.memory_space<vmem>>, %arg3: memref<128x128xbf16, #tpu.memory_space<vmem>>, %arg4: memref<1x128xf32, #tpu.memory_space<vmem>>, %arg5: memref<256x128xbf16, #tpu.memory_space<vmem>>) attributes {dimension_semantics = [#tpu.dimension_semantics<parallel>, #tpu.dimension_semantics<parallel>], iteration_bounds = array<i64: 8, 1>, scalar_prefetch = 0 : i64, scratch_operands = 0 : i64, tpu.core_type = #tpu.core_type<tc>, window_params = [{transform_indices = @transform_0, window_bounds = array<i64: 256, 128>}, {transform_indices = @transform_1, window_bounds = array<i64: 128, 128>}, {transform_indices = @transform_2, window_bounds = array<i64: 1, 128>}, {transform_indices = @transform_3, window_bounds = array<i64: 256, 128>}]} {
    %c0 = arith.constant 0 : index
    %c0_0 = arith.constant 0 : index
    %0 = vector.load %arg2[%c0, %c0_0] : memref<256x128xbf16, #tpu.memory_space<vmem>>, vector<256x128xbf16>
    %c0_1 = arith.constant 0 : index
    %c0_2 = arith.constant 0 : index
    %1 = vector.load %arg3[%c0_1, %c0_2] : memref<128x128xbf16, #tpu.memory_space<vmem>>, vector<128x128xbf16>
    %cst = arith.constant dense<0.000000e+00> : vector<256x128xf32>
    %2 = tpu.matmul %0, %1, %cst {dimension_numbers = #tpu.dot_dimension_numbers<[1], [0], [0], [1], [0, 0, 1, 1], [], []>} : vector<256x128xbf16>, vector<128x128xbf16>, vector<256x128xf32> -> vector<256x128xf32>
    %c0_3 = arith.constant 0 : index
    %c0_4 = arith.constant 0 : index
    %3 = vector.load %arg4[%c0_3, %c0_4] : memref<1x128xf32, #tpu.memory_space<vmem>>, vector<1x128xf32>
    %4 = vector.broadcast %3 : vector<1x128xf32> to vector<256x128xf32>
    %5 = arith.addf %2, %4 : vector<256x128xf32>
    %cst_5 = arith.constant 0.000000e+00 : f32
    %6 = vector.broadcast %cst_5 : f32 to vector<256x128xf32>
    %7 = arith.maximumf %5, %6 : vector<256x128xf32>
    %8 = arith.truncf %7 : vector<256x128xf32> to vector<256x128xbf16>
    %c0_6 = arith.constant 0 : index
    %c0_7 = arith.constant 0 : index
    %9 = vector.load %arg5[%c0_6, %c0_7] : memref<256x128xbf16, #tpu.memory_space<vmem>>, vector<256x128xbf16>
    tpu.vector_store %arg5[%c0_6, %c0_7], %8 {strides = array<i32>} : memref<256x128xbf16, #tpu.memory_space<vmem>>, vector<256x128xbf16>,
    return
  }
  func.func @transform_0(%arg0: i32, %arg1: i32) -> (i32, i32) {
    %c0_i32 = arith.constant 0 : i32
    %c0_i32_0 = arith.constant 0 : i32
    return %arg0, %c0_i32 : i32, i32
  }
  func.func @transform_1(%arg0: i32, %arg1: i32) -> (i32, i32) {
    %c0_i32 = arith.constant 0 : i32
    %c0_i32_0 = arith.constant 0 : i32
    return %c0_i32, %arg1 : i32, i32
  }
  func.func @transform_2(%arg0: i32, %arg1: i32) -> (i32, i32) {
    %c0_i32 = arith.constant 0 : i32
    %c0_i32_0 = arith.constant 0 : i32
    return %c0_i32, %arg1 : i32, i32
  }
  func.func @transform_3(%arg0: i32, %arg1: i32) -> (i32, i32) {
    %c0_i32 = arith.constant 0 : i32
    return %arg0, %arg1 : i32, i32
  }
}

module attributes {stable_mosaic.version = 11 : i64} {
  func.func @_maxpool2x2_kernel(%arg0: i32, %arg1: memref<1x15x2x15x256xbf16, #tpu.memory_space<vmem>>, %arg2: memref<1x15x15x128xbf16, #tpu.memory_space<vmem>>) attributes {dimension_semantics = [#tpu.dimension_semantics<parallel>], iteration_bounds = array<i64: 2>, scalar_prefetch = 0 : i64, scratch_operands = 0 : i64, tpu.core_type = #tpu.core_type<tc>, window_params = [{transform_indices = @transform_0, window_bounds = array<i64: 1, 15, 2, 15, 256>}, {transform_indices = @transform_1, window_bounds = array<i64: 1, 15, 15, 128>}]} {
    %c0 = arith.constant 0 : index
    %c0_0 = arith.constant 0 : index
    %c0_1 = arith.constant 0 : index
    %c0_2 = arith.constant 0 : index
    %c0_3 = arith.constant 0 : index
    %0 = vector.load %arg1[%c0, %c0_0, %c0_1, %c0_2, %c0_3] : memref<1x15x2x15x256xbf16, #tpu.memory_space<vmem>>, vector<1x15x1x15x128xbf16>
    %1 = vector.shape_cast %0 : vector<1x15x1x15x128xbf16> to vector<15x15x128xbf16>
    %c0_4 = arith.constant 0 : index
    %c0_5 = arith.constant 0 : index
    %c0_6 = arith.constant 0 : index
    %c0_7 = arith.constant 0 : index
    %c128 = arith.constant 128 : index
    %2 = vector.load %arg1[%c0_4, %c0_5, %c0_6, %c0_7, %c128] : memref<1x15x2x15x256xbf16, #tpu.memory_space<vmem>>, vector<1x15x1x15x128xbf16>
    %3 = vector.shape_cast %2 : vector<1x15x1x15x128xbf16> to vector<15x15x128xbf16>
    %c0_8 = arith.constant 0 : index
    %c0_9 = arith.constant 0 : index
    %c1 = arith.constant 1 : index
    %c0_10 = arith.constant 0 : index
    %c0_11 = arith.constant 0 : index
    %4 = vector.load %arg1[%c0_8, %c0_9, %c1, %c0_10, %c0_11] : memref<1x15x2x15x256xbf16, #tpu.memory_space<vmem>>, vector<1x15x1x15x128xbf16>
    %5 = vector.shape_cast %4 : vector<1x15x1x15x128xbf16> to vector<15x15x128xbf16>
    %c0_12 = arith.constant 0 : index
    %c0_13 = arith.constant 0 : index
    %c1_14 = arith.constant 1 : index
    %c0_15 = arith.constant 0 : index
    %c128_16 = arith.constant 128 : index
    %6 = vector.load %arg1[%c0_12, %c0_13, %c1_14, %c0_15, %c128_16] : memref<1x15x2x15x256xbf16, #tpu.memory_space<vmem>>, vector<1x15x1x15x128xbf16>
    %7 = vector.shape_cast %6 : vector<1x15x1x15x128xbf16> to vector<15x15x128xbf16>
    %8 = arith.maximumf %1, %3 : vector<15x15x128xbf16>
    %9 = arith.maximumf %5, %7 : vector<15x15x128xbf16>
    %10 = arith.maximumf %8, %9 : vector<15x15x128xbf16>
    %c0_17 = arith.constant 0 : index
    %c0_18 = arith.constant 0 : index
    %c0_19 = arith.constant 0 : index
    %c0_20 = arith.constant 0 : index
    %11 = vector.load %arg2[%c0_17, %c0_18, %c0_19, %c0_20] : memref<1x15x15x128xbf16, #tpu.memory_space<vmem>>, vector<1x15x15x128xbf16>
    %12 = vector.shape_cast %11 : vector<1x15x15x128xbf16> to vector<15x15x128xbf16>
    %13 = vector.shape_cast %10 : vector<15x15x128xbf16> to vector<1x15x15x128xbf16>
    tpu.vector_store %arg2[%c0_17, %c0_18, %c0_19, %c0_20], %13 {strides = array<i32>} : memref<1x15x15x128xbf16, #tpu.memory_space<vmem>>, vector<1x15x15x128xbf16>,
    return
  }
  func.func @transform_0(%arg0: i32) -> (i32, i32, i32, i32, i32) {
    %c0_i32 = arith.constant 0 : i32
    %c0_i32_0 = arith.constant 0 : i32
    %c0_i32_1 = arith.constant 0 : i32
    %c0_i32_2 = arith.constant 0 : i32
    %c0_i32_3 = arith.constant 0 : i32
    return %arg0, %c0_i32, %c0_i32_0, %c0_i32_1, %c0_i32_2 : i32, i32, i32, i32, i32
  }
  func.func @transform_1(%arg0: i32) -> (i32, i32, i32, i32) {
    %c0_i32 = arith.constant 0 : i32
    %c0_i32_0 = arith.constant 0 : i32
    %c0_i32_1 = arith.constant 0 : i32
    %c0_i32_2 = arith.constant 0 : i32
    return %arg0, %c0_i32, %c0_i32_0, %c0_i32_1 : i32, i32, i32, i32
  }
}

module attributes {stable_mosaic.version = 11 : i64} {
  func.func @_matmul_bias_kernel(%arg0: i32, %arg1: i32, %arg2: memref<240x1152xbf16, #tpu.memory_space<vmem>>, %arg3: memref<1152x128xbf16, #tpu.memory_space<vmem>>, %arg4: memref<1x128xf32, #tpu.memory_space<vmem>>, %arg5: memref<240x128xbf16, #tpu.memory_space<vmem>>) attributes {dimension_semantics = [#tpu.dimension_semantics<parallel>, #tpu.dimension_semantics<parallel>], iteration_bounds = array<i64: 2, 1>, scalar_prefetch = 0 : i64, scratch_operands = 0 : i64, tpu.core_type = #tpu.core_type<tc>, window_params = [{transform_indices = @transform_0, window_bounds = array<i64: 240, 1152>}, {transform_indices = @transform_1, window_bounds = array<i64: 1152, 128>}, {transform_indices = @transform_2, window_bounds = array<i64: 1, 128>}, {transform_indices = @transform_3, window_bounds = array<i64: 240, 128>}]} {
    %c0 = arith.constant 0 : index
    %c0_0 = arith.constant 0 : index
    %0 = vector.load %arg2[%c0, %c0_0] : memref<240x1152xbf16, #tpu.memory_space<vmem>>, vector<240x1152xbf16>
    %c0_1 = arith.constant 0 : index
    %c0_2 = arith.constant 0 : index
    %1 = vector.load %arg3[%c0_1, %c0_2] : memref<1152x128xbf16, #tpu.memory_space<vmem>>, vector<1152x128xbf16>
    %cst = arith.constant dense<0.000000e+00> : vector<240x128xf32>
    %2 = tpu.matmul %0, %1, %cst {dimension_numbers = #tpu.dot_dimension_numbers<[1], [0], [0], [1], [0, 0, 1, 1], [], []>} : vector<240x1152xbf16>, vector<1152x128xbf16>, vector<240x128xf32> -> vector<240x128xf32>
    %c0_3 = arith.constant 0 : index
    %c0_4 = arith.constant 0 : index
    %3 = vector.load %arg4[%c0_3, %c0_4] : memref<1x128xf32, #tpu.memory_space<vmem>>, vector<1x128xf32>
    %4 = vector.broadcast %3 : vector<1x128xf32> to vector<240x128xf32>
    %5 = arith.addf %2, %4 : vector<240x128xf32>
    %cst_5 = arith.constant 0.000000e+00 : f32
    %6 = vector.broadcast %cst_5 : f32 to vector<240x128xf32>
    %7 = arith.maximumf %5, %6 : vector<240x128xf32>
    %8 = arith.truncf %7 : vector<240x128xf32> to vector<240x128xbf16>
    %c0_6 = arith.constant 0 : index
    %c0_7 = arith.constant 0 : index
    %9 = vector.load %arg5[%c0_6, %c0_7] : memref<240x128xbf16, #tpu.memory_space<vmem>>, vector<240x128xbf16>
    tpu.vector_store %arg5[%c0_6, %c0_7], %8 {strides = array<i32>} : memref<240x128xbf16, #tpu.memory_space<vmem>>, vector<240x128xbf16>,
    return
  }
  func.func @transform_0(%arg0: i32, %arg1: i32) -> (i32, i32) {
    %c0_i32 = arith.constant 0 : i32
    %c0_i32_0 = arith.constant 0 : i32
    return %arg0, %c0_i32 : i32, i32
  }
  func.func @transform_1(%arg0: i32, %arg1: i32) -> (i32, i32) {
    %c0_i32 = arith.constant 0 : i32
    %c0_i32_0 = arith.constant 0 : i32
    return %c0_i32, %arg1 : i32, i32
  }
  func.func @transform_2(%arg0: i32, %arg1: i32) -> (i32, i32) {
    %c0_i32 = arith.constant 0 : i32
    %c0_i32_0 = arith.constant 0 : i32
    return %c0_i32, %arg1 : i32, i32
  }
  func.func @transform_3(%arg0: i32, %arg1: i32) -> (i32, i32) {
    %c0_i32 = arith.constant 0 : i32
    return %arg0, %arg1 : i32, i32
  }
}

module attributes {stable_mosaic.version = 11 : i64} {
  func.func @_maxpool2x2_kernel(%arg0: i32, %arg1: memref<1x7x2x7x256xbf16, #tpu.memory_space<vmem>>, %arg2: memref<1x7x7x128xbf16, #tpu.memory_space<vmem>>) attributes {dimension_semantics = [#tpu.dimension_semantics<parallel>], iteration_bounds = array<i64: 2>, scalar_prefetch = 0 : i64, scratch_operands = 0 : i64, tpu.core_type = #tpu.core_type<tc>, window_params = [{transform_indices = @transform_0, window_bounds = array<i64: 1, 7, 2, 7, 256>}, {transform_indices = @transform_1, window_bounds = array<i64: 1, 7, 7, 128>}]} {
    %c0 = arith.constant 0 : index
    %c0_0 = arith.constant 0 : index
    %c0_1 = arith.constant 0 : index
    %c0_2 = arith.constant 0 : index
    %c0_3 = arith.constant 0 : index
    %0 = vector.load %arg1[%c0, %c0_0, %c0_1, %c0_2, %c0_3] : memref<1x7x2x7x256xbf16, #tpu.memory_space<vmem>>, vector<1x7x1x7x128xbf16>
    %1 = vector.shape_cast %0 : vector<1x7x1x7x128xbf16> to vector<7x7x128xbf16>
    %c0_4 = arith.constant 0 : index
    %c0_5 = arith.constant 0 : index
    %c0_6 = arith.constant 0 : index
    %c0_7 = arith.constant 0 : index
    %c128 = arith.constant 128 : index
    %2 = vector.load %arg1[%c0_4, %c0_5, %c0_6, %c0_7, %c128] : memref<1x7x2x7x256xbf16, #tpu.memory_space<vmem>>, vector<1x7x1x7x128xbf16>
    %3 = vector.shape_cast %2 : vector<1x7x1x7x128xbf16> to vector<7x7x128xbf16>
    %c0_8 = arith.constant 0 : index
    %c0_9 = arith.constant 0 : index
    %c1 = arith.constant 1 : index
    %c0_10 = arith.constant 0 : index
    %c0_11 = arith.constant 0 : index
    %4 = vector.load %arg1[%c0_8, %c0_9, %c1, %c0_10, %c0_11] : memref<1x7x2x7x256xbf16, #tpu.memory_space<vmem>>, vector<1x7x1x7x128xbf16>
    %5 = vector.shape_cast %4 : vector<1x7x1x7x128xbf16> to vector<7x7x128xbf16>
    %c0_12 = arith.constant 0 : index
    %c0_13 = arith.constant 0 : index
    %c1_14 = arith.constant 1 : index
    %c0_15 = arith.constant 0 : index
    %c128_16 = arith.constant 128 : index
    %6 = vector.load %arg1[%c0_12, %c0_13, %c1_14, %c0_15, %c128_16] : memref<1x7x2x7x256xbf16, #tpu.memory_space<vmem>>, vector<1x7x1x7x128xbf16>
    %7 = vector.shape_cast %6 : vector<1x7x1x7x128xbf16> to vector<7x7x128xbf16>
    %8 = arith.maximumf %1, %3 : vector<7x7x128xbf16>
    %9 = arith.maximumf %5, %7 : vector<7x7x128xbf16>
    %10 = arith.maximumf %8, %9 : vector<7x7x128xbf16>
    %c0_17 = arith.constant 0 : index
    %c0_18 = arith.constant 0 : index
    %c0_19 = arith.constant 0 : index
    %c0_20 = arith.constant 0 : index
    %11 = vector.load %arg2[%c0_17, %c0_18, %c0_19, %c0_20] : memref<1x7x7x128xbf16, #tpu.memory_space<vmem>>, vector<1x7x7x128xbf16>
    %12 = vector.shape_cast %11 : vector<1x7x7x128xbf16> to vector<7x7x128xbf16>
    %13 = vector.shape_cast %10 : vector<7x7x128xbf16> to vector<1x7x7x128xbf16>
    tpu.vector_store %arg2[%c0_17, %c0_18, %c0_19, %c0_20], %13 {strides = array<i32>} : memref<1x7x7x128xbf16, #tpu.memory_space<vmem>>, vector<1x7x7x128xbf16>,
    return
  }
  func.func @transform_0(%arg0: i32) -> (i32, i32, i32, i32, i32) {
    %c0_i32 = arith.constant 0 : i32
    %c0_i32_0 = arith.constant 0 : i32
    %c0_i32_1 = arith.constant 0 : i32
    %c0_i32_2 = arith.constant 0 : i32
    %c0_i32_3 = arith.constant 0 : i32
    return %arg0, %c0_i32, %c0_i32_0, %c0_i32_1, %c0_i32_2 : i32, i32, i32, i32, i32
  }
  func.func @transform_1(%arg0: i32) -> (i32, i32, i32, i32) {
    %c0_i32 = arith.constant 0 : i32
    %c0_i32_0 = arith.constant 0 : i32
    %c0_i32_1 = arith.constant 0 : i32
    %c0_i32_2 = arith.constant 0 : i32
    return %arg0, %c0_i32, %c0_i32_0, %c0_i32_1 : i32, i32, i32, i32
  }
}

module attributes {stable_mosaic.version = 11 : i64} {
  func.func @_matmul_bias_kernel(%arg0: i32, %arg1: i32, %arg2: memref<16x1664xbf16, #tpu.memory_space<vmem>>, %arg3: memref<1664x256xbf16, #tpu.memory_space<vmem>>, %arg4: memref<1x256xf32, #tpu.memory_space<vmem>>, %arg5: memref<16x256xbf16, #tpu.memory_space<vmem>>) attributes {dimension_semantics = [#tpu.dimension_semantics<parallel>, #tpu.dimension_semantics<parallel>], iteration_bounds = array<i64: 1, 2>, scalar_prefetch = 0 : i64, scratch_operands = 0 : i64, tpu.core_type = #tpu.core_type<tc>, window_params = [{transform_indices = @transform_0, window_bounds = array<i64: 16, 1664>}, {transform_indices = @transform_1, window_bounds = array<i64: 1664, 256>}, {transform_indices = @transform_2, window_bounds = array<i64: 1, 256>}, {transform_indices = @transform_3, window_bounds = array<i64: 16, 256>}]} {
    %c0 = arith.constant 0 : index
    %c0_0 = arith.constant 0 : index
    %0 = vector.load %arg2[%c0, %c0_0] : memref<16x1664xbf16, #tpu.memory_space<vmem>>, vector<16x1664xbf16>
    %c0_1 = arith.constant 0 : index
    %c0_2 = arith.constant 0 : index
    %1 = vector.load %arg3[%c0_1, %c0_2] : memref<1664x256xbf16, #tpu.memory_space<vmem>>, vector<1664x256xbf16>
    %cst = arith.constant dense<0.000000e+00> : vector<16x256xf32>
    %2 = tpu.matmul %0, %1, %cst {dimension_numbers = #tpu.dot_dimension_numbers<[1], [0], [0], [1], [0, 0, 1, 1], [], []>} : vector<16x1664xbf16>, vector<1664x256xbf16>, vector<16x256xf32> -> vector<16x256xf32>
    %c0_3 = arith.constant 0 : index
    %c0_4 = arith.constant 0 : index
    %3 = vector.load %arg4[%c0_3, %c0_4] : memref<1x256xf32, #tpu.memory_space<vmem>>, vector<1x256xf32>
    %4 = vector.broadcast %3 : vector<1x256xf32> to vector<16x256xf32>
    %5 = arith.addf %2, %4 : vector<16x256xf32>
    %6 = arith.truncf %5 : vector<16x256xf32> to vector<16x256xbf16>
    %c0_5 = arith.constant 0 : index
    %c0_6 = arith.constant 0 : index
    %7 = vector.load %arg5[%c0_5, %c0_6] : memref<16x256xbf16, #tpu.memory_space<vmem>>, vector<16x256xbf16>
    tpu.vector_store %arg5[%c0_5, %c0_6], %6 {strides = array<i32>} : memref<16x256xbf16, #tpu.memory_space<vmem>>, vector<16x256xbf16>,
    return
  }
  func.func @transform_0(%arg0: i32, %arg1: i32) -> (i32, i32) {
    %c0_i32 = arith.constant 0 : i32
    %c0_i32_0 = arith.constant 0 : i32
    return %arg0, %c0_i32 : i32, i32
  }
  func.func @transform_1(%arg0: i32, %arg1: i32) -> (i32, i32) {
    %c0_i32 = arith.constant 0 : i32
    %c0_i32_0 = arith.constant 0 : i32
    return %c0_i32, %arg1 : i32, i32
  }
  func.func @transform_2(%arg0: i32, %arg1: i32) -> (i32, i32) {
    %c0_i32 = arith.constant 0 : i32
    %c0_i32_0 = arith.constant 0 : i32
    return %c0_i32, %arg1 : i32, i32
  }
  func.func @transform_3(%arg0: i32, %arg1: i32) -> (i32, i32) {
    %c0_i32 = arith.constant 0 : i32
    return %arg0, %arg1 : i32, i32
  }
}

module attributes {stable_mosaic.version = 11 : i64} {
  func.func @_matmul_bias_kernel(%arg0: i32, %arg1: i32, %arg2: memref<16x512xbf16, #tpu.memory_space<vmem>>, %arg3: memref<512x128xbf16, #tpu.memory_space<vmem>>, %arg4: memref<1x128xf32, #tpu.memory_space<vmem>>, %arg5: memref<16x128xf32, #tpu.memory_space<vmem>>) attributes {dimension_semantics = [#tpu.dimension_semantics<parallel>, #tpu.dimension_semantics<parallel>], iteration_bounds = array<i64: 1, 1>, scalar_prefetch = 0 : i64, scratch_operands = 0 : i64, tpu.core_type = #tpu.core_type<tc>, window_params = [{transform_indices = @transform_0, window_bounds = array<i64: 16, 512>}, {transform_indices = @transform_1, window_bounds = array<i64: 512, 128>}, {transform_indices = @transform_2, window_bounds = array<i64: 1, 128>}, {transform_indices = @transform_3, window_bounds = array<i64: 16, 128>}]} {
    %c0 = arith.constant 0 : index
    %c0_0 = arith.constant 0 : index
    %0 = vector.load %arg2[%c0, %c0_0] : memref<16x512xbf16, #tpu.memory_space<vmem>>, vector<16x512xbf16>
    %c0_1 = arith.constant 0 : index
    %c0_2 = arith.constant 0 : index
    %1 = vector.load %arg3[%c0_1, %c0_2] : memref<512x128xbf16, #tpu.memory_space<vmem>>, vector<512x128xbf16>
    %cst = arith.constant dense<0.000000e+00> : vector<16x128xf32>
    %2 = tpu.matmul %0, %1, %cst {dimension_numbers = #tpu.dot_dimension_numbers<[1], [0], [0], [1], [0, 0, 1, 1], [], []>} : vector<16x512xbf16>, vector<512x128xbf16>, vector<16x128xf32> -> vector<16x128xf32>
    %c0_3 = arith.constant 0 : index
    %c0_4 = arith.constant 0 : index
    %3 = vector.load %arg4[%c0_3, %c0_4] : memref<1x128xf32, #tpu.memory_space<vmem>>, vector<1x128xf32>
    %4 = vector.broadcast %3 : vector<1x128xf32> to vector<16x128xf32>
    %5 = arith.addf %2, %4 : vector<16x128xf32>
    %c0_5 = arith.constant 0 : index
    %c0_6 = arith.constant 0 : index
    %6 = vector.load %arg5[%c0_5, %c0_6] : memref<16x128xf32, #tpu.memory_space<vmem>>, vector<16x128xf32>
    tpu.vector_store %arg5[%c0_5, %c0_6], %5 {strides = array<i32>} : memref<16x128xf32, #tpu.memory_space<vmem>>, vector<16x128xf32>,
    return
  }
  func.func @transform_0(%arg0: i32, %arg1: i32) -> (i32, i32) {
    %c0_i32 = arith.constant 0 : i32
    %c0_i32_0 = arith.constant 0 : i32
    return %arg0, %c0_i32 : i32, i32
  }
  func.func @transform_1(%arg0: i32, %arg1: i32) -> (i32, i32) {
    %c0_i32 = arith.constant 0 : i32
    %c0_i32_0 = arith.constant 0 : i32
    return %c0_i32, %arg1 : i32, i32
  }
  func.func @transform_2(%arg0: i32, %arg1: i32) -> (i32, i32) {
    %c0_i32 = arith.constant 0 : i32
    %c0_i32_0 = arith.constant 0 : i32
    return %c0_i32, %arg1 : i32, i32
  }
  func.func @transform_3(%arg0: i32, %arg1: i32) -> (i32, i32) {
    %c0_i32 = arith.constant 0 : i32
    return %arg0, %arg1 : i32, i32
  }
}

</mosaic_0001>

<llo_original>
// kernel: hybrid_qnn_forward.6
$region0: #{hybrid_qnn_forward.6}
  #allocation0 [shape = 'u32[]', space=smem, size = 0x4, offset = 0x4, fixed_abs, tag = 'smem constant byte address 0x4 - core index']
  #allocation1 [shape = 'u32[144,128]{1,0:T(1,128)}', space=vmem, size = 0x12000, scoped, tag = 'internal scratch']
  %s0 = inlined_call_operand.vmem [shape: bf16[2048,128], index: 0, kind: input, shape index: {}]
  %s1 = inlined_call_operand.vmem [shape: bf16[128,128], index: 1, kind: input, shape index: {}]
  %s2 = inlined_call_operand.vmem [shape: f32[1,128], index: 2, kind: input, shape index: {}]
  %s3 = inlined_call_operand.vmem [shape: bf16[2048,128], index: 3, kind: output, shape index: {}]
  %s4 = sld [smem:[#allocation0]]
  $region45: #{hybrid_qnn_forward.6} parent=0
    _
  %s6 = ssub.s32 1, %s4
  %s7 = scalar_select 0, %s6, %s4
  loop: start=0, step=1, limit=10
  $region2: #{hybrid_qnn_forward.6} parent=0 // loop_pre_header
    _
  $region3: #{hybrid_qnn_forward.6} parent=0 // loop_header
    %s9 = sphi 0, %s13
    %p10 = scmp.ge.s32.totalorder %s9, 10
    %s16 = sphi 0, %s28
    %s17 = sphi 0, %s24
    %s18 = sphi 0, %s16
    %s19 = sphi 0, %s17
    %s20 = sphi 0, %s18
    %s21 = sphi 0, %s19
    %s31 = sphi 0, %s33
    %s34 = sphi 0, %s31
    %s35 = sphi 0, %s34
    %s51 = sphi 0, %s35
    %s57 = sphi 0, %s59
    %s60 = sphi 0, %s57
    %s61 = sphi 0, %s60
    %s77 = sphi 0, %s61
    %s83 = sphi 0, %s85
    %s86 = sphi 0, %s83
    %s87 = sphi 0, %s86
    %s103 = sphi 0, %s87
    %s111 = sphi 0, %s113
    %s114 = sphi 0, %s111
    %s115 = sphi 0, %s114
    %s131 = sphi 0, %s115
  $region4: #{hybrid_qnn_forward.6} parent=0 // loop_header_branch
    %12 = sbr.rel (%p10) target = $region8
  $region5: #{hybrid_qnn_forward.6} parent=0 // loop_body
    %s14 = ssub.s32 %s9, 1
    %s15 = ssub.s32 %s9, 2
    %s22 = sadd.s32 1, %s17
    %p23 = scmp.ge.s32.totalorder %s22, 1
    %s24 = scalar_select %p23, 0, %s22
    %s25 = sadd.s32 1, %s16
    %s26 = scalar_select %p23, %s25, %s16
    %p27 = scmp.ge.s32.totalorder %s26, 8
    %s28 = scalar_select %p27, 0, %s26
    %s29 = ssub.s32 %s16, %s28
    %p30 = scmp.eq.s32.totalorder %s29, 0
    %s32 = sadd.s32 %s31, 1
    %s33 = scalar_select %p30, %s31, %s32
    %p36 = pneg %p30
    %p37 = scmp.eq.s32.totalorder %s9, 7
    %p38 = por %p36, %p37
    %p39 = scmp.ne.s32.totalorder %s31, %s34
    %p40 = scmp.eq.s32.totalorder %s9, 0
    %p41 = por %p39, %p40
    %p42 = scmp.ne.s32.totalorder %s31, %s34
    %p43 = scmp.eq.s32.totalorder %s14, 7
    %p44 = por %p42, %p43
    %p45 = scmp.ne.s32.totalorder %s34, %s35
    %p46 = scmp.eq.s32.totalorder %s14, 0
    %p47 = por %p45, %p46
    %p48 = scmp.ne.s32.totalorder %s34, %s35
    %p49 = scmp.eq.s32.totalorder %s15, 7
    %p50 = por %p48, %p49
    %p52 = scmp.ne.s32.totalorder %s35, %s51
    %p53 = scmp.eq.s32.totalorder %s15, 0
    %p54 = por %p52, %p53
    %s55 = ssub.s32 %s17, %s24
    %p56 = scmp.eq.s32.totalorder %s55, 0
    %s58 = sadd.s32 %s57, 1
    %s59 = scalar_select %p56, %s57, %s58
    %p62 = pneg %p56
    %p63 = scmp.eq.s32.totalorder %s9, 7
    %p64 = por %p62, %p63
    %p65 = scmp.ne.s32.totalorder %s57, %s60
    %p66 = scmp.eq.s32.totalorder %s9, 0
    %p67 = por %p65, %p66
    %p68 = scmp.ne.s32.totalorder %s57, %s60
    %p69 = scmp.eq.s32.totalorder %s14, 7
    %p70 = por %p68, %p69
    %p71 = scmp.ne.s32.totalorder %s60, %s61
    %p72 = scmp.eq.s32.totalorder %s14, 0
    %p73 = por %p71, %p72
    %p74 = scmp.ne.s32.totalorder %s60, %s61
    %p75 = scmp.eq.s32.totalorder %s15, 7
    %p76 = por %p74, %p75
    %p78 = scmp.ne.s32.totalorder %s61, %s77
    %p79 = scmp.eq.s32.totalorder %s15, 0
    %p80 = por %p78, %p79
    %s81 = ssub.s32 %s17, %s24
    %p82 = scmp.eq.s32.totalorder %s81, 0
    %s84 = sadd.s32 %s83, 1
    %s85 = scalar_select %p82, %s83, %s84
    %p88 = pneg %p82
    %p89 = scmp.eq.s32.totalorder %s9, 7
    %p90 = por %p88, %p89
    %p91 = scmp.ne.s32.totalorder %s83, %s86
    %p92 = scmp.eq.s32.totalorder %s9, 0
    %p93 = por %p91, %p92
    %p94 = scmp.ne.s32.totalorder %s83, %s86
    %p95 = scmp.eq.s32.totalorder %s14, 7
    %p96 = por %p94, %p95
    %p97 = scmp.ne.s32.totalorder %s86, %s87
    %p98 = scmp.eq.s32.totalorder %s14, 0
    %p99 = por %p97, %p98
    %p100 = scmp.ne.s32.totalorder %s86, %s87
    %p101 = scmp.eq.s32.totalorder %s15, 7
    %p102 = por %p100, %p101
    %p104 = scmp.ne.s32.totalorder %s87, %s103
    %p105 = scmp.eq.s32.totalorder %s15, 0
    %p106 = por %p104, %p105
    %s107 = ssub.s32 %s16, %s28
    %s108 = ssub.s32 %s17, %s24
    %s109 = sor.u32 %s107, %s108
    %p110 = scmp.eq.s32.totalorder %s109, 0
    %s112 = sadd.s32 %s111, 1
    %s113 = scalar_select %p110, %s111, %s112
    %p116 = pneg %p110
    %p117 = scmp.eq.s32.totalorder %s9, 7
    %p118 = por %p116, %p117
    %p119 = scmp.ne.s32.totalorder %s111, %s114
    %p120 = scmp.eq.s32.totalorder %s9, 0
    %p121 = por %p119, %p120
    %p122 = scmp.ne.s32.totalorder %s111, %s114
    %p123 = scmp.eq.s32.totalorder %s14, 7
    %p124 = por %p122, %p123
    %p125 = scmp.ne.s32.totalorder %s114, %s115
    %p126 = scmp.eq.s32.totalorder %s14, 0
    %p127 = por %p125, %p126
    %p128 = scmp.ne.s32.totalorder %s114, %s115
    %p129 = scmp.eq.s32.totalorder %s15, 7
    %p130 = por %p128, %p129
    %p132 = scmp.ne.s32.totalorder %s115, %s131
    %p133 = scmp.eq.s32.totalorder %s15, 0
    %p134 = por %p132, %p133
    %p135 = scmp.le.s32.totalorder 1, %s9
    %p136 = scmp.lt.s32.totalorder %s9, 9
    %p137 = pnand %p135, %p136
    %p138 = pneg %p137
    // Predicated region
    $region9: #{hybrid_qnn_forward.6} parent=5 // pred_check
      _
    $region10: #{hybrid_qnn_forward.6} parent=5 // pred_check_branch
      %140 = sbr.rel (%p137) target = $region12
    $region11: #{hybrid_qnn_forward.6} parent=5 // pred_region
      %s141 = ssub.s32 %s9, 1
      // Predicated region
      $region13: #{hybrid_qnn_forward.6} parent=11 // pred_check
        %p142 = pneg %p73
      $region14: #{hybrid_qnn_forward.6} parent=11 // pred_check_branch
        %144 = sbr.rel (%p142) target = $region16
      $region15: #{hybrid_qnn_forward.6} parent=11 // pred_region
        %p145 = scmp.lt.s32.totalorder %s19, 0
        %s146 = scalar_select %p145, %s19, 0
        %s147 = smul.addr %s146, 4
        %s148 = scalar_lea.vmem %s1, %s147
      $region16: #{hybrid_qnn_forward.6} parent=11 // pred_fallthru
        _
      // Predicated region
      $region17: #{hybrid_qnn_forward.6} parent=11 // pred_check
        %p149 = pneg %p99
      $region18: #{hybrid_qnn_forward.6} parent=11 // pred_check_branch
        %151 = sbr.rel (%p149) target = $region20
      $region19: #{hybrid_qnn_forward.6} parent=11 // pred_region
        %p152 = scmp.lt.s32.totalorder %s19, 0
        %s153 = scalar_select %p152, %s19, 0
        %s154 = scalar_lea.vmem %s2, %s153
      $region20: #{hybrid_qnn_forward.6} parent=11 // pred_fallthru
        _
    $region12: #{hybrid_qnn_forward.6} parent=5 // pred_fallthru
      _
    %p155 = scmp.lt.s32.totalorder %s9, 8
    // Predicated region
    $region21: #{hybrid_qnn_forward.6} parent=5 // pred_check
      %p156 = pneg %p155
    $region22: #{hybrid_qnn_forward.6} parent=5 // pred_check_branch
      %158 = sbr.rel (%p156) target = $region24
    $region23: #{hybrid_qnn_forward.6} parent=5 // pred_region
      // Predicated region
      $region25: #{hybrid_qnn_forward.6} parent=23 // pred_check
        %p159 = pneg %p41
      $region26: #{hybrid_qnn_forward.6} parent=23 // pred_check_branch
        %161 = sbr.rel (%p159) target = $region28
      $region27: #{hybrid_qnn_forward.6} parent=23 // pred_region
        %s162 = smul.u32 32, %s16
        %p163 = scmp.lt.s32.totalorder %s162, 255
        %s164 = scalar_select %p163, %s162, 255
        %s165 = smul.addr %s164, 4
        %s166 = scalar_lea.vmem %s0, %s165
        %s167 = smul.u32 32, %s16
      $region28: #{hybrid_qnn_forward.6} parent=23 // pred_fallthru
        _
    $region24: #{hybrid_qnn_forward.6} parent=5 // pred_fallthru
      _
    %p168 = scmp.le.s32.totalorder 1, %s9
    %p169 = scmp.lt.s32.totalorder %s9, 9
    %p170 = pnand %p168, %p169
    %p171 = pneg %p170
    // Predicated region
    $region29: #{hybrid_qnn_forward.6} parent=5 // pred_check
      _
    $region30: #{hybrid_qnn_forward.6} parent=5 // pred_check_branch
      %173 = sbr.rel (%p170) target = $region32
    $region31: #{hybrid_qnn_forward.6} parent=5 // pred_region
      %s174 = ssub.s32 %s9, 1
      %s175 = smul.u32 32, %s18
      %p176 = scmp.lt.s32.totalorder %s175, 255
      %s177 = scalar_select %p176, %s175, 255
      %s178 = smul.addr %s177, 4
      %s179 = scalar_lea.vmem %s0, %s178
      %p180 = pneg %p47
      %p181 = pneg %p44
      %p182 = scmp.lt.s32.totalorder %s19, 0
      %s183 = scalar_select %p182, %s19, 0
      %s184 = smul.addr %s183, 4
      %s185 = scalar_lea.vmem %s1, %s184
      %p186 = pneg %p73
      %p187 = pneg %p70
      %p188 = scmp.lt.s32.totalorder %s19, 0
      %s189 = scalar_select %p188, %s19, 0
      %s190 = scalar_lea.vmem %s2, %s189
      %p191 = pneg %p99
      %p192 = pneg %p96
      %p193 = pneg %p127
      %p194 = pneg %p124
      %s195 = smul.u32 32, %s18
      %p196 = scmp.lt.s32.totalorder %s195, 255
      %s197 = scalar_select %p196, %s195, 255
      %p198 = scmp.lt.s32.totalorder %s19, 0
      %s199 = scalar_select %p198, %s19, 0
      %s200 = sadd.s32 %s199, %s197
      %s201 = smul.addr %s200, 4
      %s202 = scalar_lea.vmem %s3, %s201
      %s203 = smul.u32 32, %s18
      %p204 = scmp.lt.s32.totalorder %s203, 255
      %s205 = scalar_select %p204, %s203, 255
      %s206 = smul.addr %s205, 4
      %s207 = scalar_lea.vmem %s0, %s206
      %s208 = smul.u32 32, %s18
      %p209 = scmp.lt.s32.totalorder %s19, 0
      %s210 = scalar_select %p209, %s19, 0
      %s211 = smul.addr %s210, 4
      %s212 = scalar_lea.vmem %s1, %s211
      %p213 = scmp.lt.s32.totalorder %s19, 0
      %s214 = scalar_select %p213, %s19, 0
      %s215 = scalar_lea.vmem %s2, %s214
      %s216 = smul.u32 32, %s18
      %p217 = scmp.lt.s32.totalorder %s216, 255
      %s218 = scalar_select %p217, %s216, 255
      %p219 = scmp.lt.s32.totalorder %s19, 0
      %s220 = scalar_select %p219, %s19, 0
      %s221 = sadd.s32 %s220, %s218
      %s222 = smul.addr %s221, 4
      %s223 = scalar_lea.vmem %s3, %s222
      %s224 = smul.u32 32, %s18
      %v226 = vld [vmem:[%s207] sm:$0xf]
      %v227 = vld [vmem:[%s207 + $0x4] sm:$0xf]
      %v228 = vld [vmem:[%s207 + $0x8] sm:$0xf]
      %v229 = vld [vmem:[%s207 + $0xc] sm:$0xf]
      %v230 = vld [vmem:[%s207 + $0x10] sm:$0xf]
      %v231 = vld [vmem:[%s207 + $0x14] sm:$0xf]
      %v232 = vld [vmem:[%s207 + $0x18] sm:$0xf]
      %v233 = vld [vmem:[%s207 + $0x1c] sm:$0xf]
      %v234 = vld [vmem:[%s207 + $0x20] sm:$0xf]
      %v235 = vld [vmem:[%s207 + $0x24] sm:$0xf]
      %v236 = vld [vmem:[%s207 + $0x28] sm:$0xf]
      %v237 = vld [vmem:[%s207 + $0x2c] sm:$0xf]
      %v238 = vld [vmem:[%s207 + $0x30] sm:$0xf]
      %v239 = vld [vmem:[%s207 + $0x34] sm:$0xf]
      %v240 = vld [vmem:[%s207 + $0x38] sm:$0xf]
      %v241 = vld [vmem:[%s207 + $0x3c] sm:$0xf]
      %v242 = vld [vmem:[%s207 + $0x40] sm:$0xf]
      %v243 = vld [vmem:[%s207 + $0x44] sm:$0xf]
      %v244 = vld [vmem:[%s207 + $0x48] sm:$0xf]
      %v245 = vld [vmem:[%s207 + $0x4c] sm:$0xf]
      %v246 = vld [vmem:[%s207 + $0x50] sm:$0xf]
      %v247 = vld [vmem:[%s207 + $0x54] sm:$0xf]
      %v248 = vld [vmem:[%s207 + $0x58] sm:$0xf]
      %v249 = vld [vmem:[%s207 + $0x5c] sm:$0xf]
      %v250 = vld [vmem:[%s207 + $0x60] sm:$0xf]
      %v251 = vld [vmem:[%s207 + $0x64] sm:$0xf]
      %v252 = vld [vmem:[%s207 + $0x68] sm:$0xf]
      %v253 = vld [vmem:[%s207 + $0x6c] sm:$0xf]
      %v254 = vld [vmem:[%s207 + $0x70] sm:$0xf]
      %v255 = vld [vmem:[%s207 + $0x74] sm:$0xf]
      %v256 = vld [vmem:[%s207 + $0x78] sm:$0xf]
      %v257 = vld [vmem:[%s207 + $0x7c] sm:$0xf]
      %v258 = vld [vmem:[%s212] sm:$0xf]
      %v259 = vld [vmem:[%s212 + $0x4] sm:$0xf]
      %v260 = vld [vmem:[%s212 + $0x8] sm:$0xf]
      %v261 = vld [vmem:[%s212 + $0xc] sm:$0xf]
      %v262 = vld [vmem:[%s212 + $0x10] sm:$0xf]
      %v263 = vld [vmem:[%s212 + $0x14] sm:$0xf]
      %v264 = vld [vmem:[%s212 + $0x18] sm:$0xf]
      %v265 = vld [vmem:[%s212 + $0x1c] sm:$0xf]
      %v266 = vld [vmem:[%s212 + $0x20] sm:$0xf]
      %v267 = vld [vmem:[%s212 + $0x24] sm:$0xf]
      %v268 = vld [vmem:[%s212 + $0x28] sm:$0xf]
      %v269 = vld [vmem:[%s212 + $0x2c] sm:$0xf]
      %v270 = vld [vmem:[%s212 + $0x30] sm:$0xf]
      %v271 = vld [vmem:[%s212 + $0x34] sm:$0xf]
      %v272 = vld [vmem:[%s212 + $0x38] sm:$0xf]
      %v273 = vld [vmem:[%s212 + $0x3c] sm:$0xf]
      %v274 = vld [vmem:[%s215] sm:$0x1]
      %v276 = vlaneseq
      %v277 = vshrl.u32 %v276, 7
      %v278 = vsub.s32 0, %v277
      %v279 = vrot.slane %v274, %v278
      %v313 = vunpack.c.l.b16 %v226
      %v314 = vunpack.c.l.b16 %v227
      %v315 = vunpack.c.l.b16 %v228
      %v316 = vunpack.c.l.b16 %v229
      %v317 = vunpack.c.l.b16 %v230
      %v318 = vunpack.c.l.b16 %v231
      %v319 = vunpack.c.l.b16 %v232
      %v320 = vunpack.c.l.b16 %v233
      %v321 = vunpack.c.l.b16 %v234
      %v322 = vunpack.c.l.b16 %v235
      %v323 = vunpack.c.l.b16 %v236
      %v324 = vunpack.c.l.b16 %v237
      %v325 = vunpack.c.l.b16 %v238
      %v326 = vunpack.c.l.b16 %v239
      %v327 = vunpack.c.l.b16 %v240
      %v328 = vunpack.c.l.b16 %v241
      %v329 = vunpack.c.l.b16 %v242
      %v330 = vunpack.c.l.b16 %v243
      %v331 = vunpack.c.l.b16 %v244
      %v332 = vunpack.c.l.b16 %v245
      %v333 = vunpack.c.l.b16 %v246
      %v334 = vunpack.c.l.b16 %v247
      %v335 = vunpack.c.l.b16 %v248
      %v336 = vunpack.c.l.b16 %v249
      %v337 = vunpack.c.l.b16 %v250
      %v338 = vunpack.c.l.b16 %v251
      %v339 = vunpack.c.l.b16 %v252
      %v340 = vunpack.c.l.b16 %v253
      %v341 = vunpack.c.l.b16 %v254
      %v342 = vunpack.c.l.b16 %v255
      %v343 = vunpack.c.l.b16 %v256
      %v344 = vunpack.c.l.b16 %v257
      %v345 = vpack.c.b16 %v314, %v313
      %v346 = vpack.c.b16 %v316, %v315
      %v347 = vpack.c.b16 %v318, %v317
      %v348 = vpack.c.b16 %v320, %v319
      %v349 = vpack.c.b16 %v322, %v321
      %v350 = vpack.c.b16 %v324, %v323
      %v351 = vpack.c.b16 %v326, %v325
      %v352 = vpack.c.b16 %v328, %v327
      %v353 = vpack.c.b16 %v330, %v329
      %v354 = vpack.c.b16 %v332, %v331
      %v355 = vpack.c.b16 %v334, %v333
      %v356 = vpack.c.b16 %v336, %v335
      %v357 = vpack.c.b16 %v338, %v337
      %v358 = vpack.c.b16 %v340, %v339
      %v359 = vpack.c.b16 %v342, %v341
      %v360 = vpack.c.b16 %v344, %v343
      %v393 = vunpack.c.l.b16 %v258
      %v394 = vunpack.c.l.b16 %v259
      %v395 = vunpack.c.l.b16 %v260
      %v396 = vunpack.c.l.b16 %v261
      %v397 = vunpack.c.l.b16 %v262
      %v398 = vunpack.c.l.b16 %v263
      %v399 = vunpack.c.l.b16 %v264
      %v400 = vunpack.c.l.b16 %v265
      %v401 = vunpack.c.l.b16 %v266
      %v402 = vunpack.c.l.b16 %v267
      %v403 = vunpack.c.l.b16 %v268
      %v404 = vunpack.c.l.b16 %v269
      %v405 = vunpack.c.l.b16 %v270
      %v406 = vunpack.c.l.b16 %v271
      %v407 = vunpack.c.l.b16 %v272
      %v408 = vunpack.c.l.b16 %v273
      %v409 = vpack.c.b16 %v394, %v393
      %v410 = vpack.c.b16 %v396, %v395
      %v411 = vpack.c.b16 %v398, %v397
      %v412 = vpack.c.b16 %v400, %v399
      %v413 = vpack.c.b16 %v402, %v401
      %v414 = vpack.c.b16 %v404, %v403
      %v415 = vpack.c.b16 %v406, %v405
      %v416 = vpack.c.b16 %v408, %v407
      %425 = vmatprep.subr.bf16.mxu0 0
      %426 = vmatpush1.bf16.msra.mxu0 %v416
      %427 = vmatprep.subr.bf16.mxu0 0
      %428 = vmatpush1.bf16.msra.mxu0 %v415
      %429 = vmatprep.subr.bf16.mxu0 0
      %430 = vmatpush1.bf16.msra.mxu0 %v414
      %431 = vmatprep.subr.bf16.mxu0 0
      %432 = vmatpush1.bf16.msra.mxu0 %v413
      %433 = vmatprep.subr.bf16.mxu0 0
      %434 = vmatpush1.bf16.msra.mxu0 %v412
      %435 = vmatprep.subr.bf16.mxu0 0
      %436 = vmatpush1.bf16.msra.mxu0 %v411
      %437 = vmatprep.subr.bf16.mxu0 0
      %438 = vmatpush1.bf16.msra.mxu0 %v410
      %439 = vmatprep.subr.bf16.mxu0 0
      %440 = vmatpush1.bf16.msra.mxu0 %v409
      %441 = vmatprep.subr.bf16.mxu0 0
      %442 = vmatpush2.bf16.msra.mxu0 0
      %443 = vmatprep.subr.bf16.mxu0 0
      %444 = vmatpush2.bf16.msra.mxu0 0
      %445 = vmatprep.subr.bf16.mxu0 0
      %446 = vmatpush2.bf16.msra.mxu0 0
      %447 = vmatprep.subr.bf16.mxu0 0
      %448 = vmatpush2.bf16.msra.mxu0 0
      %449 = vmatprep.subr.bf16.mxu0 0
      %450 = vmatpush2.bf16.msra.mxu0 0
      %451 = vmatprep.subr.bf16.mxu0 0
      %452 = vmatpush2.bf16.msra.mxu0 0
      %453 = vmatprep.subr.bf16.mxu0 0
      %454 = vmatpush2.bf16.msra.mxu0 0
      %455 = vmatprep.subr.bf16.mxu0 0
      %456 = vmatpush2.bf16.msra.mxu0 0
      %457 = vmatprep.mubr.bf16.mxu0 0
      %458 = vmatmul.mubr.bf16.gmra.mxu0 %v345
      %v459 = vpop.f32.mrf.mxu0
      %v460 = vadd.f32 %v279, %v459
      %v461 = vpop.f32.mrf.mxu0
      %v462 = vpop.f32.mrf.mxu0
      %v463 = vadd.f32 %v279, %v462
      %v464 = vpop.f32.mrf.mxu0
      %465 = vmatprep.mubr.bf16.mxu0 0
      %466 = vmatmul.mubr.bf16.gmra.mxu0 %v346
      %v467 = vpop.f32.mrf.mxu0
      %v468 = vadd.f32 %v279, %v467
      %v469 = vpop.f32.mrf.mxu0
      %v470 = vpop.f32.mrf.mxu0
      %v471 = vadd.f32 %v279, %v470
      %v472 = vpop.f32.mrf.mxu0
      %473 = vmatprep.mubr.bf16.mxu0 0
      %474 = vmatmul.mubr.bf16.gmra.mxu0 %v347
      %v475 = vpop.f32.mrf.mxu0
      %v476 = vadd.f32 %v279, %v475
      %v477 = vpop.f32.mrf.mxu0
      %v478 = vpop.f32.mrf.mxu0
      %v479 = vadd.f32 %v279, %v478
      %v480 = vpop.f32.mrf.mxu0
      %481 = vmatprep.mubr.bf16.mxu0 0
      %482 = vmatmul.mubr.bf16.gmra.mxu0 %v348
      %v483 = vpop.f32.mrf.mxu0
      %v484 = vadd.f32 %v279, %v483
      %v485 = vpop.f32.mrf.mxu0
      %v486 = vpop.f32.mrf.mxu0
      %v487 = vadd.f32 %v279, %v486
      %v488 = vpop.f32.mrf.mxu0
      %489 = vmatprep.mubr.bf16.mxu0 0
      %490 = vmatmul.mubr.bf16.gmra.mxu0 %v349
      %v491 = vpop.f32.mrf.mxu0
      %v492 = vadd.f32 %v279, %v491
      %v493 = vpop.f32.mrf.mxu0
      %v494 = vpop.f32.mrf.mxu0
      %v495 = vadd.f32 %v279, %v494
      %v496 = vpop.f32.mrf.mxu0
      %497 = vmatprep.mubr.bf16.mxu0 0
      %498 = vmatmul.mubr.bf16.gmra.mxu0 %v350
      %v499 = vpop.f32.mrf.mxu0
      %v500 = vadd.f32 %v279, %v499
      %v501 = vpop.f32.mrf.mxu0
      %v502 = vpop.f32.mrf.mxu0
      %v503 = vadd.f32 %v279, %v502
      %v504 = vpop.f32.mrf.mxu0
      %505 = vmatprep.mubr.bf16.mxu0 0
      %506 = vmatmul.mubr.bf16.gmra.mxu0 %v351
      %v507 = vpop.f32.mrf.mxu0
      %v508 = vadd.f32 %v279, %v507
      %v509 = vpop.f32.mrf.mxu0
      %v510 = vpop.f32.mrf.mxu0
      %v511 = vadd.f32 %v279, %v510
      %v512 = vpop.f32.mrf.mxu0
      %513 = vmatprep.mubr.bf16.mxu0 0
      %514 = vmatmul.mubr.bf16.gmra.mxu0 %v352
      %v515 = vpop.f32.mrf.mxu0
      %v516 = vadd.f32 %v279, %v515
      %v517 = vpop.f32.mrf.mxu0
      %v518 = vpop.f32.mrf.mxu0
      %v519 = vadd.f32 %v279, %v518
      %v520 = vpop.f32.mrf.mxu0
      %521 = vmatprep.mubr.bf16.mxu0 0
      %522 = vmatmul.mubr.bf16.gmra.mxu0 %v353
      %v523 = vpop.f32.mrf.mxu0
      %v524 = vadd.f32 %v279, %v523
      %v525 = vpop.f32.mrf.mxu0
      %v526 = vpop.f32.mrf.mxu0
      %v527 = vadd.f32 %v279, %v526
      %v528 = vpop.f32.mrf.mxu0
      %529 = vmatprep.mubr.bf16.mxu0 0
      %530 = vmatmul.mubr.bf16.gmra.mxu0 %v354
      %v531 = vpop.f32.mrf.mxu0
      %v532 = vadd.f32 %v279, %v531
      %v533 = vpop.f32.mrf.mxu0
      %v534 = vpop.f32.mrf.mxu0
      %v535 = vadd.f32 %v279, %v534
      %v536 = vpop.f32.mrf.mxu0
      %537 = vmatprep.mubr.bf16.mxu0 0
      %538 = vmatmul.mubr.bf16.gmra.mxu0 %v355
      %v539 = vpop.f32.mrf.mxu0
      %v540 = vadd.f32 %v279, %v539
      %v541 = vpop.f32.mrf.mxu0
      %v542 = vpop.f32.mrf.mxu0
      %v543 = vadd.f32 %v279, %v542
      %v544 = vpop.f32.mrf.mxu0
      %545 = vmatprep.mubr.bf16.mxu0 0
      %546 = vmatmul.mubr.bf16.gmra.mxu0 %v356
      %v547 = vpop.f32.mrf.mxu0
      %v548 = vadd.f32 %v279, %v547
      %v549 = vpop.f32.mrf.mxu0
      %v550 = vpop.f32.mrf.mxu0
      %v551 = vadd.f32 %v279, %v550
      %v552 = vpop.f32.mrf.mxu0
      %553 = vmatprep.mubr.bf16.mxu0 0
      %554 = vmatmul.mubr.bf16.gmra.mxu0 %v357
      %v555 = vpop.f32.mrf.mxu0
      %v556 = vadd.f32 %v279, %v555
      %v557 = vpop.f32.mrf.mxu0
      %v558 = vpop.f32.mrf.mxu0
      %v559 = vadd.f32 %v279, %v558
      %v560 = vpop.f32.mrf.mxu0
      %561 = vmatprep.mubr.bf16.mxu0 0
      %562 = vmatmul.mubr.bf16.gmra.mxu0 %v358
      %v563 = vpop.f32.mrf.mxu0
      %v564 = vadd.f32 %v279, %v563
      %v565 = vpop.f32.mrf.mxu0
      %v566 = vpop.f32.mrf.mxu0
      %v567 = vadd.f32 %v279, %v566
      %v568 = vpop.f32.mrf.mxu0
      %569 = vmatprep.mubr.bf16.mxu0 0
      %570 = vmatmul.mubr.bf16.gmra.mxu0 %v359
      %v571 = vpop.f32.mrf.mxu0
      %v572 = vadd.f32 %v279, %v571
      %v573 = vpop.f32.mrf.mxu0
      %v574 = vpop.f32.mrf.mxu0
      %v575 = vadd.f32 %v279, %v574
      %v576 = vpop.f32.mrf.mxu0
      %577 = vmatprep.mubr.bf16.mxu0 0
      %578 = vmatmul.mubr.bf16.gmra.mxu0 %v360
      %v579 = vpop.f32.mrf.mxu0
      %v580 = vadd.f32 %v279, %v579
      %v581 = vpop.f32.mrf.mxu0
      %v582 = vpop.f32.mrf.mxu0
      %v583 = vadd.f32 %v279, %v582
      %v584 = vpop.f32.mrf.mxu0
      %585 = vdwg.mxu0
      %v586 = vmax.f32 %v460, 0.0
      %v587 = vmax.f32 %v463, 0.0
      %v588 = vmax.f32 %v468, 0.0
      %v589 = vmax.f32 %v471, 0.0
      %v590 = vmax.f32 %v476, 0.0
      %v591 = vmax.f32 %v479, 0.0
      %v592 = vmax.f32 %v484, 0.0
      %v593 = vmax.f32 %v487, 0.0
      %v594 = vmax.f32 %v492, 0.0
      %v595 = vmax.f32 %v495, 0.0
      %v596 = vmax.f32 %v500, 0.0
      %v597 = vmax.f32 %v503, 0.0
      %v598 = vmax.f32 %v508, 0.0
      %v599 = vmax.f32 %v511, 0.0
      %v600 = vmax.f32 %v516, 0.0
      %v601 = vmax.f32 %v519, 0.0
      %v602 = vmax.f32 %v524, 0.0
      %v603 = vmax.f32 %v527, 0.0
      %v604 = vmax.f32 %v532, 0.0
      %v605 = vmax.f32 %v535, 0.0
      %v606 = vmax.f32 %v540, 0.0
      %v607 = vmax.f32 %v543, 0.0
      %v608 = vmax.f32 %v548, 0.0
      %v609 = vmax.f32 %v551, 0.0
      %v610 = vmax.f32 %v556, 0.0
      %v611 = vmax.f32 %v559, 0.0
      %v612 = vmax.f32 %v564, 0.0
      %v613 = vmax.f32 %v567, 0.0
      %v614 = vmax.f32 %v572, 0.0
      %v615 = vmax.f32 %v575, 0.0
      %v616 = vmax.f32 %v580, 0.0
      %v617 = vmax.f32 %v583, 0.0
      %v618 = vpack.c.bf16 %v587, %v586
      %v619 = vpack.c.bf16 %v589, %v588
      %v620 = vpack.c.bf16 %v591, %v590
      %v621 = vpack.c.bf16 %v593, %v592
      %v622 = vpack.c.bf16 %v595, %v594
      %v623 = vpack.c.bf16 %v597, %v596
      %v624 = vpack.c.bf16 %v599, %v598
      %v625 = vpack.c.bf16 %v601, %v600
      %v626 = vpack.c.bf16 %v603, %v602
      %v627 = vpack.c.bf16 %v605, %v604
      %v628 = vpack.c.bf16 %v607, %v606
      %v629 = vpack.c.bf16 %v609, %v608
      %v630 = vpack.c.bf16 %v611, %v610
      %v631 = vpack.c.bf16 %v613, %v612
      %v632 = vpack.c.bf16 %v615, %v614
      %v633 = vpack.c.bf16 %v617, %v616
      %v650 = vunpack.c.l.b16 %v618
      %v651 = vunpack.c.h.b16 %v618
      %v652 = vunpack.c.l.b16 %v619
      %v653 = vunpack.c.h.b16 %v619
      %v654 = vunpack.c.l.b16 %v620
      %v655 = vunpack.c.h.b16 %v620
      %v656 = vunpack.c.l.b16 %v621
      %v657 = vunpack.c.h.b16 %v621
      %v658 = vunpack.c.l.b16 %v622
      %v659 = vunpack.c.h.b16 %v622
      %v660 = vunpack.c.l.b16 %v623
      %v661 = vunpack.c.h.b16 %v623
      %v662 = vunpack.c.l.b16 %v624
      %v663 = vunpack.c.h.b16 %v624
      %v664 = vunpack.c.l.b16 %v625
      %v665 = vunpack.c.h.b16 %v625
      %v666 = vunpack.c.l.b16 %v626
      %v667 = vunpack.c.h.b16 %v626
      %v668 = vunpack.c.l.b16 %v627
      %v669 = vunpack.c.h.b16 %v627
      %v670 = vunpack.c.l.b16 %v628
      %v671 = vunpack.c.h.b16 %v628
      %v672 = vunpack.c.l.b16 %v629
      %v673 = vunpack.c.h.b16 %v629
      %v674 = vunpack.c.l.b16 %v630
      %v675 = vunpack.c.h.b16 %v630
      %v676 = vunpack.c.l.b16 %v631
      %v677 = vunpack.c.h.b16 %v631
      %v678 = vunpack.c.l.b16 %v632
      %v679 = vunpack.c.h.b16 %v632
      %v680 = vunpack.c.l.b16 %v633
      %v681 = vunpack.c.h.b16 %v633
      %v682 = vpack.c.b16 %v650, %v650
      %v683 = vpack.c.b16 %v651, %v651
      %v684 = vpack.c.b16 %v652, %v652
      %v685 = vpack.c.b16 %v653, %v653
      %v686 = vpack.c.b16 %v654, %v654
      %v687 = vpack.c.b16 %v655, %v655
      %v688 = vpack.c.b16 %v656, %v656
      %v689 = vpack.c.b16 %v657, %v657
      %v690 = vpack.c.b16 %v658, %v658
      %v691 = vpack.c.b16 %v659, %v659
      %v692 = vpack.c.b16 %v660, %v660
      %v693 = vpack.c.b16 %v661, %v661
      %v694 = vpack.c.b16 %v662, %v662
      %v695 = vpack.c.b16 %v663, %v663
      %v696 = vpack.c.b16 %v664, %v664
      %v697 = vpack.c.b16 %v665, %v665
      %v698 = vpack.c.b16 %v666, %v666
      %v699 = vpack.c.b16 %v667, %v667
      %v700 = vpack.c.b16 %v668, %v668
      %v701 = vpack.c.b16 %v669, %v669
      %v702 = vpack.c.b16 %v670, %v670
      %v703 = vpack.c.b16 %v671, %v671
      %v704 = vpack.c.b16 %v672, %v672
      %v705 = vpack.c.b16 %v673, %v673
      %v706 = vpack.c.b16 %v674, %v674
      %v707 = vpack.c.b16 %v675, %v675
      %v708 = vpack.c.b16 %v676, %v676
      %v709 = vpack.c.b16 %v677, %v677
      %v710 = vpack.c.b16 %v678, %v678
      %v711 = vpack.c.b16 %v679, %v679
      %v712 = vpack.c.b16 %v680, %v680
      %v713 = vpack.c.b16 %v681, %v681
      %746 = vst [vmem:[%s223] sm:$0xf] %v682
      %747 = vst [vmem:[%s223 + $0x4] sm:$0xf] %v683
      %748 = vst [vmem:[%s223 + $0x8] sm:$0xf] %v684
      %749 = vst [vmem:[%s223 + $0xc] sm:$0xf] %v685
      %750 = vst [vmem:[%s223 + $0x10] sm:$0xf] %v686
      %751 = vst [vmem:[%s223 + $0x14] sm:$0xf] %v687
      %752 = vst [vmem:[%s223 + $0x18] sm:$0xf] %v688
      %753 = vst [vmem:[%s223 + $0x1c] sm:$0xf] %v689
      %754 = vst [vmem:[%s223 + $0x20] sm:$0xf] %v690
      %755 = vst [vmem:[%s223 + $0x24] sm:$0xf] %v691
      %756 = vst [vmem:[%s223 + $0x28] sm:$0xf] %v692
      %757 = vst [vmem:[%s223 + $0x2c] sm:$0xf] %v693
      %758 = vst [vmem:[%s223 + $0x30] sm:$0xf] %v694
      %759 = vst [vmem:[%s223 + $0x34] sm:$0xf] %v695
      %760 = vst [vmem:[%s223 + $0x38] sm:$0xf] %v696
      %761 = vst [vmem:[%s223 + $0x3c] sm:$0xf] %v697
      %762 = vst [vmem:[%s223 + $0x40] sm:$0xf] %v698
      %763 = vst [vmem:[%s223 + $0x44] sm:$0xf] %v699
      %764 = vst [vmem:[%s223 + $0x48] sm:$0xf] %v700
      %765 = vst [vmem:[%s223 + $0x4c] sm:$0xf] %v701
      %766 = vst [vmem:[%s223 + $0x50] sm:$0xf] %v702
      %767 = vst [vmem:[%s223 + $0x54] sm:$0xf] %v703
      %768 = vst [vmem:[%s223 + $0x58] sm:$0xf] %v704
      %769 = vst [vmem:[%s223 + $0x5c] sm:$0xf] %v705
      %770 = vst [vmem:[%s223 + $0x60] sm:$0xf] %v706
      %771 = vst [vmem:[%s223 + $0x64] sm:$0xf] %v707
      %772 = vst [vmem:[%s223 + $0x68] sm:$0xf] %v708
      %773 = vst [vmem:[%s223 + $0x6c] sm:$0xf] %v709
      %774 = vst [vmem:[%s223 + $0x70] sm:$0xf] %v710
      %775 = vst [vmem:[%s223 + $0x74] sm:$0xf] %v711
      %776 = vst [vmem:[%s223 + $0x78] sm:$0xf] %v712
      %777 = vst [vmem:[%s223 + $0x7c] sm:$0xf] %v713
      %s778 = smul.u32 32, %s18
      %p779 = scmp.lt.s32.totalorder %s778, 255
      %s780 = scalar_select %p779, %s778, 255
      %p781 = scmp.lt.s32.totalorder %s19, 0
      %s782 = scalar_select %p781, %s19, 0
      %s783 = sadd.s32 %s782, %s780
      %s784 = smul.addr %s783, 4
      %s785 = scalar_lea.vmem %s3, %s784
      // Predicated region
      $region33: #{hybrid_qnn_forward.6} parent=31 // pred_check
        %p786 = pneg %p124
      $region34: #{hybrid_qnn_forward.6} parent=31 // pred_check_branch
        %788 = sbr.rel (%p786) target = $region36
      $region35: #{hybrid_qnn_forward.6} parent=31 // pred_region
        %s789 = smul.u32 32, %s18
      $region36: #{hybrid_qnn_forward.6} parent=31 // pred_fallthru
        _
    $region32: #{hybrid_qnn_forward.6} parent=5 // pred_fallthru
      _
    %p790 = scmp.le.s32.totalorder 2, %s9
    // Predicated region
    $region37: #{hybrid_qnn_forward.6} parent=5 // pred_check
      %p791 = pneg %p790
    $region38: #{hybrid_qnn_forward.6} parent=5 // pred_check_branch
      %793 = sbr.rel (%p791) target = $region40
    $region39: #{hybrid_qnn_forward.6} parent=5 // pred_region
      %s794 = ssub.s32 %s9, 2
      // Predicated region
      $region41: #{hybrid_qnn_forward.6} parent=39 // pred_check
        %p795 = pneg %p130
      $region42: #{hybrid_qnn_forward.6} parent=39 // pred_check_branch
        %797 = sbr.rel (%p795) target = $region44
      $region43: #{hybrid_qnn_forward.6} parent=39 // pred_region
        %s798 = smul.u32 32, %s20
        %p799 = scmp.lt.s32.totalorder %s798, 255
        %s800 = scalar_select %p799, %s798, 255
        %p801 = scmp.lt.s32.totalorder %s21, 0
        %s802 = scalar_select %p801, %s21, 0
        %s803 = sadd.s32 %s802, %s800
        %s804 = smul.addr %s803, 4
        %s805 = scalar_lea.vmem %s3, %s804
      $region44: #{hybrid_qnn_forward.6} parent=39 // pred_fallthru
        _
    $region40: #{hybrid_qnn_forward.6} parent=5 // pred_fallthru
      _
  $region6: #{hybrid_qnn_forward.6} parent=0 // loop_footer
    %s13 = sadd.s32 1, %s9
  $region7: #{hybrid_qnn_forward.6} parent=0 // loop_footer_branch
    %8 = sbr.rel target = $region3
  $region8: #{hybrid_qnn_forward.6} parent=0 // loop_exit
    _

// kernel: hybrid_qnn_forward.7
$region0: #{hybrid_qnn_forward.7}
  #allocation0 [shape = 'u32[]', space=smem, size = 0x4, offset = 0x4, fixed_abs, tag = 'smem constant byte address 0x4 - core index']
  #allocation1 [shape = 'u32[144,128]{1,0:T(1,128)}', space=vmem, size = 0x12000, scoped, tag = 'internal scratch']
  %s0 = inlined_call_operand.vmem [shape: bf16[2,15,2,15,256], index: 0, kind: input, shape index: {}]
  %s1 = inlined_call_operand.vmem [shape: bf16[2,15,15,128], index: 1, kind: output, shape index: {}]
  %s2 = sld [smem:[#allocation0]]
  $region37: #{hybrid_qnn_forward.7} parent=0
    _
  %s4 = ssub.s32 1, %s2
  %s5 = scalar_select 0, %s4, %s2
  loop: start=0, step=1, limit=4
  $region2: #{hybrid_qnn_forward.7} parent=0 // loop_pre_header
    _
  $region3: #{hybrid_qnn_forward.7} parent=0 // loop_header
    %s7 = sphi 0, %s11
    %p8 = scmp.ge.s32.totalorder %s7, 4
    %s17 = sphi 0, %s19
    %s20 = sphi 0, %s17
    %s21 = sphi 0, %s20
    %s37 = sphi 0, %s21
    %s43 = sphi 0, %s45
    %s46 = sphi 0, %s43
    %s47 = sphi 0, %s46
    %s63 = sphi 0, %s47
  $region4: #{hybrid_qnn_forward.7} parent=0 // loop_header_branch
    %10 = sbr.rel (%p8) target = $region8
  $region5: #{hybrid_qnn_forward.7} parent=0 // loop_body
    %s12 = ssub.s32 %s7, 1
    %s13 = ssub.s32 %s7, 2
    %s14 = sadd.s32 %s7, 1
    %s15 = ssub.s32 %s7, %s14
    %p16 = scmp.eq.s32.totalorder %s15, 0
    %s18 = sadd.s32 %s17, 1
    %s19 = scalar_select %p16, %s17, %s18
    %p22 = pneg %p16
    %p23 = scmp.eq.s32.totalorder %s7, 1
    %p24 = por %p22, %p23
    %p25 = scmp.ne.s32.totalorder %s17, %s20
    %p26 = scmp.eq.s32.totalorder %s7, 0
    %p27 = por %p25, %p26
    %p28 = scmp.ne.s32.totalorder %s17, %s20
    %p29 = scmp.eq.s32.totalorder %s12, 1
    %p30 = por %p28, %p29
    %p31 = scmp.ne.s32.totalorder %s20, %s21
    %p32 = scmp.eq.s32.totalorder %s12, 0
    %p33 = por %p31, %p32
    %p34 = scmp.ne.s32.totalorder %s20, %s21
    %p35 = scmp.eq.s32.totalorder %s13, 1
    %p36 = por %p34, %p35
    %p38 = scmp.ne.s32.totalorder %s21, %s37
    %p39 = scmp.eq.s32.totalorder %s13, 0
    %p40 = por %p38, %p39
    %s41 = ssub.s32 %s7, %s14
    %p42 = scmp.eq.s32.totalorder %s41, 0
    %s44 = sadd.s32 %s43, 1
    %s45 = scalar_select %p42, %s43, %s44
    %p48 = pneg %p42
    %p49 = scmp.eq.s32.totalorder %s7, 1
    %p50 = por %p48, %p49
    %p51 = scmp.ne.s32.totalorder %s43, %s46
    %p52 = scmp.eq.s32.totalorder %s7, 0
    %p53 = por %p51, %p52
    %p54 = scmp.ne.s32.totalorder %s43, %s46
    %p55 = scmp.eq.s32.totalorder %s12, 1
    %p56 = por %p54, %p55
    %p57 = scmp.ne.s32.totalorder %s46, %s47
    %p58 = scmp.eq.s32.totalorder %s12, 0
    %p59 = por %p57, %p58
    %p60 = scmp.ne.s32.totalorder %s46, %s47
    %p61 = scmp.eq.s32.totalorder %s13, 1
    %p62 = por %p60, %p61
    %p64 = scmp.ne.s32.totalorder %s47, %s63
    %p65 = scmp.eq.s32.totalorder %s13, 0
    %p66 = por %p64, %p65
    %p67 = scmp.le.s32.totalorder 1, %s7
    %p68 = scmp.lt.s32.totalorder %s7, 3
    %p69 = pnand %p67, %p68
    %p70 = pneg %p69
    // Predicated region
    $region9: #{hybrid_qnn_forward.7} parent=5 // pred_check
      _
    $region10: #{hybrid_qnn_forward.7} parent=5 // pred_check_branch
      %72 = sbr.rel (%p69) target = $region12
    $region11: #{hybrid_qnn_forward.7} parent=5 // pred_region
      %s73 = ssub.s32 %s7, 1
    $region12: #{hybrid_qnn_forward.7} parent=5 // pred_fallthru
      _
    %p74 = scmp.lt.s32.totalorder %s7, 2
    // Predicated region
    $region13: #{hybrid_qnn_forward.7} parent=5 // pred_check
      %p75 = pneg %p74
    $region14: #{hybrid_qnn_forward.7} parent=5 // pred_check_branch
      %77 = sbr.rel (%p75) target = $region16
    $region15: #{hybrid_qnn_forward.7} parent=5 // pred_region
      // Predicated region
      $region17: #{hybrid_qnn_forward.7} parent=15 // pred_check
        %p78 = pneg %p27
      $region18: #{hybrid_qnn_forward.7} parent=15 // pred_check_branch
        %80 = sbr.rel (%p78) target = $region20
      $region19: #{hybrid_qnn_forward.7} parent=15 // pred_region
        %p81 = scmp.lt.s32.totalorder %s7, 1
        %s82 = scalar_select %p81, %s7, 1
        %s83 = smul.addr %s82, 120
        %s84 = smul.addr %s83, 4
        %s85 = scalar_lea.vmem %s0, %s84
      $region20: #{hybrid_qnn_forward.7} parent=15 // pred_fallthru
        _
    $region16: #{hybrid_qnn_forward.7} parent=5 // pred_fallthru
      _
    %p86 = scmp.le.s32.totalorder 1, %s7
    %p87 = scmp.lt.s32.totalorder %s7, 3
    %p88 = pnand %p86, %p87
    %p89 = pneg %p88
    // Predicated region
    $region21: #{hybrid_qnn_forward.7} parent=5 // pred_check
      _
    $region22: #{hybrid_qnn_forward.7} parent=5 // pred_check_branch
      %91 = sbr.rel (%p88) target = $region24
    $region23: #{hybrid_qnn_forward.7} parent=5 // pred_region
      %s92 = ssub.s32 %s7, 1
      %p93 = scmp.lt.s32.totalorder %s12, 1
      %s94 = scalar_select %p93, %s12, 1
      %s95 = smul.addr %s94, 120
      %s96 = smul.addr %s95, 4
      %s97 = scalar_lea.vmem %s0, %s96
      %p98 = pneg %p33
      %p99 = pneg %p30
      %p100 = pneg %p59
      %p101 = pneg %p56
      %p102 = scmp.lt.s32.totalorder %s12, 1
      %s103 = scalar_select %p102, %s12, 1
      %s104 = smul.addr %s103, 30
      %s105 = smul.addr %s104, 4
      %s106 = scalar_lea.vmem %s1, %s105
      %p107 = scmp.lt.s32.totalorder %s12, 1
      %s108 = scalar_select %p107, %s12, 1
      %s109 = smul.addr %s108, 120
      %s110 = smul.addr %s109, 4
      %s111 = scalar_lea.vmem %s0, %s110
      %p112 = scmp.lt.s32.totalorder %s12, 1
      %s113 = scalar_select %p112, %s12, 1
      %s114 = smul.addr %s113, 30
      %s115 = smul.addr %s114, 4
      %s116 = scalar_lea.vmem %s1, %s115
      %v117 = vld [vmem:[%s111] sm:$0xf]
      %v118 = vld [vmem:[%s111 + $0x8] sm:$0xf]
      %v119 = vld [vmem:[%s111 + $0x20] sm:$0xf]
      %v120 = vld [vmem:[%s111 + $0x28] sm:$0xf]
      %v121 = vld [vmem:[%s111 + $0x40] sm:$0xf]
      %v122 = vld [vmem:[%s111 + $0x48] sm:$0xf]
      %v123 = vld [vmem:[%s111 + $0x60] sm:$0xf]
      %v124 = vld [vmem:[%s111 + $0x68] sm:$0xf]
      %v125 = vld [vmem:[%s111 + $0x80] sm:$0xf]
      %v126 = vld [vmem:[%s111 + $0x88] sm:$0xf]
      %v127 = vld [vmem:[%s111 + $0xa0] sm:$0xf]
      %v128 = vld [vmem:[%s111 + $0xa8] sm:$0xf]
      %v129 = vld [vmem:[%s111 + $0xc0] sm:$0xf]
      %v130 = vld [vmem:[%s111 + $0xc8] sm:$0xf]
      %v131 = vld [vmem:[%s111 + $0xe0] sm:$0xf]
      %v132 = vld [vmem:[%s111 + $0xe8] sm:$0xf]
      %v133 = vld [vmem:[%s111 + $0x100] sm:$0xf]
      %v134 = vld [vmem:[%s111 + $0x108] sm:$0xf]
      %v135 = vld [vmem:[%s111 + $0x120] sm:$0xf]
      %v136 = vld [vmem:[%s111 + $0x128] sm:$0xf]
      %v137 = vld [vmem:[%s111 + $0x140] sm:$0xf]
      %v138 = vld [vmem:[%s111 + $0x148] sm:$0xf]
      %v139 = vld [vmem:[%s111 + $0x160] sm:$0xf]
      %v140 = vld [vmem:[%s111 + $0x168] sm:$0xf]
      %v141 = vld [vmem:[%s111 + $0x180] sm:$0xf]
      %v142 = vld [vmem:[%s111 + $0x188] sm:$0xf]
      %v143 = vld [vmem:[%s111 + $0x1a0] sm:$0xf]
      %v144 = vld [vmem:[%s111 + $0x1a8] sm:$0xf]
      %v145 = vld [vmem:[%s111 + $0x1c0] sm:$0xf]
      %v146 = vld [vmem:[%s111 + $0x1c8] sm:$0xf]
      %v147 = vld [vmem:[%s111 + $0x4] sm:$0xf]
      %v148 = vld [vmem:[%s111 + $0xc] sm:$0xf]
      %v149 = vld [vmem:[%s111 + $0x24] sm:$0xf]
      %v150 = vld [vmem:[%s111 + $0x2c] sm:$0xf]
      %v151 = vld [vmem:[%s111 + $0x44] sm:$0xf]
      %v152 = vld [vmem:[%s111 + $0x4c] sm:$0xf]
      %v153 = vld [vmem:[%s111 + $0x64] sm:$0xf]
      %v154 = vld [vmem:[%s111 + $0x6c] sm:$0xf]
      %v155 = vld [vmem:[%s111 + $0x84] sm:$0xf]
      %v156 = vld [vmem:[%s111 + $0x8c] sm:$0xf]
      %v157 = vld [vmem:[%s111 + $0xa4] sm:$0xf]
      %v158 = vld [vmem:[%s111 + $0xac] sm:$0xf]
      %v159 = vld [vmem:[%s111 + $0xc4] sm:$0xf]
      %v160 = vld [vmem:[%s111 + $0xcc] sm:$0xf]
      %v161 = vld [vmem:[%s111 + $0xe4] sm:$0xf]
      %v162 = vld [vmem:[%s111 + $0xec] sm:$0xf]
      %v163 = vld [vmem:[%s111 + $0x104] sm:$0xf]
      %v164 = vld [vmem:[%s111 + $0x10c] sm:$0xf]
      %v165 = vld [vmem:[%s111 + $0x124] sm:$0xf]
      %v166 = vld [vmem:[%s111 + $0x12c] sm:$0xf]
      %v167 = vld [vmem:[%s111 + $0x144] sm:$0xf]
      %v168 = vld [vmem:[%s111 + $0x14c] sm:$0xf]
      %v169 = vld [vmem:[%s111 + $0x164] sm:$0xf]
      %v170 = vld [vmem:[%s111 + $0x16c] sm:$0xf]
      %v171 = vld [vmem:[%s111 + $0x184] sm:$0xf]
      %v172 = vld [vmem:[%s111 + $0x18c] sm:$0xf]
      %v173 = vld [vmem:[%s111 + $0x1a4] sm:$0xf]
      %v174 = vld [vmem:[%s111 + $0x1ac] sm:$0xf]
      %v175 = vld [vmem:[%s111 + $0x1c4] sm:$0xf]
      %v176 = vld [vmem:[%s111 + $0x1cc] sm:$0xf]
      %s177 = scalar_lea.vmem %s111, 16
      %v178 = vld [vmem:[%s177] sm:$0xf]
      %v179 = vld [vmem:[%s177 + $0x8] sm:$0xf]
      %v180 = vld [vmem:[%s177 + $0x20] sm:$0xf]
      %v181 = vld [vmem:[%s177 + $0x28] sm:$0xf]
      %v182 = vld [vmem:[%s177 + $0x40] sm:$0xf]
      %v183 = vld [vmem:[%s177 + $0x48] sm:$0xf]
      %v184 = vld [vmem:[%s177 + $0x60] sm:$0xf]
      %v185 = vld [vmem:[%s177 + $0x68] sm:$0xf]
      %v186 = vld [vmem:[%s177 + $0x80] sm:$0xf]
      %v187 = vld [vmem:[%s177 + $0x88] sm:$0xf]
      %v188 = vld [vmem:[%s177 + $0xa0] sm:$0xf]
      %v189 = vld [vmem:[%s177 + $0xa8] sm:$0xf]
      %v190 = vld [vmem:[%s177 + $0xc0] sm:$0xf]
      %v191 = vld [vmem:[%s177 + $0xc8] sm:$0xf]
      %v192 = vld [vmem:[%s177 + $0xe0] sm:$0xf]
      %v193 = vld [vmem:[%s177 + $0xe8] sm:$0xf]
      %v194 = vld [vmem:[%s177 + $0x100] sm:$0xf]
      %v195 = vld [vmem:[%s177 + $0x108] sm:$0xf]
      %v196 = vld [vmem:[%s177 + $0x120] sm:$0xf]
      %v197 = vld [vmem:[%s177 + $0x128] sm:$0xf]
      %v198 = vld [vmem:[%s177 + $0x140] sm:$0xf]
      %v199 = vld [vmem:[%s177 + $0x148] sm:$0xf]
      %v200 = vld [vmem:[%s177 + $0x160] sm:$0xf]
      %v201 = vld [vmem:[%s177 + $0x168] sm:$0xf]
      %v202 = vld [vmem:[%s177 + $0x180] sm:$0xf]
      %v203 = vld [vmem:[%s177 + $0x188] sm:$0xf]
      %v204 = vld [vmem:[%s177 + $0x1a0] sm:$0xf]
      %v205 = vld [vmem:[%s177 + $0x1a8] sm:$0xf]
      %v206 = vld [vmem:[%s177 + $0x1c0] sm:$0xf]
      %v207 = vld [vmem:[%s177 + $0x1c8] sm:$0xf]
      %v208 = vld [vmem:[%s177 + $0x4] sm:$0xf]
      %v209 = vld [vmem:[%s177 + $0xc] sm:$0xf]
      %v210 = vld [vmem:[%s177 + $0x24] sm:$0xf]
      %v211 = vld [vmem:[%s177 + $0x2c] sm:$0xf]
      %v212 = vld [vmem:[%s177 + $0x44] sm:$0xf]
      %v213 = vld [vmem:[%s177 + $0x4c] sm:$0xf]
      %v214 = vld [vmem:[%s177 + $0x64] sm:$0xf]
      %v215 = vld [vmem:[%s177 + $0x6c] sm:$0xf]
      %v216 = vld [vmem:[%s177 + $0x84] sm:$0xf]
      %v217 = vld [vmem:[%s177 + $0x8c] sm:$0xf]
      %v218 = vld [vmem:[%s177 + $0xa4] sm:$0xf]
      %v219 = vld [vmem:[%s177 + $0xac] sm:$0xf]
      %v220 = vld [vmem:[%s177 + $0xc4] sm:$0xf]
      %v221 = vld [vmem:[%s177 + $0xcc] sm:$0xf]
      %v222 = vld [vmem:[%s177 + $0xe4] sm:$0xf]
      %v223 = vld [vmem:[%s177 + $0xec] sm:$0xf]
      %v224 = vld [vmem:[%s177 + $0x104] sm:$0xf]
      %v225 = vld [vmem:[%s177 + $0x10c] sm:$0xf]
      %v226 = vld [vmem:[%s177 + $0x124] sm:$0xf]
      %v227 = vld [vmem:[%s177 + $0x12c] sm:$0xf]
      %v228 = vld [vmem:[%s177 + $0x144] sm:$0xf]
      %v229 = vld [vmem:[%s177 + $0x14c] sm:$0xf]
      %v230 = vld [vmem:[%s177 + $0x164] sm:$0xf]
      %v231 = vld [vmem:[%s177 + $0x16c] sm:$0xf]
      %v232 = vld [vmem:[%s177 + $0x184] sm:$0xf]
      %v233 = vld [vmem:[%s177 + $0x18c] sm:$0xf]
      %v234 = vld [vmem:[%s177 + $0x1a4] sm:$0xf]
      %v235 = vld [vmem:[%s177 + $0x1ac] sm:$0xf]
      %v236 = vld [vmem:[%s177 + $0x1c4] sm:$0xf]
      %v237 = vld [vmem:[%s177 + $0x1cc] sm:$0xf]
      %v238 = vmax.bf16 %v117, %v147
      %v239 = vmax.bf16 %v118, %v148
      %v240 = vmax.bf16 %v119, %v149
      %v241 = vmax.bf16 %v120, %v150
      %v242 = vmax.bf16 %v121, %v151
      %v243 = vmax.bf16 %v122, %v152
      %v244 = vmax.bf16 %v123, %v153
      %v245 = vmax.bf16 %v124, %v154
      %v246 = vmax.bf16 %v125, %v155
      %v247 = vmax.bf16 %v126, %v156
      %v248 = vmax.bf16 %v127, %v157
      %v249 = vmax.bf16 %v128, %v158
      %v250 = vmax.bf16 %v129, %v159
      %v251 = vmax.bf16 %v130, %v160
      %v252 = vmax.bf16 %v131, %v161
      %v253 = vmax.bf16 %v132, %v162
      %v254 = vmax.bf16 %v133, %v163
      %v255 = vmax.bf16 %v134, %v164
      %v256 = vmax.bf16 %v135, %v165
      %v257 = vmax.bf16 %v136, %v166
      %v258 = vmax.bf16 %v137, %v167
      %v259 = vmax.bf16 %v138, %v168
      %v260 = vmax.bf16 %v139, %v169
      %v261 = vmax.bf16 %v140, %v170
      %v262 = vmax.bf16 %v141, %v171
      %v263 = vmax.bf16 %v142, %v172
      %v264 = vmax.bf16 %v143, %v173
      %v265 = vmax.bf16 %v144, %v174
      %v266 = vmax.bf16 %v145, %v175
      %v267 = vmax.bf16 %v146, %v176
      %v268 = vmax.bf16 %v178, %v208
      %v269 = vmax.bf16 %v179, %v209
      %v270 = vmax.bf16 %v180, %v210
      %v271 = vmax.bf16 %v181, %v211
      %v272 = vmax.bf16 %v182, %v212
      %v273 = vmax.bf16 %v183, %v213
      %v274 = vmax.bf16 %v184, %v214
      %v275 = vmax.bf16 %v185, %v215
      %v276 = vmax.bf16 %v186, %v216
      %v277 = vmax.bf16 %v187, %v217
      %v278 = vmax.bf16 %v188, %v218
      %v279 = vmax.bf16 %v189, %v219
      %v280 = vmax.bf16 %v190, %v220
      %v281 = vmax.bf16 %v191, %v221
      %v282 = vmax.bf16 %v192, %v222
      %v283 = vmax.bf16 %v193, %v223
      %v284 = vmax.bf16 %v194, %v224
      %v285 = vmax.bf16 %v195, %v225
      %v286 = vmax.bf16 %v196, %v226
      %v287 = vmax.bf16 %v197, %v227
      %v288 = vmax.bf16 %v198, %v228
      %v289 = vmax.bf16 %v199, %v229
      %v290 = vmax.bf16 %v200, %v230
      %v291 = vmax.bf16 %v201, %v231
      %v292 = vmax.bf16 %v202, %v232
      %v293 = vmax.bf16 %v203, %v233
      %v294 = vmax.bf16 %v204, %v234
      %v295 = vmax.bf16 %v205, %v235
      %v296 = vmax.bf16 %v206, %v236
      %v297 = vmax.bf16 %v207, %v237
      %v298 = vmax.bf16 %v238, %v268
      %v299 = vmax.bf16 %v239, %v269
      %v300 = vmax.bf16 %v240, %v270
      %v301 = vmax.bf16 %v241, %v271
      %v302 = vmax.bf16 %v242, %v272
      %v303 = vmax.bf16 %v243, %v273
      %v304 = vmax.bf16 %v244, %v274
      %v305 = vmax.bf16 %v245, %v275
      %v306 = vmax.bf16 %v246, %v276
      %v307 = vmax.bf16 %v247, %v277
      %v308 = vmax.bf16 %v248, %v278
      %v309 = vmax.bf16 %v249, %v279
      %v310 = vmax.bf16 %v250, %v280
      %v311 = vmax.bf16 %v251, %v281
      %v312 = vmax.bf16 %v252, %v282
      %v313 = vmax.bf16 %v253, %v283
      %v314 = vmax.bf16 %v254, %v284
      %v315 = vmax.bf16 %v255, %v285
      %v316 = vmax.bf16 %v256, %v286
      %v317 = vmax.bf16 %v257, %v287
      %v318 = vmax.bf16 %v258, %v288
      %v319 = vmax.bf16 %v259, %v289
      %v320 = vmax.bf16 %v260, %v290
      %v321 = vmax.bf16 %v261, %v291
      %v322 = vmax.bf16 %v262, %v292
      %v323 = vmax.bf16 %v263, %v293
      %v324 = vmax.bf16 %v264, %v294
      %v325 = vmax.bf16 %v265, %v295
      %v326 = vmax.bf16 %v266, %v296
      %v327 = vmax.bf16 %v267, %v297
      %328 = vst [vmem:[%s116] sm:$0xf] %v298
      %vm329 = vcmask 1043456
      %vm330 = vsmask.f32 3328
      %vm331 = vmand %vm329, %vm330
      %v332 = vld [vmem:[%s116 + $0x4] sm:$0xf]
      %v333 = vsel %vm331, %v299, %v332
      %334 = vst [vmem:[%s116 + $0x4] sm:$0xf] %v333
      %335 = vst [vmem:[%s116 + $0x8] sm:$0xf] %v300
      %v336 = vld [vmem:[%s116 + $0xc] sm:$0xf]
      %v337 = vsel %vm331, %v301, %v336
      %338 = vst [vmem:[%s116 + $0xc] sm:$0xf] %v337
      %339 = vst [vmem:[%s116 + $0x10] sm:$0xf] %v302
      %v340 = vld [vmem:[%s116 + $0x14] sm:$0xf]
      %v341 = vsel %vm331, %v303, %v340
      %342 = vst [vmem:[%s116 + $0x14] sm:$0xf] %v341
      %343 = vst [vmem:[%s116 + $0x18] sm:$0xf] %v304
      %v344 = vld [vmem:[%s116 + $0x1c] sm:$0xf]
      %v345 = vsel %vm331, %v305, %v344
      %346 = vst [vmem:[%s116 + $0x1c] sm:$0xf] %v345
      %347 = vst [vmem:[%s116 + $0x20] sm:$0xf] %v306
      %v348 = vld [vmem:[%s116 + $0x24] sm:$0xf]
      %v349 = vsel %vm331, %v307, %v348
      %350 = vst [vmem:[%s116 + $0x24] sm:$0xf] %v349
      %351 = vst [vmem:[%s116 + $0x28] sm:$0xf] %v308
      %v352 = vld [vmem:[%s116 + $0x2c] sm:$0xf]
      %v353 = vsel %vm331, %v309, %v352
      %354 = vst [vmem:[%s116 + $0x2c] sm:$0xf] %v353
      %355 = vst [vmem:[%s116 + $0x30] sm:$0xf] %v310
      %v356 = vld [vmem:[%s116 + $0x34] sm:$0xf]
      %v357 = vsel %vm331, %v311, %v356
      %358 = vst [vmem:[%s116 + $0x34] sm:$0xf] %v357
      %359 = vst [vmem:[%s116 + $0x38] sm:$0xf] %v312
      %v360 = vld [vmem:[%s116 + $0x3c] sm:$0xf]
      %v361 = vsel %vm331, %v313, %v360
      %362 = vst [vmem:[%s116 + $0x3c] sm:$0xf] %v361
      %363 = vst [vmem:[%s116 + $0x40] sm:$0xf] %v314
      %v364 = vld [vmem:[%s116 + $0x44] sm:$0xf]
      %v365 = vsel %vm331, %v315, %v364
      %366 = vst [vmem:[%s116 + $0x44] sm:$0xf] %v365
      %367 = vst [vmem:[%s116 + $0x48] sm:$0xf] %v316
      %v368 = vld [vmem:[%s116 + $0x4c] sm:$0xf]
      %v369 = vsel %vm331, %v317, %v368
      %370 = vst [vmem:[%s116 + $0x4c] sm:$0xf] %v369
      %371 = vst [vmem:[%s116 + $0x50] sm:$0xf] %v318
      %v372 = vld [vmem:[%s116 + $0x54] sm:$0xf]
      %v373 = vsel %vm331, %v319, %v372
      %374 = vst [vmem:[%s116 + $0x54] sm:$0xf] %v373
      %375 = vst [vmem:[%s116 + $0x58] sm:$0xf] %v320
      %v376 = vld [vmem:[%s116 + $0x5c] sm:$0xf]
      %v377 = vsel %vm331, %v321, %v376
      %378 = vst [vmem:[%s116 + $0x5c] sm:$0xf] %v377
      %379 = vst [vmem:[%s116 + $0x60] sm:$0xf] %v322
      %v380 = vld [vmem:[%s116 + $0x64] sm:$0xf]
      %v381 = vsel %vm331, %v323, %v380
      %382 = vst [vmem:[%s116 + $0x64] sm:$0xf] %v381
      %383 = vst [vmem:[%s116 + $0x68] sm:$0xf] %v324
      %v384 = vld [vmem:[%s116 + $0x6c] sm:$0xf]
      %v385 = vsel %vm331, %v325, %v384
      %386 = vst [vmem:[%s116 + $0x6c] sm:$0xf] %v385
      %387 = vst [vmem:[%s116 + $0x70] sm:$0xf] %v326
      %v388 = vld [vmem:[%s116 + $0x74] sm:$0xf]
      %v389 = vsel %vm331, %v327, %v388
      %390 = vst [vmem:[%s116 + $0x74] sm:$0xf] %v389
      %p391 = scmp.lt.s32.totalorder %s12, 1
      %s392 = scalar_select %p391, %s12, 1
      %s393 = smul.addr %s392, 30
      %s394 = smul.addr %s393, 4
      %s395 = scalar_lea.vmem %s1, %s394
      // Predicated region
      $region25: #{hybrid_qnn_forward.7} parent=23 // pred_check
        %p396 = pneg %p56
      $region26: #{hybrid_qnn_forward.7} parent=23 // pred_check_branch
        %398 = sbr.rel (%p396) target = $region28
      $region27: #{hybrid_qnn_forward.7} parent=23 // pred_region
        _
      $region28: #{hybrid_qnn_forward.7} parent=23 // pred_fallthru
        _
    $region24: #{hybrid_qnn_forward.7} parent=5 // pred_fallthru
      _
    %p399 = scmp.le.s32.totalorder 2, %s7
    // Predicated region
    $region29: #{hybrid_qnn_forward.7} parent=5 // pred_check
      %p400 = pneg %p399
    $region30: #{hybrid_qnn_forward.7} parent=5 // pred_check_branch
      %402 = sbr.rel (%p400) target = $region32
    $region31: #{hybrid_qnn_forward.7} parent=5 // pred_region
      %s403 = ssub.s32 %s7, 2
      // Predicated region
      $region33: #{hybrid_qnn_forward.7} parent=31 // pred_check
        %p404 = pneg %p62
      $region34: #{hybrid_qnn_forward.7} parent=31 // pred_check_branch
        %406 = sbr.rel (%p404) target = $region36
      $region35: #{hybrid_qnn_forward.7} parent=31 // pred_region
        %p407 = scmp.lt.s32.totalorder %s13, 1
        %s408 = scalar_select %p407, %s13, 1
        %s409 = smul.addr %s408, 30
        %s410 = smul.addr %s409, 4
        %s411 = scalar_lea.vmem %s1, %s410
      $region36: #{hybrid_qnn_forward.7} parent=31 // pred_fallthru
        _
    $region32: #{hybrid_qnn_forward.7} parent=5 // pred_fallthru
      _
  $region6: #{hybrid_qnn_forward.7} parent=0 // loop_footer
    %s11 = sadd.s32 1, %s7
  $region7: #{hybrid_qnn_forward.7} parent=0 // loop_footer_branch
    %6 = sbr.rel target = $region3
  $region8: #{hybrid_qnn_forward.7} parent=0 // loop_exit
    _

// kernel: hybrid_qnn_forward.9
$region0: #{hybrid_qnn_forward.9}
  #allocation0 [shape = 'u32[]', space=smem, size = 0x4, offset = 0x4, fixed_abs, tag = 'smem constant byte address 0x4 - core index']
  #allocation1 [shape = 'u32[144,128]{1,0:T(1,128)}', space=vmem, size = 0x12000, scoped, tag = 'internal scratch']
  %s0 = inlined_call_operand.vmem [shape: bf16[2,7,2,7,256], index: 0, kind: input, shape index: {}]
  %s1 = inlined_call_operand.vmem [shape: bf16[2,7,7,128], index: 1, kind: output, shape index: {}]
  %s2 = sld [smem:[#allocation0]]
  $region37: #{hybrid_qnn_forward.9} parent=0
    _
  %s4 = ssub.s32 1, %s2
  %s5 = scalar_select 0, %s4, %s2
  loop: start=0, step=1, limit=4
  $region2: #{hybrid_qnn_forward.9} parent=0 // loop_pre_header
    _
  $region3: #{hybrid_qnn_forward.9} parent=0 // loop_header
    %s7 = sphi 0, %s11
    %p8 = scmp.ge.s32.totalorder %s7, 4
    %s17 = sphi 0, %s19
    %s20 = sphi 0, %s17
    %s21 = sphi 0, %s20
    %s37 = sphi 0, %s21
    %s43 = sphi 0, %s45
    %s46 = sphi 0, %s43
    %s47 = sphi 0, %s46
    %s63 = sphi 0, %s47
  $region4: #{hybrid_qnn_forward.9} parent=0 // loop_header_branch
    %10 = sbr.rel (%p8) target = $region8
  $region5: #{hybrid_qnn_forward.9} parent=0 // loop_body
    %s12 = ssub.s32 %s7, 1
    %s13 = ssub.s32 %s7, 2
    %s14 = sadd.s32 %s7, 1
    %s15 = ssub.s32 %s7, %s14
    %p16 = scmp.eq.s32.totalorder %s15, 0
    %s18 = sadd.s32 %s17, 1
    %s19 = scalar_select %p16, %s17, %s18
    %p22 = pneg %p16
    %p23 = scmp.eq.s32.totalorder %s7, 1
    %p24 = por %p22, %p23
    %p25 = scmp.ne.s32.totalorder %s17, %s20
    %p26 = scmp.eq.s32.totalorder %s7, 0
    %p27 = por %p25, %p26
    %p28 = scmp.ne.s32.totalorder %s17, %s20
    %p29 = scmp.eq.s32.totalorder %s12, 1
    %p30 = por %p28, %p29
    %p31 = scmp.ne.s32.totalorder %s20, %s21
    %p32 = scmp.eq.s32.totalorder %s12, 0
    %p33 = por %p31, %p32
    %p34 = scmp.ne.s32.totalorder %s20, %s21
    %p35 = scmp.eq.s32.totalorder %s13, 1
    %p36 = por %p34, %p35
    %p38 = scmp.ne.s32.totalorder %s21, %s37
    %p39 = scmp.eq.s32.totalorder %s13, 0
    %p40 = por %p38, %p39
    %s41 = ssub.s32 %s7, %s14
    %p42 = scmp.eq.s32.totalorder %s41, 0
    %s44 = sadd.s32 %s43, 1
    %s45 = scalar_select %p42, %s43, %s44
    %p48 = pneg %p42
    %p49 = scmp.eq.s32.totalorder %s7, 1
    %p50 = por %p48, %p49
    %p51 = scmp.ne.s32.totalorder %s43, %s46
    %p52 = scmp.eq.s32.totalorder %s7, 0
    %p53 = por %p51, %p52
    %p54 = scmp.ne.s32.totalorder %s43, %s46
    %p55 = scmp.eq.s32.totalorder %s12, 1
    %p56 = por %p54, %p55
    %p57 = scmp.ne.s32.totalorder %s46, %s47
    %p58 = scmp.eq.s32.totalorder %s12, 0
    %p59 = por %p57, %p58
    %p60 = scmp.ne.s32.totalorder %s46, %s47
    %p61 = scmp.eq.s32.totalorder %s13, 1
    %p62 = por %p60, %p61
    %p64 = scmp.ne.s32.totalorder %s47, %s63
    %p65 = scmp.eq.s32.totalorder %s13, 0
    %p66 = por %p64, %p65
    %p67 = scmp.le.s32.totalorder 1, %s7
    %p68 = scmp.lt.s32.totalorder %s7, 3
    %p69 = pnand %p67, %p68
    %p70 = pneg %p69
    // Predicated region
    $region9: #{hybrid_qnn_forward.9} parent=5 // pred_check
      _
    $region10: #{hybrid_qnn_forward.9} parent=5 // pred_check_branch
      %72 = sbr.rel (%p69) target = $region12
    $region11: #{hybrid_qnn_forward.9} parent=5 // pred_region
      %s73 = ssub.s32 %s7, 1
    $region12: #{hybrid_qnn_forward.9} parent=5 // pred_fallthru
      _
    %p74 = scmp.lt.s32.totalorder %s7, 2
    // Predicated region
    $region13: #{hybrid_qnn_forward.9} parent=5 // pred_check
      %p75 = pneg %p74
    $region14: #{hybrid_qnn_forward.9} parent=5 // pred_check_branch
      %77 = sbr.rel (%p75) target = $region16
    $region15: #{hybrid_qnn_forward.9} parent=5 // pred_region
      // Predicated region
      $region17: #{hybrid_qnn_forward.9} parent=15 // pred_check
        %p78 = pneg %p27
      $region18: #{hybrid_qnn_forward.9} parent=15 // pred_check_branch
        %80 = sbr.rel (%p78) target = $region20
      $region19: #{hybrid_qnn_forward.9} parent=15 // pred_region
        %p81 = scmp.lt.s32.totalorder %s7, 1
        %s82 = scalar_select %p81, %s7, 1
        %s83 = smul.addr %s82, 28
        %s84 = smul.addr %s83, 4
        %s85 = scalar_lea.vmem %s0, %s84
      $region20: #{hybrid_qnn_forward.9} parent=15 // pred_fallthru
        _
    $region16: #{hybrid_qnn_forward.9} parent=5 // pred_fallthru
      _
    %p86 = scmp.le.s32.totalorder 1, %s7
    %p87 = scmp.lt.s32.totalorder %s7, 3
    %p88 = pnand %p86, %p87
    %p89 = pneg %p88
    // Predicated region
    $region21: #{hybrid_qnn_forward.9} parent=5 // pred_check
      _
    $region22: #{hybrid_qnn_forward.9} parent=5 // pred_check_branch
      %91 = sbr.rel (%p88) target = $region24
    $region23: #{hybrid_qnn_forward.9} parent=5 // pred_region
      %s92 = ssub.s32 %s7, 1
      %p93 = scmp.lt.s32.totalorder %s12, 1
      %s94 = scalar_select %p93, %s12, 1
      %s95 = smul.addr %s94, 28
      %s96 = smul.addr %s95, 4
      %s97 = scalar_lea.vmem %s0, %s96
      %p98 = pneg %p33
      %p99 = pneg %p30
      %p100 = pneg %p59
      %p101 = pneg %p56
      %p102 = scmp.lt.s32.totalorder %s12, 1
      %s103 = scalar_select %p102, %s12, 1
      %s104 = smul.addr %s103, 7
      %s105 = smul.addr %s104, 4
      %s106 = scalar_lea.vmem %s1, %s105
      %p107 = scmp.lt.s32.totalorder %s12, 1
      %s108 = scalar_select %p107, %s12, 1
      %s109 = smul.addr %s108, 28
      %s110 = smul.addr %s109, 4
      %s111 = scalar_lea.vmem %s0, %s110
      %p112 = scmp.lt.s32.totalorder %s12, 1
      %s113 = scalar_select %p112, %s12, 1
      %s114 = smul.addr %s113, 7
      %s115 = smul.addr %s114, 4
      %s116 = scalar_lea.vmem %s1, %s115
      %v117 = vld [vmem:[%s111] sm:$0xf]
      %v118 = vld [vmem:[%s111 + $0x10] sm:$0xf]
      %v119 = vld [vmem:[%s111 + $0x20] sm:$0xf]
      %v120 = vld [vmem:[%s111 + $0x30] sm:$0xf]
      %v121 = vld [vmem:[%s111 + $0x40] sm:$0xf]
      %v122 = vld [vmem:[%s111 + $0x50] sm:$0xf]
      %v123 = vld [vmem:[%s111 + $0x60] sm:$0xf]
      %v124 = vld [vmem:[%s111 + $0x4] sm:$0xf]
      %v125 = vld [vmem:[%s111 + $0x14] sm:$0xf]
      %v126 = vld [vmem:[%s111 + $0x24] sm:$0xf]
      %v127 = vld [vmem:[%s111 + $0x34] sm:$0xf]
      %v128 = vld [vmem:[%s111 + $0x44] sm:$0xf]
      %v129 = vld [vmem:[%s111 + $0x54] sm:$0xf]
      %v130 = vld [vmem:[%s111 + $0x64] sm:$0xf]
      %s131 = scalar_lea.vmem %s111, 8
      %v132 = vld [vmem:[%s131] sm:$0xf]
      %v133 = vld [vmem:[%s131 + $0x10] sm:$0xf]
      %v134 = vld [vmem:[%s131 + $0x20] sm:$0xf]
      %v135 = vld [vmem:[%s131 + $0x30] sm:$0xf]
      %v136 = vld [vmem:[%s131 + $0x40] sm:$0xf]
      %v137 = vld [vmem:[%s131 + $0x50] sm:$0xf]
      %v138 = vld [vmem:[%s131 + $0x60] sm:$0xf]
      %v139 = vld [vmem:[%s131 + $0x4] sm:$0xf]
      %v140 = vld [vmem:[%s131 + $0x14] sm:$0xf]
      %v141 = vld [vmem:[%s131 + $0x24] sm:$0xf]
      %v142 = vld [vmem:[%s131 + $0x34] sm:$0xf]
      %v143 = vld [vmem:[%s131 + $0x44] sm:$0xf]
      %v144 = vld [vmem:[%s131 + $0x54] sm:$0xf]
      %v145 = vld [vmem:[%s131 + $0x64] sm:$0xf]
      %v146 = vmax.bf16 %v117, %v124
      %v147 = vmax.bf16 %v118, %v125
      %v148 = vmax.bf16 %v119, %v126
      %v149 = vmax.bf16 %v120, %v127
      %v150 = vmax.bf16 %v121, %v128
      %v151 = vmax.bf16 %v122, %v129
      %v152 = vmax.bf16 %v123, %v130
      %v153 = vmax.bf16 %v132, %v139
      %v154 = vmax.bf16 %v133, %v140
      %v155 = vmax.bf16 %v134, %v141
      %v156 = vmax.bf16 %v135, %v142
      %v157 = vmax.bf16 %v136, %v143
      %v158 = vmax.bf16 %v137, %v144
      %v159 = vmax.bf16 %v138, %v145
      %v160 = vmax.bf16 %v146, %v153
      %v161 = vmax.bf16 %v147, %v154
      %v162 = vmax.bf16 %v148, %v155
      %v163 = vmax.bf16 %v149, %v156
      %v164 = vmax.bf16 %v150, %v157
      %v165 = vmax.bf16 %v151, %v158
      %v166 = vmax.bf16 %v152, %v159
      %vm167 = vcmask 1043456
      %vm168 = vsmask.f32 3328
      %vm169 = vmand %vm167, %vm168
      %v170 = vld [vmem:[%s116] sm:$0xf]
      %v171 = vsel %vm169, %v160, %v170
      %172 = vst [vmem:[%s116] sm:$0xf] %v171
      %v173 = vld [vmem:[%s116 + $0x4] sm:$0xf]
      %v174 = vsel %vm169, %v161, %v173
      %175 = vst [vmem:[%s116 + $0x4] sm:$0xf] %v174
      %v176 = vld [vmem:[%s116 + $0x8] sm:$0xf]
      %v177 = vsel %vm169, %v162, %v176
      %178 = vst [vmem:[%s116 + $0x8] sm:$0xf] %v177
      %v179 = vld [vmem:[%s116 + $0xc] sm:$0xf]
      %v180 = vsel %vm169, %v163, %v179
      %181 = vst [vmem:[%s116 + $0xc] sm:$0xf] %v180
      %v182 = vld [vmem:[%s116 + $0x10] sm:$0xf]
      %v183 = vsel %vm169, %v164, %v182
      %184 = vst [vmem:[%s116 + $0x10] sm:$0xf] %v183
      %v185 = vld [vmem:[%s116 + $0x14] sm:$0xf]
      %v186 = vsel %vm169, %v165, %v185
      %187 = vst [vmem:[%s116 + $0x14] sm:$0xf] %v186
      %v188 = vld [vmem:[%s116 + $0x18] sm:$0xf]
      %v189 = vsel %vm169, %v166, %v188
      %190 = vst [vmem:[%s116 + $0x18] sm:$0xf] %v189
      %p191 = scmp.lt.s32.totalorder %s12, 1
      %s192 = scalar_select %p191, %s12, 1
      %s193 = smul.addr %s192, 7
      %s194 = smul.addr %s193, 4
      %s195 = scalar_lea.vmem %s1, %s194
      // Predicated region
      $region25: #{hybrid_qnn_forward.9} parent=23 // pred_check
        %p196 = pneg %p56
      $region26: #{hybrid_qnn_forward.9} parent=23 // pred_check_branch
        %198 = sbr.rel (%p196) target = $region28
      $region27: #{hybrid_qnn_forward.9} parent=23 // pred_region
        _
      $region28: #{hybrid_qnn_forward.9} parent=23 // pred_fallthru
        _
    $region24: #{hybrid_qnn_forward.9} parent=5 // pred_fallthru
      _
    %p199 = scmp.le.s32.totalorder 2, %s7
    // Predicated region
    $region29: #{hybrid_qnn_forward.9} parent=5 // pred_check
      %p200 = pneg %p199
    $region30: #{hybrid_qnn_forward.9} parent=5 // pred_check_branch
      %202 = sbr.rel (%p200) target = $region32
    $region31: #{hybrid_qnn_forward.9} parent=5 // pred_region
      %s203 = ssub.s32 %s7, 2
      // Predicated region
      $region33: #{hybrid_qnn_forward.9} parent=31 // pred_check
        %p204 = pneg %p62
      $region34: #{hybrid_qnn_forward.9} parent=31 // pred_check_branch
        %206 = sbr.rel (%p204) target = $region36
      $region35: #{hybrid_qnn_forward.9} parent=31 // pred_region
        %p207 = scmp.lt.s32.totalorder %s13, 1
        %s208 = scalar_select %p207, %s13, 1
        %s209 = smul.addr %s208, 7
        %s210 = smul.addr %s209, 4
        %s211 = scalar_lea.vmem %s1, %s210
      $region36: #{hybrid_qnn_forward.9} parent=31 // pred_fallthru
        _
    $region32: #{hybrid_qnn_forward.9} parent=5 // pred_fallthru
      _
  $region6: #{hybrid_qnn_forward.9} parent=0 // loop_footer
    %s11 = sadd.s32 1, %s7
  $region7: #{hybrid_qnn_forward.9} parent=0 // loop_footer_branch
    %6 = sbr.rel target = $region3
  $region8: #{hybrid_qnn_forward.9} parent=0 // loop_exit
    _

// kernel: hybrid_qnn_forward.8
$region0: #{hybrid_qnn_forward.8}
  #allocation0 [shape = 'u32[]', space=smem, size = 0x4, offset = 0x4, fixed_abs, tag = 'smem constant byte address 0x4 - core index']
  #allocation1 [shape = 'u32[144,128]{1,0:T(1,128)}', space=vmem, size = 0x12000, scoped, tag = 'internal scratch']
  %s0 = inlined_call_operand.vmem [shape: bf16[480,1152], index: 0, kind: input, shape index: {}]
  %s1 = inlined_call_operand.vmem [shape: bf16[1152,128], index: 1, kind: input, shape index: {}]
  %s2 = inlined_call_operand.vmem [shape: f32[1,128], index: 2, kind: input, shape index: {}]
  %s3 = inlined_call_operand.vmem [shape: bf16[480,128], index: 3, kind: output, shape index: {}]
  %s4 = sld [smem:[#allocation0]]
  $region45: #{hybrid_qnn_forward.8} parent=0
    _
  %s6 = ssub.s32 1, %s4
  %s7 = scalar_select 0, %s6, %s4
  loop: start=0, step=1, limit=4
  $region2: #{hybrid_qnn_forward.8} parent=0 // loop_pre_header
    _
  $region3: #{hybrid_qnn_forward.8} parent=0 // loop_header
    %s9 = sphi 0, %s13
    %p10 = scmp.ge.s32.totalorder %s9, 4
    %s16 = sphi 0, %s28
    %s17 = sphi 0, %s24
    %s18 = sphi 0, %s16
    %s19 = sphi 0, %s17
    %s20 = sphi 0, %s18
    %s21 = sphi 0, %s19
    %s31 = sphi 0, %s33
    %s34 = sphi 0, %s31
    %s35 = sphi 0, %s34
    %s51 = sphi 0, %s35
    %s57 = sphi 0, %s59
    %s60 = sphi 0, %s57
    %s61 = sphi 0, %s60
    %s77 = sphi 0, %s61
    %s83 = sphi 0, %s85
    %s86 = sphi 0, %s83
    %s87 = sphi 0, %s86
    %s103 = sphi 0, %s87
    %s111 = sphi 0, %s113
    %s114 = sphi 0, %s111
    %s115 = sphi 0, %s114
    %s131 = sphi 0, %s115
  $region4: #{hybrid_qnn_forward.8} parent=0 // loop_header_branch
    %12 = sbr.rel (%p10) target = $region8
  $region5: #{hybrid_qnn_forward.8} parent=0 // loop_body
    %s14 = ssub.s32 %s9, 1
    %s15 = ssub.s32 %s9, 2
    %s22 = sadd.s32 1, %s17
    %p23 = scmp.ge.s32.totalorder %s22, 1
    %s24 = scalar_select %p23, 0, %s22
    %s25 = sadd.s32 1, %s16
    %s26 = scalar_select %p23, %s25, %s16
    %p27 = scmp.ge.s32.totalorder %s26, 2
    %s28 = scalar_select %p27, 0, %s26
    %s29 = ssub.s32 %s16, %s28
    %p30 = scmp.eq.s32.totalorder %s29, 0
    %s32 = sadd.s32 %s31, 1
    %s33 = scalar_select %p30, %s31, %s32
    %p36 = pneg %p30
    %p37 = scmp.eq.s32.totalorder %s9, 1
    %p38 = por %p36, %p37
    %p39 = scmp.ne.s32.totalorder %s31, %s34
    %p40 = scmp.eq.s32.totalorder %s9, 0
    %p41 = por %p39, %p40
    %p42 = scmp.ne.s32.totalorder %s31, %s34
    %p43 = scmp.eq.s32.totalorder %s14, 1
    %p44 = por %p42, %p43
    %p45 = scmp.ne.s32.totalorder %s34, %s35
    %p46 = scmp.eq.s32.totalorder %s14, 0
    %p47 = por %p45, %p46
    %p48 = scmp.ne.s32.totalorder %s34, %s35
    %p49 = scmp.eq.s32.totalorder %s15, 1
    %p50 = por %p48, %p49
    %p52 = scmp.ne.s32.totalorder %s35, %s51
    %p53 = scmp.eq.s32.totalorder %s15, 0
    %p54 = por %p52, %p53
    %s55 = ssub.s32 %s17, %s24
    %p56 = scmp.eq.s32.totalorder %s55, 0
    %s58 = sadd.s32 %s57, 1
    %s59 = scalar_select %p56, %s57, %s58
    %p62 = pneg %p56
    %p63 = scmp.eq.s32.totalorder %s9, 1
    %p64 = por %p62, %p63
    %p65 = scmp.ne.s32.totalorder %s57, %s60
    %p66 = scmp.eq.s32.totalorder %s9, 0
    %p67 = por %p65, %p66
    %p68 = scmp.ne.s32.totalorder %s57, %s60
    %p69 = scmp.eq.s32.totalorder %s14, 1
    %p70 = por %p68, %p69
    %p71 = scmp.ne.s32.totalorder %s60, %s61
    %p72 = scmp.eq.s32.totalorder %s14, 0
    %p73 = por %p71, %p72
    %p74 = scmp.ne.s32.totalorder %s60, %s61
    %p75 = scmp.eq.s32.totalorder %s15, 1
    %p76 = por %p74, %p75
    %p78 = scmp.ne.s32.totalorder %s61, %s77
    %p79 = scmp.eq.s32.totalorder %s15, 0
    %p80 = por %p78, %p79
    %s81 = ssub.s32 %s17, %s24
    %p82 = scmp.eq.s32.totalorder %s81, 0
    %s84 = sadd.s32 %s83, 1
    %s85 = scalar_select %p82, %s83, %s84
    %p88 = pneg %p82
    %p89 = scmp.eq.s32.totalorder %s9, 1
    %p90 = por %p88, %p89
    %p91 = scmp.ne.s32.totalorder %s83, %s86
    %p92 = scmp.eq.s32.totalorder %s9, 0
    %p93 = por %p91, %p92
    %p94 = scmp.ne.s32.totalorder %s83, %s86
    %p95 = scmp.eq.s32.totalorder %s14, 1
    %p96 = por %p94, %p95
    %p97 = scmp.ne.s32.totalorder %s86, %s87
    %p98 = scmp.eq.s32.totalorder %s14, 0
    %p99 = por %p97, %p98
    %p100 = scmp.ne.s32.totalorder %s86, %s87
    %p101 = scmp.eq.s32.totalorder %s15, 1
    %p102 = por %p100, %p101
    %p104 = scmp.ne.s32.totalorder %s87, %s103
    %p105 = scmp.eq.s32.totalorder %s15, 0
    %p106 = por %p104, %p105
    %s107 = ssub.s32 %s16, %s28
    %s108 = ssub.s32 %s17, %s24
    %s109 = sor.u32 %s107, %s108
    %p110 = scmp.eq.s32.totalorder %s109, 0
    %s112 = sadd.s32 %s111, 1
    %s113 = scalar_select %p110, %s111, %s112
    %p116 = pneg %p110
    %p117 = scmp.eq.s32.totalorder %s9, 1
    %p118 = por %p116, %p117
    %p119 = scmp.ne.s32.totalorder %s111, %s114
    %p120 = scmp.eq.s32.totalorder %s9, 0
    %p121 = por %p119, %p120
    %p122 = scmp.ne.s32.totalorder %s111, %s114
    %p123 = scmp.eq.s32.totalorder %s14, 1
    %p124 = por %p122, %p123
    %p125 = scmp.ne.s32.totalorder %s114, %s115
    %p126 = scmp.eq.s32.totalorder %s14, 0
    %p127 = por %p125, %p126
    %p128 = scmp.ne.s32.totalorder %s114, %s115
    %p129 = scmp.eq.s32.totalorder %s15, 1
    %p130 = por %p128, %p129
    %p132 = scmp.ne.s32.totalorder %s115, %s131
    %p133 = scmp.eq.s32.totalorder %s15, 0
    %p134 = por %p132, %p133
    %p135 = scmp.le.s32.totalorder 1, %s9
    %p136 = scmp.lt.s32.totalorder %s9, 3
    %p137 = pnand %p135, %p136
    %p138 = pneg %p137
    // Predicated region
    $region9: #{hybrid_qnn_forward.8} parent=5 // pred_check
      _
    $region10: #{hybrid_qnn_forward.8} parent=5 // pred_check_branch
      %140 = sbr.rel (%p137) target = $region12
    $region11: #{hybrid_qnn_forward.8} parent=5 // pred_region
      %s141 = ssub.s32 %s9, 1
      // Predicated region
      $region13: #{hybrid_qnn_forward.8} parent=11 // pred_check
        %p142 = pneg %p73
      $region14: #{hybrid_qnn_forward.8} parent=11 // pred_check_branch
        %144 = sbr.rel (%p142) target = $region16
      $region15: #{hybrid_qnn_forward.8} parent=11 // pred_region
        %p145 = scmp.lt.s32.totalorder %s19, 0
        %s146 = scalar_select %p145, %s19, 0
        %s147 = smul.addr %s146, 4
        %s148 = scalar_lea.vmem %s1, %s147
      $region16: #{hybrid_qnn_forward.8} parent=11 // pred_fallthru
        _
      // Predicated region
      $region17: #{hybrid_qnn_forward.8} parent=11 // pred_check
        %p149 = pneg %p99
      $region18: #{hybrid_qnn_forward.8} parent=11 // pred_check_branch
        %151 = sbr.rel (%p149) target = $region20
      $region19: #{hybrid_qnn_forward.8} parent=11 // pred_region
        %p152 = scmp.lt.s32.totalorder %s19, 0
        %s153 = scalar_select %p152, %s19, 0
        %s154 = scalar_lea.vmem %s2, %s153
      $region20: #{hybrid_qnn_forward.8} parent=11 // pred_fallthru
        _
    $region12: #{hybrid_qnn_forward.8} parent=5 // pred_fallthru
      _
    %p155 = scmp.lt.s32.totalorder %s9, 2
    // Predicated region
    $region21: #{hybrid_qnn_forward.8} parent=5 // pred_check
      %p156 = pneg %p155
    $region22: #{hybrid_qnn_forward.8} parent=5 // pred_check_branch
      %158 = sbr.rel (%p156) target = $region24
    $region23: #{hybrid_qnn_forward.8} parent=5 // pred_region
      // Predicated region
      $region25: #{hybrid_qnn_forward.8} parent=23 // pred_check
        %p159 = pneg %p41
      $region26: #{hybrid_qnn_forward.8} parent=23 // pred_check_branch
        %161 = sbr.rel (%p159) target = $region28
      $region27: #{hybrid_qnn_forward.8} parent=23 // pred_region
        %s162 = smul.u32 30, %s16
        %p163 = scmp.lt.s32.totalorder %s162, 59
        %s164 = scalar_select %p163, %s162, 59
        %s165 = smul.addr %s164, 9
        %s166 = smul.addr %s165, 4
        %s167 = scalar_lea.vmem %s0, %s166
        %s168 = smul.u32 30, %s16
      $region28: #{hybrid_qnn_forward.8} parent=23 // pred_fallthru
        _
    $region24: #{hybrid_qnn_forward.8} parent=5 // pred_fallthru
      _
    %p169 = scmp.le.s32.totalorder 1, %s9
    %p170 = scmp.lt.s32.totalorder %s9, 3
    %p171 = pnand %p169, %p170
    %p172 = pneg %p171
    // Predicated region
    $region29: #{hybrid_qnn_forward.8} parent=5 // pred_check
      _
    $region30: #{hybrid_qnn_forward.8} parent=5 // pred_check_branch
      %174 = sbr.rel (%p171) target = $region32
    $region31: #{hybrid_qnn_forward.8} parent=5 // pred_region
      %s175 = ssub.s32 %s9, 1
      %s176 = smul.u32 30, %s18
      %p177 = scmp.lt.s32.totalorder %s176, 59
      %s178 = scalar_select %p177, %s176, 59
      %s179 = smul.addr %s178, 9
      %s180 = smul.addr %s179, 4
      %s181 = scalar_lea.vmem %s0, %s180
      %p182 = pneg %p47
      %p183 = pneg %p44
      %p184 = scmp.lt.s32.totalorder %s19, 0
      %s185 = scalar_select %p184, %s19, 0
      %s186 = smul.addr %s185, 4
      %s187 = scalar_lea.vmem %s1, %s186
      %p188 = pneg %p73
      %p189 = pneg %p70
      %p190 = scmp.lt.s32.totalorder %s19, 0
      %s191 = scalar_select %p190, %s19, 0
      %s192 = scalar_lea.vmem %s2, %s191
      %p193 = pneg %p99
      %p194 = pneg %p96
      %p195 = pneg %p127
      %p196 = pneg %p124
      %s197 = smul.u32 30, %s18
      %p198 = scmp.lt.s32.totalorder %s197, 59
      %s199 = scalar_select %p198, %s197, 59
      %p200 = scmp.lt.s32.totalorder %s19, 0
      %s201 = scalar_select %p200, %s19, 0
      %s202 = sadd.s32 %s201, %s199
      %s203 = smul.addr %s202, 4
      %s204 = scalar_lea.vmem %s3, %s203
      %s205 = smul.u32 30, %s18
      %p206 = scmp.lt.s32.totalorder %s205, 59
      %s207 = scalar_select %p206, %s205, 59
      %s208 = smul.addr %s207, 9
      %s209 = smul.addr %s208, 4
      %s210 = scalar_lea.vmem %s0, %s209
      %s211 = smul.u32 30, %s18
      %p212 = scmp.lt.s32.totalorder %s19, 0
      %s213 = scalar_select %p212, %s19, 0
      %s214 = smul.addr %s213, 4
      %s215 = scalar_lea.vmem %s1, %s214
      %p216 = scmp.lt.s32.totalorder %s19, 0
      %s217 = scalar_select %p216, %s19, 0
      %s218 = scalar_lea.vmem %s2, %s217
      %s219 = smul.u32 30, %s18
      %p220 = scmp.lt.s32.totalorder %s219, 59
      %s221 = scalar_select %p220, %s219, 59
      %p222 = scmp.lt.s32.totalorder %s19, 0
      %s223 = scalar_select %p222, %s19, 0
      %s224 = sadd.s32 %s223, %s221
      %s225 = smul.addr %s224, 4
      %s226 = scalar_lea.vmem %s3, %s225
      %s227 = smul.u32 30, %s18
      %v229 = vld [vmem:[%s210] sm:$0xff]
      %v230 = vld [vmem:[%s210 + $0x8] sm:$0xff]
      %v231 = vld [vmem:[%s210 + $0x10] sm:$0xff]
      %v232 = vld [vmem:[%s210 + $0x18] sm:$0xff]
      %v233 = vld [vmem:[%s210 + $0x20] sm:$0xf]
      %v234 = vld [vmem:[%s210 + $0x24] sm:$0xff]
      %v235 = vld [vmem:[%s210 + $0x2c] sm:$0xff]
      %v236 = vld [vmem:[%s210 + $0x34] sm:$0xff]
      %v237 = vld [vmem:[%s210 + $0x3c] sm:$0xff]
      %v238 = vld [vmem:[%s210 + $0x44] sm:$0xf]
      %v239 = vld [vmem:[%s210 + $0x48] sm:$0xff]
      %v240 = vld [vmem:[%s210 + $0x50] sm:$0xff]
      %v241 = vld [vmem:[%s210 + $0x58] sm:$0xff]
      %v242 = vld [vmem:[%s210 + $0x60] sm:$0xff]
      %v243 = vld [vmem:[%s210 + $0x68] sm:$0xf]
      %v244 = vld [vmem:[%s210 + $0x6c] sm:$0xff]
      %v245 = vld [vmem:[%s210 + $0x74] sm:$0xff]
      %v246 = vld [vmem:[%s210 + $0x7c] sm:$0xff]
      %v247 = vld [vmem:[%s210 + $0x84] sm:$0xff]
      %v248 = vld [vmem:[%s210 + $0x8c] sm:$0xf]
      %v249 = vld [vmem:[%s210 + $0x90] sm:$0xff]
      %v250 = vld [vmem:[%s210 + $0x98] sm:$0xff]
      %v251 = vld [vmem:[%s210 + $0xa0] sm:$0xff]
      %v252 = vld [vmem:[%s210 + $0xa8] sm:$0xff]
      %v253 = vld [vmem:[%s210 + $0xb0] sm:$0xf]
      %v254 = vld [vmem:[%s210 + $0xb4] sm:$0xff]
      %v255 = vld [vmem:[%s210 + $0xbc] sm:$0xff]
      %v256 = vld [vmem:[%s210 + $0xc4] sm:$0xff]
      %v257 = vld [vmem:[%s210 + $0xcc] sm:$0xff]
      %v258 = vld [vmem:[%s210 + $0xd4] sm:$0xf]
      %v259 = vld [vmem:[%s210 + $0xd8] sm:$0xff]
      %v260 = vld [vmem:[%s210 + $0xe0] sm:$0xff]
      %v261 = vld [vmem:[%s210 + $0xe8] sm:$0xff]
      %v262 = vld [vmem:[%s210 + $0xf0] sm:$0xff]
      %v263 = vld [vmem:[%s210 + $0xf8] sm:$0xf]
      %v264 = vld [vmem:[%s210 + $0xfc] sm:$0xff]
      %v265 = vld [vmem:[%s210 + $0x104] sm:$0xff]
      %v266 = vld [vmem:[%s210 + $0x10c] sm:$0xff]
      %v267 = vld [vmem:[%s210 + $0x114] sm:$0xff]
      %v268 = vld [vmem:[%s210 + $0x11c] sm:$0xf]
      %v269 = vld [vmem:[%s210 + $0x120] sm:$0xff]
      %v270 = vld [vmem:[%s210 + $0x128] sm:$0xff]
      %v271 = vld [vmem:[%s210 + $0x130] sm:$0xff]
      %v272 = vld [vmem:[%s210 + $0x138] sm:$0xff]
      %v273 = vld [vmem:[%s210 + $0x140] sm:$0xf]
      %v274 = vld [vmem:[%s210 + $0x144] sm:$0xff]
      %v275 = vld [vmem:[%s210 + $0x14c] sm:$0xff]
      %v276 = vld [vmem:[%s210 + $0x154] sm:$0xff]
      %v277 = vld [vmem:[%s210 + $0x15c] sm:$0xff]
      %v278 = vld [vmem:[%s210 + $0x164] sm:$0xf]
      %v279 = vld [vmem:[%s210 + $0x168] sm:$0xff]
      %v280 = vld [vmem:[%s210 + $0x170] sm:$0xff]
      %v281 = vld [vmem:[%s210 + $0x178] sm:$0xff]
      %v282 = vld [vmem:[%s210 + $0x180] sm:$0xff]
      %v283 = vld [vmem:[%s210 + $0x188] sm:$0xf]
      %v284 = vld [vmem:[%s210 + $0x18c] sm:$0xff]
      %v285 = vld [vmem:[%s210 + $0x194] sm:$0xff]
      %v286 = vld [vmem:[%s210 + $0x19c] sm:$0xff]
      %v287 = vld [vmem:[%s210 + $0x1a4] sm:$0xff]
      %v288 = vld [vmem:[%s210 + $0x1ac] sm:$0xf]
      %v289 = vld [vmem:[%s210 + $0x1b0] sm:$0xff]
      %v290 = vld [vmem:[%s210 + $0x1b8] sm:$0xff]
      %v291 = vld [vmem:[%s210 + $0x1c0] sm:$0xff]
      %v292 = vld [vmem:[%s210 + $0x1c8] sm:$0xff]
      %v293 = vld [vmem:[%s210 + $0x1d0] sm:$0xf]
      %v294 = vld [vmem:[%s210 + $0x1d4] sm:$0xff]
      %v295 = vld [vmem:[%s210 + $0x1dc] sm:$0xff]
      %v296 = vld [vmem:[%s210 + $0x1e4] sm:$0xff]
      %v297 = vld [vmem:[%s210 + $0x1ec] sm:$0xff]
      %v298 = vld [vmem:[%s210 + $0x1f4] sm:$0xf]
      %v299 = vld [vmem:[%s210 + $0x1f8] sm:$0xff]
      %v300 = vld [vmem:[%s210 + $0x200] sm:$0xff]
      %v301 = vld [vmem:[%s210 + $0x208] sm:$0xff]
      %v302 = vld [vmem:[%s210 + $0x210] sm:$0xff]
      %v303 = vld [vmem:[%s210 + $0x218] sm:$0xf]
      %v304 = vld [vmem:[%s210 + $0x21c] sm:$0xff]
      %v305 = vld [vmem:[%s210 + $0x224] sm:$0xff]
      %v306 = vld [vmem:[%s210 + $0x22c] sm:$0xff]
      %v307 = vld [vmem:[%s210 + $0x234] sm:$0xff]
      %v308 = vld [vmem:[%s210 + $0x23c] sm:$0xf]
      %v309 = vld [vmem:[%s210 + $0x240] sm:$0xff]
      %v310 = vld [vmem:[%s210 + $0x248] sm:$0xff]
      %v311 = vld [vmem:[%s210 + $0x250] sm:$0xff]
      %v312 = vld [vmem:[%s210 + $0x258] sm:$0xff]
      %v313 = vld [vmem:[%s210 + $0x260] sm:$0xf]
      %v314 = vld [vmem:[%s210 + $0x264] sm:$0xff]
      %v315 = vld [vmem:[%s210 + $0x26c] sm:$0xff]
      %v316 = vld [vmem:[%s210 + $0x274] sm:$0xff]
      %v317 = vld [vmem:[%s210 + $0x27c] sm:$0xff]
      %v318 = vld [vmem:[%s210 + $0x284] sm:$0xf]
      %v319 = vld [vmem:[%s210 + $0x288] sm:$0xff]
      %v320 = vld [vmem:[%s210 + $0x290] sm:$0xff]
      %v321 = vld [vmem:[%s210 + $0x298] sm:$0xff]
      %v322 = vld [vmem:[%s210 + $0x2a0] sm:$0xff]
      %v323 = vld [vmem:[%s210 + $0x2a8] sm:$0xf]
      %v324 = vld [vmem:[%s210 + $0x2ac] sm:$0xff]
      %v325 = vld [vmem:[%s210 + $0x2b4] sm:$0xff]
      %v326 = vld [vmem:[%s210 + $0x2bc] sm:$0xff]
      %v327 = vld [vmem:[%s210 + $0x2c4] sm:$0xff]
      %v328 = vld [vmem:[%s210 + $0x2cc] sm:$0xf]
      %v329 = vld [vmem:[%s210 + $0x2d0] sm:$0xff]
      %v330 = vld [vmem:[%s210 + $0x2d8] sm:$0xff]
      %v331 = vld [vmem:[%s210 + $0x2e0] sm:$0xff]
      %v332 = vld [vmem:[%s210 + $0x2e8] sm:$0xff]
      %v333 = vld [vmem:[%s210 + $0x2f0] sm:$0xf]
      %v334 = vld [vmem:[%s210 + $0x2f4] sm:$0xff]
      %v335 = vld [vmem:[%s210 + $0x2fc] sm:$0xff]
      %v336 = vld [vmem:[%s210 + $0x304] sm:$0xff]
      %v337 = vld [vmem:[%s210 + $0x30c] sm:$0xff]
      %v338 = vld [vmem:[%s210 + $0x314] sm:$0xf]
      %v339 = vld [vmem:[%s210 + $0x318] sm:$0xff]
      %v340 = vld [vmem:[%s210 + $0x320] sm:$0xff]
      %v341 = vld [vmem:[%s210 + $0x328] sm:$0xff]
      %v342 = vld [vmem:[%s210 + $0x330] sm:$0xff]
      %v343 = vld [vmem:[%s210 + $0x338] sm:$0xf]
      %v344 = vld [vmem:[%s210 + $0x33c] sm:$0xff]
      %v345 = vld [vmem:[%s210 + $0x344] sm:$0xff]
      %v346 = vld [vmem:[%s210 + $0x34c] sm:$0xff]
      %v347 = vld [vmem:[%s210 + $0x354] sm:$0xff]
      %v348 = vld [vmem:[%s210 + $0x35c] sm:$0xf]
      %v349 = vld [vmem:[%s210 + $0x360] sm:$0xff]
      %v350 = vld [vmem:[%s210 + $0x368] sm:$0xff]
      %v351 = vld [vmem:[%s210 + $0x370] sm:$0xff]
      %v352 = vld [vmem:[%s210 + $0x378] sm:$0xff]
      %v353 = vld [vmem:[%s210 + $0x380] sm:$0xf]
      %v354 = vld [vmem:[%s210 + $0x384] sm:$0xff]
      %v355 = vld [vmem:[%s210 + $0x38c] sm:$0xff]
      %v356 = vld [vmem:[%s210 + $0x394] sm:$0xff]
      %v357 = vld [vmem:[%s210 + $0x39c] sm:$0xff]
      %v358 = vld [vmem:[%s210 + $0x3a4] sm:$0xf]
      %v359 = vld [vmem:[%s210 + $0x3a8] sm:$0xff]
      %v360 = vld [vmem:[%s210 + $0x3b0] sm:$0xff]
      %v361 = vld [vmem:[%s210 + $0x3b8] sm:$0xff]
      %v362 = vld [vmem:[%s210 + $0x3c0] sm:$0xff]
      %v363 = vld [vmem:[%s210 + $0x3c8] sm:$0xf]
      %v364 = vld [vmem:[%s210 + $0x3cc] sm:$0xff]
      %v365 = vld [vmem:[%s210 + $0x3d4] sm:$0xff]
      %v366 = vld [vmem:[%s210 + $0x3dc] sm:$0xff]
      %v367 = vld [vmem:[%s210 + $0x3e4] sm:$0xff]
      %v368 = vld [vmem:[%s210 + $0x3ec] sm:$0xf]
      %v369 = vld [vmem:[%s210 + $0x3f0] sm:$0xff]
      %v370 = vld [vmem:[%s210 + $0x3f8] sm:$0xff]
      %v371 = vld [vmem:[%s210 + $0x400] sm:$0xff]
      %v372 = vld [vmem:[%s210 + $0x408] sm:$0xff]
      %v373 = vld [vmem:[%s210 + $0x410] sm:$0xf]
      %v374 = vld [vmem:[%s210 + $0x414] sm:$0xff]
      %v375 = vld [vmem:[%s210 + $0x41c] sm:$0xff]
      %v376 = vld [vmem:[%s210 + $0x424] sm:$0xff]
      %v377 = vld [vmem:[%s210 + $0x42c] sm:$0xff]
      %v378 = vld [vmem:[%s210 + $0x434] sm:$0xf]
      %v379 = vld [vmem:[%s215] sm:$0xf]
      %v380 = vld [vmem:[%s215 + $0x4] sm:$0xf]
      %v381 = vld [vmem:[%s215 + $0x8] sm:$0xf]
      %v382 = vld [vmem:[%s215 + $0xc] sm:$0xf]
      %v383 = vld [vmem:[%s215 + $0x10] sm:$0xf]
      %v384 = vld [vmem:[%s215 + $0x14] sm:$0xf]
      %v385 = vld [vmem:[%s215 + $0x18] sm:$0xf]
      %v386 = vld [vmem:[%s215 + $0x1c] sm:$0xf]
      %v387 = vld [vmem:[%s215 + $0x20] sm:$0xf]
      %v388 = vld [vmem:[%s215 + $0x24] sm:$0xf]
      %v389 = vld [vmem:[%s215 + $0x28] sm:$0xf]
      %v390 = vld [vmem:[%s215 + $0x2c] sm:$0xf]
      %v391 = vld [vmem:[%s215 + $0x30] sm:$0xf]
      %v392 = vld [vmem:[%s215 + $0x34] sm:$0xf]
      %v393 = vld [vmem:[%s215 + $0x38] sm:$0xf]
      %v394 = vld [vmem:[%s215 + $0x3c] sm:$0xf]
      %v395 = vld [vmem:[%s215 + $0x40] sm:$0xf]
      %v396 = vld [vmem:[%s215 + $0x44] sm:$0xf]
      %v397 = vld [vmem:[%s215 + $0x48] sm:$0xf]
      %v398 = vld [vmem:[%s215 + $0x4c] sm:$0xf]
      %v399 = vld [vmem:[%s215 + $0x50] sm:$0xf]
      %v400 = vld [vmem:[%s215 + $0x54] sm:$0xf]
      %v401 = vld [vmem:[%s215 + $0x58] sm:$0xf]
      %v402 = vld [vmem:[%s215 + $0x5c] sm:$0xf]
      %v403 = vld [vmem:[%s215 + $0x60] sm:$0xf]
      %v404 = vld [vmem:[%s215 + $0x64] sm:$0xf]
      %v405 = vld [vmem:[%s215 + $0x68] sm:$0xf]
      %v406 = vld [vmem:[%s215 + $0x6c] sm:$0xf]
      %v407 = vld [vmem:[%s215 + $0x70] sm:$0xf]
      %v408 = vld [vmem:[%s215 + $0x74] sm:$0xf]
      %v409 = vld [vmem:[%s215 + $0x78] sm:$0xf]
      %v410 = vld [vmem:[%s215 + $0x7c] sm:$0xf]
      %v411 = vld [vmem:[%s215 + $0x80] sm:$0xf]
      %v412 = vld [vmem:[%s215 + $0x84] sm:$0xf]
      %v413 = vld [vmem:[%s215 + $0x88] sm:$0xf]
      %v414 = vld [vmem:[%s215 + $0x8c] sm:$0xf]
      %v415 = vld [vmem:[%s215 + $0x90] sm:$0xf]
      %v416 = vld [vmem:[%s215 + $0x94] sm:$0xf]
      %v417 = vld [vmem:[%s215 + $0x98] sm:$0xf]
      %v418 = vld [vmem:[%s215 + $0x9c] sm:$0xf]
      %v419 = vld [vmem:[%s215 + $0xa0] sm:$0xf]
      %v420 = vld [vmem:[%s215 + $0xa4] sm:$0xf]
      %v421 = vld [vmem:[%s215 + $0xa8] sm:$0xf]
      %v422 = vld [vmem:[%s215 + $0xac] sm:$0xf]
      %v423 = vld [vmem:[%s215 + $0xb0] sm:$0xf]
      %v424 = vld [vmem:[%s215 + $0xb4] sm:$0xf]
      %v425 = vld [vmem:[%s215 + $0xb8] sm:$0xf]
      %v426 = vld [vmem:[%s215 + $0xbc] sm:$0xf]
      %v427 = vld [vmem:[%s215 + $0xc0] sm:$0xf]
      %v428 = vld [vmem:[%s215 + $0xc4] sm:$0xf]
      %v429 = vld [vmem:[%s215 + $0xc8] sm:$0xf]
      %v430 = vld [vmem:[%s215 + $0xcc] sm:$0xf]
      %v431 = vld [vmem:[%s215 + $0xd0] sm:$0xf]
      %v432 = vld [vmem:[%s215 + $0xd4] sm:$0xf]
      %v433 = vld [vmem:[%s215 + $0xd8] sm:$0xf]
      %v434 = vld [vmem:[%s215 + $0xdc] sm:$0xf]
      %v435 = vld [vmem:[%s215 + $0xe0] sm:$0xf]
      %v436 = vld [vmem:[%s215 + $0xe4] sm:$0xf]
      %v437 = vld [vmem:[%s215 + $0xe8] sm:$0xf]
      %v438 = vld [vmem:[%s215 + $0xec] sm:$0xf]
      %v439 = vld [vmem:[%s215 + $0xf0] sm:$0xf]
      %v440 = vld [vmem:[%s215 + $0xf4] sm:$0xf]
      %v441 = vld [vmem:[%s215 + $0xf8] sm:$0xf]
      %v442 = vld [vmem:[%s215 + $0xfc] sm:$0xf]
      %v443 = vld [vmem:[%s215 + $0x100] sm:$0xf]
      %v444 = vld [vmem:[%s215 + $0x104] sm:$0xf]
      %v445 = vld [vmem:[%s215 + $0x108] sm:$0xf]
      %v446 = vld [vmem:[%s215 + $0x10c] sm:$0xf]
      %v447 = vld [vmem:[%s215 + $0x110] sm:$0xf]
      %v448 = vld [vmem:[%s215 + $0x114] sm:$0xf]
      %v449 = vld [vmem:[%s215 + $0x118] sm:$0xf]
      %v450 = vld [vmem:[%s215 + $0x11c] sm:$0xf]
      %v451 = vld [vmem:[%s215 + $0x120] sm:$0xf]
      %v452 = vld [vmem:[%s215 + $0x124] sm:$0xf]
      %v453 = vld [vmem:[%s215 + $0x128] sm:$0xf]
      %v454 = vld [vmem:[%s215 + $0x12c] sm:$0xf]
      %v455 = vld [vmem:[%s215 + $0x130] sm:$0xf]
      %v456 = vld [vmem:[%s215 + $0x134] sm:$0xf]
      %v457 = vld [vmem:[%s215 + $0x138] sm:$0xf]
      %v458 = vld [vmem:[%s215 + $0x13c] sm:$0xf]
      %v459 = vld [vmem:[%s215 + $0x140] sm:$0xf]
      %v460 = vld [vmem:[%s215 + $0x144] sm:$0xf]
      %v461 = vld [vmem:[%s215 + $0x148] sm:$0xf]
      %v462 = vld [vmem:[%s215 + $0x14c] sm:$0xf]
      %v463 = vld [vmem:[%s215 + $0x150] sm:$0xf]
      %v464 = vld [vmem:[%s215 + $0x154] sm:$0xf]
      %v465 = vld [vmem:[%s215 + $0x158] sm:$0xf]
      %v466 = vld [vmem:[%s215 + $0x15c] sm:$0xf]
      %v467 = vld [vmem:[%s215 + $0x160] sm:$0xf]
      %v468 = vld [vmem:[%s215 + $0x164] sm:$0xf]
      %v469 = vld [vmem:[%s215 + $0x168] sm:$0xf]
      %v470 = vld [vmem:[%s215 + $0x16c] sm:$0xf]
      %v471 = vld [vmem:[%s215 + $0x170] sm:$0xf]
      %v472 = vld [vmem:[%s215 + $0x174] sm:$0xf]
      %v473 = vld [vmem:[%s215 + $0x178] sm:$0xf]
      %v474 = vld [vmem:[%s215 + $0x17c] sm:$0xf]
      %v475 = vld [vmem:[%s215 + $0x180] sm:$0xf]
      %v476 = vld [vmem:[%s215 + $0x184] sm:$0xf]
      %v477 = vld [vmem:[%s215 + $0x188] sm:$0xf]
      %v478 = vld [vmem:[%s215 + $0x18c] sm:$0xf]
      %v479 = vld [vmem:[%s215 + $0x190] sm:$0xf]
      %v480 = vld [vmem:[%s215 + $0x194] sm:$0xf]
      %v481 = vld [vmem:[%s215 + $0x198] sm:$0xf]
      %v482 = vld [vmem:[%s215 + $0x19c] sm:$0xf]
      %v483 = vld [vmem:[%s215 + $0x1a0] sm:$0xf]
      %v484 = vld [vmem:[%s215 + $0x1a4] sm:$0xf]
      %v485 = vld [vmem:[%s215 + $0x1a8] sm:$0xf]
      %v486 = vld [vmem:[%s215 + $0x1ac] sm:$0xf]
      %v487 = vld [vmem:[%s215 + $0x1b0] sm:$0xf]
      %v488 = vld [vmem:[%s215 + $0x1b4] sm:$0xf]
      %v489 = vld [vmem:[%s215 + $0x1b8] sm:$0xf]
      %v490 = vld [vmem:[%s215 + $0x1bc] sm:$0xf]
      %v491 = vld [vmem:[%s215 + $0x1c0] sm:$0xf]
      %v492 = vld [vmem:[%s215 + $0x1c4] sm:$0xf]
      %v493 = vld [vmem:[%s215 + $0x1c8] sm:$0xf]
      %v494 = vld [vmem:[%s215 + $0x1cc] sm:$0xf]
      %v495 = vld [vmem:[%s215 + $0x1d0] sm:$0xf]
      %v496 = vld [vmem:[%s215 + $0x1d4] sm:$0xf]
      %v497 = vld [vmem:[%s215 + $0x1d8] sm:$0xf]
      %v498 = vld [vmem:[%s215 + $0x1dc] sm:$0xf]
      %v499 = vld [vmem:[%s215 + $0x1e0] sm:$0xf]
      %v500 = vld [vmem:[%s215 + $0x1e4] sm:$0xf]
      %v501 = vld [vmem:[%s215 + $0x1e8] sm:$0xf]
      %v502 = vld [vmem:[%s215 + $0x1ec] sm:$0xf]
      %v503 = vld [vmem:[%s215 + $0x1f0] sm:$0xf]
      %v504 = vld [vmem:[%s215 + $0x1f4] sm:$0xf]
      %v505 = vld [vmem:[%s215 + $0x1f8] sm:$0xf]
      %v506 = vld [vmem:[%s215 + $0x1fc] sm:$0xf]
      %v507 = vld [vmem:[%s215 + $0x200] sm:$0xf]
      %v508 = vld [vmem:[%s215 + $0x204] sm:$0xf]
      %v509 = vld [vmem:[%s215 + $0x208] sm:$0xf]
      %v510 = vld [vmem:[%s215 + $0x20c] sm:$0xf]
      %v511 = vld [vmem:[%s215 + $0x210] sm:$0xf]
      %v512 = vld [vmem:[%s215 + $0x214] sm:$0xf]
      %v513 = vld [vmem:[%s215 + $0x218] sm:$0xf]
      %v514 = vld [vmem:[%s215 + $0x21c] sm:$0xf]
      %v515 = vld [vmem:[%s215 + $0x220] sm:$0xf]
      %v516 = vld [vmem:[%s215 + $0x224] sm:$0xf]
      %v517 = vld [vmem:[%s215 + $0x228] sm:$0xf]
      %v518 = vld [vmem:[%s215 + $0x22c] sm:$0xf]
      %v519 = vld [vmem:[%s215 + $0x230] sm:$0xf]
      %v520 = vld [vmem:[%s215 + $0x234] sm:$0xf]
      %v521 = vld [vmem:[%s215 + $0x238] sm:$0xf]
      %v522 = vld [vmem:[%s215 + $0x23c] sm:$0xf]
      %v523 = vld [vmem:[%s218] sm:$0x1]
      %v525 = vlaneseq
      %v526 = vshrl.u32 %v525, 7
      %v527 = vsub.s32 0, %v526
      %v528 = vrot.slane %v523, %v527
      %v680 = vunpack.c.l.b16 %v229
      %v681 = vunpack.c.h.b16 %v229
      %v682 = vunpack.c.l.b16 %v230
      %v683 = vunpack.c.h.b16 %v230
      %v684 = vunpack.c.l.b16 %v231
      %v685 = vunpack.c.h.b16 %v231
      %v686 = vunpack.c.l.b16 %v232
      %v687 = vunpack.c.h.b16 %v232
      %v688 = vunpack.c.l.b16 %v233
      %v689 = vunpack.c.l.b16 %v234
      %v690 = vunpack.c.h.b16 %v234
      %v691 = vunpack.c.l.b16 %v235
      %v692 = vunpack.c.h.b16 %v235
      %v693 = vunpack.c.l.b16 %v236
      %v694 = vunpack.c.h.b16 %v236
      %v695 = vunpack.c.l.b16 %v237
      %v696 = vunpack.c.h.b16 %v237
      %v697 = vunpack.c.l.b16 %v238
      %v698 = vunpack.c.l.b16 %v239
      %v699 = vunpack.c.h.b16 %v239
      %v700 = vunpack.c.l.b16 %v240
      %v701 = vunpack.c.h.b16 %v240
      %v702 = vunpack.c.l.b16 %v241
      %v703 = vunpack.c.h.b16 %v241
      %v704 = vunpack.c.l.b16 %v242
      %v705 = vunpack.c.h.b16 %v242
      %v706 = vunpack.c.l.b16 %v243
      %v707 = vunpack.c.l.b16 %v244
      %v708 = vunpack.c.h.b16 %v244
      %v709 = vunpack.c.l.b16 %v245
      %v710 = vunpack.c.h.b16 %v245
      %v711 = vunpack.c.l.b16 %v246
      %v712 = vunpack.c.h.b16 %v246
      %v713 = vunpack.c.l.b16 %v247
      %v714 = vunpack.c.h.b16 %v247
      %v715 = vunpack.c.l.b16 %v248
      %v716 = vunpack.c.l.b16 %v249
      %v717 = vunpack.c.h.b16 %v249
      %v718 = vunpack.c.l.b16 %v250
      %v719 = vunpack.c.h.b16 %v250
      %v720 = vunpack.c.l.b16 %v251
      %v721 = vunpack.c.h.b16 %v251
      %v722 = vunpack.c.l.b16 %v252
      %v723 = vunpack.c.h.b16 %v252
      %v724 = vunpack.c.l.b16 %v253
      %v725 = vunpack.c.l.b16 %v254
      %v726 = vunpack.c.h.b16 %v254
      %v727 = vunpack.c.l.b16 %v255
      %v728 = vunpack.c.h.b16 %v255
      %v729 = vunpack.c.l.b16 %v256
      %v730 = vunpack.c.h.b16 %v256
      %v731 = vunpack.c.l.b16 %v257
      %v732 = vunpack.c.h.b16 %v257
      %v733 = vunpack.c.l.b16 %v258
      %v734 = vunpack.c.l.b16 %v259
      %v735 = vunpack.c.h.b16 %v259
      %v736 = vunpack.c.l.b16 %v260
      %v737 = vunpack.c.h.b16 %v260
      %v738 = vunpack.c.l.b16 %v261
      %v739 = vunpack.c.h.b16 %v261
      %v740 = vunpack.c.l.b16 %v262
      %v741 = vunpack.c.h.b16 %v262
      %v742 = vunpack.c.l.b16 %v263
      %v743 = vunpack.c.l.b16 %v264
      %v744 = vunpack.c.h.b16 %v264
      %v745 = vunpack.c.l.b16 %v265
      %v746 = vunpack.c.h.b16 %v265
      %v747 = vunpack.c.l.b16 %v266
      %v748 = vunpack.c.h.b16 %v266
      %v749 = vunpack.c.l.b16 %v267
      %v750 = vunpack.c.h.b16 %v267
      %v751 = vunpack.c.l.b16 %v268
      %v752 = vunpack.c.l.b16 %v269
      %v753 = vunpack.c.h.b16 %v269
      %v754 = vunpack.c.l.b16 %v270
      %v755 = vunpack.c.h.b16 %v270
      %v756 = vunpack.c.l.b16 %v271
      %v757 = vunpack.c.h.b16 %v271
      %v758 = vunpack.c.l.b16 %v272
      %v759 = vunpack.c.h.b16 %v272
      %v760 = vunpack.c.l.b16 %v273
      %v761 = vunpack.c.l.b16 %v274
      %v762 = vunpack.c.h.b16 %v274
      %v763 = vunpack.c.l.b16 %v275
      %v764 = vunpack.c.h.b16 %v275
      %v765 = vunpack.c.l.b16 %v276
      %v766 = vunpack.c.h.b16 %v276
      %v767 = vunpack.c.l.b16 %v277
      %v768 = vunpack.c.h.b16 %v277
      %v769 = vunpack.c.l.b16 %v278
      %v770 = vunpack.c.l.b16 %v279
      %v771 = vunpack.c.h.b16 %v279
      %v772 = vunpack.c.l.b16 %v280
      %v773 = vunpack.c.h.b16 %v280
      %v774 = vunpack.c.l.b16 %v281
      %v775 = vunpack.c.h.b16 %v281
      %v776 = vunpack.c.l.b16 %v282
      %v777 = vunpack.c.h.b16 %v282
      %v778 = vunpack.c.l.b16 %v283
      %v779 = vunpack.c.l.b16 %v284
      %v780 = vunpack.c.h.b16 %v284
      %v781 = vunpack.c.l.b16 %v285
      %v782 = vunpack.c.h.b16 %v285
      %v783 = vunpack.c.l.b16 %v286
      %v784 = vunpack.c.h.b16 %v286
      %v785 = vunpack.c.l.b16 %v287
      %v786 = vunpack.c.h.b16 %v287
      %v787 = vunpack.c.l.b16 %v288
      %v788 = vunpack.c.l.b16 %v289
      %v789 = vunpack.c.h.b16 %v289
      %v790 = vunpack.c.l.b16 %v290
      %v791 = vunpack.c.h.b16 %v290
      %v792 = vunpack.c.l.b16 %v291
      %v793 = vunpack.c.h.b16 %v291
      %v794 = vunpack.c.l.b16 %v292
      %v795 = vunpack.c.h.b16 %v292
      %v796 = vunpack.c.l.b16 %v293
      %v797 = vunpack.c.l.b16 %v294
      %v798 = vunpack.c.h.b16 %v294
      %v799 = vunpack.c.l.b16 %v295
      %v800 = vunpack.c.h.b16 %v295
      %v801 = vunpack.c.l.b16 %v296
      %v802 = vunpack.c.h.b16 %v296
      %v803 = vunpack.c.l.b16 %v297
      %v804 = vunpack.c.h.b16 %v297
      %v805 = vunpack.c.l.b16 %v298
      %v806 = vunpack.c.l.b16 %v299
      %v807 = vunpack.c.h.b16 %v299
      %v808 = vunpack.c.l.b16 %v300
      %v809 = vunpack.c.h.b16 %v300
      %v810 = vunpack.c.l.b16 %v301
      %v811 = vunpack.c.h.b16 %v301
      %v812 = vunpack.c.l.b16 %v302
      %v813 = vunpack.c.h.b16 %v302
      %v814 = vunpack.c.l.b16 %v303
      %v815 = vunpack.c.l.b16 %v304
      %v816 = vunpack.c.h.b16 %v304
      %v817 = vunpack.c.l.b16 %v305
      %v818 = vunpack.c.h.b16 %v305
      %v819 = vunpack.c.l.b16 %v306
      %v820 = vunpack.c.h.b16 %v306
      %v821 = vunpack.c.l.b16 %v307
      %v822 = vunpack.c.h.b16 %v307
      %v823 = vunpack.c.l.b16 %v308
      %v824 = vunpack.c.l.b16 %v309
      %v825 = vunpack.c.h.b16 %v309
      %v826 = vunpack.c.l.b16 %v310
      %v827 = vunpack.c.h.b16 %v310
      %v828 = vunpack.c.l.b16 %v311
      %v829 = vunpack.c.h.b16 %v311
      %v830 = vunpack.c.l.b16 %v312
      %v831 = vunpack.c.h.b16 %v312
      %v832 = vunpack.c.l.b16 %v313
      %v833 = vunpack.c.l.b16 %v314
      %v834 = vunpack.c.h.b16 %v314
      %v835 = vunpack.c.l.b16 %v315
      %v836 = vunpack.c.h.b16 %v315
      %v837 = vunpack.c.l.b16 %v316
      %v838 = vunpack.c.h.b16 %v316
      %v839 = vunpack.c.l.b16 %v317
      %v840 = vunpack.c.h.b16 %v317
      %v841 = vunpack.c.l.b16 %v318
      %v842 = vunpack.c.l.b16 %v319
      %v843 = vunpack.c.h.b16 %v319
      %v844 = vunpack.c.l.b16 %v320
      %v845 = vunpack.c.h.b16 %v320
      %v846 = vunpack.c.l.b16 %v321
      %v847 = vunpack.c.h.b16 %v321
      %v848 = vunpack.c.l.b16 %v322
      %v849 = vunpack.c.h.b16 %v322
      %v850 = vunpack.c.l.b16 %v323
      %v851 = vunpack.c.l.b16 %v324
      %v852 = vunpack.c.h.b16 %v324
      %v853 = vunpack.c.l.b16 %v325
      %v854 = vunpack.c.h.b16 %v325
      %v855 = vunpack.c.l.b16 %v326
      %v856 = vunpack.c.h.b16 %v326
      %v857 = vunpack.c.l.b16 %v327
      %v858 = vunpack.c.h.b16 %v327
      %v859 = vunpack.c.l.b16 %v328
      %v860 = vunpack.c.l.b16 %v329
      %v861 = vunpack.c.h.b16 %v329
      %v862 = vunpack.c.l.b16 %v330
      %v863 = vunpack.c.h.b16 %v330
      %v864 = vunpack.c.l.b16 %v331
      %v865 = vunpack.c.h.b16 %v331
      %v866 = vunpack.c.l.b16 %v332
      %v867 = vunpack.c.h.b16 %v332
      %v868 = vunpack.c.l.b16 %v333
      %v869 = vunpack.c.l.b16 %v334
      %v870 = vunpack.c.h.b16 %v334
      %v871 = vunpack.c.l.b16 %v335
      %v872 = vunpack.c.h.b16 %v335
      %v873 = vunpack.c.l.b16 %v336
      %v874 = vunpack.c.h.b16 %v336
      %v875 = vunpack.c.l.b16 %v337
      %v876 = vunpack.c.h.b16 %v337
      %v877 = vunpack.c.l.b16 %v338
      %v878 = vunpack.c.l.b16 %v339
      %v879 = vunpack.c.h.b16 %v339
      %v880 = vunpack.c.l.b16 %v340
      %v881 = vunpack.c.h.b16 %v340
      %v882 = vunpack.c.l.b16 %v341
      %v883 = vunpack.c.h.b16 %v341
      %v884 = vunpack.c.l.b16 %v342
      %v885 = vunpack.c.h.b16 %v342
      %v886 = vunpack.c.l.b16 %v343
      %v887 = vunpack.c.l.b16 %v344
      %v888 = vunpack.c.h.b16 %v344
      %v889 = vunpack.c.l.b16 %v345
      %v890 = vunpack.c.h.b16 %v345
      %v891 = vunpack.c.l.b16 %v346
      %v892 = vunpack.c.h.b16 %v346
      %v893 = vunpack.c.l.b16 %v347
      %v894 = vunpack.c.h.b16 %v347
      %v895 = vunpack.c.l.b16 %v348
      %v896 = vunpack.c.l.b16 %v349
      %v897 = vunpack.c.h.b16 %v349
      %v898 = vunpack.c.l.b16 %v350
      %v899 = vunpack.c.h.b16 %v350
      %v900 = vunpack.c.l.b16 %v351
      %v901 = vunpack.c.h.b16 %v351
      %v902 = vunpack.c.l.b16 %v352
      %v903 = vunpack.c.h.b16 %v352
      %v904 = vunpack.c.l.b16 %v353
      %v905 = vunpack.c.l.b16 %v354
      %v906 = vunpack.c.h.b16 %v354
      %v907 = vunpack.c.l.b16 %v355
      %v908 = vunpack.c.h.b16 %v355
      %v909 = vunpack.c.l.b16 %v356
      %v910 = vunpack.c.h.b16 %v356
      %v911 = vunpack.c.l.b16 %v357
      %v912 = vunpack.c.h.b16 %v357
      %v913 = vunpack.c.l.b16 %v358
      %v914 = vunpack.c.l.b16 %v359
      %v915 = vunpack.c.h.b16 %v359
      %v916 = vunpack.c.l.b16 %v360
      %v917 = vunpack.c.h.b16 %v360
      %v918 = vunpack.c.l.b16 %v361
      %v919 = vunpack.c.h.b16 %v361
      %v920 = vunpack.c.l.b16 %v362
      %v921 = vunpack.c.h.b16 %v362
      %v922 = vunpack.c.l.b16 %v363
      %v923 = vunpack.c.l.b16 %v364
      %v924 = vunpack.c.h.b16 %v364
      %v925 = vunpack.c.l.b16 %v365
      %v926 = vunpack.c.h.b16 %v365
      %v927 = vunpack.c.l.b16 %v366
      %v928 = vunpack.c.h.b16 %v366
      %v929 = vunpack.c.l.b16 %v367
      %v930 = vunpack.c.h.b16 %v367
      %v931 = vunpack.c.l.b16 %v368
      %v932 = vunpack.c.l.b16 %v369
      %v933 = vunpack.c.h.b16 %v369
      %v934 = vunpack.c.l.b16 %v370
      %v935 = vunpack.c.h.b16 %v370
      %v936 = vunpack.c.l.b16 %v371
      %v937 = vunpack.c.h.b16 %v371
      %v938 = vunpack.c.l.b16 %v372
      %v939 = vunpack.c.h.b16 %v372
      %v940 = vunpack.c.l.b16 %v373
      %v941 = vunpack.c.l.b16 %v374
      %v942 = vunpack.c.h.b16 %v374
      %v943 = vunpack.c.l.b16 %v375
      %v944 = vunpack.c.h.b16 %v375
      %v945 = vunpack.c.l.b16 %v376
      %v946 = vunpack.c.h.b16 %v376
      %v947 = vunpack.c.l.b16 %v377
      %v948 = vunpack.c.h.b16 %v377
      %v949 = vunpack.c.l.b16 %v378
      %v950 = vpack.c.b16 %v689, %v680
      %v951 = vpack.c.b16 %v690, %v681
      %v952 = vpack.c.b16 %v691, %v682
      %v953 = vpack.c.b16 %v692, %v683
      %v954 = vpack.c.b16 %v693, %v684
      %v955 = vpack.c.b16 %v694, %v685
      %v956 = vpack.c.b16 %v695, %v686
      %v957 = vpack.c.b16 %v696, %v687
      %v958 = vpack.c.b16 %v697, %v688
      %v959 = vpack.c.b16 %v707, %v698
      %v960 = vpack.c.b16 %v708, %v699
      %v961 = vpack.c.b16 %v709, %v700
      %v962 = vpack.c.b16 %v710, %v701
      %v963 = vpack.c.b16 %v711, %v702
      %v964 = vpack.c.b16 %v712, %v703
      %v965 = vpack.c.b16 %v713, %v704
      %v966 = vpack.c.b16 %v714, %v705
      %v967 = vpack.c.b16 %v715, %v706
      %v968 = vpack.c.b16 %v725, %v716
      %v969 = vpack.c.b16 %v726, %v717
      %v970 = vpack.c.b16 %v727, %v718
      %v971 = vpack.c.b16 %v728, %v719
      %v972 = vpack.c.b16 %v729, %v720
      %v973 = vpack.c.b16 %v730, %v721
      %v974 = vpack.c.b16 %v731, %v722
      %v975 = vpack.c.b16 %v732, %v723
      %v976 = vpack.c.b16 %v733, %v724
      %v977 = vpack.c.b16 %v743, %v734
      %v978 = vpack.c.b16 %v744, %v735
      %v979 = vpack.c.b16 %v745, %v736
      %v980 = vpack.c.b16 %v746, %v737
      %v981 = vpack.c.b16 %v747, %v738
      %v982 = vpack.c.b16 %v748, %v739
      %v983 = vpack.c.b16 %v749, %v740
      %v984 = vpack.c.b16 %v750, %v741
      %v985 = vpack.c.b16 %v751, %v742
      %v986 = vpack.c.b16 %v761, %v752
      %v987 = vpack.c.b16 %v762, %v753
      %v988 = vpack.c.b16 %v763, %v754
      %v989 = vpack.c.b16 %v764, %v755
      %v990 = vpack.c.b16 %v765, %v756
      %v991 = vpack.c.b16 %v766, %v757
      %v992 = vpack.c.b16 %v767, %v758
      %v993 = vpack.c.b16 %v768, %v759
      %v994 = vpack.c.b16 %v769, %v760
      %v995 = vpack.c.b16 %v779, %v770
      %v996 = vpack.c.b16 %v780, %v771
      %v997 = vpack.c.b16 %v781, %v772
      %v998 = vpack.c.b16 %v782, %v773
      %v999 = vpack.c.b16 %v783, %v774
      %v1000 = vpack.c.b16 %v784, %v775
      %v1001 = vpack.c.b16 %v785, %v776
      %v1002 = vpack.c.b16 %v786, %v777
      %v1003 = vpack.c.b16 %v787, %v778
      %v1004 = vpack.c.b16 %v797, %v788
      %v1005 = vpack.c.b16 %v798, %v789
      %v1006 = vpack.c.b16 %v799, %v790
      %v1007 = vpack.c.b16 %v800, %v791
      %v1008 = vpack.c.b16 %v801, %v792
      %v1009 = vpack.c.b16 %v802, %v793
      %v1010 = vpack.c.b16 %v803, %v794
      %v1011 = vpack.c.b16 %v804, %v795
      %v1012 = vpack.c.b16 %v805, %v796
      %v1013 = vpack.c.b16 %v815, %v806
      %v1014 = vpack.c.b16 %v816, %v807
      %v1015 = vpack.c.b16 %v817, %v808
      %v1016 = vpack.c.b16 %v818, %v809
      %v1017 = vpack.c.b16 %v819, %v810
      %v1018 = vpack.c.b16 %v820, %v811
      %v1019 = vpack.c.b16 %v821, %v812
      %v1020 = vpack.c.b16 %v822, %v813
      %v1021 = vpack.c.b16 %v823, %v814
      %v1022 = vpack.c.b16 %v833, %v824
      %v1023 = vpack.c.b16 %v834, %v825
      %v1024 = vpack.c.b16 %v835, %v826
      %v1025 = vpack.c.b16 %v836, %v827
      %v1026 = vpack.c.b16 %v837, %v828
      %v1027 = vpack.c.b16 %v838, %v829
      %v1028 = vpack.c.b16 %v839, %v830
      %v1029 = vpack.c.b16 %v840, %v831
      %v1030 = vpack.c.b16 %v841, %v832
      %v1031 = vpack.c.b16 %v851, %v842
      %v1032 = vpack.c.b16 %v852, %v843
      %v1033 = vpack.c.b16 %v853, %v844
      %v1034 = vpack.c.b16 %v854, %v845
      %v1035 = vpack.c.b16 %v855, %v846
      %v1036 = vpack.c.b16 %v856, %v847
      %v1037 = vpack.c.b16 %v857, %v848
      %v1038 = vpack.c.b16 %v858, %v849
      %v1039 = vpack.c.b16 %v859, %v850
      %v1040 = vpack.c.b16 %v869, %v860
      %v1041 = vpack.c.b16 %v870, %v861
      %v1042 = vpack.c.b16 %v871, %v862
      %v1043 = vpack.c.b16 %v872, %v863
      %v1044 = vpack.c.b16 %v873, %v864
      %v1045 = vpack.c.b16 %v874, %v865
      %v1046 = vpack.c.b16 %v875, %v866
      %v1047 = vpack.c.b16 %v876, %v867
      %v1048 = vpack.c.b16 %v877, %v868
      %v1049 = vpack.c.b16 %v887, %v878
      %v1050 = vpack.c.b16 %v888, %v879
      %v1051 = vpack.c.b16 %v889, %v880
      %v1052 = vpack.c.b16 %v890, %v881
      %v1053 = vpack.c.b16 %v891, %v882
      %v1054 = vpack.c.b16 %v892, %v883
      %v1055 = vpack.c.b16 %v893, %v884
      %v1056 = vpack.c.b16 %v894, %v885
      %v1057 = vpack.c.b16 %v895, %v886
      %v1058 = vpack.c.b16 %v905, %v896
      %v1059 = vpack.c.b16 %v906, %v897
      %v1060 = vpack.c.b16 %v907, %v898
      %v1061 = vpack.c.b16 %v908, %v899
      %v1062 = vpack.c.b16 %v909, %v900
      %v1063 = vpack.c.b16 %v910, %v901
      %v1064 = vpack.c.b16 %v911, %v902
      %v1065 = vpack.c.b16 %v912, %v903
      %v1066 = vpack.c.b16 %v913, %v904
      %v1067 = vpack.c.b16 %v923, %v914
      %v1068 = vpack.c.b16 %v924, %v915
      %v1069 = vpack.c.b16 %v925, %v916
      %v1070 = vpack.c.b16 %v926, %v917
      %v1071 = vpack.c.b16 %v927, %v918
      %v1072 = vpack.c.b16 %v928, %v919
      %v1073 = vpack.c.b16 %v929, %v920
      %v1074 = vpack.c.b16 %v930, %v921
      %v1075 = vpack.c.b16 %v931, %v922
      %v1076 = vpack.c.b16 %v941, %v932
      %v1077 = vpack.c.b16 %v942, %v933
      %v1078 = vpack.c.b16 %v943, %v934
      %v1079 = vpack.c.b16 %v944, %v935
      %v1080 = vpack.c.b16 %v945, %v936
      %v1081 = vpack.c.b16 %v946, %v937
      %v1082 = vpack.c.b16 %v947, %v938
      %v1083 = vpack.c.b16 %v948, %v939
      %v1084 = vpack.c.b16 %v949, %v940
      %v1364 = vunpack.c.l.b16 %v379
      %v1365 = vunpack.c.l.b16 %v380
      %v1366 = vunpack.c.l.b16 %v381
      %v1367 = vunpack.c.l.b16 %v382
      %v1368 = vunpack.c.l.b16 %v383
      %v1369 = vunpack.c.l.b16 %v384
      %v1370 = vunpack.c.l.b16 %v385
      %v1371 = vunpack.c.l.b16 %v386
      %v1372 = vunpack.c.l.b16 %v387
      %v1373 = vunpack.c.l.b16 %v388
      %v1374 = vunpack.c.l.b16 %v389
      %v1375 = vunpack.c.l.b16 %v390
      %v1376 = vunpack.c.l.b16 %v391
      %v1377 = vunpack.c.l.b16 %v392
      %v1378 = vunpack.c.l.b16 %v393
      %v1379 = vunpack.c.l.b16 %v394
      %v1380 = vunpack.c.l.b16 %v395
      %v1381 = vunpack.c.l.b16 %v396
      %v1382 = vunpack.c.l.b16 %v397
      %v1383 = vunpack.c.l.b16 %v398
      %v1384 = vunpack.c.l.b16 %v399
      %v1385 = vunpack.c.l.b16 %v400
      %v1386 = vunpack.c.l.b16 %v401
      %v1387 = vunpack.c.l.b16 %v402
      %v1388 = vunpack.c.l.b16 %v403
      %v1389 = vunpack.c.l.b16 %v404
      %v1390 = vunpack.c.l.b16 %v405
      %v1391 = vunpack.c.l.b16 %v406
      %v1392 = vunpack.c.l.b16 %v407
      %v1393 = vunpack.c.l.b16 %v408
      %v1394 = vunpack.c.l.b16 %v409
      %v1395 = vunpack.c.l.b16 %v410
      %v1396 = vunpack.c.l.b16 %v411
      %v1397 = vunpack.c.l.b16 %v412
      %v1398 = vunpack.c.l.b16 %v413
      %v1399 = vunpack.c.l.b16 %v414
      %v1400 = vunpack.c.l.b16 %v415
      %v1401 = vunpack.c.l.b16 %v416
      %v1402 = vunpack.c.l.b16 %v417
      %v1403 = vunpack.c.l.b16 %v418
      %v1404 = vunpack.c.l.b16 %v419
      %v1405 = vunpack.c.l.b16 %v420
      %v1406 = vunpack.c.l.b16 %v421
      %v1407 = vunpack.c.l.b16 %v422
      %v1408 = vunpack.c.l.b16 %v423
      %v1409 = vunpack.c.l.b16 %v424
      %v1410 = vunpack.c.l.b16 %v425
      %v1411 = vunpack.c.l.b16 %v426
      %v1412 = vunpack.c.l.b16 %v427
      %v1413 = vunpack.c.l.b16 %v428
      %v1414 = vunpack.c.l.b16 %v429
      %v1415 = vunpack.c.l.b16 %v430
      %v1416 = vunpack.c.l.b16 %v431
      %v1417 = vunpack.c.l.b16 %v432
      %v1418 = vunpack.c.l.b16 %v433
      %v1419 = vunpack.c.l.b16 %v434
      %v1420 = vunpack.c.l.b16 %v435
      %v1421 = vunpack.c.l.b16 %v436
      %v1422 = vunpack.c.l.b16 %v437
      %v1423 = vunpack.c.l.b16 %v438
      %v1424 = vunpack.c.l.b16 %v439
      %v1425 = vunpack.c.l.b16 %v440
      %v1426 = vunpack.c.l.b16 %v441
      %v1427 = vunpack.c.l.b16 %v442
      %v1428 = vunpack.c.l.b16 %v443
      %v1429 = vunpack.c.l.b16 %v444
      %v1430 = vunpack.c.l.b16 %v445
      %v1431 = vunpack.c.l.b16 %v446
      %v1432 = vunpack.c.l.b16 %v447
      %v1433 = vunpack.c.l.b16 %v448
      %v1434 = vunpack.c.l.b16 %v449
      %v1435 = vunpack.c.l.b16 %v450
      %v1436 = vunpack.c.l.b16 %v451
      %v1437 = vunpack.c.l.b16 %v452
      %v1438 = vunpack.c.l.b16 %v453
      %v1439 = vunpack.c.l.b16 %v454
      %v1440 = vunpack.c.l.b16 %v455
      %v1441 = vunpack.c.l.b16 %v456
      %v1442 = vunpack.c.l.b16 %v457
      %v1443 = vunpack.c.l.b16 %v458
      %v1444 = vunpack.c.l.b16 %v459
      %v1445 = vunpack.c.l.b16 %v460
      %v1446 = vunpack.c.l.b16 %v461
      %v1447 = vunpack.c.l.b16 %v462
      %v1448 = vunpack.c.l.b16 %v463
      %v1449 = vunpack.c.l.b16 %v464
      %v1450 = vunpack.c.l.b16 %v465
      %v1451 = vunpack.c.l.b16 %v466
      %v1452 = vunpack.c.l.b16 %v467
      %v1453 = vunpack.c.l.b16 %v468
      %v1454 = vunpack.c.l.b16 %v469
      %v1455 = vunpack.c.l.b16 %v470
      %v1456 = vunpack.c.l.b16 %v471
      %v1457 = vunpack.c.l.b16 %v472
      %v1458 = vunpack.c.l.b16 %v473
      %v1459 = vunpack.c.l.b16 %v474
      %v1460 = vunpack.c.l.b16 %v475
      %v1461 = vunpack.c.l.b16 %v476
      %v1462 = vunpack.c.l.b16 %v477
      %v1463 = vunpack.c.l.b16 %v478
      %v1464 = vunpack.c.l.b16 %v479
      %v1465 = vunpack.c.l.b16 %v480
      %v1466 = vunpack.c.l.b16 %v481
      %v1467 = vunpack.c.l.b16 %v482
      %v1468 = vunpack.c.l.b16 %v483
      %v1469 = vunpack.c.l.b16 %v484
      %v1470 = vunpack.c.l.b16 %v485
      %v1471 = vunpack.c.l.b16 %v486
      %v1472 = vunpack.c.l.b16 %v487
      %v1473 = vunpack.c.l.b16 %v488
      %v1474 = vunpack.c.l.b16 %v489
      %v1475 = vunpack.c.l.b16 %v490
      %v1476 = vunpack.c.l.b16 %v491
      %v1477 = vunpack.c.l.b16 %v492
      %v1478 = vunpack.c.l.b16 %v493
      %v1479 = vunpack.c.l.b16 %v494
      %v1480 = vunpack.c.l.b16 %v495
      %v1481 = vunpack.c.l.b16 %v496
      %v1482 = vunpack.c.l.b16 %v497
      %v1483 = vunpack.c.l.b16 %v498
      %v1484 = vunpack.c.l.b16 %v499
      %v1485 = vunpack.c.l.b16 %v500
      %v1486 = vunpack.c.l.b16 %v501
      %v1487 = vunpack.c.l.b16 %v502
      %v1488 = vunpack.c.l.b16 %v503
      %v1489 = vunpack.c.l.b16 %v504
      %v1490 = vunpack.c.l.b16 %v505
      %v1491 = vunpack.c.l.b16 %v506
      %v1492 = vunpack.c.l.b16 %v507
      %v1493 = vunpack.c.l.b16 %v508
      %v1494 = vunpack.c.l.b16 %v509
      %v1495 = vunpack.c.l.b16 %v510
      %v1496 = vunpack.c.l.b16 %v511
      %v1497 = vunpack.c.l.b16 %v512
      %v1498 = vunpack.c.l.b16 %v513
      %v1499 = vunpack.c.l.b16 %v514
      %v1500 = vunpack.c.l.b16 %v515
      %v1501 = vunpack.c.l.b16 %v516
      %v1502 = vunpack.c.l.b16 %v517
      %v1503 = vunpack.c.l.b16 %v518
      %v1504 = vunpack.c.l.b16 %v519
      %v1505 = vunpack.c.l.b16 %v520
      %v1506 = vunpack.c.l.b16 %v521
      %v1507 = vunpack.c.l.b16 %v522
      %v1508 = vpack.c.b16 %v1365, %v1364
      %v1509 = vpack.c.b16 %v1367, %v1366
      %v1510 = vpack.c.b16 %v1369, %v1368
      %v1511 = vpack.c.b16 %v1371, %v1370
      %v1512 = vpack.c.b16 %v1373, %v1372
      %v1513 = vpack.c.b16 %v1375, %v1374
      %v1514 = vpack.c.b16 %v1377, %v1376
      %v1515 = vpack.c.b16 %v1379, %v1378
      %v1516 = vpack.c.b16 %v1381, %v1380
      %v1517 = vpack.c.b16 %v1383, %v1382
      %v1518 = vpack.c.b16 %v1385, %v1384
      %v1519 = vpack.c.b16 %v1387, %v1386
      %v1520 = vpack.c.b16 %v1389, %v1388
      %v1521 = vpack.c.b16 %v1391, %v1390
      %v1522 = vpack.c.b16 %v1393, %v1392
      %v1523 = vpack.c.b16 %v1395, %v1394
      %v1524 = vpack.c.b16 %v1397, %v1396
      %v1525 = vpack.c.b16 %v1399, %v1398
      %v1526 = vpack.c.b16 %v1401, %v1400
      %v1527 = vpack.c.b16 %v1403, %v1402
      %v1528 = vpack.c.b16 %v1405, %v1404
      %v1529 = vpack.c.b16 %v1407, %v1406
      %v1530 = vpack.c.b16 %v1409, %v1408
      %v1531 = vpack.c.b16 %v1411, %v1410
      %v1532 = vpack.c.b16 %v1413, %v1412
      %v1533 = vpack.c.b16 %v1415, %v1414
      %v1534 = vpack.c.b16 %v1417, %v1416
      %v1535 = vpack.c.b16 %v1419, %v1418
      %v1536 = vpack.c.b16 %v1421, %v1420
      %v1537 = vpack.c.b16 %v1423, %v1422
      %v1538 = vpack.c.b16 %v1425, %v1424
      %v1539 = vpack.c.b16 %v1427, %v1426
      %v1540 = vpack.c.b16 %v1429, %v1428
      %v1541 = vpack.c.b16 %v1431, %v1430
      %v1542 = vpack.c.b16 %v1433, %v1432
      %v1543 = vpack.c.b16 %v1435, %v1434
      %v1544 = vpack.c.b16 %v1437, %v1436
      %v1545 = vpack.c.b16 %v1439, %v1438
      %v1546 = vpack.c.b16 %v1441, %v1440
      %v1547 = vpack.c.b16 %v1443, %v1442
      %v1548 = vpack.c.b16 %v1445, %v1444
      %v1549 = vpack.c.b16 %v1447, %v1446
      %v1550 = vpack.c.b16 %v1449, %v1448
      %v1551 = vpack.c.b16 %v1451, %v1450
      %v1552 = vpack.c.b16 %v1453, %v1452
      %v1553 = vpack.c.b16 %v1455, %v1454
      %v1554 = vpack.c.b16 %v1457, %v1456
      %v1555 = vpack.c.b16 %v1459, %v1458
      %v1556 = vpack.c.b16 %v1461, %v1460
      %v1557 = vpack.c.b16 %v1463, %v1462
      %v1558 = vpack.c.b16 %v1465, %v1464
      %v1559 = vpack.c.b16 %v1467, %v1466
      %v1560 = vpack.c.b16 %v1469, %v1468
      %v1561 = vpack.c.b16 %v1471, %v1470
      %v1562 = vpack.c.b16 %v1473, %v1472
      %v1563 = vpack.c.b16 %v1475, %v1474
      %v1564 = vpack.c.b16 %v1477, %v1476
      %v1565 = vpack.c.b16 %v1479, %v1478
      %v1566 = vpack.c.b16 %v1481, %v1480
      %v1567 = vpack.c.b16 %v1483, %v1482
      %v1568 = vpack.c.b16 %v1485, %v1484
      %v1569 = vpack.c.b16 %v1487, %v1486
      %v1570 = vpack.c.b16 %v1489, %v1488
      %v1571 = vpack.c.b16 %v1491, %v1490
      %v1572 = vpack.c.b16 %v1493, %v1492
      %v1573 = vpack.c.b16 %v1495, %v1494
      %v1574 = vpack.c.b16 %v1497, %v1496
      %v1575 = vpack.c.b16 %v1499, %v1498
      %v1576 = vpack.c.b16 %v1501, %v1500
      %v1577 = vpack.c.b16 %v1503, %v1502
      %v1578 = vpack.c.b16 %v1505, %v1504
      %v1579 = vpack.c.b16 %v1507, %v1506
      %1652 = vmatprep.subr.bf16.mxu0 0
      %1653 = vmatpush1.bf16.msra.mxu0 %v1515
      %1654 = vmatprep.subr.bf16.mxu0 0
      %1655 = vmatpush1.bf16.msra.mxu0 %v1514
      %1656 = vmatprep.subr.bf16.mxu0 0
      %1657 = vmatpush1.bf16.msra.mxu0 %v1513
      %1658 = vmatprep.subr.bf16.mxu0 0
      %1659 = vmatpush1.bf16.msra.mxu0 %v1512
      %1660 = vmatprep.subr.bf16.mxu0 0
      %1661 = vmatpush1.bf16.msra.mxu0 %v1511
      %1662 = vmatprep.subr.bf16.mxu0 0
      %1663 = vmatpush1.bf16.msra.mxu0 %v1510
      %1664 = vmatprep.subr.bf16.mxu0 0
      %1665 = vmatpush1.bf16.msra.mxu0 %v1509
      %1666 = vmatprep.subr.bf16.mxu0 0
      %1667 = vmatpush1.bf16.msra.mxu0 %v1508
      %1668 = vmatprep.subr.bf16.mxu0 0
      %1669 = vmatpush2.bf16.msra.mxu0 %v1523
      %1670 = vmatprep.subr.bf16.mxu0 0
      %1671 = vmatpush2.bf16.msra.mxu0 %v1522
      %1672 = vmatprep.subr.bf16.mxu0 0
      %1673 = vmatpush2.bf16.msra.mxu0 %v1521
      %1674 = vmatprep.subr.bf16.mxu0 0
      %1675 = vmatpush2.bf16.msra.mxu0 %v1520
      %1676 = vmatprep.subr.bf16.mxu0 0
      %1677 = vmatpush2.bf16.msra.mxu0 %v1519
      %1678 = vmatprep.subr.bf16.mxu0 0
      %1679 = vmatpush2.bf16.msra.mxu0 %v1518
      %1680 = vmatprep.subr.bf16.mxu0 0
      %1681 = vmatpush2.bf16.msra.mxu0 %v1517
      %1682 = vmatprep.subr.bf16.mxu0 0
      %1683 = vmatpush2.bf16.msra.mxu0 %v1516
      %1684 = vmatprep.mubr.bf16.mxu0 %v951
      %1685 = vmatmul.mubr.bf16.gmra.mxu0 %v950
      %v1686 = vpop.f32.mrf.mxu0
      %v1687 = vadd.f32 %v528, %v1686
      %v1688 = vpop.f32.mrf.mxu0
      %v1689 = vpop.f32.mrf.mxu0
      %v1690 = vadd.f32 %v528, %v1689
      %v1691 = vpop.f32.mrf.mxu0
      %1692 = vmatprep.mubr.bf16.mxu0 %v960
      %1693 = vmatmul.mubr.bf16.gmra.mxu0 %v959
      %v1694 = vpop.f32.mrf.mxu0
      %v1695 = vadd.f32 %v528, %v1694
      %v1696 = vpop.f32.mrf.mxu0
      %v1697 = vpop.f32.mrf.mxu0
      %v1698 = vadd.f32 %v528, %v1697
      %v1699 = vpop.f32.mrf.mxu0
      %1700 = vmatprep.mubr.bf16.mxu0 %v969
      %1701 = vmatmul.mubr.bf16.gmra.mxu0 %v968
      %v1702 = vpop.f32.mrf.mxu0
      %v1703 = vadd.f32 %v528, %v1702
      %v1704 = vpop.f32.mrf.mxu0
      %v1705 = vpop.f32.mrf.mxu0
      %v1706 = vadd.f32 %v528, %v1705
      %v1707 = vpop.f32.mrf.mxu0
      %1708 = vmatprep.mubr.bf16.mxu0 %v978
      %1709 = vmatmul.mubr.bf16.gmra.mxu0 %v977
      %v1710 = vpop.f32.mrf.mxu0
      %v1711 = vadd.f32 %v528, %v1710
      %v1712 = vpop.f32.mrf.mxu0
      %v1713 = vpop.f32.mrf.mxu0
      %v1714 = vadd.f32 %v528, %v1713
      %v1715 = vpop.f32.mrf.mxu0
      %1716 = vmatprep.mubr.bf16.mxu0 %v987
      %1717 = vmatmul.mubr.bf16.gmra.mxu0 %v986
      %v1718 = vpop.f32.mrf.mxu0
      %v1719 = vadd.f32 %v528, %v1718
      %v1720 = vpop.f32.mrf.mxu0
      %v1721 = vpop.f32.mrf.mxu0
      %v1722 = vadd.f32 %v528, %v1721
      %v1723 = vpop.f32.mrf.mxu0
      %1724 = vmatprep.mubr.bf16.mxu0 %v996
      %1725 = vmatmul.mubr.bf16.gmra.mxu0 %v995
      %v1726 = vpop.f32.mrf.mxu0
      %v1727 = vadd.f32 %v528, %v1726
      %v1728 = vpop.f32.mrf.mxu0
      %v1729 = vpop.f32.mrf.mxu0
      %v1730 = vadd.f32 %v528, %v1729
      %v1731 = vpop.f32.mrf.mxu0
      %1732 = vmatprep.mubr.bf16.mxu0 %v1005
      %1733 = vmatmul.mubr.bf16.gmra.mxu0 %v1004
      %v1734 = vpop.f32.mrf.mxu0
      %v1735 = vadd.f32 %v528, %v1734
      %v1736 = vpop.f32.mrf.mxu0
      %v1737 = vpop.f32.mrf.mxu0
      %v1738 = vadd.f32 %v528, %v1737
      %v1739 = vpop.f32.mrf.mxu0
      %1740 = vmatprep.mubr.bf16.mxu0 %v1014
      %1741 = vmatmul.mubr.bf16.gmra.mxu0 %v1013
      %v1742 = vpop.f32.mrf.mxu0
      %v1743 = vadd.f32 %v528, %v1742
      %v1744 = vpop.f32.mrf.mxu0
      %v1745 = vpop.f32.mrf.mxu0
      %v1746 = vadd.f32 %v528, %v1745
      %v1747 = vpop.f32.mrf.mxu0
      %1748 = vmatprep.mubr.bf16.mxu0 %v1023
      %1749 = vmatmul.mubr.bf16.gmra.mxu0 %v1022
      %v1750 = vpop.f32.mrf.mxu0
      %v1751 = vadd.f32 %v528, %v1750
      %v1752 = vpop.f32.mrf.mxu0
      %v1753 = vpop.f32.mrf.mxu0
      %v1754 = vadd.f32 %v528, %v1753
      %v1755 = vpop.f32.mrf.mxu0
      %1756 = vmatprep.mubr.bf16.mxu0 %v1032
      %1757 = vmatmul.mubr.bf16.gmra.mxu0 %v1031
      %v1758 = vpop.f32.mrf.mxu0
      %v1759 = vadd.f32 %v528, %v1758
      %v1760 = vpop.f32.mrf.mxu0
      %v1761 = vpop.f32.mrf.mxu0
      %v1762 = vadd.f32 %v528, %v1761
      %v1763 = vpop.f32.mrf.mxu0
      %1764 = vmatprep.mubr.bf16.mxu0 %v1041
      %1765 = vmatmul.mubr.bf16.gmra.mxu0 %v1040
      %v1766 = vpop.f32.mrf.mxu0
      %v1767 = vadd.f32 %v528, %v1766
      %v1768 = vpop.f32.mrf.mxu0
      %v1769 = vpop.f32.mrf.mxu0
      %v1770 = vadd.f32 %v528, %v1769
      %v1771 = vpop.f32.mrf.mxu0
      %1772 = vmatprep.mubr.bf16.mxu0 %v1050
      %1773 = vmatmul.mubr.bf16.gmra.mxu0 %v1049
      %v1774 = vpop.f32.mrf.mxu0
      %v1775 = vadd.f32 %v528, %v1774
      %v1776 = vpop.f32.mrf.mxu0
      %v1777 = vpop.f32.mrf.mxu0
      %v1778 = vadd.f32 %v528, %v1777
      %v1779 = vpop.f32.mrf.mxu0
      %1780 = vmatprep.mubr.bf16.mxu0 %v1059
      %1781 = vmatmul.mubr.bf16.gmra.mxu0 %v1058
      %v1782 = vpop.f32.mrf.mxu0
      %v1783 = vadd.f32 %v528, %v1782
      %v1784 = vpop.f32.mrf.mxu0
      %v1785 = vpop.f32.mrf.mxu0
      %v1786 = vadd.f32 %v528, %v1785
      %v1787 = vpop.f32.mrf.mxu0
      %1788 = vmatprep.mubr.bf16.mxu0 %v1068
      %1789 = vmatmul.mubr.bf16.gmra.mxu0 %v1067
      %v1790 = vpop.f32.mrf.mxu0
      %v1791 = vadd.f32 %v528, %v1790
      %v1792 = vpop.f32.mrf.mxu0
      %v1793 = vpop.f32.mrf.mxu0
      %v1794 = vadd.f32 %v528, %v1793
      %v1795 = vpop.f32.mrf.mxu0
      %1796 = vmatprep.mubr.bf16.mxu0 %v1077
      %1797 = vmatmul.mubr.bf16.gmra.mxu0 %v1076
      %v1798 = vpop.f32.mrf.mxu0
      %v1799 = vadd.f32 %v528, %v1798
      %v1800 = vpop.f32.mrf.mxu0
      %v1801 = vpop.f32.mrf.mxu0
      %v1802 = vadd.f32 %v528, %v1801
      %v1803 = vpop.f32.mrf.mxu0
      %1804 = vdwg.mxu0
      %1805 = vmatprep.subr.bf16.mxu0 0
      %1806 = vmatpush1.bf16.msra.mxu0 %v1531
      %1807 = vmatprep.subr.bf16.mxu0 0
      %1808 = vmatpush1.bf16.msra.mxu0 %v1530
      %1809 = vmatprep.subr.bf16.mxu0 0
      %1810 = vmatpush1.bf16.msra.mxu0 %v1529
      %1811 = vmatprep.subr.bf16.mxu0 0
      %1812 = vmatpush1.bf16.msra.mxu0 %v1528
      %1813 = vmatprep.subr.bf16.mxu0 0
      %1814 = vmatpush1.bf16.msra.mxu0 %v1527
      %1815 = vmatprep.subr.bf16.mxu0 0
      %1816 = vmatpush1.bf16.msra.mxu0 %v1526
      %1817 = vmatprep.subr.bf16.mxu0 0
      %1818 = vmatpush1.bf16.msra.mxu0 %v1525
      %1819 = vmatprep.subr.bf16.mxu0 0
      %1820 = vmatpush1.bf16.msra.mxu0 %v1524
      %1821 = vmatprep.subr.bf16.mxu0 0
      %1822 = vmatpush2.bf16.msra.mxu0 %v1539
      %1823 = vmatprep.subr.bf16.mxu0 0
      %1824 = vmatpush2.bf16.msra.mxu0 %v1538
      %1825 = vmatprep.subr.bf16.mxu0 0
      %1826 = vmatpush2.bf16.msra.mxu0 %v1537
      %1827 = vmatprep.subr.bf16.mxu0 0
      %1828 = vmatpush2.bf16.msra.mxu0 %v1536
      %1829 = vmatprep.subr.bf16.mxu0 0
      %1830 = vmatpush2.bf16.msra.mxu0 %v1535
      %1831 = vmatprep.subr.bf16.mxu0 0
      %1832 = vmatpush2.bf16.msra.mxu0 %v1534
      %1833 = vmatprep.subr.bf16.mxu0 0
      %1834 = vmatpush2.bf16.msra.mxu0 %v1533
      %1835 = vmatprep.subr.bf16.mxu0 0
      %1836 = vmatpush2.bf16.msra.mxu0 %v1532
      %1837 = vmatprep.mubr.bf16.mxu0 %v953
      %1838 = vmatmul.mubr.bf16.gmra.mxu0 %v952
      %v1839 = vpop.f32.mrf.mxu0
      %v1840 = vadd.f32 %v1687, %v1839
      %v1841 = vpop.f32.mrf.mxu0
      %v1842 = vpop.f32.mrf.mxu0
      %v1843 = vadd.f32 %v1690, %v1842
      %v1844 = vpop.f32.mrf.mxu0
      %1845 = vmatprep.mubr.bf16.mxu0 %v962
      %1846 = vmatmul.mubr.bf16.gmra.mxu0 %v961
      %v1847 = vpop.f32.mrf.mxu0
      %v1848 = vadd.f32 %v1695, %v1847
      %v1849 = vpop.f32.mrf.mxu0
      %v1850 = vpop.f32.mrf.mxu0
      %v1851 = vadd.f32 %v1698, %v1850
      %v1852 = vpop.f32.mrf.mxu0
      %1853 = vmatprep.mubr.bf16.mxu0 %v971
      %1854 = vmatmul.mubr.bf16.gmra.mxu0 %v970
      %v1855 = vpop.f32.mrf.mxu0
      %v1856 = vadd.f32 %v1703, %v1855
      %v1857 = vpop.f32.mrf.mxu0
      %v1858 = vpop.f32.mrf.mxu0
      %v1859 = vadd.f32 %v1706, %v1858
      %v1860 = vpop.f32.mrf.mxu0
      %1861 = vmatprep.mubr.bf16.mxu0 %v980
      %1862 = vmatmul.mubr.bf16.gmra.mxu0 %v979
      %v1863 = vpop.f32.mrf.mxu0
      %v1864 = vadd.f32 %v1711, %v1863
      %v1865 = vpop.f32.mrf.mxu0
      %v1866 = vpop.f32.mrf.mxu0
      %v1867 = vadd.f32 %v1714, %v1866
      %v1868 = vpop.f32.mrf.mxu0
      %1869 = vmatprep.mubr.bf16.mxu0 %v989
      %1870 = vmatmul.mubr.bf16.gmra.mxu0 %v988
      %v1871 = vpop.f32.mrf.mxu0
      %v1872 = vadd.f32 %v1719, %v1871
      %v1873 = vpop.f32.mrf.mxu0
      %v1874 = vpop.f32.mrf.mxu0
      %v1875 = vadd.f32 %v1722, %v1874
      %v1876 = vpop.f32.mrf.mxu0
      %1877 = vmatprep.mubr.bf16.mxu0 %v998
      %1878 = vmatmul.mubr.bf16.gmra.mxu0 %v997
      %v1879 = vpop.f32.mrf.mxu0
      %v1880 = vadd.f32 %v1727, %v1879
      %v1881 = vpop.f32.mrf.mxu0
      %v1882 = vpop.f32.mrf.mxu0
      %v1883 = vadd.f32 %v1730, %v1882
      %v1884 = vpop.f32.mrf.mxu0
      %1885 = vmatprep.mubr.bf16.mxu0 %v1007
      %1886 = vmatmul.mubr.bf16.gmra.mxu0 %v1006
      %v1887 = vpop.f32.mrf.mxu0
      %v1888 = vadd.f32 %v1735, %v1887
      %v1889 = vpop.f32.mrf.mxu0
      %v1890 = vpop.f32.mrf.mxu0
      %v1891 = vadd.f32 %v1738, %v1890
      %v1892 = vpop.f32.mrf.mxu0
      %1893 = vmatprep.mubr.bf16.mxu0 %v1016
      %1894 = vmatmul.mubr.bf16.gmra.mxu0 %v1015
      %v1895 = vpop.f32.mrf.mxu0
      %v1896 = vadd.f32 %v1743, %v1895
      %v1897 = vpop.f32.mrf.mxu0
      %v1898 = vpop.f32.mrf.mxu0
      %v1899 = vadd.f32 %v1746, %v1898
      %v1900 = vpop.f32.mrf.mxu0
      %1901 = vmatprep.mubr.bf16.mxu0 %v1025
      %1902 = vmatmul.mubr.bf16.gmra.mxu0 %v1024
      %v1903 = vpop.f32.mrf.mxu0
      %v1904 = vadd.f32 %v1751, %v1903
      %v1905 = vpop.f32.mrf.mxu0
      %v1906 = vpop.f32.mrf.mxu0
      %v1907 = vadd.f32 %v1754, %v1906
      %v1908 = vpop.f32.mrf.mxu0
      %1909 = vmatprep.mubr.bf16.mxu0 %v1034
      %1910 = vmatmul.mubr.bf16.gmra.mxu0 %v1033
      %v1911 = vpop.f32.mrf.mxu0
      %v1912 = vadd.f32 %v1759, %v1911
      %v1913 = vpop.f32.mrf.mxu0
      %v1914 = vpop.f32.mrf.mxu0
      %v1915 = vadd.f32 %v1762, %v1914
      %v1916 = vpop.f32.mrf.mxu0
      %1917 = vmatprep.mubr.bf16.mxu0 %v1043
      %1918 = vmatmul.mubr.bf16.gmra.mxu0 %v1042
      %v1919 = vpop.f32.mrf.mxu0
      %v1920 = vadd.f32 %v1767, %v1919
      %v1921 = vpop.f32.mrf.mxu0
      %v1922 = vpop.f32.mrf.mxu0
      %v1923 = vadd.f32 %v1770, %v1922
      %v1924 = vpop.f32.mrf.mxu0
      %1925 = vmatprep.mubr.bf16.mxu0 %v1052
      %1926 = vmatmul.mubr.bf16.gmra.mxu0 %v1051
      %v1927 = vpop.f32.mrf.mxu0
      %v1928 = vadd.f32 %v1775, %v1927
      %v1929 = vpop.f32.mrf.mxu0
      %v1930 = vpop.f32.mrf.mxu0
      %v1931 = vadd.f32 %v1778, %v1930
      %v1932 = vpop.f32.mrf.mxu0
      %1933 = vmatprep.mubr.bf16.mxu0 %v1061
      %1934 = vmatmul.mubr.bf16.gmra.mxu0 %v1060
      %v1935 = vpop.f32.mrf.mxu0
      %v1936 = vadd.f32 %v1783, %v1935
      %v1937 = vpop.f32.mrf.mxu0
      %v1938 = vpop.f32.mrf.mxu0
      %v1939 = vadd.f32 %v1786, %v1938
      %v1940 = vpop.f32.mrf.mxu0
      %1941 = vmatprep.mubr.bf16.mxu0 %v1070
      %1942 = vmatmul.mubr.bf16.gmra.mxu0 %v1069
      %v1943 = vpop.f32.mrf.mxu0
      %v1944 = vadd.f32 %v1791, %v1943
      %v1945 = vpop.f32.mrf.mxu0
      %v1946 = vpop.f32.mrf.mxu0
      %v1947 = vadd.f32 %v1794, %v1946
      %v1948 = vpop.f32.mrf.mxu0
      %1949 = vmatprep.mubr.bf16.mxu0 %v1079
      %1950 = vmatmul.mubr.bf16.gmra.mxu0 %v1078
      %v1951 = vpop.f32.mrf.mxu0
      %v1952 = vadd.f32 %v1799, %v1951
      %v1953 = vpop.f32.mrf.mxu0
      %v1954 = vpop.f32.mrf.mxu0
      %v1955 = vadd.f32 %v1802, %v1954
      %v1956 = vpop.f32.mrf.mxu0
      %1957 = vdwg.mxu0
      %1958 = vmatprep.subr.bf16.mxu0 0
      %1959 = vmatpush1.bf16.msra.mxu0 %v1547
      %1960 = vmatprep.subr.bf16.mxu0 0
      %1961 = vmatpush1.bf16.msra.mxu0 %v1546
      %1962 = vmatprep.subr.bf16.mxu0 0
      %1963 = vmatpush1.bf16.msra.mxu0 %v1545
      %1964 = vmatprep.subr.bf16.mxu0 0
      %1965 = vmatpush1.bf16.msra.mxu0 %v1544
      %1966 = vmatprep.subr.bf16.mxu0 0
      %1967 = vmatpush1.bf16.msra.mxu0 %v1543
      %1968 = vmatprep.subr.bf16.mxu0 0
      %1969 = vmatpush1.bf16.msra.mxu0 %v1542
      %1970 = vmatprep.subr.bf16.mxu0 0
      %1971 = vmatpush1.bf16.msra.mxu0 %v1541
      %1972 = vmatprep.subr.bf16.mxu0 0
      %1973 = vmatpush1.bf16.msra.mxu0 %v1540
      %1974 = vmatprep.subr.bf16.mxu0 0
      %1975 = vmatpush2.bf16.msra.mxu0 %v1555
      %1976 = vmatprep.subr.bf16.mxu0 0
      %1977 = vmatpush2.bf16.msra.mxu0 %v1554
      %1978 = vmatprep.subr.bf16.mxu0 0
      %1979 = vmatpush2.bf16.msra.mxu0 %v1553
      %1980 = vmatprep.subr.bf16.mxu0 0
      %1981 = vmatpush2.bf16.msra.mxu0 %v1552
      %1982 = vmatprep.subr.bf16.mxu0 0
      %1983 = vmatpush2.bf16.msra.mxu0 %v1551
      %1984 = vmatprep.subr.bf16.mxu0 0
      %1985 = vmatpush2.bf16.msra.mxu0 %v1550
      %1986 = vmatprep.subr.bf16.mxu0 0
      %1987 = vmatpush2.bf16.msra.mxu0 %v1549
      %1988 = vmatprep.subr.bf16.mxu0 0
      %1989 = vmatpush2.bf16.msra.mxu0 %v1548
      %1990 = vmatprep.mubr.bf16.mxu0 %v955
      %1991 = vmatmul.mubr.bf16.gmra.mxu0 %v954
      %v1992 = vpop.f32.mrf.mxu0
      %v1993 = vadd.f32 %v1840, %v1992
      %v1994 = vpop.f32.mrf.mxu0
      %v1995 = vpop.f32.mrf.mxu0
      %v1996 = vadd.f32 %v1843, %v1995
      %v1997 = vpop.f32.mrf.mxu0
      %1998 = vmatprep.mubr.bf16.mxu0 %v964
      %1999 = vmatmul.mubr.bf16.gmra.mxu0 %v963
      %v2000 = vpop.f32.mrf.mxu0
      %v2001 = vadd.f32 %v1848, %v2000
      %v2002 = vpop.f32.mrf.mxu0
      %v2003 = vpop.f32.mrf.mxu0
      %v2004 = vadd.f32 %v1851, %v2003
      %v2005 = vpop.f32.mrf.mxu0
      %2006 = vmatprep.mubr.bf16.mxu0 %v973
      %2007 = vmatmul.mubr.bf16.gmra.mxu0 %v972
      %v2008 = vpop.f32.mrf.mxu0
      %v2009 = vadd.f32 %v1856, %v2008
      %v2010 = vpop.f32.mrf.mxu0
      %v2011 = vpop.f32.mrf.mxu0
      %v2012 = vadd.f32 %v1859, %v2011
      %v2013 = vpop.f32.mrf.mxu0
      %2014 = vmatprep.mubr.bf16.mxu0 %v982
      %2015 = vmatmul.mubr.bf16.gmra.mxu0 %v981
      %v2016 = vpop.f32.mrf.mxu0
      %v2017 = vadd.f32 %v1864, %v2016
      %v2018 = vpop.f32.mrf.mxu0
      %v2019 = vpop.f32.mrf.mxu0
      %v2020 = vadd.f32 %v1867, %v2019
      %v2021 = vpop.f32.mrf.mxu0
      %2022 = vmatprep.mubr.bf16.mxu0 %v991
      %2023 = vmatmul.mubr.bf16.gmra.mxu0 %v990
      %v2024 = vpop.f32.mrf.mxu0
      %v2025 = vadd.f32 %v1872, %v2024
      %v2026 = vpop.f32.mrf.mxu0
      %v2027 = vpop.f32.mrf.mxu0
      %v2028 = vadd.f32 %v1875, %v2027
      %v2029 = vpop.f32.mrf.mxu0
      %2030 = vmatprep.mubr.bf16.mxu0 %v1000
      %2031 = vmatmul.mubr.bf16.gmra.mxu0 %v999
      %v2032 = vpop.f32.mrf.mxu0
      %v2033 = vadd.f32 %v1880, %v2032
      %v2034 = vpop.f32.mrf.mxu0
      %v2035 = vpop.f32.mrf.mxu0
      %v2036 = vadd.f32 %v1883, %v2035
      %v2037 = vpop.f32.mrf.mxu0
      %2038 = vmatprep.mubr.bf16.mxu0 %v1009
      %2039 = vmatmul.mubr.bf16.gmra.mxu0 %v1008
      %v2040 = vpop.f32.mrf.mxu0
      %v2041 = vadd.f32 %v1888, %v2040
      %v2042 = vpop.f32.mrf.mxu0
      %v2043 = vpop.f32.mrf.mxu0
      %v2044 = vadd.f32 %v1891, %v2043
      %v2045 = vpop.f32.mrf.mxu0
      %2046 = vmatprep.mubr.bf16.mxu0 %v1018
      %2047 = vmatmul.mubr.bf16.gmra.mxu0 %v1017
      %v2048 = vpop.f32.mrf.mxu0
      %v2049 = vadd.f32 %v1896, %v2048
      %v2050 = vpop.f32.mrf.mxu0
      %v2051 = vpop.f32.mrf.mxu0
      %v2052 = vadd.f32 %v1899, %v2051
      %v2053 = vpop.f32.mrf.mxu0
      %2054 = vmatprep.mubr.bf16.mxu0 %v1027
      %2055 = vmatmul.mubr.bf16.gmra.mxu0 %v1026
      %v2056 = vpop.f32.mrf.mxu0
      %v2057 = vadd.f32 %v1904, %v2056
      %v2058 = vpop.f32.mrf.mxu0
      %v2059 = vpop.f32.mrf.mxu0
      %v2060 = vadd.f32 %v1907, %v2059
      %v2061 = vpop.f32.mrf.mxu0
      %2062 = vmatprep.mubr.bf16.mxu0 %v1036
      %2063 = vmatmul.mubr.bf16.gmra.mxu0 %v1035
      %v2064 = vpop.f32.mrf.mxu0
      %v2065 = vadd.f32 %v1912, %v2064
      %v2066 = vpop.f32.mrf.mxu0
      %v2067 = vpop.f32.mrf.mxu0
      %v2068 = vadd.f32 %v1915, %v2067
      %v2069 = vpop.f32.mrf.mxu0
      %2070 = vmatprep.mubr.bf16.mxu0 %v1045
      %2071 = vmatmul.mubr.bf16.gmra.mxu0 %v1044
      %v2072 = vpop.f32.mrf.mxu0
      %v2073 = vadd.f32 %v1920, %v2072
      %v2074 = vpop.f32.mrf.mxu0
      %v2075 = vpop.f32.mrf.mxu0
      %v2076 = vadd.f32 %v1923, %v2075
      %v2077 = vpop.f32.mrf.mxu0
      %2078 = vmatprep.mubr.bf16.mxu0 %v1054
      %2079 = vmatmul.mubr.bf16.gmra.mxu0 %v1053
      %v2080 = vpop.f32.mrf.mxu0
      %v2081 = vadd.f32 %v1928, %v2080
      %v2082 = vpop.f32.mrf.mxu0
      %v2083 = vpop.f32.mrf.mxu0
      %v2084 = vadd.f32 %v1931, %v2083
      %v2085 = vpop.f32.mrf.mxu0
      %2086 = vmatprep.mubr.bf16.mxu0 %v1063
      %2087 = vmatmul.mubr.bf16.gmra.mxu0 %v1062
      %v2088 = vpop.f32.mrf.mxu0
      %v2089 = vadd.f32 %v1936, %v2088
      %v2090 = vpop.f32.mrf.mxu0
      %v2091 = vpop.f32.mrf.mxu0
      %v2092 = vadd.f32 %v1939, %v2091
      %v2093 = vpop.f32.mrf.mxu0
      %2094 = vmatprep.mubr.bf16.mxu0 %v1072
      %2095 = vmatmul.mubr.bf16.gmra.mxu0 %v1071
      %v2096 = vpop.f32.mrf.mxu0
      %v2097 = vadd.f32 %v1944, %v2096
      %v2098 = vpop.f32.mrf.mxu0
      %v2099 = vpop.f32.mrf.mxu0
      %v2100 = vadd.f32 %v1947, %v2099
      %v2101 = vpop.f32.mrf.mxu0
      %2102 = vmatprep.mubr.bf16.mxu0 %v1081
      %2103 = vmatmul.mubr.bf16.gmra.mxu0 %v1080
      %v2104 = vpop.f32.mrf.mxu0
      %v2105 = vadd.f32 %v1952, %v2104
      %v2106 = vpop.f32.mrf.mxu0
      %v2107 = vpop.f32.mrf.mxu0
      %v2108 = vadd.f32 %v1955, %v2107
      %v2109 = vpop.f32.mrf.mxu0
      %2110 = vdwg.mxu0
      %2111 = vmatprep.subr.bf16.mxu0 0
      %2112 = vmatpush1.bf16.msra.mxu0 %v1563
      %2113 = vmatprep.subr.bf16.mxu0 0
      %2114 = vmatpush1.bf16.msra.mxu0 %v1562
      %2115 = vmatprep.subr.bf16.mxu0 0
      %2116 = vmatpush1.bf16.msra.mxu0 %v1561
      %2117 = vmatprep.subr.bf16.mxu0 0
      %2118 = vmatpush1.bf16.msra.mxu0 %v1560
      %2119 = vmatprep.subr.bf16.mxu0 0
      %2120 = vmatpush1.bf16.msra.mxu0 %v1559
      %2121 = vmatprep.subr.bf16.mxu0 0
      %2122 = vmatpush1.bf16.msra.mxu0 %v1558
      %2123 = vmatprep.subr.bf16.mxu0 0
      %2124 = vmatpush1.bf16.msra.mxu0 %v1557
      %2125 = vmatprep.subr.bf16.mxu0 0
      %2126 = vmatpush1.bf16.msra.mxu0 %v1556
      %2127 = vmatprep.subr.bf16.mxu0 0
      %2128 = vmatpush2.bf16.msra.mxu0 %v1571
      %2129 = vmatprep.subr.bf16.mxu0 0
      %2130 = vmatpush2.bf16.msra.mxu0 %v1570
      %2131 = vmatprep.subr.bf16.mxu0 0
      %2132 = vmatpush2.bf16.msra.mxu0 %v1569
      %2133 = vmatprep.subr.bf16.mxu0 0
      %2134 = vmatpush2.bf16.msra.mxu0 %v1568
      %2135 = vmatprep.subr.bf16.mxu0 0
      %2136 = vmatpush2.bf16.msra.mxu0 %v1567
      %2137 = vmatprep.subr.bf16.mxu0 0
      %2138 = vmatpush2.bf16.msra.mxu0 %v1566
      %2139 = vmatprep.subr.bf16.mxu0 0
      %2140 = vmatpush2.bf16.msra.mxu0 %v1565
      %2141 = vmatprep.subr.bf16.mxu0 0
      %2142 = vmatpush2.bf16.msra.mxu0 %v1564
      %2143 = vmatprep.mubr.bf16.mxu0 %v957
      %2144 = vmatmul.mubr.bf16.gmra.mxu0 %v956
      %v2145 = vpop.f32.mrf.mxu0
      %v2146 = vadd.f32 %v1993, %v2145
      %v2147 = vpop.f32.mrf.mxu0
      %v2148 = vpop.f32.mrf.mxu0
      %v2149 = vadd.f32 %v1996, %v2148
      %v2150 = vpop.f32.mrf.mxu0
      %2151 = vmatprep.mubr.bf16.mxu0 %v966
      %2152 = vmatmul.mubr.bf16.gmra.mxu0 %v965
      %v2153 = vpop.f32.mrf.mxu0
      %v2154 = vadd.f32 %v2001, %v2153
      %v2155 = vpop.f32.mrf.mxu0
      %v2156 = vpop.f32.mrf.mxu0
      %v2157 = vadd.f32 %v2004, %v2156
      %v2158 = vpop.f32.mrf.mxu0
      %2159 = vmatprep.mubr.bf16.mxu0 %v975
      %2160 = vmatmul.mubr.bf16.gmra.mxu0 %v974
      %v2161 = vpop.f32.mrf.mxu0
      %v2162 = vadd.f32 %v2009, %v2161
      %v2163 = vpop.f32.mrf.mxu0
      %v2164 = vpop.f32.mrf.mxu0
      %v2165 = vadd.f32 %v2012, %v2164
      %v2166 = vpop.f32.mrf.mxu0
      %2167 = vmatprep.mubr.bf16.mxu0 %v984
      %2168 = vmatmul.mubr.bf16.gmra.mxu0 %v983
      %v2169 = vpop.f32.mrf.mxu0
      %v2170 = vadd.f32 %v2017, %v2169
      %v2171 = vpop.f32.mrf.mxu0
      %v2172 = vpop.f32.mrf.mxu0
      %v2173 = vadd.f32 %v2020, %v2172
      %v2174 = vpop.f32.mrf.mxu0
      %2175 = vmatprep.mubr.bf16.mxu0 %v993
      %2176 = vmatmul.mubr.bf16.gmra.mxu0 %v992
      %v2177 = vpop.f32.mrf.mxu0
      %v2178 = vadd.f32 %v2025, %v2177
      %v2179 = vpop.f32.mrf.mxu0
      %v2180 = vpop.f32.mrf.mxu0
      %v2181 = vadd.f32 %v2028, %v2180
      %v2182 = vpop.f32.mrf.mxu0
      %2183 = vmatprep.mubr.bf16.mxu0 %v1002
      %2184 = vmatmul.mubr.bf16.gmra.mxu0 %v1001
      %v2185 = vpop.f32.mrf.mxu0
      %v2186 = vadd.f32 %v2033, %v2185
      %v2187 = vpop.f32.mrf.mxu0
      %v2188 = vpop.f32.mrf.mxu0
      %v2189 = vadd.f32 %v2036, %v2188
      %v2190 = vpop.f32.mrf.mxu0
      %2191 = vmatprep.mubr.bf16.mxu0 %v1011
      %2192 = vmatmul.mubr.bf16.gmra.mxu0 %v1010
      %v2193 = vpop.f32.mrf.mxu0
      %v2194 = vadd.f32 %v2041, %v2193
      %v2195 = vpop.f32.mrf.mxu0
      %v2196 = vpop.f32.mrf.mxu0
      %v2197 = vadd.f32 %v2044, %v2196
      %v2198 = vpop.f32.mrf.mxu0
      %2199 = vmatprep.mubr.bf16.mxu0 %v1020
      %2200 = vmatmul.mubr.bf16.gmra.mxu0 %v1019
      %v2201 = vpop.f32.mrf.mxu0
      %v2202 = vadd.f32 %v2049, %v2201
      %v2203 = vpop.f32.mrf.mxu0
      %v2204 = vpop.f32.mrf.mxu0
      %v2205 = vadd.f32 %v2052, %v2204
      %v2206 = vpop.f32.mrf.mxu0
      %2207 = vmatprep.mubr.bf16.mxu0 %v1029
      %2208 = vmatmul.mubr.bf16.gmra.mxu0 %v1028
      %v2209 = vpop.f32.mrf.mxu0
      %v2210 = vadd.f32 %v2057, %v2209
      %v2211 = vpop.f32.mrf.mxu0
      %v2212 = vpop.f32.mrf.mxu0
      %v2213 = vadd.f32 %v2060, %v2212
      %v2214 = vpop.f32.mrf.mxu0
      %2215 = vmatprep.mubr.bf16.mxu0 %v1038
      %2216 = vmatmul.mubr.bf16.gmra.mxu0 %v1037
      %v2217 = vpop.f32.mrf.mxu0
      %v2218 = vadd.f32 %v2065, %v2217
      %v2219 = vpop.f32.mrf.mxu0
      %v2220 = vpop.f32.mrf.mxu0
      %v2221 = vadd.f32 %v2068, %v2220
      %v2222 = vpop.f32.mrf.mxu0
      %2223 = vmatprep.mubr.bf16.mxu0 %v1047
      %2224 = vmatmul.mubr.bf16.gmra.mxu0 %v1046
      %v2225 = vpop.f32.mrf.mxu0
      %v2226 = vadd.f32 %v2073, %v2225
      %v2227 = vpop.f32.mrf.mxu0
      %v2228 = vpop.f32.mrf.mxu0
      %v2229 = vadd.f32 %v2076, %v2228
      %v2230 = vpop.f32.mrf.mxu0
      %2231 = vmatprep.mubr.bf16.mxu0 %v1056
      %2232 = vmatmul.mubr.bf16.gmra.mxu0 %v1055
      %v2233 = vpop.f32.mrf.mxu0
      %v2234 = vadd.f32 %v2081, %v2233
      %v2235 = vpop.f32.mrf.mxu0
      %v2236 = vpop.f32.mrf.mxu0
      %v2237 = vadd.f32 %v2084, %v2236
      %v2238 = vpop.f32.mrf.mxu0
      %2239 = vmatprep.mubr.bf16.mxu0 %v1065
      %2240 = vmatmul.mubr.bf16.gmra.mxu0 %v1064
      %v2241 = vpop.f32.mrf.mxu0
      %v2242 = vadd.f32 %v2089, %v2241
      %v2243 = vpop.f32.mrf.mxu0
      %v2244 = vpop.f32.mrf.mxu0
      %v2245 = vadd.f32 %v2092, %v2244
      %v2246 = vpop.f32.mrf.mxu0
      %2247 = vmatprep.mubr.bf16.mxu0 %v1074
      %2248 = vmatmul.mubr.bf16.gmra.mxu0 %v1073
      %v2249 = vpop.f32.mrf.mxu0
      %v2250 = vadd.f32 %v2097, %v2249
      %v2251 = vpop.f32.mrf.mxu0
      %v2252 = vpop.f32.mrf.mxu0
      %v2253 = vadd.f32 %v2100, %v2252
      %v2254 = vpop.f32.mrf.mxu0
      %2255 = vmatprep.mubr.bf16.mxu0 %v1083
      %2256 = vmatmul.mubr.bf16.gmra.mxu0 %v1082
      %v2257 = vpop.f32.mrf.mxu0
      %v2258 = vadd.f32 %v2105, %v2257
      %v2259 = vpop.f32.mrf.mxu0
      %v2260 = vpop.f32.mrf.mxu0
      %v2261 = vadd.f32 %v2108, %v2260
      %v2262 = vpop.f32.mrf.mxu0
      %2263 = vdwg.mxu0
      %2264 = vmatprep.subr.bf16.mxu0 0
      %2265 = vmatpush1.bf16.msra.mxu0 %v1579
      %2266 = vmatprep.subr.bf16.mxu0 0
      %2267 = vmatpush1.bf16.msra.mxu0 %v1578
      %2268 = vmatprep.subr.bf16.mxu0 0
      %2269 = vmatpush1.bf16.msra.mxu0 %v1577
      %2270 = vmatprep.subr.bf16.mxu0 0
      %2271 = vmatpush1.bf16.msra.mxu0 %v1576
      %2272 = vmatprep.subr.bf16.mxu0 0
      %2273 = vmatpush1.bf16.msra.mxu0 %v1575
      %2274 = vmatprep.subr.bf16.mxu0 0
      %2275 = vmatpush1.bf16.msra.mxu0 %v1574
      %2276 = vmatprep.subr.bf16.mxu0 0
      %2277 = vmatpush1.bf16.msra.mxu0 %v1573
      %2278 = vmatprep.subr.bf16.mxu0 0
      %2279 = vmatpush1.bf16.msra.mxu0 %v1572
      %2280 = vmatprep.subr.bf16.mxu0 0
      %2281 = vmatpush2.bf16.msra.mxu0 0
      %2282 = vmatprep.subr.bf16.mxu0 0
      %2283 = vmatpush2.bf16.msra.mxu0 0
      %2284 = vmatprep.subr.bf16.mxu0 0
      %2285 = vmatpush2.bf16.msra.mxu0 0
      %2286 = vmatprep.subr.bf16.mxu0 0
      %2287 = vmatpush2.bf16.msra.mxu0 0
      %2288 = vmatprep.subr.bf16.mxu0 0
      %2289 = vmatpush2.bf16.msra.mxu0 0
      %2290 = vmatprep.subr.bf16.mxu0 0
      %2291 = vmatpush2.bf16.msra.mxu0 0
      %2292 = vmatprep.subr.bf16.mxu0 0
      %2293 = vmatpush2.bf16.msra.mxu0 0
      %2294 = vmatprep.subr.bf16.mxu0 0
      %2295 = vmatpush2.bf16.msra.mxu0 0
      %2296 = vmatprep.mubr.bf16.mxu0 0
      %2297 = vmatmul.mubr.bf16.gmra.mxu0 %v958
      %v2298 = vpop.f32.mrf.mxu0
      %v2299 = vadd.f32 %v2146, %v2298
      %v2300 = vpop.f32.mrf.mxu0
      %v2301 = vpop.f32.mrf.mxu0
      %v2302 = vadd.f32 %v2149, %v2301
      %v2303 = vpop.f32.mrf.mxu0
      %2304 = vmatprep.mubr.bf16.mxu0 0
      %2305 = vmatmul.mubr.bf16.gmra.mxu0 %v967
      %v2306 = vpop.f32.mrf.mxu0
      %v2307 = vadd.f32 %v2154, %v2306
      %v2308 = vpop.f32.mrf.mxu0
      %v2309 = vpop.f32.mrf.mxu0
      %v2310 = vadd.f32 %v2157, %v2309
      %v2311 = vpop.f32.mrf.mxu0
      %2312 = vmatprep.mubr.bf16.mxu0 0
      %2313 = vmatmul.mubr.bf16.gmra.mxu0 %v976
      %v2314 = vpop.f32.mrf.mxu0
      %v2315 = vadd.f32 %v2162, %v2314
      %v2316 = vpop.f32.mrf.mxu0
      %v2317 = vpop.f32.mrf.mxu0
      %v2318 = vadd.f32 %v2165, %v2317
      %v2319 = vpop.f32.mrf.mxu0
      %2320 = vmatprep.mubr.bf16.mxu0 0
      %2321 = vmatmul.mubr.bf16.gmra.mxu0 %v985
      %v2322 = vpop.f32.mrf.mxu0
      %v2323 = vadd.f32 %v2170, %v2322
      %v2324 = vpop.f32.mrf.mxu0
      %v2325 = vpop.f32.mrf.mxu0
      %v2326 = vadd.f32 %v2173, %v2325
      %v2327 = vpop.f32.mrf.mxu0
      %2328 = vmatprep.mubr.bf16.mxu0 0
      %2329 = vmatmul.mubr.bf16.gmra.mxu0 %v994
      %v2330 = vpop.f32.mrf.mxu0
      %v2331 = vadd.f32 %v2178, %v2330
      %v2332 = vpop.f32.mrf.mxu0
      %v2333 = vpop.f32.mrf.mxu0
      %v2334 = vadd.f32 %v2181, %v2333
      %v2335 = vpop.f32.mrf.mxu0
      %2336 = vmatprep.mubr.bf16.mxu0 0
      %2337 = vmatmul.mubr.bf16.gmra.mxu0 %v1003
      %v2338 = vpop.f32.mrf.mxu0
      %v2339 = vadd.f32 %v2186, %v2338
      %v2340 = vpop.f32.mrf.mxu0
      %v2341 = vpop.f32.mrf.mxu0
      %v2342 = vadd.f32 %v2189, %v2341
      %v2343 = vpop.f32.mrf.mxu0
      %2344 = vmatprep.mubr.bf16.mxu0 0
      %2345 = vmatmul.mubr.bf16.gmra.mxu0 %v1012
      %v2346 = vpop.f32.mrf.mxu0
      %v2347 = vadd.f32 %v2194, %v2346
      %v2348 = vpop.f32.mrf.mxu0
      %v2349 = vpop.f32.mrf.mxu0
      %v2350 = vadd.f32 %v2197, %v2349
      %v2351 = vpop.f32.mrf.mxu0
      %2352 = vmatprep.mubr.bf16.mxu0 0
      %2353 = vmatmul.mubr.bf16.gmra.mxu0 %v1021
      %v2354 = vpop.f32.mrf.mxu0
      %v2355 = vadd.f32 %v2202, %v2354
      %v2356 = vpop.f32.mrf.mxu0
      %v2357 = vpop.f32.mrf.mxu0
      %v2358 = vadd.f32 %v2205, %v2357
      %v2359 = vpop.f32.mrf.mxu0
      %2360 = vmatprep.mubr.bf16.mxu0 0
      %2361 = vmatmul.mubr.bf16.gmra.mxu0 %v1030
      %v2362 = vpop.f32.mrf.mxu0
      %v2363 = vadd.f32 %v2210, %v2362
      %v2364 = vpop.f32.mrf.mxu0
      %v2365 = vpop.f32.mrf.mxu0
      %v2366 = vadd.f32 %v2213, %v2365
      %v2367 = vpop.f32.mrf.mxu0
      %2368 = vmatprep.mubr.bf16.mxu0 0
      %2369 = vmatmul.mubr.bf16.gmra.mxu0 %v1039
      %v2370 = vpop.f32.mrf.mxu0
      %v2371 = vadd.f32 %v2218, %v2370
      %v2372 = vpop.f32.mrf.mxu0
      %v2373 = vpop.f32.mrf.mxu0
      %v2374 = vadd.f32 %v2221, %v2373
      %v2375 = vpop.f32.mrf.mxu0
      %2376 = vmatprep.mubr.bf16.mxu0 0
      %2377 = vmatmul.mubr.bf16.gmra.mxu0 %v1048
      %v2378 = vpop.f32.mrf.mxu0
      %v2379 = vadd.f32 %v2226, %v2378
      %v2380 = vpop.f32.mrf.mxu0
      %v2381 = vpop.f32.mrf.mxu0
      %v2382 = vadd.f32 %v2229, %v2381
      %v2383 = vpop.f32.mrf.mxu0
      %2384 = vmatprep.mubr.bf16.mxu0 0
      %2385 = vmatmul.mubr.bf16.gmra.mxu0 %v1057
      %v2386 = vpop.f32.mrf.mxu0
      %v2387 = vadd.f32 %v2234, %v2386
      %v2388 = vpop.f32.mrf.mxu0
      %v2389 = vpop.f32.mrf.mxu0
      %v2390 = vadd.f32 %v2237, %v2389
      %v2391 = vpop.f32.mrf.mxu0
      %2392 = vmatprep.mubr.bf16.mxu0 0
      %2393 = vmatmul.mubr.bf16.gmra.mxu0 %v1066
      %v2394 = vpop.f32.mrf.mxu0
      %v2395 = vadd.f32 %v2242, %v2394
      %v2396 = vpop.f32.mrf.mxu0
      %v2397 = vpop.f32.mrf.mxu0
      %v2398 = vadd.f32 %v2245, %v2397
      %v2399 = vpop.f32.mrf.mxu0
      %2400 = vmatprep.mubr.bf16.mxu0 0
      %2401 = vmatmul.mubr.bf16.gmra.mxu0 %v1075
      %v2402 = vpop.f32.mrf.mxu0
      %v2403 = vadd.f32 %v2250, %v2402
      %v2404 = vpop.f32.mrf.mxu0
      %v2405 = vpop.f32.mrf.mxu0
      %v2406 = vadd.f32 %v2253, %v2405
      %v2407 = vpop.f32.mrf.mxu0
      %2408 = vmatprep.mubr.bf16.mxu0 0
      %2409 = vmatmul.mubr.bf16.gmra.mxu0 %v1084
      %v2410 = vpop.f32.mrf.mxu0
      %v2411 = vadd.f32 %v2258, %v2410
      %v2412 = vpop.f32.mrf.mxu0
      %v2413 = vpop.f32.mrf.mxu0
      %v2414 = vadd.f32 %v2261, %v2413
      %v2415 = vpop.f32.mrf.mxu0
      %2416 = vdwg.mxu0
      %v2417 = vmax.f32 %v2299, 0.0
      %v2418 = vmax.f32 %v2302, 0.0
      %v2419 = vmax.f32 %v2307, 0.0
      %v2420 = vmax.f32 %v2310, 0.0
      %v2421 = vmax.f32 %v2315, 0.0
      %v2422 = vmax.f32 %v2318, 0.0
      %v2423 = vmax.f32 %v2323, 0.0
      %v2424 = vmax.f32 %v2326, 0.0
      %v2425 = vmax.f32 %v2331, 0.0
      %v2426 = vmax.f32 %v2334, 0.0
      %v2427 = vmax.f32 %v2339, 0.0
      %v2428 = vmax.f32 %v2342, 0.0
      %v2429 = vmax.f32 %v2347, 0.0
      %v2430 = vmax.f32 %v2350, 0.0
      %v2431 = vmax.f32 %v2355, 0.0
      %v2432 = vmax.f32 %v2358, 0.0
      %v2433 = vmax.f32 %v2363, 0.0
      %v2434 = vmax.f32 %v2366, 0.0
      %v2435 = vmax.f32 %v2371, 0.0
      %v2436 = vmax.f32 %v2374, 0.0
      %v2437 = vmax.f32 %v2379, 0.0
      %v2438 = vmax.f32 %v2382, 0.0
      %v2439 = vmax.f32 %v2387, 0.0
      %v2440 = vmax.f32 %v2390, 0.0
      %v2441 = vmax.f32 %v2395, 0.0
      %v2442 = vmax.f32 %v2398, 0.0
      %v2443 = vmax.f32 %v2403, 0.0
      %v2444 = vmax.f32 %v2406, 0.0
      %v2445 = vmax.f32 %v2411, 0.0
      %v2446 = vmax.f32 %v2414, 0.0
      %v2447 = vpack.c.bf16 %v2418, %v2417
      %v2448 = vpack.c.bf16 %v2420, %v2419
      %v2449 = vpack.c.bf16 %v2422, %v2421
      %v2450 = vpack.c.bf16 %v2424, %v2423
      %v2451 = vpack.c.bf16 %v2426, %v2425
      %v2452 = vpack.c.bf16 %v2428, %v2427
      %v2453 = vpack.c.bf16 %v2430, %v2429
      %v2454 = vpack.c.bf16 %v2432, %v2431
      %v2455 = vpack.c.bf16 %v2434, %v2433
      %v2456 = vpack.c.bf16 %v2436, %v2435
      %v2457 = vpack.c.bf16 %v2438, %v2437
      %v2458 = vpack.c.bf16 %v2440, %v2439
      %v2459 = vpack.c.bf16 %v2442, %v2441
      %v2460 = vpack.c.bf16 %v2444, %v2443
      %v2461 = vpack.c.bf16 %v2446, %v2445
      %v2477 = vunpack.c.l.b16 %v2447
      %v2478 = vunpack.c.h.b16 %v2447
      %v2479 = vunpack.c.l.b16 %v2448
      %v2480 = vunpack.c.h.b16 %v2448
      %v2481 = vunpack.c.l.b16 %v2449
      %v2482 = vunpack.c.h.b16 %v2449
      %v2483 = vunpack.c.l.b16 %v2450
      %v2484 = vunpack.c.h.b16 %v2450
      %v2485 = vunpack.c.l.b16 %v2451
      %v2486 = vunpack.c.h.b16 %v2451
      %v2487 = vunpack.c.l.b16 %v2452
      %v2488 = vunpack.c.h.b16 %v2452
      %v2489 = vunpack.c.l.b16 %v2453
      %v2490 = vunpack.c.h.b16 %v2453
      %v2491 = vunpack.c.l.b16 %v2454
      %v2492 = vunpack.c.h.b16 %v2454
      %v2493 = vunpack.c.l.b16 %v2455
      %v2494 = vunpack.c.h.b16 %v2455
      %v2495 = vunpack.c.l.b16 %v2456
      %v2496 = vunpack.c.h.b16 %v2456
      %v2497 = vunpack.c.l.b16 %v2457
      %v2498 = vunpack.c.h.b16 %v2457
      %v2499 = vunpack.c.l.b16 %v2458
      %v2500 = vunpack.c.h.b16 %v2458
      %v2501 = vunpack.c.l.b16 %v2459
      %v2502 = vunpack.c.h.b16 %v2459
      %v2503 = vunpack.c.l.b16 %v2460
      %v2504 = vunpack.c.h.b16 %v2460
      %v2505 = vunpack.c.l.b16 %v2461
      %v2506 = vunpack.c.h.b16 %v2461
      %v2507 = vpack.c.b16 %v2477, %v2477
      %v2508 = vpack.c.b16 %v2478, %v2478
      %v2509 = vpack.c.b16 %v2479, %v2479
      %v2510 = vpack.c.b16 %v2480, %v2480
      %v2511 = vpack.c.b16 %v2481, %v2481
      %v2512 = vpack.c.b16 %v2482, %v2482
      %v2513 = vpack.c.b16 %v2483, %v2483
      %v2514 = vpack.c.b16 %v2484, %v2484
      %v2515 = vpack.c.b16 %v2485, %v2485
      %v2516 = vpack.c.b16 %v2486, %v2486
      %v2517 = vpack.c.b16 %v2487, %v2487
      %v2518 = vpack.c.b16 %v2488, %v2488
      %v2519 = vpack.c.b16 %v2489, %v2489
      %v2520 = vpack.c.b16 %v2490, %v2490
      %v2521 = vpack.c.b16 %v2491, %v2491
      %v2522 = vpack.c.b16 %v2492, %v2492
      %v2523 = vpack.c.b16 %v2493, %v2493
      %v2524 = vpack.c.b16 %v2494, %v2494
      %v2525 = vpack.c.b16 %v2495, %v2495
      %v2526 = vpack.c.b16 %v2496, %v2496
      %v2527 = vpack.c.b16 %v2497, %v2497
      %v2528 = vpack.c.b16 %v2498, %v2498
      %v2529 = vpack.c.b16 %v2499, %v2499
      %v2530 = vpack.c.b16 %v2500, %v2500
      %v2531 = vpack.c.b16 %v2501, %v2501
      %v2532 = vpack.c.b16 %v2502, %v2502
      %v2533 = vpack.c.b16 %v2503, %v2503
      %v2534 = vpack.c.b16 %v2504, %v2504
      %v2535 = vpack.c.b16 %v2505, %v2505
      %v2536 = vpack.c.b16 %v2506, %v2506
      %2567 = vst [vmem:[%s226] sm:$0xf] %v2507
      %2568 = vst [vmem:[%s226 + $0x4] sm:$0xf] %v2508
      %2569 = vst [vmem:[%s226 + $0x8] sm:$0xf] %v2509
      %2570 = vst [vmem:[%s226 + $0xc] sm:$0xf] %v2510
      %2571 = vst [vmem:[%s226 + $0x10] sm:$0xf] %v2511
      %2572 = vst [vmem:[%s226 + $0x14] sm:$0xf] %v2512
      %2573 = vst [vmem:[%s226 + $0x18] sm:$0xf] %v2513
      %2574 = vst [vmem:[%s226 + $0x1c] sm:$0xf] %v2514
      %2575 = vst [vmem:[%s226 + $0x20] sm:$0xf] %v2515
      %2576 = vst [vmem:[%s226 + $0x24] sm:$0xf] %v2516
      %2577 = vst [vmem:[%s226 + $0x28] sm:$0xf] %v2517
      %2578 = vst [vmem:[%s226 + $0x2c] sm:$0xf] %v2518
      %2579 = vst [vmem:[%s226 + $0x30] sm:$0xf] %v2519
      %2580 = vst [vmem:[%s226 + $0x34] sm:$0xf] %v2520
      %2581 = vst [vmem:[%s226 + $0x38] sm:$0xf] %v2521
      %2582 = vst [vmem:[%s226 + $0x3c] sm:$0xf] %v2522
      %2583 = vst [vmem:[%s226 + $0x40] sm:$0xf] %v2523
      %2584 = vst [vmem:[%s226 + $0x44] sm:$0xf] %v2524
      %2585 = vst [vmem:[%s226 + $0x48] sm:$0xf] %v2525
      %2586 = vst [vmem:[%s226 + $0x4c] sm:$0xf] %v2526
      %2587 = vst [vmem:[%s226 + $0x50] sm:$0xf] %v2527
      %2588 = vst [vmem:[%s226 + $0x54] sm:$0xf] %v2528
      %2589 = vst [vmem:[%s226 + $0x58] sm:$0xf] %v2529
      %2590 = vst [vmem:[%s226 + $0x5c] sm:$0xf] %v2530
      %2591 = vst [vmem:[%s226 + $0x60] sm:$0xf] %v2531
      %2592 = vst [vmem:[%s226 + $0x64] sm:$0xf] %v2532
      %2593 = vst [vmem:[%s226 + $0x68] sm:$0xf] %v2533
      %2594 = vst [vmem:[%s226 + $0x6c] sm:$0xf] %v2534
      %2595 = vst [vmem:[%s226 + $0x70] sm:$0xf] %v2535
      %2596 = vst [vmem:[%s226 + $0x74] sm:$0xf] %v2536
      %s2597 = smul.u32 30, %s18
      %p2598 = scmp.lt.s32.totalorder %s2597, 59
      %s2599 = scalar_select %p2598, %s2597, 59
      %p2600 = scmp.lt.s32.totalorder %s19, 0
      %s2601 = scalar_select %p2600, %s19, 0
      %s2602 = sadd.s32 %s2601, %s2599
      %s2603 = smul.addr %s2602, 4
      %s2604 = scalar_lea.vmem %s3, %s2603
      // Predicated region
      $region33: #{hybrid_qnn_forward.8} parent=31 // pred_check
        %p2605 = pneg %p124
      $region34: #{hybrid_qnn_forward.8} parent=31 // pred_check_branch
        %2607 = sbr.rel (%p2605) target = $region36
      $region35: #{hybrid_qnn_forward.8} parent=31 // pred_region
        %s2608 = smul.u32 30, %s18
      $region36: #{hybrid_qnn_forward.8} parent=31 // pred_fallthru
        _
    $region32: #{hybrid_qnn_forward.8} parent=5 // pred_fallthru
      _
    %p2609 = scmp.le.s32.totalorder 2, %s9
    // Predicated region
    $region37: #{hybrid_qnn_forward.8} parent=5 // pred_check
      %p2610 = pneg %p2609
    $region38: #{hybrid_qnn_forward.8} parent=5 // pred_check_branch
      %2612 = sbr.rel (%p2610) target = $region40
    $region39: #{hybrid_qnn_forward.8} parent=5 // pred_region
      %s2613 = ssub.s32 %s9, 2
      // Predicated region
      $region41: #{hybrid_qnn_forward.8} parent=39 // pred_check
        %p2614 = pneg %p130
      $region42: #{hybrid_qnn_forward.8} parent=39 // pred_check_branch
        %2616 = sbr.rel (%p2614) target = $region44
      $region43: #{hybrid_qnn_forward.8} parent=39 // pred_region
        %s2617 = smul.u32 30, %s20
        %p2618 = scmp.lt.s32.totalorder %s2617, 59
        %s2619 = scalar_select %p2618, %s2617, 59
        %p2620 = scmp.lt.s32.totalorder %s21, 0
        %s2621 = scalar_select %p2620, %s21, 0
        %s2622 = sadd.s32 %s2621, %s2619
        %s2623 = smul.addr %s2622, 4
        %s2624 = scalar_lea.vmem %s3, %s2623
      $region44: #{hybrid_qnn_forward.8} parent=39 // pred_fallthru
        _
    $region40: #{hybrid_qnn_forward.8} parent=5 // pred_fallthru
      _
  $region6: #{hybrid_qnn_forward.8} parent=0 // loop_footer
    %s13 = sadd.s32 1, %s9
  $region7: #{hybrid_qnn_forward.8} parent=0 // loop_footer_branch
    %8 = sbr.rel target = $region3
  $region8: #{hybrid_qnn_forward.8} parent=0 // loop_exit
    _

// kernel: hybrid_qnn_forward.11
$region0: #{hybrid_qnn_forward.11}
  #allocation0 [shape = 'u32[]', space=smem, size = 0x4, offset = 0x4, fixed_abs, tag = 'smem constant byte address 0x4 - core index']
  #allocation1 [shape = 'u32[144,128]{1,0:T(1,128)}', space=vmem, size = 0x12000, scoped, tag = 'internal scratch']
  %s0 = inlined_call_operand.vmem [shape: bf16[16,512], index: 0, kind: input, shape index: {}]
  %s1 = inlined_call_operand.vmem [shape: bf16[512,128], index: 1, kind: input, shape index: {}]
  %s2 = inlined_call_operand.vmem [shape: f32[1,128], index: 2, kind: input, shape index: {}]
  %s3 = inlined_call_operand.vmem [shape: f32[16,128], index: 3, kind: output, shape index: {}]
  %s4 = sld [smem:[#allocation0]]
  $region22: #{hybrid_qnn_forward.11} parent=0
    _
  %s6 = ssub.s32 1, %s4
  %s7 = scalar_select 0, %s6, %s4
  // Predicated region
  $region2: #{hybrid_qnn_forward.11} parent=0 // pred_check
    _
  $region3: #{hybrid_qnn_forward.11} parent=0 // pred_check_branch
    %9 = sbr.rel (0) target = $region5
  $region4: #{hybrid_qnn_forward.11} parent=0 // pred_region
    _
  $region5: #{hybrid_qnn_forward.11} parent=0 // pred_fallthru
    _
  // Predicated region
  $region6: #{hybrid_qnn_forward.11} parent=0 // pred_check
    _
  $region7: #{hybrid_qnn_forward.11} parent=0 // pred_check_branch
    %11 = sbr.rel (0) target = $region9
  $region8: #{hybrid_qnn_forward.11} parent=0 // pred_region
    _
  $region9: #{hybrid_qnn_forward.11} parent=0 // pred_fallthru
    _
  // Predicated region
  $region10: #{hybrid_qnn_forward.11} parent=0 // pred_check
    _
  $region11: #{hybrid_qnn_forward.11} parent=0 // pred_check_branch
    %13 = sbr.rel (0) target = $region13
  $region12: #{hybrid_qnn_forward.11} parent=0 // pred_region
    _
  $region13: #{hybrid_qnn_forward.11} parent=0 // pred_fallthru
    _
  %v15 = vld [vmem:[%s0] sm:$0xff]
  %v16 = vld [vmem:[%s0 + $0x8] sm:$0xff]
  %v17 = vld [vmem:[%s0 + $0x10] sm:$0xff]
  %v18 = vld [vmem:[%s0 + $0x18] sm:$0xff]
  %v19 = vld [vmem:[%s1] sm:$0xf]
  %v20 = vld [vmem:[%s1 + $0x4] sm:$0xf]
  %v21 = vld [vmem:[%s1 + $0x8] sm:$0xf]
  %v22 = vld [vmem:[%s1 + $0xc] sm:$0xf]
  %v23 = vld [vmem:[%s1 + $0x10] sm:$0xf]
  %v24 = vld [vmem:[%s1 + $0x14] sm:$0xf]
  %v25 = vld [vmem:[%s1 + $0x18] sm:$0xf]
  %v26 = vld [vmem:[%s1 + $0x1c] sm:$0xf]
  %v27 = vld [vmem:[%s1 + $0x20] sm:$0xf]
  %v28 = vld [vmem:[%s1 + $0x24] sm:$0xf]
  %v29 = vld [vmem:[%s1 + $0x28] sm:$0xf]
  %v30 = vld [vmem:[%s1 + $0x2c] sm:$0xf]
  %v31 = vld [vmem:[%s1 + $0x30] sm:$0xf]
  %v32 = vld [vmem:[%s1 + $0x34] sm:$0xf]
  %v33 = vld [vmem:[%s1 + $0x38] sm:$0xf]
  %v34 = vld [vmem:[%s1 + $0x3c] sm:$0xf]
  %v35 = vld [vmem:[%s1 + $0x40] sm:$0xf]
  %v36 = vld [vmem:[%s1 + $0x44] sm:$0xf]
  %v37 = vld [vmem:[%s1 + $0x48] sm:$0xf]
  %v38 = vld [vmem:[%s1 + $0x4c] sm:$0xf]
  %v39 = vld [vmem:[%s1 + $0x50] sm:$0xf]
  %v40 = vld [vmem:[%s1 + $0x54] sm:$0xf]
  %v41 = vld [vmem:[%s1 + $0x58] sm:$0xf]
  %v42 = vld [vmem:[%s1 + $0x5c] sm:$0xf]
  %v43 = vld [vmem:[%s1 + $0x60] sm:$0xf]
  %v44 = vld [vmem:[%s1 + $0x64] sm:$0xf]
  %v45 = vld [vmem:[%s1 + $0x68] sm:$0xf]
  %v46 = vld [vmem:[%s1 + $0x6c] sm:$0xf]
  %v47 = vld [vmem:[%s1 + $0x70] sm:$0xf]
  %v48 = vld [vmem:[%s1 + $0x74] sm:$0xf]
  %v49 = vld [vmem:[%s1 + $0x78] sm:$0xf]
  %v50 = vld [vmem:[%s1 + $0x7c] sm:$0xf]
  %v51 = vld [vmem:[%s1 + $0x80] sm:$0xf]
  %v52 = vld [vmem:[%s1 + $0x84] sm:$0xf]
  %v53 = vld [vmem:[%s1 + $0x88] sm:$0xf]
  %v54 = vld [vmem:[%s1 + $0x8c] sm:$0xf]
  %v55 = vld [vmem:[%s1 + $0x90] sm:$0xf]
  %v56 = vld [vmem:[%s1 + $0x94] sm:$0xf]
  %v57 = vld [vmem:[%s1 + $0x98] sm:$0xf]
  %v58 = vld [vmem:[%s1 + $0x9c] sm:$0xf]
  %v59 = vld [vmem:[%s1 + $0xa0] sm:$0xf]
  %v60 = vld [vmem:[%s1 + $0xa4] sm:$0xf]
  %v61 = vld [vmem:[%s1 + $0xa8] sm:$0xf]
  %v62 = vld [vmem:[%s1 + $0xac] sm:$0xf]
  %v63 = vld [vmem:[%s1 + $0xb0] sm:$0xf]
  %v64 = vld [vmem:[%s1 + $0xb4] sm:$0xf]
  %v65 = vld [vmem:[%s1 + $0xb8] sm:$0xf]
  %v66 = vld [vmem:[%s1 + $0xbc] sm:$0xf]
  %v67 = vld [vmem:[%s1 + $0xc0] sm:$0xf]
  %v68 = vld [vmem:[%s1 + $0xc4] sm:$0xf]
  %v69 = vld [vmem:[%s1 + $0xc8] sm:$0xf]
  %v70 = vld [vmem:[%s1 + $0xcc] sm:$0xf]
  %v71 = vld [vmem:[%s1 + $0xd0] sm:$0xf]
  %v72 = vld [vmem:[%s1 + $0xd4] sm:$0xf]
  %v73 = vld [vmem:[%s1 + $0xd8] sm:$0xf]
  %v74 = vld [vmem:[%s1 + $0xdc] sm:$0xf]
  %v75 = vld [vmem:[%s1 + $0xe0] sm:$0xf]
  %v76 = vld [vmem:[%s1 + $0xe4] sm:$0xf]
  %v77 = vld [vmem:[%s1 + $0xe8] sm:$0xf]
  %v78 = vld [vmem:[%s1 + $0xec] sm:$0xf]
  %v79 = vld [vmem:[%s1 + $0xf0] sm:$0xf]
  %v80 = vld [vmem:[%s1 + $0xf4] sm:$0xf]
  %v81 = vld [vmem:[%s1 + $0xf8] sm:$0xf]
  %v82 = vld [vmem:[%s1 + $0xfc] sm:$0xf]
  %v83 = vld [vmem:[%s2] sm:$0x1]
  %v85 = vlaneseq
  %v86 = vshrl.u32 %v85, 7
  %v87 = vsub.s32 0, %v86
  %v88 = vrot.slane %v83, %v87
  %v94 = vunpack.c.l.b16 %v15
  %v95 = vunpack.c.h.b16 %v15
  %v96 = vunpack.c.l.b16 %v16
  %v97 = vunpack.c.h.b16 %v16
  %v98 = vunpack.c.l.b16 %v17
  %v99 = vunpack.c.h.b16 %v17
  %v100 = vunpack.c.l.b16 %v18
  %v101 = vunpack.c.h.b16 %v18
  %v102 = vpack.c.b16 %v98, %v94
  %v103 = vpack.c.b16 %v99, %v95
  %v104 = vpack.c.b16 %v100, %v96
  %v105 = vpack.c.b16 %v101, %v97
  %v174 = vunpack.c.l.b16 %v19
  %v175 = vunpack.c.l.b16 %v20
  %v176 = vunpack.c.l.b16 %v21
  %v177 = vunpack.c.l.b16 %v22
  %v178 = vunpack.c.l.b16 %v23
  %v179 = vunpack.c.l.b16 %v24
  %v180 = vunpack.c.l.b16 %v25
  %v181 = vunpack.c.l.b16 %v26
  %v182 = vunpack.c.l.b16 %v27
  %v183 = vunpack.c.l.b16 %v28
  %v184 = vunpack.c.l.b16 %v29
  %v185 = vunpack.c.l.b16 %v30
  %v186 = vunpack.c.l.b16 %v31
  %v187 = vunpack.c.l.b16 %v32
  %v188 = vunpack.c.l.b16 %v33
  %v189 = vunpack.c.l.b16 %v34
  %v190 = vunpack.c.l.b16 %v35
  %v191 = vunpack.c.l.b16 %v36
  %v192 = vunpack.c.l.b16 %v37
  %v193 = vunpack.c.l.b16 %v38
  %v194 = vunpack.c.l.b16 %v39
  %v195 = vunpack.c.l.b16 %v40
  %v196 = vunpack.c.l.b16 %v41
  %v197 = vunpack.c.l.b16 %v42
  %v198 = vunpack.c.l.b16 %v43
  %v199 = vunpack.c.l.b16 %v44
  %v200 = vunpack.c.l.b16 %v45
  %v201 = vunpack.c.l.b16 %v46
  %v202 = vunpack.c.l.b16 %v47
  %v203 = vunpack.c.l.b16 %v48
  %v204 = vunpack.c.l.b16 %v49
  %v205 = vunpack.c.l.b16 %v50
  %v206 = vunpack.c.l.b16 %v51
  %v207 = vunpack.c.l.b16 %v52
  %v208 = vunpack.c.l.b16 %v53
  %v209 = vunpack.c.l.b16 %v54
  %v210 = vunpack.c.l.b16 %v55
  %v211 = vunpack.c.l.b16 %v56
  %v212 = vunpack.c.l.b16 %v57
  %v213 = vunpack.c.l.b16 %v58
  %v214 = vunpack.c.l.b16 %v59
  %v215 = vunpack.c.l.b16 %v60
  %v216 = vunpack.c.l.b16 %v61
  %v217 = vunpack.c.l.b16 %v62
  %v218 = vunpack.c.l.b16 %v63
  %v219 = vunpack.c.l.b16 %v64
  %v220 = vunpack.c.l.b16 %v65
  %v221 = vunpack.c.l.b16 %v66
  %v222 = vunpack.c.l.b16 %v67
  %v223 = vunpack.c.l.b16 %v68
  %v224 = vunpack.c.l.b16 %v69
  %v225 = vunpack.c.l.b16 %v70
  %v226 = vunpack.c.l.b16 %v71
  %v227 = vunpack.c.l.b16 %v72
  %v228 = vunpack.c.l.b16 %v73
  %v229 = vunpack.c.l.b16 %v74
  %v230 = vunpack.c.l.b16 %v75
  %v231 = vunpack.c.l.b16 %v76
  %v232 = vunpack.c.l.b16 %v77
  %v233 = vunpack.c.l.b16 %v78
  %v234 = vunpack.c.l.b16 %v79
  %v235 = vunpack.c.l.b16 %v80
  %v236 = vunpack.c.l.b16 %v81
  %v237 = vunpack.c.l.b16 %v82
  %v238 = vpack.c.b16 %v175, %v174
  %v239 = vpack.c.b16 %v177, %v176
  %v240 = vpack.c.b16 %v179, %v178
  %v241 = vpack.c.b16 %v181, %v180
  %v242 = vpack.c.b16 %v183, %v182
  %v243 = vpack.c.b16 %v185, %v184
  %v244 = vpack.c.b16 %v187, %v186
  %v245 = vpack.c.b16 %v189, %v188
  %v246 = vpack.c.b16 %v191, %v190
  %v247 = vpack.c.b16 %v193, %v192
  %v248 = vpack.c.b16 %v195, %v194
  %v249 = vpack.c.b16 %v197, %v196
  %v250 = vpack.c.b16 %v199, %v198
  %v251 = vpack.c.b16 %v201, %v200
  %v252 = vpack.c.b16 %v203, %v202
  %v253 = vpack.c.b16 %v205, %v204
  %v254 = vpack.c.b16 %v207, %v206
  %v255 = vpack.c.b16 %v209, %v208
  %v256 = vpack.c.b16 %v211, %v210
  %v257 = vpack.c.b16 %v213, %v212
  %v258 = vpack.c.b16 %v215, %v214
  %v259 = vpack.c.b16 %v217, %v216
  %v260 = vpack.c.b16 %v219, %v218
  %v261 = vpack.c.b16 %v221, %v220
  %v262 = vpack.c.b16 %v223, %v222
  %v263 = vpack.c.b16 %v225, %v224
  %v264 = vpack.c.b16 %v227, %v226
  %v265 = vpack.c.b16 %v229, %v228
  %v266 = vpack.c.b16 %v231, %v230
  %v267 = vpack.c.b16 %v233, %v232
  %v268 = vpack.c.b16 %v235, %v234
  %v269 = vpack.c.b16 %v237, %v236
  %302 = vmatprep.subr.bf16.mxu0 0
  %303 = vmatpush1.bf16.msra.mxu0 %v245
  %304 = vmatprep.subr.bf16.mxu0 0
  %305 = vmatpush1.bf16.msra.mxu0 %v244
  %306 = vmatprep.subr.bf16.mxu0 0
  %307 = vmatpush1.bf16.msra.mxu0 %v243
  %308 = vmatprep.subr.bf16.mxu0 0
  %309 = vmatpush1.bf16.msra.mxu0 %v242
  %310 = vmatprep.subr.bf16.mxu0 0
  %311 = vmatpush1.bf16.msra.mxu0 %v241
  %312 = vmatprep.subr.bf16.mxu0 0
  %313 = vmatpush1.bf16.msra.mxu0 %v240
  %314 = vmatprep.subr.bf16.mxu0 0
  %315 = vmatpush1.bf16.msra.mxu0 %v239
  %316 = vmatprep.subr.bf16.mxu0 0
  %317 = vmatpush1.bf16.msra.mxu0 %v238
  %318 = vmatprep.subr.bf16.mxu0 0
  %319 = vmatpush2.bf16.msra.mxu0 %v253
  %320 = vmatprep.subr.bf16.mxu0 0
  %321 = vmatpush2.bf16.msra.mxu0 %v252
  %322 = vmatprep.subr.bf16.mxu0 0
  %323 = vmatpush2.bf16.msra.mxu0 %v251
  %324 = vmatprep.subr.bf16.mxu0 0
  %325 = vmatpush2.bf16.msra.mxu0 %v250
  %326 = vmatprep.subr.bf16.mxu0 0
  %327 = vmatpush2.bf16.msra.mxu0 %v249
  %328 = vmatprep.subr.bf16.mxu0 0
  %329 = vmatpush2.bf16.msra.mxu0 %v248
  %330 = vmatprep.subr.bf16.mxu0 0
  %331 = vmatpush2.bf16.msra.mxu0 %v247
  %332 = vmatprep.subr.bf16.mxu0 0
  %333 = vmatpush2.bf16.msra.mxu0 %v246
  %334 = vmatprep.mubr.bf16.mxu0 %v103
  %335 = vmatmul.mubr.bf16.gmra.mxu0 %v102
  %v336 = vpop.f32.mrf.mxu0
  %v337 = vadd.f32 %v88, %v336
  %v338 = vpop.f32.mrf.mxu0
  %v339 = vpop.f32.mrf.mxu0
  %v340 = vadd.f32 %v88, %v339
  %v341 = vpop.f32.mrf.mxu0
  %342 = vdwg.mxu0
  %343 = vmatprep.subr.bf16.mxu0 0
  %344 = vmatpush1.bf16.msra.mxu0 %v261
  %345 = vmatprep.subr.bf16.mxu0 0
  %346 = vmatpush1.bf16.msra.mxu0 %v260
  %347 = vmatprep.subr.bf16.mxu0 0
  %348 = vmatpush1.bf16.msra.mxu0 %v259
  %349 = vmatprep.subr.bf16.mxu0 0
  %350 = vmatpush1.bf16.msra.mxu0 %v258
  %351 = vmatprep.subr.bf16.mxu0 0
  %352 = vmatpush1.bf16.msra.mxu0 %v257
  %353 = vmatprep.subr.bf16.mxu0 0
  %354 = vmatpush1.bf16.msra.mxu0 %v256
  %355 = vmatprep.subr.bf16.mxu0 0
  %356 = vmatpush1.bf16.msra.mxu0 %v255
  %357 = vmatprep.subr.bf16.mxu0 0
  %358 = vmatpush1.bf16.msra.mxu0 %v254
  %359 = vmatprep.subr.bf16.mxu0 0
  %360 = vmatpush2.bf16.msra.mxu0 %v269
  %361 = vmatprep.subr.bf16.mxu0 0
  %362 = vmatpush2.bf16.msra.mxu0 %v268
  %363 = vmatprep.subr.bf16.mxu0 0
  %364 = vmatpush2.bf16.msra.mxu0 %v267
  %365 = vmatprep.subr.bf16.mxu0 0
  %366 = vmatpush2.bf16.msra.mxu0 %v266
  %367 = vmatprep.subr.bf16.mxu0 0
  %368 = vmatpush2.bf16.msra.mxu0 %v265
  %369 = vmatprep.subr.bf16.mxu0 0
  %370 = vmatpush2.bf16.msra.mxu0 %v264
  %371 = vmatprep.subr.bf16.mxu0 0
  %372 = vmatpush2.bf16.msra.mxu0 %v263
  %373 = vmatprep.subr.bf16.mxu0 0
  %374 = vmatpush2.bf16.msra.mxu0 %v262
  %375 = vmatprep.mubr.bf16.mxu0 %v105
  %376 = vmatmul.mubr.bf16.gmra.mxu0 %v104
  %v377 = vpop.f32.mrf.mxu0
  %v378 = vadd.f32 %v337, %v377
  %v379 = vpop.f32.mrf.mxu0
  %v380 = vpop.f32.mrf.mxu0
  %v381 = vadd.f32 %v340, %v380
  %v382 = vpop.f32.mrf.mxu0
  %383 = vdwg.mxu0
  %384 = vst [vmem:[%s3] sm:$0xff] %v378
  %385 = vst [vmem:[%s3 + $0x8] sm:$0xff] %v381
  // Predicated region
  $region14: #{hybrid_qnn_forward.11} parent=0 // pred_check
    _
  $region15: #{hybrid_qnn_forward.11} parent=0 // pred_check_branch
    %387 = sbr.rel (0) target = $region17
  $region16: #{hybrid_qnn_forward.11} parent=0 // pred_region
    _
  $region17: #{hybrid_qnn_forward.11} parent=0 // pred_fallthru
    _
  // Predicated region
  $region18: #{hybrid_qnn_forward.11} parent=0 // pred_check
    _
  $region19: #{hybrid_qnn_forward.11} parent=0 // pred_check_branch
    %389 = sbr.rel (0) target = $region21
  $region20: #{hybrid_qnn_forward.11} parent=0 // pred_region
    _
  $region21: #{hybrid_qnn_forward.11} parent=0 // pred_fallthru
    _

// kernel: hybrid_qnn_forward.10
$region0: #{hybrid_qnn_forward.10}
  #allocation0 [shape = 'u32[]', space=smem, size = 0x4, offset = 0x4, fixed_abs, tag = 'smem constant byte address 0x4 - core index']
  #allocation1 [shape = 'u32[144,128]{1,0:T(1,128)}', space=vmem, size = 0x12000, scoped, tag = 'internal scratch']
  %s0 = inlined_call_operand.vmem [shape: bf16[16,1664], index: 0, kind: input, shape index: {}]
  %s1 = inlined_call_operand.vmem [shape: bf16[1664,512], index: 1, kind: input, shape index: {}]
  %s2 = inlined_call_operand.vmem [shape: f32[1,512], index: 2, kind: input, shape index: {}]
  %s3 = inlined_call_operand.vmem [shape: bf16[16,512], index: 3, kind: output, shape index: {}]
  %s4 = sld [smem:[#allocation0]]
  $region117: #{hybrid_qnn_forward.10} parent=0
    _
  %s6 = ssub.s32 1, %s4
  %s7 = scalar_select 0, %s6, %s4
  $region1: #{hybrid_qnn_forward.10} parent=0
    #allocation2 [shape = 'u8[1703936]{0}', space=vmem, size = 0x1a0000, scoped, tag = 'input window, operand 1']
    #allocation3 [shape = 'u8[16384]{0}', space=vmem, size = 0x4000, scoped, tag = 'output window, operand 0']
    loop: start=0, step=1, limit=4
    $region2: #{hybrid_qnn_forward.10} parent=1 // loop_pre_header
      _
    $region3: #{hybrid_qnn_forward.10} parent=1 // loop_header
      %s9 = sphi 0, %s13
      %p10 = scmp.ge.s32.totalorder %s9, 4
      %s16 = sphi 0, %s28
      %s17 = sphi 0, %s24
      %s18 = sphi 0, %s16
      %s19 = sphi 0, %s17
      %s20 = sphi 0, %s18
      %s21 = sphi 0, %s19
      %s31 = sphi 0, %s33
      %s34 = sphi 0, %s31
      %s35 = sphi 0, %s34
      %s51 = sphi 0, %s35
      %s57 = sphi 0, %s59
      %s60 = sphi 0, %s57
      %s61 = sphi 0, %s60
      %s77 = sphi 0, %s61
      %s83 = sphi 0, %s85
      %s86 = sphi 0, %s83
      %s87 = sphi 0, %s86
      %s103 = sphi 0, %s87
      %s111 = sphi 0, %s113
      %s114 = sphi 0, %s111
      %s115 = sphi 0, %s114
      %s131 = sphi 0, %s115
    $region4: #{hybrid_qnn_forward.10} parent=1 // loop_header_branch
      %12 = sbr.rel (%p10) target = $region8
    $region5: #{hybrid_qnn_forward.10} parent=1 // loop_body
      %s14 = ssub.s32 %s9, 1
      %s15 = ssub.s32 %s9, 2
      %s22 = sadd.s32 1, %s17
      %p23 = scmp.ge.s32.totalorder %s22, 2
      %s24 = scalar_select %p23, 0, %s22
      %s25 = sadd.s32 1, %s16
      %s26 = scalar_select %p23, %s25, %s16
      %p27 = scmp.ge.s32.totalorder %s26, 1
      %s28 = scalar_select %p27, 0, %s26
      %s29 = ssub.s32 %s16, %s28
      %p30 = scmp.eq.s32.totalorder %s29, 0
      %s32 = sadd.s32 %s31, 1
      %s33 = scalar_select %p30, %s31, %s32
      %p36 = pneg %p30
      %p37 = scmp.eq.s32.totalorder %s9, 1
      %p38 = por %p36, %p37
      %p39 = scmp.ne.s32.totalorder %s31, %s34
      %p40 = scmp.eq.s32.totalorder %s9, 0
      %p41 = por %p39, %p40
      %p42 = scmp.ne.s32.totalorder %s31, %s34
      %p43 = scmp.eq.s32.totalorder %s14, 1
      %p44 = por %p42, %p43
      %p45 = scmp.ne.s32.totalorder %s34, %s35
      %p46 = scmp.eq.s32.totalorder %s14, 0
      %p47 = por %p45, %p46
      %p48 = scmp.ne.s32.totalorder %s34, %s35
      %p49 = scmp.eq.s32.totalorder %s15, 1
      %p50 = por %p48, %p49
      %p52 = scmp.ne.s32.totalorder %s35, %s51
      %p53 = scmp.eq.s32.totalorder %s15, 0
      %p54 = por %p52, %p53
      %s55 = ssub.s32 %s17, %s24
      %p56 = scmp.eq.s32.totalorder %s55, 0
      %s58 = sadd.s32 %s57, 1
      %s59 = scalar_select %p56, %s57, %s58
      %p62 = pneg %p56
      %p63 = scmp.eq.s32.totalorder %s9, 1
      %p64 = por %p62, %p63
      %p65 = scmp.ne.s32.totalorder %s57, %s60
      %p66 = scmp.eq.s32.totalorder %s9, 0
      %p67 = por %p65, %p66
      %p68 = scmp.ne.s32.totalorder %s57, %s60
      %p69 = scmp.eq.s32.totalorder %s14, 1
      %p70 = por %p68, %p69
      %p71 = scmp.ne.s32.totalorder %s60, %s61
      %p72 = scmp.eq.s32.totalorder %s14, 0
      %p73 = por %p71, %p72
      %p74 = scmp.ne.s32.totalorder %s60, %s61
      %p75 = scmp.eq.s32.totalorder %s15, 1
      %p76 = por %p74, %p75
      %p78 = scmp.ne.s32.totalorder %s61, %s77
      %p79 = scmp.eq.s32.totalorder %s15, 0
      %p80 = por %p78, %p79
      %s81 = ssub.s32 %s17, %s24
      %p82 = scmp.eq.s32.totalorder %s81, 0
      %s84 = sadd.s32 %s83, 1
      %s85 = scalar_select %p82, %s83, %s84
      %p88 = pneg %p82
      %p89 = scmp.eq.s32.totalorder %s9, 1
      %p90 = por %p88, %p89
      %p91 = scmp.ne.s32.totalorder %s83, %s86
      %p92 = scmp.eq.s32.totalorder %s9, 0
      %p93 = por %p91, %p92
      %p94 = scmp.ne.s32.totalorder %s83, %s86
      %p95 = scmp.eq.s32.totalorder %s14, 1
      %p96 = por %p94, %p95
      %p97 = scmp.ne.s32.totalorder %s86, %s87
      %p98 = scmp.eq.s32.totalorder %s14, 0
      %p99 = por %p97, %p98
      %p100 = scmp.ne.s32.totalorder %s86, %s87
      %p101 = scmp.eq.s32.totalorder %s15, 1
      %p102 = por %p100, %p101
      %p104 = scmp.ne.s32.totalorder %s87, %s103
      %p105 = scmp.eq.s32.totalorder %s15, 0
      %p106 = por %p104, %p105
      %s107 = ssub.s32 %s16, %s28
      %s108 = ssub.s32 %s17, %s24
      %s109 = sor.u32 %s107, %s108
      %p110 = scmp.eq.s32.totalorder %s109, 0
      %s112 = sadd.s32 %s111, 1
      %s113 = scalar_select %p110, %s111, %s112
      %p116 = pneg %p110
      %p117 = scmp.eq.s32.totalorder %s9, 1
      %p118 = por %p116, %p117
      %p119 = scmp.ne.s32.totalorder %s111, %s114
      %p120 = scmp.eq.s32.totalorder %s9, 0
      %p121 = por %p119, %p120
      %p122 = scmp.ne.s32.totalorder %s111, %s114
      %p123 = scmp.eq.s32.totalorder %s14, 1
      %p124 = por %p122, %p123
      %p125 = scmp.ne.s32.totalorder %s114, %s115
      %p126 = scmp.eq.s32.totalorder %s14, 0
      %p127 = por %p125, %p126
      %p128 = scmp.ne.s32.totalorder %s114, %s115
      %p129 = scmp.eq.s32.totalorder %s15, 1
      %p130 = por %p128, %p129
      %p132 = scmp.ne.s32.totalorder %s115, %s131
      %p133 = scmp.eq.s32.totalorder %s15, 0
      %p134 = por %p132, %p133
      %p135 = scmp.le.s32.totalorder 1, %s9
      %p136 = scmp.lt.s32.totalorder %s9, 3
      %p137 = pnand %p135, %p136
      %p138 = pneg %p137
      // Predicated region
      $region9: #{hybrid_qnn_forward.10} parent=5 // pred_check
        _
      $region10: #{hybrid_qnn_forward.10} parent=5 // pred_check_branch
        %140 = sbr.rel (%p137) target = $region12
      $region11: #{hybrid_qnn_forward.10} parent=5 // pred_region
        %s141 = ssub.s32 %s9, 1
        // Predicated region
        $region13: #{hybrid_qnn_forward.10} parent=11 // pred_check
          %p142 = pneg %p47
        $region14: #{hybrid_qnn_forward.10} parent=11 // pred_check_branch
          %144 = sbr.rel (%p142) target = $region16
        $region15: #{hybrid_qnn_forward.10} parent=11 // pred_region
          %s145 = smul.u32 2, %s18
          %p146 = scmp.lt.s32.totalorder %s145, 1
          %s147 = scalar_select %p146, %s145, 1
          %s148 = smul.addr %s147, 13
          %s149 = smul.addr %s148, 4
          %s150 = scalar_lea.vmem %s0, %s149
          %s151 = smul.u32 2, %s18
        $region16: #{hybrid_qnn_forward.10} parent=11 // pred_fallthru
          _
      $region12: #{hybrid_qnn_forward.10} parent=5 // pred_fallthru
        _
      %p152 = scmp.lt.s32.totalorder %s9, 2
      // Predicated region
      $region17: #{hybrid_qnn_forward.10} parent=5 // pred_check
        %p153 = pneg %p152
      $region18: #{hybrid_qnn_forward.10} parent=5 // pred_check_branch
        %155 = sbr.rel (%p153) target = $region20
      $region19: #{hybrid_qnn_forward.10} parent=5 // pred_region
        // Predicated region
        $region21: #{hybrid_qnn_forward.10} parent=19 // pred_check
          %p156 = pneg %p67
        $region22: #{hybrid_qnn_forward.10} parent=19 // pred_check_branch
          %158 = sbr.rel (%p156) target = $region24
        $region23: #{hybrid_qnn_forward.10} parent=19 // pred_region
          %s159 = sand.u32 %s57, 1
          %s160 = sand.u32 %s57, 1
          %s161 = smul.addr %s160, 1664
          %s162 = scalar_lea.vmem [#allocation2], %s161
          %s163 = smul.u32 2, %s17
          %s164 = smul.addr %s163, 4
          %s165 = scalar_lea.vmem %s1, %s164
          // Predicated region
          $region25: #{hybrid_qnn_forward.10} parent=23 // pred_check
            _
          $region26: #{hybrid_qnn_forward.10} parent=23 // pred_check_branch
            %167 = sbr.rel (0) target = $region28
          $region27: #{hybrid_qnn_forward.10} parent=23 // pred_region
            // Predicated region
            $region29: #{hybrid_qnn_forward.10} parent=27 // pred_check
              _
            $region30: #{hybrid_qnn_forward.10} parent=27 // pred_check_branch
              %169 = sbr.rel (0) target = $region32
            $region31: #{hybrid_qnn_forward.10} parent=27 // pred_region
              // Predicated region
              $region44: #{hybrid_qnn_forward.10} parent=31 // pred_check
                _
              $region45: #{hybrid_qnn_forward.10} parent=31 // pred_check_branch
                %599 = sbr.rel (0) target = $region47
              $region46: #{hybrid_qnn_forward.10} parent=31 // pred_region
                loop: start=0, step=1, limit=1
                $region48: #{hybrid_qnn_forward.10} parent=46 // loop_pre_header
                  _
                $region49: #{hybrid_qnn_forward.10} parent=46 // loop_header
                  %s601 = sphi 0, %s605
                  %p602 = scmp.ge.s32.totalorder %s601, 1
                  %s606 = sphi %s165, %s165
                  %s607 = sphi %s162, %s162
                $region50: #{hybrid_qnn_forward.10} parent=46 // loop_header_branch
                  %604 = sbr.rel (%p602) target = $region54
                $region51: #{hybrid_qnn_forward.10} parent=46 // loop_body
                  %v608 = vld [vmem:[%s606] sm:$0xff]
                  %609 = vst [vmem:[%s607] sm:$0xff] %v608
                  %v610 = vld [vmem:[%s606 + $0x10] sm:$0xff]
                  %611 = vst [vmem:[%s607 + $0x8] sm:$0xff] %v610
                  %v612 = vld [vmem:[%s606 + $0x20] sm:$0xff]
                  %613 = vst [vmem:[%s607 + $0x10] sm:$0xff] %v612
                  %v614 = vld [vmem:[%s606 + $0x30] sm:$0xff]
                  %615 = vst [vmem:[%s607 + $0x18] sm:$0xff] %v614
                  %v616 = vld [vmem:[%s606 + $0x40] sm:$0xff]
                  %617 = vst [vmem:[%s607 + $0x20] sm:$0xff] %v616
                  %v618 = vld [vmem:[%s606 + $0x50] sm:$0xff]
                  %619 = vst [vmem:[%s607 + $0x28] sm:$0xff] %v618
                  %v620 = vld [vmem:[%s606 + $0x60] sm:$0xff]
                  %621 = vst [vmem:[%s607 + $0x30] sm:$0xff] %v620
                  %v622 = vld [vmem:[%s606 + $0x70] sm:$0xff]
                  %623 = vst [vmem:[%s607 + $0x38] sm:$0xff] %v622
                  %v624 = vld [vmem:[%s606 + $0x80] sm:$0xff]
                  %625 = vst [vmem:[%s607 + $0x40] sm:$0xff] %v624
                  %v626 = vld [vmem:[%s606 + $0x90] sm:$0xff]
                  %627 = vst [vmem:[%s607 + $0x48] sm:$0xff] %v626
                  %v628 = vld [vmem:[%s606 + $0xa0] sm:$0xff]
                  %629 = vst [vmem:[%s607 + $0x50] sm:$0xff] %v628
                  %v630 = vld [vmem:[%s606 + $0xb0] sm:$0xff]
                  %631 = vst [vmem:[%s607 + $0x58] sm:$0xff] %v630
                  %v632 = vld [vmem:[%s606 + $0xc0] sm:$0xff]
                  %633 = vst [vmem:[%s607 + $0x60] sm:$0xff] %v632
                  %v634 = vld [vmem:[%s606 + $0xd0] sm:$0xff]
                  %635 = vst [vmem:[%s607 + $0x68] sm:$0xff] %v634
                  %v636 = vld [vmem:[%s606 + $0xe0] sm:$0xff]
                  %637 = vst [vmem:[%s607 + $0x70] sm:$0xff] %v636
                  %v638 = vld [vmem:[%s606 + $0xf0] sm:$0xff]
                  %639 = vst [vmem:[%s607 + $0x78] sm:$0xff] %v638
                  %v640 = vld [vmem:[%s606 + $0x100] sm:$0xff]
                  %641 = vst [vmem:[%s607 + $0x80] sm:$0xff] %v640
                  %v642 = vld [vmem:[%s606 + $0x110] sm:$0xff]
                  %643 = vst [vmem:[%s607 + $0x88] sm:$0xff] %v642
                  %v644 = vld [vmem:[%s606 + $0x120] sm:$0xff]
                  %645 = vst [vmem:[%s607 + $0x90] sm:$0xff] %v644
                  %v646 = vld [vmem:[%s606 + $0x130] sm:$0xff]
                  %647 = vst [vmem:[%s607 + $0x98] sm:$0xff] %v646
                  %v648 = vld [vmem:[%s606 + $0x140] sm:$0xff]
                  %649 = vst [vmem:[%s607 + $0xa0] sm:$0xff] %v648
                  %v650 = vld [vmem:[%s606 + $0x150] sm:$0xff]
                  %651 = vst [vmem:[%s607 + $0xa8] sm:$0xff] %v650
                  %v652 = vld [vmem:[%s606 + $0x160] sm:$0xff]
                  %653 = vst [vmem:[%s607 + $0xb0] sm:$0xff] %v652
                  %v654 = vld [vmem:[%s606 + $0x170] sm:$0xff]
                  %655 = vst [vmem:[%s607 + $0xb8] sm:$0xff] %v654
                  %v656 = vld [vmem:[%s606 + $0x180] sm:$0xff]
                  %657 = vst [vmem:[%s607 + $0xc0] sm:$0xff] %v656
                  %v658 = vld [vmem:[%s606 + $0x190] sm:$0xff]
                  %659 = vst [vmem:[%s607 + $0xc8] sm:$0xff] %v658
                  %v660 = vld [vmem:[%s606 + $0x1a0] sm:$0xff]
                  %661 = vst [vmem:[%s607 + $0xd0] sm:$0xff] %v660
                  %v662 = vld [vmem:[%s606 + $0x1b0] sm:$0xff]
                  %663 = vst [vmem:[%s607 + $0xd8] sm:$0xff] %v662
                  %v664 = vld [vmem:[%s606 + $0x1c0] sm:$0xff]
                  %665 = vst [vmem:[%s607 + $0xe0] sm:$0xff] %v664
                  %v666 = vld [vmem:[%s606 + $0x1d0] sm:$0xff]
                  %667 = vst [vmem:[%s607 + $0xe8] sm:$0xff] %v666
                  %v668 = vld [vmem:[%s606 + $0x1e0] sm:$0xff]
                  %669 = vst [vmem:[%s607 + $0xf0] sm:$0xff] %v668
                  %v670 = vld [vmem:[%s606 + $0x1f0] sm:$0xff]
                  %671 = vst [vmem:[%s607 + $0xf8] sm:$0xff] %v670
                  %v672 = vld [vmem:[%s606 + $0x200] sm:$0xff]
                  %673 = vst [vmem:[%s607 + $0x100] sm:$0xff] %v672
                  %v674 = vld [vmem:[%s606 + $0x210] sm:$0xff]
                  %675 = vst [vmem:[%s607 + $0x108] sm:$0xff] %v674
                  %v676 = vld [vmem:[%s606 + $0x220] sm:$0xff]
                  %677 = vst [vmem:[%s607 + $0x110] sm:$0xff] %v676
                  %v678 = vld [vmem:[%s606 + $0x230] sm:$0xff]
                  %679 = vst [vmem:[%s607 + $0x118] sm:$0xff] %v678
                  %v680 = vld [vmem:[%s606 + $0x240] sm:$0xff]
                  %681 = vst [vmem:[%s607 + $0x120] sm:$0xff] %v680
                  %v682 = vld [vmem:[%s606 + $0x250] sm:$0xff]
                  %683 = vst [vmem:[%s607 + $0x128] sm:$0xff] %v682
                  %v684 = vld [vmem:[%s606 + $0x260] sm:$0xff]
                  %685 = vst [vmem:[%s607 + $0x130] sm:$0xff] %v684
                  %v686 = vld [vmem:[%s606 + $0x270] sm:$0xff]
                  %687 = vst [vmem:[%s607 + $0x138] sm:$0xff] %v686
                  %v688 = vld [vmem:[%s606 + $0x280] sm:$0xff]
                  %689 = vst [vmem:[%s607 + $0x140] sm:$0xff] %v688
                  %v690 = vld [vmem:[%s606 + $0x290] sm:$0xff]
                  %691 = vst [vmem:[%s607 + $0x148] sm:$0xff] %v690
                  %v692 = vld [vmem:[%s606 + $0x2a0] sm:$0xff]
                  %693 = vst [vmem:[%s607 + $0x150] sm:$0xff] %v692
                  %v694 = vld [vmem:[%s606 + $0x2b0] sm:$0xff]
                  %695 = vst [vmem:[%s607 + $0x158] sm:$0xff] %v694
                  %v696 = vld [vmem:[%s606 + $0x2c0] sm:$0xff]
                  %697 = vst [vmem:[%s607 + $0x160] sm:$0xff] %v696
                  %v698 = vld [vmem:[%s606 + $0x2d0] sm:$0xff]
                  %699 = vst [vmem:[%s607 + $0x168] sm:$0xff] %v698
                  %v700 = vld [vmem:[%s606 + $0x2e0] sm:$0xff]
                  %701 = vst [vmem:[%s607 + $0x170] sm:$0xff] %v700
                  %v702 = vld [vmem:[%s606 + $0x2f0] sm:$0xff]
                  %703 = vst [vmem:[%s607 + $0x178] sm:$0xff] %v702
                  %v704 = vld [vmem:[%s606 + $0x300] sm:$0xff]
                  %705 = vst [vmem:[%s607 + $0x180] sm:$0xff] %v704
                  %v706 = vld [vmem:[%s606 + $0x310] sm:$0xff]
                  %707 = vst [vmem:[%s607 + $0x188] sm:$0xff] %v706
                  %v708 = vld [vmem:[%s606 + $0x320] sm:$0xff]
                  %709 = vst [vmem:[%s607 + $0x190] sm:$0xff] %v708
                  %v710 = vld [vmem:[%s606 + $0x330] sm:$0xff]
                  %711 = vst [vmem:[%s607 + $0x198] sm:$0xff] %v710
                  %v712 = vld [vmem:[%s606 + $0x340] sm:$0xff]
                  %713 = vst [vmem:[%s607 + $0x1a0] sm:$0xff] %v712
                  %v714 = vld [vmem:[%s606 + $0x350] sm:$0xff]
                  %715 = vst [vmem:[%s607 + $0x1a8] sm:$0xff] %v714
                  %v716 = vld [vmem:[%s606 + $0x360] sm:$0xff]
                  %717 = vst [vmem:[%s607 + $0x1b0] sm:$0xff] %v716
                  %v718 = vld [vmem:[%s606 + $0x370] sm:$0xff]
                  %719 = vst [vmem:[%s607 + $0x1b8] sm:$0xff] %v718
                  %v720 = vld [vmem:[%s606 + $0x380] sm:$0xff]
                  %721 = vst [vmem:[%s607 + $0x1c0] sm:$0xff] %v720
                  %v722 = vld [vmem:[%s606 + $0x390] sm:$0xff]
                  %723 = vst [vmem:[%s607 + $0x1c8] sm:$0xff] %v722
                  %v724 = vld [vmem:[%s606 + $0x3a0] sm:$0xff]
                  %725 = vst [vmem:[%s607 + $0x1d0] sm:$0xff] %v724
                  %v726 = vld [vmem:[%s606 + $0x3b0] sm:$0xff]
                  %727 = vst [vmem:[%s607 + $0x1d8] sm:$0xff] %v726
                  %v728 = vld [vmem:[%s606 + $0x3c0] sm:$0xff]
                  %729 = vst [vmem:[%s607 + $0x1e0] sm:$0xff] %v728
                  %v730 = vld [vmem:[%s606 + $0x3d0] sm:$0xff]
                  %731 = vst [vmem:[%s607 + $0x1e8] sm:$0xff] %v730
                  %v732 = vld [vmem:[%s606 + $0x3e0] sm:$0xff]
                  %733 = vst [vmem:[%s607 + $0x1f0] sm:$0xff] %v732
                  %v734 = vld [vmem:[%s606 + $0x3f0] sm:$0xff]
                  %735 = vst [vmem:[%s607 + $0x1f8] sm:$0xff] %v734
                  %v736 = vld [vmem:[%s606 + $0x400] sm:$0xff]
                  %737 = vst [vmem:[%s607 + $0x200] sm:$0xff] %v736
                  %v738 = vld [vmem:[%s606 + $0x410] sm:$0xff]
                  %739 = vst [vmem:[%s607 + $0x208] sm:$0xff] %v738
                  %v740 = vld [vmem:[%s606 + $0x420] sm:$0xff]
                  %741 = vst [vmem:[%s607 + $0x210] sm:$0xff] %v740
                  %v742 = vld [vmem:[%s606 + $0x430] sm:$0xff]
                  %743 = vst [vmem:[%s607 + $0x218] sm:$0xff] %v742
                  %v744 = vld [vmem:[%s606 + $0x440] sm:$0xff]
                  %745 = vst [vmem:[%s607 + $0x220] sm:$0xff] %v744
                  %v746 = vld [vmem:[%s606 + $0x450] sm:$0xff]
                  %747 = vst [vmem:[%s607 + $0x228] sm:$0xff] %v746
                  %v748 = vld [vmem:[%s606 + $0x460] sm:$0xff]
                  %749 = vst [vmem:[%s607 + $0x230] sm:$0xff] %v748
                  %v750 = vld [vmem:[%s606 + $0x470] sm:$0xff]
                  %751 = vst [vmem:[%s607 + $0x238] sm:$0xff] %v750
                  %v752 = vld [vmem:[%s606 + $0x480] sm:$0xff]
                  %753 = vst [vmem:[%s607 + $0x240] sm:$0xff] %v752
                  %v754 = vld [vmem:[%s606 + $0x490] sm:$0xff]
                  %755 = vst [vmem:[%s607 + $0x248] sm:$0xff] %v754
                  %v756 = vld [vmem:[%s606 + $0x4a0] sm:$0xff]
                  %757 = vst [vmem:[%s607 + $0x250] sm:$0xff] %v756
                  %v758 = vld [vmem:[%s606 + $0x4b0] sm:$0xff]
                  %759 = vst [vmem:[%s607 + $0x258] sm:$0xff] %v758
                  %v760 = vld [vmem:[%s606 + $0x4c0] sm:$0xff]
                  %761 = vst [vmem:[%s607 + $0x260] sm:$0xff] %v760
                  %v762 = vld [vmem:[%s606 + $0x4d0] sm:$0xff]
                  %763 = vst [vmem:[%s607 + $0x268] sm:$0xff] %v762
                  %v764 = vld [vmem:[%s606 + $0x4e0] sm:$0xff]
                  %765 = vst [vmem:[%s607 + $0x270] sm:$0xff] %v764
                  %v766 = vld [vmem:[%s606 + $0x4f0] sm:$0xff]
                  %767 = vst [vmem:[%s607 + $0x278] sm:$0xff] %v766
                  %v768 = vld [vmem:[%s606 + $0x500] sm:$0xff]
                  %769 = vst [vmem:[%s607 + $0x280] sm:$0xff] %v768
                  %v770 = vld [vmem:[%s606 + $0x510] sm:$0xff]
                  %771 = vst [vmem:[%s607 + $0x288] sm:$0xff] %v770
                  %v772 = vld [vmem:[%s606 + $0x520] sm:$0xff]
                  %773 = vst [vmem:[%s607 + $0x290] sm:$0xff] %v772
                  %v774 = vld [vmem:[%s606 + $0x530] sm:$0xff]
                  %775 = vst [vmem:[%s607 + $0x298] sm:$0xff] %v774
                  %v776 = vld [vmem:[%s606 + $0x540] sm:$0xff]
                  %777 = vst [vmem:[%s607 + $0x2a0] sm:$0xff] %v776
                  %v778 = vld [vmem:[%s606 + $0x550] sm:$0xff]
                  %779 = vst [vmem:[%s607 + $0x2a8] sm:$0xff] %v778
                  %v780 = vld [vmem:[%s606 + $0x560] sm:$0xff]
                  %781 = vst [vmem:[%s607 + $0x2b0] sm:$0xff] %v780
                  %v782 = vld [vmem:[%s606 + $0x570] sm:$0xff]
                  %783 = vst [vmem:[%s607 + $0x2b8] sm:$0xff] %v782
                  %v784 = vld [vmem:[%s606 + $0x580] sm:$0xff]
                  %785 = vst [vmem:[%s607 + $0x2c0] sm:$0xff] %v784
                  %v786 = vld [vmem:[%s606 + $0x590] sm:$0xff]
                  %787 = vst [vmem:[%s607 + $0x2c8] sm:$0xff] %v786
                  %v788 = vld [vmem:[%s606 + $0x5a0] sm:$0xff]
                  %789 = vst [vmem:[%s607 + $0x2d0] sm:$0xff] %v788
                  %v790 = vld [vmem:[%s606 + $0x5b0] sm:$0xff]
                  %791 = vst [vmem:[%s607 + $0x2d8] sm:$0xff] %v790
                  %v792 = vld [vmem:[%s606 + $0x5c0] sm:$0xff]
                  %793 = vst [vmem:[%s607 + $0x2e0] sm:$0xff] %v792
                  %v794 = vld [vmem:[%s606 + $0x5d0] sm:$0xff]
                  %795 = vst [vmem:[%s607 + $0x2e8] sm:$0xff] %v794
                  %v796 = vld [vmem:[%s606 + $0x5e0] sm:$0xff]
                  %797 = vst [vmem:[%s607 + $0x2f0] sm:$0xff] %v796
                  %v798 = vld [vmem:[%s606 + $0x5f0] sm:$0xff]
                  %799 = vst [vmem:[%s607 + $0x2f8] sm:$0xff] %v798
                  %v800 = vld [vmem:[%s606 + $0x600] sm:$0xff]
                  %801 = vst [vmem:[%s607 + $0x300] sm:$0xff] %v800
                  %v802 = vld [vmem:[%s606 + $0x610] sm:$0xff]
                  %803 = vst [vmem:[%s607 + $0x308] sm:$0xff] %v802
                  %v804 = vld [vmem:[%s606 + $0x620] sm:$0xff]
                  %805 = vst [vmem:[%s607 + $0x310] sm:$0xff] %v804
                  %v806 = vld [vmem:[%s606 + $0x630] sm:$0xff]
                  %807 = vst [vmem:[%s607 + $0x318] sm:$0xff] %v806
                  %v808 = vld [vmem:[%s606 + $0x640] sm:$0xff]
                  %809 = vst [vmem:[%s607 + $0x320] sm:$0xff] %v808
                  %v810 = vld [vmem:[%s606 + $0x650] sm:$0xff]
                  %811 = vst [vmem:[%s607 + $0x328] sm:$0xff] %v810
                  %v812 = vld [vmem:[%s606 + $0x660] sm:$0xff]
                  %813 = vst [vmem:[%s607 + $0x330] sm:$0xff] %v812
                  %v814 = vld [vmem:[%s606 + $0x670] sm:$0xff]
                  %815 = vst [vmem:[%s607 + $0x338] sm:$0xff] %v814
                  %v816 = vld [vmem:[%s606 + $0x680] sm:$0xff]
                  %817 = vst [vmem:[%s607 + $0x340] sm:$0xff] %v816
                  %v818 = vld [vmem:[%s606 + $0x690] sm:$0xff]
                  %819 = vst [vmem:[%s607 + $0x348] sm:$0xff] %v818
                  %v820 = vld [vmem:[%s606 + $0x6a0] sm:$0xff]
                  %821 = vst [vmem:[%s607 + $0x350] sm:$0xff] %v820
                  %v822 = vld [vmem:[%s606 + $0x6b0] sm:$0xff]
                  %823 = vst [vmem:[%s607 + $0x358] sm:$0xff] %v822
                  %v824 = vld [vmem:[%s606 + $0x6c0] sm:$0xff]
                  %825 = vst [vmem:[%s607 + $0x360] sm:$0xff] %v824
                  %v826 = vld [vmem:[%s606 + $0x6d0] sm:$0xff]
                  %827 = vst [vmem:[%s607 + $0x368] sm:$0xff] %v826
                  %v828 = vld [vmem:[%s606 + $0x6e0] sm:$0xff]
                  %829 = vst [vmem:[%s607 + $0x370] sm:$0xff] %v828
                  %v830 = vld [vmem:[%s606 + $0x6f0] sm:$0xff]
                  %831 = vst [vmem:[%s607 + $0x378] sm:$0xff] %v830
                  %v832 = vld [vmem:[%s606 + $0x700] sm:$0xff]
                  %833 = vst [vmem:[%s607 + $0x380] sm:$0xff] %v832
                  %v834 = vld [vmem:[%s606 + $0x710] sm:$0xff]
                  %835 = vst [vmem:[%s607 + $0x388] sm:$0xff] %v834
                  %v836 = vld [vmem:[%s606 + $0x720] sm:$0xff]
                  %837 = vst [vmem:[%s607 + $0x390] sm:$0xff] %v836
                  %v838 = vld [vmem:[%s606 + $0x730] sm:$0xff]
                  %839 = vst [vmem:[%s607 + $0x398] sm:$0xff] %v838
                  %v840 = vld [vmem:[%s606 + $0x740] sm:$0xff]
                  %841 = vst [vmem:[%s607 + $0x3a0] sm:$0xff] %v840
                  %v842 = vld [vmem:[%s606 + $0x750] sm:$0xff]
                  %843 = vst [vmem:[%s607 + $0x3a8] sm:$0xff] %v842
                  %v844 = vld [vmem:[%s606 + $0x760] sm:$0xff]
                  %845 = vst [vmem:[%s607 + $0x3b0] sm:$0xff] %v844
                  %v846 = vld [vmem:[%s606 + $0x770] sm:$0xff]
                  %847 = vst [vmem:[%s607 + $0x3b8] sm:$0xff] %v846
                  %v848 = vld [vmem:[%s606 + $0x780] sm:$0xff]
                  %849 = vst [vmem:[%s607 + $0x3c0] sm:$0xff] %v848
                  %v850 = vld [vmem:[%s606 + $0x790] sm:$0xff]
                  %851 = vst [vmem:[%s607 + $0x3c8] sm:$0xff] %v850
                  %v852 = vld [vmem:[%s606 + $0x7a0] sm:$0xff]
                  %853 = vst [vmem:[%s607 + $0x3d0] sm:$0xff] %v852
                  %v854 = vld [vmem:[%s606 + $0x7b0] sm:$0xff]
                  %855 = vst [vmem:[%s607 + $0x3d8] sm:$0xff] %v854
                  %v856 = vld [vmem:[%s606 + $0x7c0] sm:$0xff]
                  %857 = vst [vmem:[%s607 + $0x3e0] sm:$0xff] %v856
                  %v858 = vld [vmem:[%s606 + $0x7d0] sm:$0xff]
                  %859 = vst [vmem:[%s607 + $0x3e8] sm:$0xff] %v858
                  %v860 = vld [vmem:[%s606 + $0x7e0] sm:$0xff]
                  %861 = vst [vmem:[%s607 + $0x3f0] sm:$0xff] %v860
                  %v862 = vld [vmem:[%s606 + $0x7f0] sm:$0xff]
                  %863 = vst [vmem:[%s607 + $0x3f8] sm:$0xff] %v862
                  %v864 = vld [vmem:[%s606 + $0x800] sm:$0xff]
                  %865 = vst [vmem:[%s607 + $0x400] sm:$0xff] %v864
                  %v866 = vld [vmem:[%s606 + $0x810] sm:$0xff]
                  %867 = vst [vmem:[%s607 + $0x408] sm:$0xff] %v866
                  %v868 = vld [vmem:[%s606 + $0x820] sm:$0xff]
                  %869 = vst [vmem:[%s607 + $0x410] sm:$0xff] %v868
                  %v870 = vld [vmem:[%s606 + $0x830] sm:$0xff]
                  %871 = vst [vmem:[%s607 + $0x418] sm:$0xff] %v870
                  %v872 = vld [vmem:[%s606 + $0x840] sm:$0xff]
                  %873 = vst [vmem:[%s607 + $0x420] sm:$0xff] %v872
                  %v874 = vld [vmem:[%s606 + $0x850] sm:$0xff]
                  %875 = vst [vmem:[%s607 + $0x428] sm:$0xff] %v874
                  %v876 = vld [vmem:[%s606 + $0x860] sm:$0xff]
                  %877 = vst [vmem:[%s607 + $0x430] sm:$0xff] %v876
                  %v878 = vld [vmem:[%s606 + $0x870] sm:$0xff]
                  %879 = vst [vmem:[%s607 + $0x438] sm:$0xff] %v878
                  %v880 = vld [vmem:[%s606 + $0x880] sm:$0xff]
                  %881 = vst [vmem:[%s607 + $0x440] sm:$0xff] %v880
                  %v882 = vld [vmem:[%s606 + $0x890] sm:$0xff]
                  %883 = vst [vmem:[%s607 + $0x448] sm:$0xff] %v882
                  %v884 = vld [vmem:[%s606 + $0x8a0] sm:$0xff]
                  %885 = vst [vmem:[%s607 + $0x450] sm:$0xff] %v884
                  %v886 = vld [vmem:[%s606 + $0x8b0] sm:$0xff]
                  %887 = vst [vmem:[%s607 + $0x458] sm:$0xff] %v886
                  %v888 = vld [vmem:[%s606 + $0x8c0] sm:$0xff]
                  %889 = vst [vmem:[%s607 + $0x460] sm:$0xff] %v888
                  %v890 = vld [vmem:[%s606 + $0x8d0] sm:$0xff]
                  %891 = vst [vmem:[%s607 + $0x468] sm:$0xff] %v890
                  %v892 = vld [vmem:[%s606 + $0x8e0] sm:$0xff]
                  %893 = vst [vmem:[%s607 + $0x470] sm:$0xff] %v892
                  %v894 = vld [vmem:[%s606 + $0x8f0] sm:$0xff]
                  %895 = vst [vmem:[%s607 + $0x478] sm:$0xff] %v894
                  %v896 = vld [vmem:[%s606 + $0x900] sm:$0xff]
                  %897 = vst [vmem:[%s607 + $0x480] sm:$0xff] %v896
                  %v898 = vld [vmem:[%s606 + $0x910] sm:$0xff]
                  %899 = vst [vmem:[%s607 + $0x488] sm:$0xff] %v898
                  %v900 = vld [vmem:[%s606 + $0x920] sm:$0xff]
                  %901 = vst [vmem:[%s607 + $0x490] sm:$0xff] %v900
                  %v902 = vld [vmem:[%s606 + $0x930] sm:$0xff]
                  %903 = vst [vmem:[%s607 + $0x498] sm:$0xff] %v902
                  %v904 = vld [vmem:[%s606 + $0x940] sm:$0xff]
                  %905 = vst [vmem:[%s607 + $0x4a0] sm:$0xff] %v904
                  %v906 = vld [vmem:[%s606 + $0x950] sm:$0xff]
                  %907 = vst [vmem:[%s607 + $0x4a8] sm:$0xff] %v906
                  %v908 = vld [vmem:[%s606 + $0x960] sm:$0xff]
                  %909 = vst [vmem:[%s607 + $0x4b0] sm:$0xff] %v908
                  %v910 = vld [vmem:[%s606 + $0x970] sm:$0xff]
                  %911 = vst [vmem:[%s607 + $0x4b8] sm:$0xff] %v910
                  %v912 = vld [vmem:[%s606 + $0x980] sm:$0xff]
                  %913 = vst [vmem:[%s607 + $0x4c0] sm:$0xff] %v912
                  %v914 = vld [vmem:[%s606 + $0x990] sm:$0xff]
                  %915 = vst [vmem:[%s607 + $0x4c8] sm:$0xff] %v914
                  %v916 = vld [vmem:[%s606 + $0x9a0] sm:$0xff]
                  %917 = vst [vmem:[%s607 + $0x4d0] sm:$0xff] %v916
                  %v918 = vld [vmem:[%s606 + $0x9b0] sm:$0xff]
                  %919 = vst [vmem:[%s607 + $0x4d8] sm:$0xff] %v918
                  %v920 = vld [vmem:[%s606 + $0x9c0] sm:$0xff]
                  %921 = vst [vmem:[%s607 + $0x4e0] sm:$0xff] %v920
                  %v922 = vld [vmem:[%s606 + $0x9d0] sm:$0xff]
                  %923 = vst [vmem:[%s607 + $0x4e8] sm:$0xff] %v922
                  %v924 = vld [vmem:[%s606 + $0x9e0] sm:$0xff]
                  %925 = vst [vmem:[%s607 + $0x4f0] sm:$0xff] %v924
                  %v926 = vld [vmem:[%s606 + $0x9f0] sm:$0xff]
                  %927 = vst [vmem:[%s607 + $0x4f8] sm:$0xff] %v926
                  %v928 = vld [vmem:[%s606 + $0xa00] sm:$0xff]
                  %929 = vst [vmem:[%s607 + $0x500] sm:$0xff] %v928
                  %v930 = vld [vmem:[%s606 + $0xa10] sm:$0xff]
                  %931 = vst [vmem:[%s607 + $0x508] sm:$0xff] %v930
                  %v932 = vld [vmem:[%s606 + $0xa20] sm:$0xff]
                  %933 = vst [vmem:[%s607 + $0x510] sm:$0xff] %v932
                  %v934 = vld [vmem:[%s606 + $0xa30] sm:$0xff]
                  %935 = vst [vmem:[%s607 + $0x518] sm:$0xff] %v934
                  %v936 = vld [vmem:[%s606 + $0xa40] sm:$0xff]
                  %937 = vst [vmem:[%s607 + $0x520] sm:$0xff] %v936
                  %v938 = vld [vmem:[%s606 + $0xa50] sm:$0xff]
                  %939 = vst [vmem:[%s607 + $0x528] sm:$0xff] %v938
                  %v940 = vld [vmem:[%s606 + $0xa60] sm:$0xff]
                  %941 = vst [vmem:[%s607 + $0x530] sm:$0xff] %v940
                  %v942 = vld [vmem:[%s606 + $0xa70] sm:$0xff]
                  %943 = vst [vmem:[%s607 + $0x538] sm:$0xff] %v942
                  %v944 = vld [vmem:[%s606 + $0xa80] sm:$0xff]
                  %945 = vst [vmem:[%s607 + $0x540] sm:$0xff] %v944
                  %v946 = vld [vmem:[%s606 + $0xa90] sm:$0xff]
                  %947 = vst [vmem:[%s607 + $0x548] sm:$0xff] %v946
                  %v948 = vld [vmem:[%s606 + $0xaa0] sm:$0xff]
                  %949 = vst [vmem:[%s607 + $0x550] sm:$0xff] %v948
                  %v950 = vld [vmem:[%s606 + $0xab0] sm:$0xff]
                  %951 = vst [vmem:[%s607 + $0x558] sm:$0xff] %v950
                  %v952 = vld [vmem:[%s606 + $0xac0] sm:$0xff]
                  %953 = vst [vmem:[%s607 + $0x560] sm:$0xff] %v952
                  %v954 = vld [vmem:[%s606 + $0xad0] sm:$0xff]
                  %955 = vst [vmem:[%s607 + $0x568] sm:$0xff] %v954
                  %v956 = vld [vmem:[%s606 + $0xae0] sm:$0xff]
                  %957 = vst [vmem:[%s607 + $0x570] sm:$0xff] %v956
                  %v958 = vld [vmem:[%s606 + $0xaf0] sm:$0xff]
                  %959 = vst [vmem:[%s607 + $0x578] sm:$0xff] %v958
                  %v960 = vld [vmem:[%s606 + $0xb00] sm:$0xff]
                  %961 = vst [vmem:[%s607 + $0x580] sm:$0xff] %v960
                  %v962 = vld [vmem:[%s606 + $0xb10] sm:$0xff]
                  %963 = vst [vmem:[%s607 + $0x588] sm:$0xff] %v962
                  %v964 = vld [vmem:[%s606 + $0xb20] sm:$0xff]
                  %965 = vst [vmem:[%s607 + $0x590] sm:$0xff] %v964
                  %v966 = vld [vmem:[%s606 + $0xb30] sm:$0xff]
                  %967 = vst [vmem:[%s607 + $0x598] sm:$0xff] %v966
                  %v968 = vld [vmem:[%s606 + $0xb40] sm:$0xff]
                  %969 = vst [vmem:[%s607 + $0x5a0] sm:$0xff] %v968
                  %v970 = vld [vmem:[%s606 + $0xb50] sm:$0xff]
                  %971 = vst [vmem:[%s607 + $0x5a8] sm:$0xff] %v970
                  %v972 = vld [vmem:[%s606 + $0xb60] sm:$0xff]
                  %973 = vst [vmem:[%s607 + $0x5b0] sm:$0xff] %v972
                  %v974 = vld [vmem:[%s606 + $0xb70] sm:$0xff]
                  %975 = vst [vmem:[%s607 + $0x5b8] sm:$0xff] %v974
                  %v976 = vld [vmem:[%s606 + $0xb80] sm:$0xff]
                  %977 = vst [vmem:[%s607 + $0x5c0] sm:$0xff] %v976
                  %v978 = vld [vmem:[%s606 + $0xb90] sm:$0xff]
                  %979 = vst [vmem:[%s607 + $0x5c8] sm:$0xff] %v978
                  %v980 = vld [vmem:[%s606 + $0xba0] sm:$0xff]
                  %981 = vst [vmem:[%s607 + $0x5d0] sm:$0xff] %v980
                  %v982 = vld [vmem:[%s606 + $0xbb0] sm:$0xff]
                  %983 = vst [vmem:[%s607 + $0x5d8] sm:$0xff] %v982
                  %v984 = vld [vmem:[%s606 + $0xbc0] sm:$0xff]
                  %985 = vst [vmem:[%s607 + $0x5e0] sm:$0xff] %v984
                  %v986 = vld [vmem:[%s606 + $0xbd0] sm:$0xff]
                  %987 = vst [vmem:[%s607 + $0x5e8] sm:$0xff] %v986
                  %v988 = vld [vmem:[%s606 + $0xbe0] sm:$0xff]
                  %989 = vst [vmem:[%s607 + $0x5f0] sm:$0xff] %v988
                  %v990 = vld [vmem:[%s606 + $0xbf0] sm:$0xff]
                  %991 = vst [vmem:[%s607 + $0x5f8] sm:$0xff] %v990
                  %v992 = vld [vmem:[%s606 + $0xc00] sm:$0xff]
                  %993 = vst [vmem:[%s607 + $0x600] sm:$0xff] %v992
                  %v994 = vld [vmem:[%s606 + $0xc10] sm:$0xff]
                  %995 = vst [vmem:[%s607 + $0x608] sm:$0xff] %v994
                  %v996 = vld [vmem:[%s606 + $0xc20] sm:$0xff]
                  %997 = vst [vmem:[%s607 + $0x610] sm:$0xff] %v996
                  %v998 = vld [vmem:[%s606 + $0xc30] sm:$0xff]
                  %999 = vst [vmem:[%s607 + $0x618] sm:$0xff] %v998
                  %v1000 = vld [vmem:[%s606 + $0xc40] sm:$0xff]
                  %1001 = vst [vmem:[%s607 + $0x620] sm:$0xff] %v1000
                  %v1002 = vld [vmem:[%s606 + $0xc50] sm:$0xff]
                  %1003 = vst [vmem:[%s607 + $0x628] sm:$0xff] %v1002
                  %v1004 = vld [vmem:[%s606 + $0xc60] sm:$0xff]
                  %1005 = vst [vmem:[%s607 + $0x630] sm:$0xff] %v1004
                  %v1006 = vld [vmem:[%s606 + $0xc70] sm:$0xff]
                  %1007 = vst [vmem:[%s607 + $0x638] sm:$0xff] %v1006
                  %v1008 = vld [vmem:[%s606 + $0xc80] sm:$0xff]
                  %1009 = vst [vmem:[%s607 + $0x640] sm:$0xff] %v1008
                  %v1010 = vld [vmem:[%s606 + $0xc90] sm:$0xff]
                  %1011 = vst [vmem:[%s607 + $0x648] sm:$0xff] %v1010
                  %v1012 = vld [vmem:[%s606 + $0xca0] sm:$0xff]
                  %1013 = vst [vmem:[%s607 + $0x650] sm:$0xff] %v1012
                  %v1014 = vld [vmem:[%s606 + $0xcb0] sm:$0xff]
                  %1015 = vst [vmem:[%s607 + $0x658] sm:$0xff] %v1014
                  %v1016 = vld [vmem:[%s606 + $0xcc0] sm:$0xff]
                  %1017 = vst [vmem:[%s607 + $0x660] sm:$0xff] %v1016
                  %v1018 = vld [vmem:[%s606 + $0xcd0] sm:$0xff]
                  %1019 = vst [vmem:[%s607 + $0x668] sm:$0xff] %v1018
                  %v1020 = vld [vmem:[%s606 + $0xce0] sm:$0xff]
                  %1021 = vst [vmem:[%s607 + $0x670] sm:$0xff] %v1020
                  %v1022 = vld [vmem:[%s606 + $0xcf0] sm:$0xff]
                  %1023 = vst [vmem:[%s607 + $0x678] sm:$0xff] %v1022
                $region52: #{hybrid_qnn_forward.10} parent=46 // loop_footer
                  %s605 = sadd.s32 1, %s601
                $region53: #{hybrid_qnn_forward.10} parent=46 // loop_footer_branch
                  %600 = sbr.rel target = $region49
                $region54: #{hybrid_qnn_forward.10} parent=46 // loop_exit
                  _
              $region47: #{hybrid_qnn_forward.10} parent=31 // pred_fallthru
                _
              // Predicated region
              $region55: #{hybrid_qnn_forward.10} parent=31 // pred_check
                _
              $region56: #{hybrid_qnn_forward.10} parent=31 // pred_check_branch
                %1025 = sbr.rel target = $region58
              $region57: #{hybrid_qnn_forward.10} parent=31 // pred_region
                _
              $region58: #{hybrid_qnn_forward.10} parent=31 // pred_fallthru
                _
            $region32: #{hybrid_qnn_forward.10} parent=27 // pred_fallthru
              _
            // Predicated region
            $region33: #{hybrid_qnn_forward.10} parent=27 // pred_check
              _
            $region34: #{hybrid_qnn_forward.10} parent=27 // pred_check_branch
              %171 = sbr.rel target = $region36
            $region35: #{hybrid_qnn_forward.10} parent=27 // pred_region
              %s173 = ssub.s32 256, 1
              loop: start=0, step=1, limit=1
              $region37: #{hybrid_qnn_forward.10} parent=35 // loop_pre_header
                _
              $region38: #{hybrid_qnn_forward.10} parent=35 // loop_header
                %s175 = sphi 0, %s179
                %p176 = scmp.ge.s32.totalorder %s175, 1
                %s180 = sphi %s165, %s165
                %s181 = sphi %s162, %s162
              $region39: #{hybrid_qnn_forward.10} parent=35 // loop_header_branch
                %178 = sbr.rel (%p176) target = $region43
              $region40: #{hybrid_qnn_forward.10} parent=35 // loop_body
                %v182 = vld [vmem:[%s180] sm:%s173]
                %183 = vst [vmem:[%s181] sm:%s173] %v182
                %v184 = vld [vmem:[%s180 + $0x10] sm:%s173]
                %185 = vst [vmem:[%s181 + $0x8] sm:%s173] %v184
                %v186 = vld [vmem:[%s180 + $0x20] sm:%s173]
                %187 = vst [vmem:[%s181 + $0x10] sm:%s173] %v186
                %v188 = vld [vmem:[%s180 + $0x30] sm:%s173]
                %189 = vst [vmem:[%s181 + $0x18] sm:%s173] %v188
                %v190 = vld [vmem:[%s180 + $0x40] sm:%s173]
                %191 = vst [vmem:[%s181 + $0x20] sm:%s173] %v190
                %v192 = vld [vmem:[%s180 + $0x50] sm:%s173]
                %193 = vst [vmem:[%s181 + $0x28] sm:%s173] %v192
                %v194 = vld [vmem:[%s180 + $0x60] sm:%s173]
                %195 = vst [vmem:[%s181 + $0x30] sm:%s173] %v194
                %v196 = vld [vmem:[%s180 + $0x70] sm:%s173]
                %197 = vst [vmem:[%s181 + $0x38] sm:%s173] %v196
                %v198 = vld [vmem:[%s180 + $0x80] sm:%s173]
                %199 = vst [vmem:[%s181 + $0x40] sm:%s173] %v198
                %v200 = vld [vmem:[%s180 + $0x90] sm:%s173]
                %201 = vst [vmem:[%s181 + $0x48] sm:%s173] %v200
                %v202 = vld [vmem:[%s180 + $0xa0] sm:%s173]
                %203 = vst [vmem:[%s181 + $0x50] sm:%s173] %v202
                %v204 = vld [vmem:[%s180 + $0xb0] sm:%s173]
                %205 = vst [vmem:[%s181 + $0x58] sm:%s173] %v204
                %v206 = vld [vmem:[%s180 + $0xc0] sm:%s173]
                %207 = vst [vmem:[%s181 + $0x60] sm:%s173] %v206
                %v208 = vld [vmem:[%s180 + $0xd0] sm:%s173]
                %209 = vst [vmem:[%s181 + $0x68] sm:%s173] %v208
                %v210 = vld [vmem:[%s180 + $0xe0] sm:%s173]
                %211 = vst [vmem:[%s181 + $0x70] sm:%s173] %v210
                %v212 = vld [vmem:[%s180 + $0xf0] sm:%s173]
                %213 = vst [vmem:[%s181 + $0x78] sm:%s173] %v212
                %v214 = vld [vmem:[%s180 + $0x100] sm:%s173]
                %215 = vst [vmem:[%s181 + $0x80] sm:%s173] %v214
                %v216 = vld [vmem:[%s180 + $0x110] sm:%s173]
                %217 = vst [vmem:[%s181 + $0x88] sm:%s173] %v216
                %v218 = vld [vmem:[%s180 + $0x120] sm:%s173]
                %219 = vst [vmem:[%s181 + $0x90] sm:%s173] %v218
                %v220 = vld [vmem:[%s180 + $0x130] sm:%s173]
                %221 = vst [vmem:[%s181 + $0x98] sm:%s173] %v220
                %v222 = vld [vmem:[%s180 + $0x140] sm:%s173]
                %223 = vst [vmem:[%s181 + $0xa0] sm:%s173] %v222
                %v224 = vld [vmem:[%s180 + $0x150] sm:%s173]
                %225 = vst [vmem:[%s181 + $0xa8] sm:%s173] %v224
                %v226 = vld [vmem:[%s180 + $0x160] sm:%s173]
                %227 = vst [vmem:[%s181 + $0xb0] sm:%s173] %v226
                %v228 = vld [vmem:[%s180 + $0x170] sm:%s173]
                %229 = vst [vmem:[%s181 + $0xb8] sm:%s173] %v228
                %v230 = vld [vmem:[%s180 + $0x180] sm:%s173]
                %231 = vst [vmem:[%s181 + $0xc0] sm:%s173] %v230
                %v232 = vld [vmem:[%s180 + $0x190] sm:%s173]
                %233 = vst [vmem:[%s181 + $0xc8] sm:%s173] %v232
                %v234 = vld [vmem:[%s180 + $0x1a0] sm:%s173]
                %235 = vst [vmem:[%s181 + $0xd0] sm:%s173] %v234
                %v236 = vld [vmem:[%s180 + $0x1b0] sm:%s173]
                %237 = vst [vmem:[%s181 + $0xd8] sm:%s173] %v236
                %v238 = vld [vmem:[%s180 + $0x1c0] sm:%s173]
                %239 = vst [vmem:[%s181 + $0xe0] sm:%s173] %v238
                %v240 = vld [vmem:[%s180 + $0x1d0] sm:%s173]
                %241 = vst [vmem:[%s181 + $0xe8] sm:%s173] %v240
                %v242 = vld [vmem:[%s180 + $0x1e0] sm:%s173]
                %243 = vst [vmem:[%s181 + $0xf0] sm:%s173] %v242
                %v244 = vld [vmem:[%s180 + $0x1f0] sm:%s173]
                %245 = vst [vmem:[%s181 + $0xf8] sm:%s173] %v244
                %v246 = vld [vmem:[%s180 + $0x200] sm:%s173]
                %247 = vst [vmem:[%s181 + $0x100] sm:%s173] %v246
                %v248 = vld [vmem:[%s180 + $0x210] sm:%s173]
                %249 = vst [vmem:[%s181 + $0x108] sm:%s173] %v248
                %v250 = vld [vmem:[%s180 + $0x220] sm:%s173]
                %251 = vst [vmem:[%s181 + $0x110] sm:%s173] %v250
                %v252 = vld [vmem:[%s180 + $0x230] sm:%s173]
                %253 = vst [vmem:[%s181 + $0x118] sm:%s173] %v252
                %v254 = vld [vmem:[%s180 + $0x240] sm:%s173]
                %255 = vst [vmem:[%s181 + $0x120] sm:%s173] %v254
                %v256 = vld [vmem:[%s180 + $0x250] sm:%s173]
                %257 = vst [vmem:[%s181 + $0x128] sm:%s173] %v256
                %v258 = vld [vmem:[%s180 + $0x260] sm:%s173]
                %259 = vst [vmem:[%s181 + $0x130] sm:%s173] %v258
                %v260 = vld [vmem:[%s180 + $0x270] sm:%s173]
                %261 = vst [vmem:[%s181 + $0x138] sm:%s173] %v260
                %v262 = vld [vmem:[%s180 + $0x280] sm:%s173]
                %263 = vst [vmem:[%s181 + $0x140] sm:%s173] %v262
                %v264 = vld [vmem:[%s180 + $0x290] sm:%s173]
                %265 = vst [vmem:[%s181 + $0x148] sm:%s173] %v264
                %v266 = vld [vmem:[%s180 + $0x2a0] sm:%s173]
                %267 = vst [vmem:[%s181 + $0x150] sm:%s173] %v266
                %v268 = vld [vmem:[%s180 + $0x2b0] sm:%s173]
                %269 = vst [vmem:[%s181 + $0x158] sm:%s173] %v268
                %v270 = vld [vmem:[%s180 + $0x2c0] sm:%s173]
                %271 = vst [vmem:[%s181 + $0x160] sm:%s173] %v270
                %v272 = vld [vmem:[%s180 + $0x2d0] sm:%s173]
                %273 = vst [vmem:[%s181 + $0x168] sm:%s173] %v272
                %v274 = vld [vmem:[%s180 + $0x2e0] sm:%s173]
                %275 = vst [vmem:[%s181 + $0x170] sm:%s173] %v274
                %v276 = vld [vmem:[%s180 + $0x2f0] sm:%s173]
                %277 = vst [vmem:[%s181 + $0x178] sm:%s173] %v276
                %v278 = vld [vmem:[%s180 + $0x300] sm:%s173]
                %279 = vst [vmem:[%s181 + $0x180] sm:%s173] %v278
                %v280 = vld [vmem:[%s180 + $0x310] sm:%s173]
                %281 = vst [vmem:[%s181 + $0x188] sm:%s173] %v280
                %v282 = vld [vmem:[%s180 + $0x320] sm:%s173]
                %283 = vst [vmem:[%s181 + $0x190] sm:%s173] %v282
                %v284 = vld [vmem:[%s180 + $0x330] sm:%s173]
                %285 = vst [vmem:[%s181 + $0x198] sm:%s173] %v284
                %v286 = vld [vmem:[%s180 + $0x340] sm:%s173]
                %287 = vst [vmem:[%s181 + $0x1a0] sm:%s173] %v286
                %v288 = vld [vmem:[%s180 + $0x350] sm:%s173]
                %289 = vst [vmem:[%s181 + $0x1a8] sm:%s173] %v288
                %v290 = vld [vmem:[%s180 + $0x360] sm:%s173]
                %291 = vst [vmem:[%s181 + $0x1b0] sm:%s173] %v290
                %v292 = vld [vmem:[%s180 + $0x370] sm:%s173]
                %293 = vst [vmem:[%s181 + $0x1b8] sm:%s173] %v292
                %v294 = vld [vmem:[%s180 + $0x380] sm:%s173]
                %295 = vst [vmem:[%s181 + $0x1c0] sm:%s173] %v294
                %v296 = vld [vmem:[%s180 + $0x390] sm:%s173]
                %297 = vst [vmem:[%s181 + $0x1c8] sm:%s173] %v296
                %v298 = vld [vmem:[%s180 + $0x3a0] sm:%s173]
                %299 = vst [vmem:[%s181 + $0x1d0] sm:%s173] %v298
                %v300 = vld [vmem:[%s180 + $0x3b0] sm:%s173]
                %301 = vst [vmem:[%s181 + $0x1d8] sm:%s173] %v300
                %v302 = vld [vmem:[%s180 + $0x3c0] sm:%s173]
                %303 = vst [vmem:[%s181 + $0x1e0] sm:%s173] %v302
                %v304 = vld [vmem:[%s180 + $0x3d0] sm:%s173]
                %305 = vst [vmem:[%s181 + $0x1e8] sm:%s173] %v304
                %v306 = vld [vmem:[%s180 + $0x3e0] sm:%s173]
                %307 = vst [vmem:[%s181 + $0x1f0] sm:%s173] %v306
                %v308 = vld [vmem:[%s180 + $0x3f0] sm:%s173]
                %309 = vst [vmem:[%s181 + $0x1f8] sm:%s173] %v308
                %v310 = vld [vmem:[%s180 + $0x400] sm:%s173]
                %311 = vst [vmem:[%s181 + $0x200] sm:%s173] %v310
                %v312 = vld [vmem:[%s180 + $0x410] sm:%s173]
                %313 = vst [vmem:[%s181 + $0x208] sm:%s173] %v312
                %v314 = vld [vmem:[%s180 + $0x420] sm:%s173]
                %315 = vst [vmem:[%s181 + $0x210] sm:%s173] %v314
                %v316 = vld [vmem:[%s180 + $0x430] sm:%s173]
                %317 = vst [vmem:[%s181 + $0x218] sm:%s173] %v316
                %v318 = vld [vmem:[%s180 + $0x440] sm:%s173]
                %319 = vst [vmem:[%s181 + $0x220] sm:%s173] %v318
                %v320 = vld [vmem:[%s180 + $0x450] sm:%s173]
                %321 = vst [vmem:[%s181 + $0x228] sm:%s173] %v320
                %v322 = vld [vmem:[%s180 + $0x460] sm:%s173]
                %323 = vst [vmem:[%s181 + $0x230] sm:%s173] %v322
                %v324 = vld [vmem:[%s180 + $0x470] sm:%s173]
                %325 = vst [vmem:[%s181 + $0x238] sm:%s173] %v324
                %v326 = vld [vmem:[%s180 + $0x480] sm:%s173]
                %327 = vst [vmem:[%s181 + $0x240] sm:%s173] %v326
                %v328 = vld [vmem:[%s180 + $0x490] sm:%s173]
                %329 = vst [vmem:[%s181 + $0x248] sm:%s173] %v328
                %v330 = vld [vmem:[%s180 + $0x4a0] sm:%s173]
                %331 = vst [vmem:[%s181 + $0x250] sm:%s173] %v330
                %v332 = vld [vmem:[%s180 + $0x4b0] sm:%s173]
                %333 = vst [vmem:[%s181 + $0x258] sm:%s173] %v332
                %v334 = vld [vmem:[%s180 + $0x4c0] sm:%s173]
                %335 = vst [vmem:[%s181 + $0x260] sm:%s173] %v334
                %v336 = vld [vmem:[%s180 + $0x4d0] sm:%s173]
                %337 = vst [vmem:[%s181 + $0x268] sm:%s173] %v336
                %v338 = vld [vmem:[%s180 + $0x4e0] sm:%s173]
                %339 = vst [vmem:[%s181 + $0x270] sm:%s173] %v338
                %v340 = vld [vmem:[%s180 + $0x4f0] sm:%s173]
                %341 = vst [vmem:[%s181 + $0x278] sm:%s173] %v340
                %v342 = vld [vmem:[%s180 + $0x500] sm:%s173]
                %343 = vst [vmem:[%s181 + $0x280] sm:%s173] %v342
                %v344 = vld [vmem:[%s180 + $0x510] sm:%s173]
                %345 = vst [vmem:[%s181 + $0x288] sm:%s173] %v344
                %v346 = vld [vmem:[%s180 + $0x520] sm:%s173]
                %347 = vst [vmem:[%s181 + $0x290] sm:%s173] %v346
                %v348 = vld [vmem:[%s180 + $0x530] sm:%s173]
                %349 = vst [vmem:[%s181 + $0x298] sm:%s173] %v348
                %v350 = vld [vmem:[%s180 + $0x540] sm:%s173]
                %351 = vst [vmem:[%s181 + $0x2a0] sm:%s173] %v350
                %v352 = vld [vmem:[%s180 + $0x550] sm:%s173]
                %353 = vst [vmem:[%s181 + $0x2a8] sm:%s173] %v352
                %v354 = vld [vmem:[%s180 + $0x560] sm:%s173]
                %355 = vst [vmem:[%s181 + $0x2b0] sm:%s173] %v354
                %v356 = vld [vmem:[%s180 + $0x570] sm:%s173]
                %357 = vst [vmem:[%s181 + $0x2b8] sm:%s173] %v356
                %v358 = vld [vmem:[%s180 + $0x580] sm:%s173]
                %359 = vst [vmem:[%s181 + $0x2c0] sm:%s173] %v358
                %v360 = vld [vmem:[%s180 + $0x590] sm:%s173]
                %361 = vst [vmem:[%s181 + $0x2c8] sm:%s173] %v360
                %v362 = vld [vmem:[%s180 + $0x5a0] sm:%s173]
                %363 = vst [vmem:[%s181 + $0x2d0] sm:%s173] %v362
                %v364 = vld [vmem:[%s180 + $0x5b0] sm:%s173]
                %365 = vst [vmem:[%s181 + $0x2d8] sm:%s173] %v364
                %v366 = vld [vmem:[%s180 + $0x5c0] sm:%s173]
                %367 = vst [vmem:[%s181 + $0x2e0] sm:%s173] %v366
                %v368 = vld [vmem:[%s180 + $0x5d0] sm:%s173]
                %369 = vst [vmem:[%s181 + $0x2e8] sm:%s173] %v368
                %v370 = vld [vmem:[%s180 + $0x5e0] sm:%s173]
                %371 = vst [vmem:[%s181 + $0x2f0] sm:%s173] %v370
                %v372 = vld [vmem:[%s180 + $0x5f0] sm:%s173]
                %373 = vst [vmem:[%s181 + $0x2f8] sm:%s173] %v372
                %v374 = vld [vmem:[%s180 + $0x600] sm:%s173]
                %375 = vst [vmem:[%s181 + $0x300] sm:%s173] %v374
                %v376 = vld [vmem:[%s180 + $0x610] sm:%s173]
                %377 = vst [vmem:[%s181 + $0x308] sm:%s173] %v376
                %v378 = vld [vmem:[%s180 + $0x620] sm:%s173]
                %379 = vst [vmem:[%s181 + $0x310] sm:%s173] %v378
                %v380 = vld [vmem:[%s180 + $0x630] sm:%s173]
                %381 = vst [vmem:[%s181 + $0x318] sm:%s173] %v380
                %v382 = vld [vmem:[%s180 + $0x640] sm:%s173]
                %383 = vst [vmem:[%s181 + $0x320] sm:%s173] %v382
                %v384 = vld [vmem:[%s180 + $0x650] sm:%s173]
                %385 = vst [vmem:[%s181 + $0x328] sm:%s173] %v384
                %v386 = vld [vmem:[%s180 + $0x660] sm:%s173]
                %387 = vst [vmem:[%s181 + $0x330] sm:%s173] %v386
                %v388 = vld [vmem:[%s180 + $0x670] sm:%s173]
                %389 = vst [vmem:[%s181 + $0x338] sm:%s173] %v388
                %v390 = vld [vmem:[%s180 + $0x680] sm:%s173]
                %391 = vst [vmem:[%s181 + $0x340] sm:%s173] %v390
                %v392 = vld [vmem:[%s180 + $0x690] sm:%s173]
                %393 = vst [vmem:[%s181 + $0x348] sm:%s173] %v392
                %v394 = vld [vmem:[%s180 + $0x6a0] sm:%s173]
                %395 = vst [vmem:[%s181 + $0x350] sm:%s173] %v394
                %v396 = vld [vmem:[%s180 + $0x6b0] sm:%s173]
                %397 = vst [vmem:[%s181 + $0x358] sm:%s173] %v396
                %v398 = vld [vmem:[%s180 + $0x6c0] sm:%s173]
                %399 = vst [vmem:[%s181 + $0x360] sm:%s173] %v398
                %v400 = vld [vmem:[%s180 + $0x6d0] sm:%s173]
                %401 = vst [vmem:[%s181 + $0x368] sm:%s173] %v400
                %v402 = vld [vmem:[%s180 + $0x6e0] sm:%s173]
                %403 = vst [vmem:[%s181 + $0x370] sm:%s173] %v402
                %v404 = vld [vmem:[%s180 + $0x6f0] sm:%s173]
                %405 = vst [vmem:[%s181 + $0x378] sm:%s173] %v404
                %v406 = vld [vmem:[%s180 + $0x700] sm:%s173]
                %407 = vst [vmem:[%s181 + $0x380] sm:%s173] %v406
                %v408 = vld [vmem:[%s180 + $0x710] sm:%s173]
                %409 = vst [vmem:[%s181 + $0x388] sm:%s173] %v408
                %v410 = vld [vmem:[%s180 + $0x720] sm:%s173]
                %411 = vst [vmem:[%s181 + $0x390] sm:%s173] %v410
                %v412 = vld [vmem:[%s180 + $0x730] sm:%s173]
                %413 = vst [vmem:[%s181 + $0x398] sm:%s173] %v412
                %v414 = vld [vmem:[%s180 + $0x740] sm:%s173]
                %415 = vst [vmem:[%s181 + $0x3a0] sm:%s173] %v414
                %v416 = vld [vmem:[%s180 + $0x750] sm:%s173]
                %417 = vst [vmem:[%s181 + $0x3a8] sm:%s173] %v416
                %v418 = vld [vmem:[%s180 + $0x760] sm:%s173]
                %419 = vst [vmem:[%s181 + $0x3b0] sm:%s173] %v418
                %v420 = vld [vmem:[%s180 + $0x770] sm:%s173]
                %421 = vst [vmem:[%s181 + $0x3b8] sm:%s173] %v420
                %v422 = vld [vmem:[%s180 + $0x780] sm:%s173]
                %423 = vst [vmem:[%s181 + $0x3c0] sm:%s173] %v422
                %v424 = vld [vmem:[%s180 + $0x790] sm:%s173]
                %425 = vst [vmem:[%s181 + $0x3c8] sm:%s173] %v424
                %v426 = vld [vmem:[%s180 + $0x7a0] sm:%s173]
                %427 = vst [vmem:[%s181 + $0x3d0] sm:%s173] %v426
                %v428 = vld [vmem:[%s180 + $0x7b0] sm:%s173]
                %429 = vst [vmem:[%s181 + $0x3d8] sm:%s173] %v428
                %v430 = vld [vmem:[%s180 + $0x7c0] sm:%s173]
                %431 = vst [vmem:[%s181 + $0x3e0] sm:%s173] %v430
                %v432 = vld [vmem:[%s180 + $0x7d0] sm:%s173]
                %433 = vst [vmem:[%s181 + $0x3e8] sm:%s173] %v432
                %v434 = vld [vmem:[%s180 + $0x7e0] sm:%s173]
                %435 = vst [vmem:[%s181 + $0x3f0] sm:%s173] %v434
                %v436 = vld [vmem:[%s180 + $0x7f0] sm:%s173]
                %437 = vst [vmem:[%s181 + $0x3f8] sm:%s173] %v436
                %v438 = vld [vmem:[%s180 + $0x800] sm:%s173]
                %439 = vst [vmem:[%s181 + $0x400] sm:%s173] %v438
                %v440 = vld [vmem:[%s180 + $0x810] sm:%s173]
                %441 = vst [vmem:[%s181 + $0x408] sm:%s173] %v440
                %v442 = vld [vmem:[%s180 + $0x820] sm:%s173]
                %443 = vst [vmem:[%s181 + $0x410] sm:%s173] %v442
                %v444 = vld [vmem:[%s180 + $0x830] sm:%s173]
                %445 = vst [vmem:[%s181 + $0x418] sm:%s173] %v444
                %v446 = vld [vmem:[%s180 + $0x840] sm:%s173]
                %447 = vst [vmem:[%s181 + $0x420] sm:%s173] %v446
                %v448 = vld [vmem:[%s180 + $0x850] sm:%s173]
                %449 = vst [vmem:[%s181 + $0x428] sm:%s173] %v448
                %v450 = vld [vmem:[%s180 + $0x860] sm:%s173]
                %451 = vst [vmem:[%s181 + $0x430] sm:%s173] %v450
                %v452 = vld [vmem:[%s180 + $0x870] sm:%s173]
                %453 = vst [vmem:[%s181 + $0x438] sm:%s173] %v452
                %v454 = vld [vmem:[%s180 + $0x880] sm:%s173]
                %455 = vst [vmem:[%s181 + $0x440] sm:%s173] %v454
                %v456 = vld [vmem:[%s180 + $0x890] sm:%s173]
                %457 = vst [vmem:[%s181 + $0x448] sm:%s173] %v456
                %v458 = vld [vmem:[%s180 + $0x8a0] sm:%s173]
                %459 = vst [vmem:[%s181 + $0x450] sm:%s173] %v458
                %v460 = vld [vmem:[%s180 + $0x8b0] sm:%s173]
                %461 = vst [vmem:[%s181 + $0x458] sm:%s173] %v460
                %v462 = vld [vmem:[%s180 + $0x8c0] sm:%s173]
                %463 = vst [vmem:[%s181 + $0x460] sm:%s173] %v462
                %v464 = vld [vmem:[%s180 + $0x8d0] sm:%s173]
                %465 = vst [vmem:[%s181 + $0x468] sm:%s173] %v464
                %v466 = vld [vmem:[%s180 + $0x8e0] sm:%s173]
                %467 = vst [vmem:[%s181 + $0x470] sm:%s173] %v466
                %v468 = vld [vmem:[%s180 + $0x8f0] sm:%s173]
                %469 = vst [vmem:[%s181 + $0x478] sm:%s173] %v468
                %v470 = vld [vmem:[%s180 + $0x900] sm:%s173]
                %471 = vst [vmem:[%s181 + $0x480] sm:%s173] %v470
                %v472 = vld [vmem:[%s180 + $0x910] sm:%s173]
                %473 = vst [vmem:[%s181 + $0x488] sm:%s173] %v472
                %v474 = vld [vmem:[%s180 + $0x920] sm:%s173]
                %475 = vst [vmem:[%s181 + $0x490] sm:%s173] %v474
                %v476 = vld [vmem:[%s180 + $0x930] sm:%s173]
                %477 = vst [vmem:[%s181 + $0x498] sm:%s173] %v476
                %v478 = vld [vmem:[%s180 + $0x940] sm:%s173]
                %479 = vst [vmem:[%s181 + $0x4a0] sm:%s173] %v478
                %v480 = vld [vmem:[%s180 + $0x950] sm:%s173]
                %481 = vst [vmem:[%s181 + $0x4a8] sm:%s173] %v480
                %v482 = vld [vmem:[%s180 + $0x960] sm:%s173]
                %483 = vst [vmem:[%s181 + $0x4b0] sm:%s173] %v482
                %v484 = vld [vmem:[%s180 + $0x970] sm:%s173]
                %485 = vst [vmem:[%s181 + $0x4b8] sm:%s173] %v484
                %v486 = vld [vmem:[%s180 + $0x980] sm:%s173]
                %487 = vst [vmem:[%s181 + $0x4c0] sm:%s173] %v486
                %v488 = vld [vmem:[%s180 + $0x990] sm:%s173]
                %489 = vst [vmem:[%s181 + $0x4c8] sm:%s173] %v488
                %v490 = vld [vmem:[%s180 + $0x9a0] sm:%s173]
                %491 = vst [vmem:[%s181 + $0x4d0] sm:%s173] %v490
                %v492 = vld [vmem:[%s180 + $0x9b0] sm:%s173]
                %493 = vst [vmem:[%s181 + $0x4d8] sm:%s173] %v492
                %v494 = vld [vmem:[%s180 + $0x9c0] sm:%s173]
                %495 = vst [vmem:[%s181 + $0x4e0] sm:%s173] %v494
                %v496 = vld [vmem:[%s180 + $0x9d0] sm:%s173]
                %497 = vst [vmem:[%s181 + $0x4e8] sm:%s173] %v496
                %v498 = vld [vmem:[%s180 + $0x9e0] sm:%s173]
                %499 = vst [vmem:[%s181 + $0x4f0] sm:%s173] %v498
                %v500 = vld [vmem:[%s180 + $0x9f0] sm:%s173]
                %501 = vst [vmem:[%s181 + $0x4f8] sm:%s173] %v500
                %v502 = vld [vmem:[%s180 + $0xa00] sm:%s173]
                %503 = vst [vmem:[%s181 + $0x500] sm:%s173] %v502
                %v504 = vld [vmem:[%s180 + $0xa10] sm:%s173]
                %505 = vst [vmem:[%s181 + $0x508] sm:%s173] %v504
                %v506 = vld [vmem:[%s180 + $0xa20] sm:%s173]
                %507 = vst [vmem:[%s181 + $0x510] sm:%s173] %v506
                %v508 = vld [vmem:[%s180 + $0xa30] sm:%s173]
                %509 = vst [vmem:[%s181 + $0x518] sm:%s173] %v508
                %v510 = vld [vmem:[%s180 + $0xa40] sm:%s173]
                %511 = vst [vmem:[%s181 + $0x520] sm:%s173] %v510
                %v512 = vld [vmem:[%s180 + $0xa50] sm:%s173]
                %513 = vst [vmem:[%s181 + $0x528] sm:%s173] %v512
                %v514 = vld [vmem:[%s180 + $0xa60] sm:%s173]
                %515 = vst [vmem:[%s181 + $0x530] sm:%s173] %v514
                %v516 = vld [vmem:[%s180 + $0xa70] sm:%s173]
                %517 = vst [vmem:[%s181 + $0x538] sm:%s173] %v516
                %v518 = vld [vmem:[%s180 + $0xa80] sm:%s173]
                %519 = vst [vmem:[%s181 + $0x540] sm:%s173] %v518
                %v520 = vld [vmem:[%s180 + $0xa90] sm:%s173]
                %521 = vst [vmem:[%s181 + $0x548] sm:%s173] %v520
                %v522 = vld [vmem:[%s180 + $0xaa0] sm:%s173]
                %523 = vst [vmem:[%s181 + $0x550] sm:%s173] %v522
                %v524 = vld [vmem:[%s180 + $0xab0] sm:%s173]
                %525 = vst [vmem:[%s181 + $0x558] sm:%s173] %v524
                %v526 = vld [vmem:[%s180 + $0xac0] sm:%s173]
                %527 = vst [vmem:[%s181 + $0x560] sm:%s173] %v526
                %v528 = vld [vmem:[%s180 + $0xad0] sm:%s173]
                %529 = vst [vmem:[%s181 + $0x568] sm:%s173] %v528
                %v530 = vld [vmem:[%s180 + $0xae0] sm:%s173]
                %531 = vst [vmem:[%s181 + $0x570] sm:%s173] %v530
                %v532 = vld [vmem:[%s180 + $0xaf0] sm:%s173]
                %533 = vst [vmem:[%s181 + $0x578] sm:%s173] %v532
                %v534 = vld [vmem:[%s180 + $0xb00] sm:%s173]
                %535 = vst [vmem:[%s181 + $0x580] sm:%s173] %v534
                %v536 = vld [vmem:[%s180 + $0xb10] sm:%s173]
                %537 = vst [vmem:[%s181 + $0x588] sm:%s173] %v536
                %v538 = vld [vmem:[%s180 + $0xb20] sm:%s173]
                %539 = vst [vmem:[%s181 + $0x590] sm:%s173] %v538
                %v540 = vld [vmem:[%s180 + $0xb30] sm:%s173]
                %541 = vst [vmem:[%s181 + $0x598] sm:%s173] %v540
                %v542 = vld [vmem:[%s180 + $0xb40] sm:%s173]
                %543 = vst [vmem:[%s181 + $0x5a0] sm:%s173] %v542
                %v544 = vld [vmem:[%s180 + $0xb50] sm:%s173]
                %545 = vst [vmem:[%s181 + $0x5a8] sm:%s173] %v544
                %v546 = vld [vmem:[%s180 + $0xb60] sm:%s173]
                %547 = vst [vmem:[%s181 + $0x5b0] sm:%s173] %v546
                %v548 = vld [vmem:[%s180 + $0xb70] sm:%s173]
                %549 = vst [vmem:[%s181 + $0x5b8] sm:%s173] %v548
                %v550 = vld [vmem:[%s180 + $0xb80] sm:%s173]
                %551 = vst [vmem:[%s181 + $0x5c0] sm:%s173] %v550
                %v552 = vld [vmem:[%s180 + $0xb90] sm:%s173]
                %553 = vst [vmem:[%s181 + $0x5c8] sm:%s173] %v552
                %v554 = vld [vmem:[%s180 + $0xba0] sm:%s173]
                %555 = vst [vmem:[%s181 + $0x5d0] sm:%s173] %v554
                %v556 = vld [vmem:[%s180 + $0xbb0] sm:%s173]
                %557 = vst [vmem:[%s181 + $0x5d8] sm:%s173] %v556
                %v558 = vld [vmem:[%s180 + $0xbc0] sm:%s173]
                %559 = vst [vmem:[%s181 + $0x5e0] sm:%s173] %v558
                %v560 = vld [vmem:[%s180 + $0xbd0] sm:%s173]
                %561 = vst [vmem:[%s181 + $0x5e8] sm:%s173] %v560
                %v562 = vld [vmem:[%s180 + $0xbe0] sm:%s173]
                %563 = vst [vmem:[%s181 + $0x5f0] sm:%s173] %v562
                %v564 = vld [vmem:[%s180 + $0xbf0] sm:%s173]
                %565 = vst [vmem:[%s181 + $0x5f8] sm:%s173] %v564
                %v566 = vld [vmem:[%s180 + $0xc00] sm:%s173]
                %567 = vst [vmem:[%s181 + $0x600] sm:%s173] %v566
                %v568 = vld [vmem:[%s180 + $0xc10] sm:%s173]
                %569 = vst [vmem:[%s181 + $0x608] sm:%s173] %v568
                %v570 = vld [vmem:[%s180 + $0xc20] sm:%s173]
                %571 = vst [vmem:[%s181 + $0x610] sm:%s173] %v570
                %v572 = vld [vmem:[%s180 + $0xc30] sm:%s173]
                %573 = vst [vmem:[%s181 + $0x618] sm:%s173] %v572
                %v574 = vld [vmem:[%s180 + $0xc40] sm:%s173]
                %575 = vst [vmem:[%s181 + $0x620] sm:%s173] %v574
                %v576 = vld [vmem:[%s180 + $0xc50] sm:%s173]
                %577 = vst [vmem:[%s181 + $0x628] sm:%s173] %v576
                %v578 = vld [vmem:[%s180 + $0xc60] sm:%s173]
                %579 = vst [vmem:[%s181 + $0x630] sm:%s173] %v578
                %v580 = vld [vmem:[%s180 + $0xc70] sm:%s173]
                %581 = vst [vmem:[%s181 + $0x638] sm:%s173] %v580
                %v582 = vld [vmem:[%s180 + $0xc80] sm:%s173]
                %583 = vst [vmem:[%s181 + $0x640] sm:%s173] %v582
                %v584 = vld [vmem:[%s180 + $0xc90] sm:%s173]
                %585 = vst [vmem:[%s181 + $0x648] sm:%s173] %v584
                %v586 = vld [vmem:[%s180 + $0xca0] sm:%s173]
                %587 = vst [vmem:[%s181 + $0x650] sm:%s173] %v586
                %v588 = vld [vmem:[%s180 + $0xcb0] sm:%s173]
                %589 = vst [vmem:[%s181 + $0x658] sm:%s173] %v588
                %v590 = vld [vmem:[%s180 + $0xcc0] sm:%s173]
                %591 = vst [vmem:[%s181 + $0x660] sm:%s173] %v590
                %v592 = vld [vmem:[%s180 + $0xcd0] sm:%s173]
                %593 = vst [vmem:[%s181 + $0x668] sm:%s173] %v592
                %v594 = vld [vmem:[%s180 + $0xce0] sm:%s173]
                %595 = vst [vmem:[%s181 + $0x670] sm:%s173] %v594
                %v596 = vld [vmem:[%s180 + $0xcf0] sm:%s173]
                %597 = vst [vmem:[%s181 + $0x678] sm:%s173] %v596
              $region41: #{hybrid_qnn_forward.10} parent=35 // loop_footer
                %s179 = sadd.s32 1, %s175
              $region42: #{hybrid_qnn_forward.10} parent=35 // loop_footer_branch
                %174 = sbr.rel target = $region38
              $region43: #{hybrid_qnn_forward.10} parent=35 // loop_exit
                _
            $region36: #{hybrid_qnn_forward.10} parent=27 // pred_fallthru
              _
          $region28: #{hybrid_qnn_forward.10} parent=23 // pred_fallthru
            _
          %1026 = vnop
        $region24: #{hybrid_qnn_forward.10} parent=19 // pred_fallthru
          _
        // Predicated region
        $region59: #{hybrid_qnn_forward.10} parent=19 // pred_check
          %p1027 = pneg %p93
        $region60: #{hybrid_qnn_forward.10} parent=19 // pred_check_branch
          %1029 = sbr.rel (%p1027) target = $region62
        $region61: #{hybrid_qnn_forward.10} parent=19 // pred_region
          %s1030 = smul.u32 2, %s17
          %p1031 = scmp.lt.s32.totalorder %s1030, 3
          %s1032 = scalar_select %p1031, %s1030, 3
          %s1033 = scalar_lea.vmem %s2, %s1032
          %s1034 = smul.u32 2, %s17
        $region62: #{hybrid_qnn_forward.10} parent=19 // pred_fallthru
          _
      $region20: #{hybrid_qnn_forward.10} parent=5 // pred_fallthru
        _
      %p1035 = scmp.le.s32.totalorder 1, %s9
      %p1036 = scmp.lt.s32.totalorder %s9, 3
      %p1037 = pnand %p1035, %p1036
      %p1038 = pneg %p1037
      // Predicated region
      $region63: #{hybrid_qnn_forward.10} parent=5 // pred_check
        _
      $region64: #{hybrid_qnn_forward.10} parent=5 // pred_check_branch
        %1040 = sbr.rel (%p1037) target = $region66
      $region65: #{hybrid_qnn_forward.10} parent=5 // pred_region
        %s1041 = ssub.s32 %s9, 1
        %s1042 = sand.u32 %s60, 1
        %s1043 = sand.u32 %s60, 1
        %s1044 = smul.addr %s1043, 1664
        %s1045 = scalar_lea.vmem [#allocation2], %s1044
        // Predicated region
        $region67: #{hybrid_qnn_forward.10} parent=65 // pred_check
          %p1046 = pneg %p73
        $region68: #{hybrid_qnn_forward.10} parent=65 // pred_check_branch
          %1048 = sbr.rel (%p1046) target = $region70
        $region69: #{hybrid_qnn_forward.10} parent=65 // pred_region
          _
        $region70: #{hybrid_qnn_forward.10} parent=65 // pred_fallthru
          _
        %s1049 = smul.u32 2, %s18
        %p1050 = scmp.lt.s32.totalorder %s1049, 1
        %s1051 = scalar_select %p1050, %s1049, 1
        %s1052 = smul.addr %s1051, 13
        %s1053 = smul.addr %s1052, 4
        %s1054 = scalar_lea.vmem %s0, %s1053
        %p1055 = pneg %p47
        %p1056 = pneg %p44
        %s1057 = sand.u32 %s60, 1
        %s1058 = sand.u32 %s60, 1
        %s1059 = smul.addr %s1058, 1664
        %s1060 = scalar_lea.vmem [#allocation2], %s1059
        %p1061 = pneg %p73
        %p1062 = pneg %p70
        %s1063 = smul.u32 2, %s19
        %p1064 = scmp.lt.s32.totalorder %s1063, 3
        %s1065 = scalar_select %p1064, %s1063, 3
        %s1066 = scalar_lea.vmem %s2, %s1065
        %p1067 = pneg %p99
        %p1068 = pneg %p96
        %p1069 = pneg %p127
        %p1070 = pneg %p124
        %s1071 = sand.u32 %s114, 1
        %s1072 = sand.u32 %s114, 1
        %s1073 = smul.addr %s1072, 16
        %s1074 = scalar_lea.vmem [#allocation3], %s1073
        %s1075 = smul.u32 2, %s18
        %p1076 = scmp.lt.s32.totalorder %s1075, 1
        %s1077 = scalar_select %p1076, %s1075, 1
        %s1078 = smul.addr %s1077, 13
        %s1079 = smul.addr %s1078, 4
        %s1080 = scalar_lea.vmem %s0, %s1079
        %s1081 = smul.u32 2, %s18
        %s1082 = smul.u32 2, %s19
        %s1083 = smul.u32 2, %s19
        %p1084 = scmp.lt.s32.totalorder %s1083, 3
        %s1085 = scalar_select %p1084, %s1083, 3
        %s1086 = scalar_lea.vmem %s2, %s1085
        %s1087 = smul.u32 2, %s19
        %s1088 = smul.u32 2, %s18
        %s1089 = smul.u32 2, %s19
        %v1091 = vld [vmem:[%s1080] sm:$0xff]
        %v1092 = vld [vmem:[%s1080 + $0x8] sm:$0xff]
        %v1093 = vld [vmem:[%s1080 + $0x10] sm:$0xff]
        %v1094 = vld [vmem:[%s1080 + $0x18] sm:$0xff]
        %v1095 = vld [vmem:[%s1080 + $0x20] sm:$0xff]
        %v1096 = vld [vmem:[%s1080 + $0x28] sm:$0xff]
        %v1097 = vld [vmem:[%s1080 + $0x30] sm:$0xf]
        %v1098 = vld [vmem:[%s1080 + $0x34] sm:$0xff]
        %v1099 = vld [vmem:[%s1080 + $0x3c] sm:$0xff]
        %v1100 = vld [vmem:[%s1080 + $0x44] sm:$0xff]
        %v1101 = vld [vmem:[%s1080 + $0x4c] sm:$0xff]
        %v1102 = vld [vmem:[%s1080 + $0x54] sm:$0xff]
        %v1103 = vld [vmem:[%s1080 + $0x5c] sm:$0xff]
        %v1104 = vld [vmem:[%s1080 + $0x64] sm:$0xf]
        %v1105 = vld [vmem:[%s1045] sm:$0xff]
        %v1106 = vld [vmem:[%s1045 + $0x8] sm:$0xff]
        %v1107 = vld [vmem:[%s1045 + $0x10] sm:$0xff]
        %v1108 = vld [vmem:[%s1045 + $0x18] sm:$0xff]
        %v1109 = vld [vmem:[%s1045 + $0x20] sm:$0xff]
        %v1110 = vld [vmem:[%s1045 + $0x28] sm:$0xff]
        %v1111 = vld [vmem:[%s1045 + $0x30] sm:$0xff]
        %v1112 = vld [vmem:[%s1045 + $0x38] sm:$0xff]
        %v1113 = vld [vmem:[%s1045 + $0x40] sm:$0xff]
        %v1114 = vld [vmem:[%s1045 + $0x48] sm:$0xff]
        %v1115 = vld [vmem:[%s1045 + $0x50] sm:$0xff]
        %v1116 = vld [vmem:[%s1045 + $0x58] sm:$0xff]
        %v1117 = vld [vmem:[%s1045 + $0x60] sm:$0xff]
        %v1118 = vld [vmem:[%s1045 + $0x68] sm:$0xff]
        %v1119 = vld [vmem:[%s1045 + $0x70] sm:$0xff]
        %v1120 = vld [vmem:[%s1045 + $0x78] sm:$0xff]
        %v1121 = vld [vmem:[%s1045 + $0x80] sm:$0xff]
        %v1122 = vld [vmem:[%s1045 + $0x88] sm:$0xff]
        %v1123 = vld [vmem:[%s1045 + $0x90] sm:$0xff]
        %v1124 = vld [vmem:[%s1045 + $0x98] sm:$0xff]
        %v1125 = vld [vmem:[%s1045 + $0xa0] sm:$0xff]
        %v1126 = vld [vmem:[%s1045 + $0xa8] sm:$0xff]
        %v1127 = vld [vmem:[%s1045 + $0xb0] sm:$0xff]
        %v1128 = vld [vmem:[%s1045 + $0xb8] sm:$0xff]
        %v1129 = vld [vmem:[%s1045 + $0xc0] sm:$0xff]
        %v1130 = vld [vmem:[%s1045 + $0xc8] sm:$0xff]
        %v1131 = vld [vmem:[%s1045 + $0xd0] sm:$0xff]
        %v1132 = vld [vmem:[%s1045 + $0xd8] sm:$0xff]
        %v1133 = vld [vmem:[%s1045 + $0xe0] sm:$0xff]
        %v1134 = vld [vmem:[%s1045 + $0xe8] sm:$0xff]
        %v1135 = vld [vmem:[%s1045 + $0xf0] sm:$0xff]
        %v1136 = vld [vmem:[%s1045 + $0xf8] sm:$0xff]
        %v1137 = vld [vmem:[%s1045 + $0x100] sm:$0xff]
        %v1138 = vld [vmem:[%s1045 + $0x108] sm:$0xff]
        %v1139 = vld [vmem:[%s1045 + $0x110] sm:$0xff]
        %v1140 = vld [vmem:[%s1045 + $0x118] sm:$0xff]
        %v1141 = vld [vmem:[%s1045 + $0x120] sm:$0xff]
        %v1142 = vld [vmem:[%s1045 + $0x128] sm:$0xff]
        %v1143 = vld [vmem:[%s1045 + $0x130] sm:$0xff]
        %v1144 = vld [vmem:[%s1045 + $0x138] sm:$0xff]
        %v1145 = vld [vmem:[%s1045 + $0x140] sm:$0xff]
        %v1146 = vld [vmem:[%s1045 + $0x148] sm:$0xff]
        %v1147 = vld [vmem:[%s1045 + $0x150] sm:$0xff]
        %v1148 = vld [vmem:[%s1045 + $0x158] sm:$0xff]
        %v1149 = vld [vmem:[%s1045 + $0x160] sm:$0xff]
        %v1150 = vld [vmem:[%s1045 + $0x168] sm:$0xff]
        %v1151 = vld [vmem:[%s1045 + $0x170] sm:$0xff]
        %v1152 = vld [vmem:[%s1045 + $0x178] sm:$0xff]
        %v1153 = vld [vmem:[%s1045 + $0x180] sm:$0xff]
        %v1154 = vld [vmem:[%s1045 + $0x188] sm:$0xff]
        %v1155 = vld [vmem:[%s1045 + $0x190] sm:$0xff]
        %v1156 = vld [vmem:[%s1045 + $0x198] sm:$0xff]
        %v1157 = vld [vmem:[%s1045 + $0x1a0] sm:$0xff]
        %v1158 = vld [vmem:[%s1045 + $0x1a8] sm:$0xff]
        %v1159 = vld [vmem:[%s1045 + $0x1b0] sm:$0xff]
        %v1160 = vld [vmem:[%s1045 + $0x1b8] sm:$0xff]
        %v1161 = vld [vmem:[%s1045 + $0x1c0] sm:$0xff]
        %v1162 = vld [vmem:[%s1045 + $0x1c8] sm:$0xff]
        %v1163 = vld [vmem:[%s1045 + $0x1d0] sm:$0xff]
        %v1164 = vld [vmem:[%s1045 + $0x1d8] sm:$0xff]
        %v1165 = vld [vmem:[%s1045 + $0x1e0] sm:$0xff]
        %v1166 = vld [vmem:[%s1045 + $0x1e8] sm:$0xff]
        %v1167 = vld [vmem:[%s1045 + $0x1f0] sm:$0xff]
        %v1168 = vld [vmem:[%s1045 + $0x1f8] sm:$0xff]
        %v1169 = vld [vmem:[%s1045 + $0x200] sm:$0xff]
        %v1170 = vld [vmem:[%s1045 + $0x208] sm:$0xff]
        %v1171 = vld [vmem:[%s1045 + $0x210] sm:$0xff]
        %v1172 = vld [vmem:[%s1045 + $0x218] sm:$0xff]
        %v1173 = vld [vmem:[%s1045 + $0x220] sm:$0xff]
        %v1174 = vld [vmem:[%s1045 + $0x228] sm:$0xff]
        %v1175 = vld [vmem:[%s1045 + $0x230] sm:$0xff]
        %v1176 = vld [vmem:[%s1045 + $0x238] sm:$0xff]
        %v1177 = vld [vmem:[%s1045 + $0x240] sm:$0xff]
        %v1178 = vld [vmem:[%s1045 + $0x248] sm:$0xff]
        %v1179 = vld [vmem:[%s1045 + $0x250] sm:$0xff]
        %v1180 = vld [vmem:[%s1045 + $0x258] sm:$0xff]
        %v1181 = vld [vmem:[%s1045 + $0x260] sm:$0xff]
        %v1182 = vld [vmem:[%s1045 + $0x268] sm:$0xff]
        %v1183 = vld [vmem:[%s1045 + $0x270] sm:$0xff]
        %v1184 = vld [vmem:[%s1045 + $0x278] sm:$0xff]
        %v1185 = vld [vmem:[%s1045 + $0x280] sm:$0xff]
        %v1186 = vld [vmem:[%s1045 + $0x288] sm:$0xff]
        %v1187 = vld [vmem:[%s1045 + $0x290] sm:$0xff]
        %v1188 = vld [vmem:[%s1045 + $0x298] sm:$0xff]
        %v1189 = vld [vmem:[%s1045 + $0x2a0] sm:$0xff]
        %v1190 = vld [vmem:[%s1045 + $0x2a8] sm:$0xff]
        %v1191 = vld [vmem:[%s1045 + $0x2b0] sm:$0xff]
        %v1192 = vld [vmem:[%s1045 + $0x2b8] sm:$0xff]
        %v1193 = vld [vmem:[%s1045 + $0x2c0] sm:$0xff]
        %v1194 = vld [vmem:[%s1045 + $0x2c8] sm:$0xff]
        %v1195 = vld [vmem:[%s1045 + $0x2d0] sm:$0xff]
        %v1196 = vld [vmem:[%s1045 + $0x2d8] sm:$0xff]
        %v1197 = vld [vmem:[%s1045 + $0x2e0] sm:$0xff]
        %v1198 = vld [vmem:[%s1045 + $0x2e8] sm:$0xff]
        %v1199 = vld [vmem:[%s1045 + $0x2f0] sm:$0xff]
        %v1200 = vld [vmem:[%s1045 + $0x2f8] sm:$0xff]
        %v1201 = vld [vmem:[%s1045 + $0x300] sm:$0xff]
        %v1202 = vld [vmem:[%s1045 + $0x308] sm:$0xff]
        %v1203 = vld [vmem:[%s1045 + $0x310] sm:$0xff]
        %v1204 = vld [vmem:[%s1045 + $0x318] sm:$0xff]
        %v1205 = vld [vmem:[%s1045 + $0x320] sm:$0xff]
        %v1206 = vld [vmem:[%s1045 + $0x328] sm:$0xff]
        %v1207 = vld [vmem:[%s1045 + $0x330] sm:$0xff]
        %v1208 = vld [vmem:[%s1045 + $0x338] sm:$0xff]
        %v1209 = vld [vmem:[%s1045 + $0x340] sm:$0xff]
        %v1210 = vld [vmem:[%s1045 + $0x348] sm:$0xff]
        %v1211 = vld [vmem:[%s1045 + $0x350] sm:$0xff]
        %v1212 = vld [vmem:[%s1045 + $0x358] sm:$0xff]
        %v1213 = vld [vmem:[%s1045 + $0x360] sm:$0xff]
        %v1214 = vld [vmem:[%s1045 + $0x368] sm:$0xff]
        %v1215 = vld [vmem:[%s1045 + $0x370] sm:$0xff]
        %v1216 = vld [vmem:[%s1045 + $0x378] sm:$0xff]
        %v1217 = vld [vmem:[%s1045 + $0x380] sm:$0xff]
        %v1218 = vld [vmem:[%s1045 + $0x388] sm:$0xff]
        %v1219 = vld [vmem:[%s1045 + $0x390] sm:$0xff]
        %v1220 = vld [vmem:[%s1045 + $0x398] sm:$0xff]
        %v1221 = vld [vmem:[%s1045 + $0x3a0] sm:$0xff]
        %v1222 = vld [vmem:[%s1045 + $0x3a8] sm:$0xff]
        %v1223 = vld [vmem:[%s1045 + $0x3b0] sm:$0xff]
        %v1224 = vld [vmem:[%s1045 + $0x3b8] sm:$0xff]
        %v1225 = vld [vmem:[%s1045 + $0x3c0] sm:$0xff]
        %v1226 = vld [vmem:[%s1045 + $0x3c8] sm:$0xff]
        %v1227 = vld [vmem:[%s1045 + $0x3d0] sm:$0xff]
        %v1228 = vld [vmem:[%s1045 + $0x3d8] sm:$0xff]
        %v1229 = vld [vmem:[%s1045 + $0x3e0] sm:$0xff]
        %v1230 = vld [vmem:[%s1045 + $0x3e8] sm:$0xff]
        %v1231 = vld [vmem:[%s1045 + $0x3f0] sm:$0xff]
        %v1232 = vld [vmem:[%s1045 + $0x3f8] sm:$0xff]
        %v1233 = vld [vmem:[%s1045 + $0x400] sm:$0xff]
        %v1234 = vld [vmem:[%s1045 + $0x408] sm:$0xff]
        %v1235 = vld [vmem:[%s1045 + $0x410] sm:$0xff]
        %v1236 = vld [vmem:[%s1045 + $0x418] sm:$0xff]
        %v1237 = vld [vmem:[%s1045 + $0x420] sm:$0xff]
        %v1238 = vld [vmem:[%s1045 + $0x428] sm:$0xff]
        %v1239 = vld [vmem:[%s1045 + $0x430] sm:$0xff]
        %v1240 = vld [vmem:[%s1045 + $0x438] sm:$0xff]
        %v1241 = vld [vmem:[%s1045 + $0x440] sm:$0xff]
        %v1242 = vld [vmem:[%s1045 + $0x448] sm:$0xff]
        %v1243 = vld [vmem:[%s1045 + $0x450] sm:$0xff]
        %v1244 = vld [vmem:[%s1045 + $0x458] sm:$0xff]
        %v1245 = vld [vmem:[%s1045 + $0x460] sm:$0xff]
        %v1246 = vld [vmem:[%s1045 + $0x468] sm:$0xff]
        %v1247 = vld [vmem:[%s1045 + $0x470] sm:$0xff]
        %v1248 = vld [vmem:[%s1045 + $0x478] sm:$0xff]
        %v1249 = vld [vmem:[%s1045 + $0x480] sm:$0xff]
        %v1250 = vld [vmem:[%s1045 + $0x488] sm:$0xff]
        %v1251 = vld [vmem:[%s1045 + $0x490] sm:$0xff]
        %v1252 = vld [vmem:[%s1045 + $0x498] sm:$0xff]
        %v1253 = vld [vmem:[%s1045 + $0x4a0] sm:$0xff]
        %v1254 = vld [vmem:[%s1045 + $0x4a8] sm:$0xff]
        %v1255 = vld [vmem:[%s1045 + $0x4b0] sm:$0xff]
        %v1256 = vld [vmem:[%s1045 + $0x4b8] sm:$0xff]
        %v1257 = vld [vmem:[%s1045 + $0x4c0] sm:$0xff]
        %v1258 = vld [vmem:[%s1045 + $0x4c8] sm:$0xff]
        %v1259 = vld [vmem:[%s1045 + $0x4d0] sm:$0xff]
        %v1260 = vld [vmem:[%s1045 + $0x4d8] sm:$0xff]
        %v1261 = vld [vmem:[%s1045 + $0x4e0] sm:$0xff]
        %v1262 = vld [vmem:[%s1045 + $0x4e8] sm:$0xff]
        %v1263 = vld [vmem:[%s1045 + $0x4f0] sm:$0xff]
        %v1264 = vld [vmem:[%s1045 + $0x4f8] sm:$0xff]
        %v1265 = vld [vmem:[%s1045 + $0x500] sm:$0xff]
        %v1266 = vld [vmem:[%s1045 + $0x508] sm:$0xff]
        %v1267 = vld [vmem:[%s1045 + $0x510] sm:$0xff]
        %v1268 = vld [vmem:[%s1045 + $0x518] sm:$0xff]
        %v1269 = vld [vmem:[%s1045 + $0x520] sm:$0xff]
        %v1270 = vld [vmem:[%s1045 + $0x528] sm:$0xff]
        %v1271 = vld [vmem:[%s1045 + $0x530] sm:$0xff]
        %v1272 = vld [vmem:[%s1045 + $0x538] sm:$0xff]
        %v1273 = vld [vmem:[%s1045 + $0x540] sm:$0xff]
        %v1274 = vld [vmem:[%s1045 + $0x548] sm:$0xff]
        %v1275 = vld [vmem:[%s1045 + $0x550] sm:$0xff]
        %v1276 = vld [vmem:[%s1045 + $0x558] sm:$0xff]
        %v1277 = vld [vmem:[%s1045 + $0x560] sm:$0xff]
        %v1278 = vld [vmem:[%s1045 + $0x568] sm:$0xff]
        %v1279 = vld [vmem:[%s1045 + $0x570] sm:$0xff]
        %v1280 = vld [vmem:[%s1045 + $0x578] sm:$0xff]
        %v1281 = vld [vmem:[%s1045 + $0x580] sm:$0xff]
        %v1282 = vld [vmem:[%s1045 + $0x588] sm:$0xff]
        %v1283 = vld [vmem:[%s1045 + $0x590] sm:$0xff]
        %v1284 = vld [vmem:[%s1045 + $0x598] sm:$0xff]
        %v1285 = vld [vmem:[%s1045 + $0x5a0] sm:$0xff]
        %v1286 = vld [vmem:[%s1045 + $0x5a8] sm:$0xff]
        %v1287 = vld [vmem:[%s1045 + $0x5b0] sm:$0xff]
        %v1288 = vld [vmem:[%s1045 + $0x5b8] sm:$0xff]
        %v1289 = vld [vmem:[%s1045 + $0x5c0] sm:$0xff]
        %v1290 = vld [vmem:[%s1045 + $0x5c8] sm:$0xff]
        %v1291 = vld [vmem:[%s1045 + $0x5d0] sm:$0xff]
        %v1292 = vld [vmem:[%s1045 + $0x5d8] sm:$0xff]
        %v1293 = vld [vmem:[%s1045 + $0x5e0] sm:$0xff]
        %v1294 = vld [vmem:[%s1045 + $0x5e8] sm:$0xff]
        %v1295 = vld [vmem:[%s1045 + $0x5f0] sm:$0xff]
        %v1296 = vld [vmem:[%s1045 + $0x5f8] sm:$0xff]
        %v1297 = vld [vmem:[%s1045 + $0x600] sm:$0xff]
        %v1298 = vld [vmem:[%s1045 + $0x608] sm:$0xff]
        %v1299 = vld [vmem:[%s1045 + $0x610] sm:$0xff]
        %v1300 = vld [vmem:[%s1045 + $0x618] sm:$0xff]
        %v1301 = vld [vmem:[%s1045 + $0x620] sm:$0xff]
        %v1302 = vld [vmem:[%s1045 + $0x628] sm:$0xff]
        %v1303 = vld [vmem:[%s1045 + $0x630] sm:$0xff]
        %v1304 = vld [vmem:[%s1045 + $0x638] sm:$0xff]
        %v1305 = vld [vmem:[%s1045 + $0x640] sm:$0xff]
        %v1306 = vld [vmem:[%s1045 + $0x648] sm:$0xff]
        %v1307 = vld [vmem:[%s1045 + $0x650] sm:$0xff]
        %v1308 = vld [vmem:[%s1045 + $0x658] sm:$0xff]
        %v1309 = vld [vmem:[%s1045 + $0x660] sm:$0xff]
        %v1310 = vld [vmem:[%s1045 + $0x668] sm:$0xff]
        %v1311 = vld [vmem:[%s1045 + $0x670] sm:$0xff]
        %v1312 = vld [vmem:[%s1045 + $0x678] sm:$0xff]
        %v1313 = vld [vmem:[%s1086] sm:$0x3]
        %v1315 = vlaneseq
        %v1316 = vshrl.u32 %v1315, 7
        %v1317 = vsub.s32 0, %v1316
        %v1318 = vrot.slane %v1313, %v1317
        %v1319 = vlaneseq
        %v1320 = vshrl.u32 %v1319, 7
        %v1321 = vsub.s32 1, %v1320
        %v1322 = vrot.slane %v1313, %v1321
        %v1339 = vunpack.c.l.b16 %v1091
        %v1340 = vunpack.c.h.b16 %v1091
        %v1341 = vunpack.c.l.b16 %v1092
        %v1342 = vunpack.c.h.b16 %v1092
        %v1343 = vunpack.c.l.b16 %v1093
        %v1344 = vunpack.c.h.b16 %v1093
        %v1345 = vunpack.c.l.b16 %v1094
        %v1346 = vunpack.c.h.b16 %v1094
        %v1347 = vunpack.c.l.b16 %v1095
        %v1348 = vunpack.c.h.b16 %v1095
        %v1349 = vunpack.c.l.b16 %v1096
        %v1350 = vunpack.c.h.b16 %v1096
        %v1351 = vunpack.c.l.b16 %v1097
        %v1352 = vunpack.c.l.b16 %v1098
        %v1353 = vunpack.c.h.b16 %v1098
        %v1354 = vunpack.c.l.b16 %v1099
        %v1355 = vunpack.c.h.b16 %v1099
        %v1356 = vunpack.c.l.b16 %v1100
        %v1357 = vunpack.c.h.b16 %v1100
        %v1358 = vunpack.c.l.b16 %v1101
        %v1359 = vunpack.c.h.b16 %v1101
        %v1360 = vunpack.c.l.b16 %v1102
        %v1361 = vunpack.c.h.b16 %v1102
        %v1362 = vunpack.c.l.b16 %v1103
        %v1363 = vunpack.c.h.b16 %v1103
        %v1364 = vunpack.c.l.b16 %v1104
        %v1365 = vpack.c.b16 %v1352, %v1339
        %v1366 = vpack.c.b16 %v1353, %v1340
        %v1367 = vpack.c.b16 %v1354, %v1341
        %v1368 = vpack.c.b16 %v1355, %v1342
        %v1369 = vpack.c.b16 %v1356, %v1343
        %v1370 = vpack.c.b16 %v1357, %v1344
        %v1371 = vpack.c.b16 %v1358, %v1345
        %v1372 = vpack.c.b16 %v1359, %v1346
        %v1373 = vpack.c.b16 %v1360, %v1347
        %v1374 = vpack.c.b16 %v1361, %v1348
        %v1375 = vpack.c.b16 %v1362, %v1349
        %v1376 = vpack.c.b16 %v1363, %v1350
        %v1377 = vpack.c.b16 %v1364, %v1351
        %v1599 = vunpack.c.l.b16 %v1105
        %v1600 = vunpack.c.h.b16 %v1105
        %v1601 = vunpack.c.l.b16 %v1106
        %v1602 = vunpack.c.h.b16 %v1106
        %v1603 = vunpack.c.l.b16 %v1107
        %v1604 = vunpack.c.h.b16 %v1107
        %v1605 = vunpack.c.l.b16 %v1108
        %v1606 = vunpack.c.h.b16 %v1108
        %v1607 = vunpack.c.l.b16 %v1109
        %v1608 = vunpack.c.h.b16 %v1109
        %v1609 = vunpack.c.l.b16 %v1110
        %v1610 = vunpack.c.h.b16 %v1110
        %v1611 = vunpack.c.l.b16 %v1111
        %v1612 = vunpack.c.h.b16 %v1111
        %v1613 = vunpack.c.l.b16 %v1112
        %v1614 = vunpack.c.h.b16 %v1112
        %v1615 = vunpack.c.l.b16 %v1113
        %v1616 = vunpack.c.h.b16 %v1113
        %v1617 = vunpack.c.l.b16 %v1114
        %v1618 = vunpack.c.h.b16 %v1114
        %v1619 = vunpack.c.l.b16 %v1115
        %v1620 = vunpack.c.h.b16 %v1115
        %v1621 = vunpack.c.l.b16 %v1116
        %v1622 = vunpack.c.h.b16 %v1116
        %v1623 = vunpack.c.l.b16 %v1117
        %v1624 = vunpack.c.h.b16 %v1117
        %v1625 = vunpack.c.l.b16 %v1118
        %v1626 = vunpack.c.h.b16 %v1118
        %v1627 = vunpack.c.l.b16 %v1119
        %v1628 = vunpack.c.h.b16 %v1119
        %v1629 = vunpack.c.l.b16 %v1120
        %v1630 = vunpack.c.h.b16 %v1120
        %v1631 = vunpack.c.l.b16 %v1121
        %v1632 = vunpack.c.h.b16 %v1121
        %v1633 = vunpack.c.l.b16 %v1122
        %v1634 = vunpack.c.h.b16 %v1122
        %v1635 = vunpack.c.l.b16 %v1123
        %v1636 = vunpack.c.h.b16 %v1123
        %v1637 = vunpack.c.l.b16 %v1124
        %v1638 = vunpack.c.h.b16 %v1124
        %v1639 = vunpack.c.l.b16 %v1125
        %v1640 = vunpack.c.h.b16 %v1125
        %v1641 = vunpack.c.l.b16 %v1126
        %v1642 = vunpack.c.h.b16 %v1126
        %v1643 = vunpack.c.l.b16 %v1127
        %v1644 = vunpack.c.h.b16 %v1127
        %v1645 = vunpack.c.l.b16 %v1128
        %v1646 = vunpack.c.h.b16 %v1128
        %v1647 = vunpack.c.l.b16 %v1129
        %v1648 = vunpack.c.h.b16 %v1129
        %v1649 = vunpack.c.l.b16 %v1130
        %v1650 = vunpack.c.h.b16 %v1130
        %v1651 = vunpack.c.l.b16 %v1131
        %v1652 = vunpack.c.h.b16 %v1131
        %v1653 = vunpack.c.l.b16 %v1132
        %v1654 = vunpack.c.h.b16 %v1132
        %v1655 = vunpack.c.l.b16 %v1133
        %v1656 = vunpack.c.h.b16 %v1133
        %v1657 = vunpack.c.l.b16 %v1134
        %v1658 = vunpack.c.h.b16 %v1134
        %v1659 = vunpack.c.l.b16 %v1135
        %v1660 = vunpack.c.h.b16 %v1135
        %v1661 = vunpack.c.l.b16 %v1136
        %v1662 = vunpack.c.h.b16 %v1136
        %v1663 = vunpack.c.l.b16 %v1137
        %v1664 = vunpack.c.h.b16 %v1137
        %v1665 = vunpack.c.l.b16 %v1138
        %v1666 = vunpack.c.h.b16 %v1138
        %v1667 = vunpack.c.l.b16 %v1139
        %v1668 = vunpack.c.h.b16 %v1139
        %v1669 = vunpack.c.l.b16 %v1140
        %v1670 = vunpack.c.h.b16 %v1140
        %v1671 = vunpack.c.l.b16 %v1141
        %v1672 = vunpack.c.h.b16 %v1141
        %v1673 = vunpack.c.l.b16 %v1142
        %v1674 = vunpack.c.h.b16 %v1142
        %v1675 = vunpack.c.l.b16 %v1143
        %v1676 = vunpack.c.h.b16 %v1143
        %v1677 = vunpack.c.l.b16 %v1144
        %v1678 = vunpack.c.h.b16 %v1144
        %v1679 = vunpack.c.l.b16 %v1145
        %v1680 = vunpack.c.h.b16 %v1145
        %v1681 = vunpack.c.l.b16 %v1146
        %v1682 = vunpack.c.h.b16 %v1146
        %v1683 = vunpack.c.l.b16 %v1147
        %v1684 = vunpack.c.h.b16 %v1147
        %v1685 = vunpack.c.l.b16 %v1148
        %v1686 = vunpack.c.h.b16 %v1148
        %v1687 = vunpack.c.l.b16 %v1149
        %v1688 = vunpack.c.h.b16 %v1149
        %v1689 = vunpack.c.l.b16 %v1150
        %v1690 = vunpack.c.h.b16 %v1150
        %v1691 = vunpack.c.l.b16 %v1151
        %v1692 = vunpack.c.h.b16 %v1151
        %v1693 = vunpack.c.l.b16 %v1152
        %v1694 = vunpack.c.h.b16 %v1152
        %v1695 = vunpack.c.l.b16 %v1153
        %v1696 = vunpack.c.h.b16 %v1153
        %v1697 = vunpack.c.l.b16 %v1154
        %v1698 = vunpack.c.h.b16 %v1154
        %v1699 = vunpack.c.l.b16 %v1155
        %v1700 = vunpack.c.h.b16 %v1155
        %v1701 = vunpack.c.l.b16 %v1156
        %v1702 = vunpack.c.h.b16 %v1156
        %v1703 = vunpack.c.l.b16 %v1157
        %v1704 = vunpack.c.h.b16 %v1157
        %v1705 = vunpack.c.l.b16 %v1158
        %v1706 = vunpack.c.h.b16 %v1158
        %v1707 = vunpack.c.l.b16 %v1159
        %v1708 = vunpack.c.h.b16 %v1159
        %v1709 = vunpack.c.l.b16 %v1160
        %v1710 = vunpack.c.h.b16 %v1160
        %v1711 = vunpack.c.l.b16 %v1161
        %v1712 = vunpack.c.h.b16 %v1161
        %v1713 = vunpack.c.l.b16 %v1162
        %v1714 = vunpack.c.h.b16 %v1162
        %v1715 = vunpack.c.l.b16 %v1163
        %v1716 = vunpack.c.h.b16 %v1163
        %v1717 = vunpack.c.l.b16 %v1164
        %v1718 = vunpack.c.h.b16 %v1164
        %v1719 = vunpack.c.l.b16 %v1165
        %v1720 = vunpack.c.h.b16 %v1165
        %v1721 = vunpack.c.l.b16 %v1166
        %v1722 = vunpack.c.h.b16 %v1166
        %v1723 = vunpack.c.l.b16 %v1167
        %v1724 = vunpack.c.h.b16 %v1167
        %v1725 = vunpack.c.l.b16 %v1168
        %v1726 = vunpack.c.h.b16 %v1168
        %v1727 = vunpack.c.l.b16 %v1169
        %v1728 = vunpack.c.h.b16 %v1169
        %v1729 = vunpack.c.l.b16 %v1170
        %v1730 = vunpack.c.h.b16 %v1170
        %v1731 = vunpack.c.l.b16 %v1171
        %v1732 = vunpack.c.h.b16 %v1171
        %v1733 = vunpack.c.l.b16 %v1172
        %v1734 = vunpack.c.h.b16 %v1172
        %v1735 = vunpack.c.l.b16 %v1173
        %v1736 = vunpack.c.h.b16 %v1173
        %v1737 = vunpack.c.l.b16 %v1174
        %v1738 = vunpack.c.h.b16 %v1174
        %v1739 = vunpack.c.l.b16 %v1175
        %v1740 = vunpack.c.h.b16 %v1175
        %v1741 = vunpack.c.l.b16 %v1176
        %v1742 = vunpack.c.h.b16 %v1176
        %v1743 = vunpack.c.l.b16 %v1177
        %v1744 = vunpack.c.h.b16 %v1177
        %v1745 = vunpack.c.l.b16 %v1178
        %v1746 = vunpack.c.h.b16 %v1178
        %v1747 = vunpack.c.l.b16 %v1179
        %v1748 = vunpack.c.h.b16 %v1179
        %v1749 = vunpack.c.l.b16 %v1180
        %v1750 = vunpack.c.h.b16 %v1180
        %v1751 = vunpack.c.l.b16 %v1181
        %v1752 = vunpack.c.h.b16 %v1181
        %v1753 = vunpack.c.l.b16 %v1182
        %v1754 = vunpack.c.h.b16 %v1182
        %v1755 = vunpack.c.l.b16 %v1183
        %v1756 = vunpack.c.h.b16 %v1183
        %v1757 = vunpack.c.l.b16 %v1184
        %v1758 = vunpack.c.h.b16 %v1184
        %v1759 = vunpack.c.l.b16 %v1185
        %v1760 = vunpack.c.h.b16 %v1185
        %v1761 = vunpack.c.l.b16 %v1186
        %v1762 = vunpack.c.h.b16 %v1186
        %v1763 = vunpack.c.l.b16 %v1187
        %v1764 = vunpack.c.h.b16 %v1187
        %v1765 = vunpack.c.l.b16 %v1188
        %v1766 = vunpack.c.h.b16 %v1188
        %v1767 = vunpack.c.l.b16 %v1189
        %v1768 = vunpack.c.h.b16 %v1189
        %v1769 = vunpack.c.l.b16 %v1190
        %v1770 = vunpack.c.h.b16 %v1190
        %v1771 = vunpack.c.l.b16 %v1191
        %v1772 = vunpack.c.h.b16 %v1191
        %v1773 = vunpack.c.l.b16 %v1192
        %v1774 = vunpack.c.h.b16 %v1192
        %v1775 = vunpack.c.l.b16 %v1193
        %v1776 = vunpack.c.h.b16 %v1193
        %v1777 = vunpack.c.l.b16 %v1194
        %v1778 = vunpack.c.h.b16 %v1194
        %v1779 = vunpack.c.l.b16 %v1195
        %v1780 = vunpack.c.h.b16 %v1195
        %v1781 = vunpack.c.l.b16 %v1196
        %v1782 = vunpack.c.h.b16 %v1196
        %v1783 = vunpack.c.l.b16 %v1197
        %v1784 = vunpack.c.h.b16 %v1197
        %v1785 = vunpack.c.l.b16 %v1198
        %v1786 = vunpack.c.h.b16 %v1198
        %v1787 = vunpack.c.l.b16 %v1199
        %v1788 = vunpack.c.h.b16 %v1199
        %v1789 = vunpack.c.l.b16 %v1200
        %v1790 = vunpack.c.h.b16 %v1200
        %v1791 = vunpack.c.l.b16 %v1201
        %v1792 = vunpack.c.h.b16 %v1201
        %v1793 = vunpack.c.l.b16 %v1202
        %v1794 = vunpack.c.h.b16 %v1202
        %v1795 = vunpack.c.l.b16 %v1203
        %v1796 = vunpack.c.h.b16 %v1203
        %v1797 = vunpack.c.l.b16 %v1204
        %v1798 = vunpack.c.h.b16 %v1204
        %v1799 = vunpack.c.l.b16 %v1205
        %v1800 = vunpack.c.h.b16 %v1205
        %v1801 = vunpack.c.l.b16 %v1206
        %v1802 = vunpack.c.h.b16 %v1206
        %v1803 = vunpack.c.l.b16 %v1207
        %v1804 = vunpack.c.h.b16 %v1207
        %v1805 = vunpack.c.l.b16 %v1208
        %v1806 = vunpack.c.h.b16 %v1208
        %v1807 = vunpack.c.l.b16 %v1209
        %v1808 = vunpack.c.h.b16 %v1209
        %v1809 = vunpack.c.l.b16 %v1210
        %v1810 = vunpack.c.h.b16 %v1210
        %v1811 = vunpack.c.l.b16 %v1211
        %v1812 = vunpack.c.h.b16 %v1211
        %v1813 = vunpack.c.l.b16 %v1212
        %v1814 = vunpack.c.h.b16 %v1212
        %v1815 = vunpack.c.l.b16 %v1213
        %v1816 = vunpack.c.h.b16 %v1213
        %v1817 = vunpack.c.l.b16 %v1214
        %v1818 = vunpack.c.h.b16 %v1214
        %v1819 = vunpack.c.l.b16 %v1215
        %v1820 = vunpack.c.h.b16 %v1215
        %v1821 = vunpack.c.l.b16 %v1216
        %v1822 = vunpack.c.h.b16 %v1216
        %v1823 = vunpack.c.l.b16 %v1217
        %v1824 = vunpack.c.h.b16 %v1217
        %v1825 = vunpack.c.l.b16 %v1218
        %v1826 = vunpack.c.h.b16 %v1218
        %v1827 = vunpack.c.l.b16 %v1219
        %v1828 = vunpack.c.h.b16 %v1219
        %v1829 = vunpack.c.l.b16 %v1220
        %v1830 = vunpack.c.h.b16 %v1220
        %v1831 = vunpack.c.l.b16 %v1221
        %v1832 = vunpack.c.h.b16 %v1221
        %v1833 = vunpack.c.l.b16 %v1222
        %v1834 = vunpack.c.h.b16 %v1222
        %v1835 = vunpack.c.l.b16 %v1223
        %v1836 = vunpack.c.h.b16 %v1223
        %v1837 = vunpack.c.l.b16 %v1224
        %v1838 = vunpack.c.h.b16 %v1224
        %v1839 = vunpack.c.l.b16 %v1225
        %v1840 = vunpack.c.h.b16 %v1225
        %v1841 = vunpack.c.l.b16 %v1226
        %v1842 = vunpack.c.h.b16 %v1226
        %v1843 = vunpack.c.l.b16 %v1227
        %v1844 = vunpack.c.h.b16 %v1227
        %v1845 = vunpack.c.l.b16 %v1228
        %v1846 = vunpack.c.h.b16 %v1228
        %v1847 = vunpack.c.l.b16 %v1229
        %v1848 = vunpack.c.h.b16 %v1229
        %v1849 = vunpack.c.l.b16 %v1230
        %v1850 = vunpack.c.h.b16 %v1230
        %v1851 = vunpack.c.l.b16 %v1231
        %v1852 = vunpack.c.h.b16 %v1231
        %v1853 = vunpack.c.l.b16 %v1232
        %v1854 = vunpack.c.h.b16 %v1232
        %v1855 = vunpack.c.l.b16 %v1233
        %v1856 = vunpack.c.h.b16 %v1233
        %v1857 = vunpack.c.l.b16 %v1234
        %v1858 = vunpack.c.h.b16 %v1234
        %v1859 = vunpack.c.l.b16 %v1235
        %v1860 = vunpack.c.h.b16 %v1235
        %v1861 = vunpack.c.l.b16 %v1236
        %v1862 = vunpack.c.h.b16 %v1236
        %v1863 = vunpack.c.l.b16 %v1237
        %v1864 = vunpack.c.h.b16 %v1237
        %v1865 = vunpack.c.l.b16 %v1238
        %v1866 = vunpack.c.h.b16 %v1238
        %v1867 = vunpack.c.l.b16 %v1239
        %v1868 = vunpack.c.h.b16 %v1239
        %v1869 = vunpack.c.l.b16 %v1240
        %v1870 = vunpack.c.h.b16 %v1240
        %v1871 = vunpack.c.l.b16 %v1241
        %v1872 = vunpack.c.h.b16 %v1241
        %v1873 = vunpack.c.l.b16 %v1242
        %v1874 = vunpack.c.h.b16 %v1242
        %v1875 = vunpack.c.l.b16 %v1243
        %v1876 = vunpack.c.h.b16 %v1243
        %v1877 = vunpack.c.l.b16 %v1244
        %v1878 = vunpack.c.h.b16 %v1244
        %v1879 = vunpack.c.l.b16 %v1245
        %v1880 = vunpack.c.h.b16 %v1245
        %v1881 = vunpack.c.l.b16 %v1246
        %v1882 = vunpack.c.h.b16 %v1246
        %v1883 = vunpack.c.l.b16 %v1247
        %v1884 = vunpack.c.h.b16 %v1247
        %v1885 = vunpack.c.l.b16 %v1248
        %v1886 = vunpack.c.h.b16 %v1248
        %v1887 = vunpack.c.l.b16 %v1249
        %v1888 = vunpack.c.h.b16 %v1249
        %v1889 = vunpack.c.l.b16 %v1250
        %v1890 = vunpack.c.h.b16 %v1250
        %v1891 = vunpack.c.l.b16 %v1251
        %v1892 = vunpack.c.h.b16 %v1251
        %v1893 = vunpack.c.l.b16 %v1252
        %v1894 = vunpack.c.h.b16 %v1252
        %v1895 = vunpack.c.l.b16 %v1253
        %v1896 = vunpack.c.h.b16 %v1253
        %v1897 = vunpack.c.l.b16 %v1254
        %v1898 = vunpack.c.h.b16 %v1254
        %v1899 = vunpack.c.l.b16 %v1255
        %v1900 = vunpack.c.h.b16 %v1255
        %v1901 = vunpack.c.l.b16 %v1256
        %v1902 = vunpack.c.h.b16 %v1256
        %v1903 = vunpack.c.l.b16 %v1257
        %v1904 = vunpack.c.h.b16 %v1257
        %v1905 = vunpack.c.l.b16 %v1258
        %v1906 = vunpack.c.h.b16 %v1258
        %v1907 = vunpack.c.l.b16 %v1259
        %v1908 = vunpack.c.h.b16 %v1259
        %v1909 = vunpack.c.l.b16 %v1260
        %v1910 = vunpack.c.h.b16 %v1260
        %v1911 = vunpack.c.l.b16 %v1261
        %v1912 = vunpack.c.h.b16 %v1261
        %v1913 = vunpack.c.l.b16 %v1262
        %v1914 = vunpack.c.h.b16 %v1262
        %v1915 = vunpack.c.l.b16 %v1263
        %v1916 = vunpack.c.h.b16 %v1263
        %v1917 = vunpack.c.l.b16 %v1264
        %v1918 = vunpack.c.h.b16 %v1264
        %v1919 = vunpack.c.l.b16 %v1265
        %v1920 = vunpack.c.h.b16 %v1265
        %v1921 = vunpack.c.l.b16 %v1266
        %v1922 = vunpack.c.h.b16 %v1266
        %v1923 = vunpack.c.l.b16 %v1267
        %v1924 = vunpack.c.h.b16 %v1267
        %v1925 = vunpack.c.l.b16 %v1268
        %v1926 = vunpack.c.h.b16 %v1268
        %v1927 = vunpack.c.l.b16 %v1269
        %v1928 = vunpack.c.h.b16 %v1269
        %v1929 = vunpack.c.l.b16 %v1270
        %v1930 = vunpack.c.h.b16 %v1270
        %v1931 = vunpack.c.l.b16 %v1271
        %v1932 = vunpack.c.h.b16 %v1271
        %v1933 = vunpack.c.l.b16 %v1272
        %v1934 = vunpack.c.h.b16 %v1272
        %v1935 = vunpack.c.l.b16 %v1273
        %v1936 = vunpack.c.h.b16 %v1273
        %v1937 = vunpack.c.l.b16 %v1274
        %v1938 = vunpack.c.h.b16 %v1274
        %v1939 = vunpack.c.l.b16 %v1275
        %v1940 = vunpack.c.h.b16 %v1275
        %v1941 = vunpack.c.l.b16 %v1276
        %v1942 = vunpack.c.h.b16 %v1276
        %v1943 = vunpack.c.l.b16 %v1277
        %v1944 = vunpack.c.h.b16 %v1277
        %v1945 = vunpack.c.l.b16 %v1278
        %v1946 = vunpack.c.h.b16 %v1278
        %v1947 = vunpack.c.l.b16 %v1279
        %v1948 = vunpack.c.h.b16 %v1279
        %v1949 = vunpack.c.l.b16 %v1280
        %v1950 = vunpack.c.h.b16 %v1280
        %v1951 = vunpack.c.l.b16 %v1281
        %v1952 = vunpack.c.h.b16 %v1281
        %v1953 = vunpack.c.l.b16 %v1282
        %v1954 = vunpack.c.h.b16 %v1282
        %v1955 = vunpack.c.l.b16 %v1283
        %v1956 = vunpack.c.h.b16 %v1283
        %v1957 = vunpack.c.l.b16 %v1284
        %v1958 = vunpack.c.h.b16 %v1284
        %v1959 = vunpack.c.l.b16 %v1285
        %v1960 = vunpack.c.h.b16 %v1285
        %v1961 = vunpack.c.l.b16 %v1286
        %v1962 = vunpack.c.h.b16 %v1286
        %v1963 = vunpack.c.l.b16 %v1287
        %v1964 = vunpack.c.h.b16 %v1287
        %v1965 = vunpack.c.l.b16 %v1288
        %v1966 = vunpack.c.h.b16 %v1288
        %v1967 = vunpack.c.l.b16 %v1289
        %v1968 = vunpack.c.h.b16 %v1289
        %v1969 = vunpack.c.l.b16 %v1290
        %v1970 = vunpack.c.h.b16 %v1290
        %v1971 = vunpack.c.l.b16 %v1291
        %v1972 = vunpack.c.h.b16 %v1291
        %v1973 = vunpack.c.l.b16 %v1292
        %v1974 = vunpack.c.h.b16 %v1292
        %v1975 = vunpack.c.l.b16 %v1293
        %v1976 = vunpack.c.h.b16 %v1293
        %v1977 = vunpack.c.l.b16 %v1294
        %v1978 = vunpack.c.h.b16 %v1294
        %v1979 = vunpack.c.l.b16 %v1295
        %v1980 = vunpack.c.h.b16 %v1295
        %v1981 = vunpack.c.l.b16 %v1296
        %v1982 = vunpack.c.h.b16 %v1296
        %v1983 = vunpack.c.l.b16 %v1297
        %v1984 = vunpack.c.h.b16 %v1297
        %v1985 = vunpack.c.l.b16 %v1298
        %v1986 = vunpack.c.h.b16 %v1298
        %v1987 = vunpack.c.l.b16 %v1299
        %v1988 = vunpack.c.h.b16 %v1299
        %v1989 = vunpack.c.l.b16 %v1300
        %v1990 = vunpack.c.h.b16 %v1300
        %v1991 = vunpack.c.l.b16 %v1301
        %v1992 = vunpack.c.h.b16 %v1301
        %v1993 = vunpack.c.l.b16 %v1302
        %v1994 = vunpack.c.h.b16 %v1302
        %v1995 = vunpack.c.l.b16 %v1303
        %v1996 = vunpack.c.h.b16 %v1303
        %v1997 = vunpack.c.l.b16 %v1304
        %v1998 = vunpack.c.h.b16 %v1304
        %v1999 = vunpack.c.l.b16 %v1305
        %v2000 = vunpack.c.h.b16 %v1305
        %v2001 = vunpack.c.l.b16 %v1306
        %v2002 = vunpack.c.h.b16 %v1306
        %v2003 = vunpack.c.l.b16 %v1307
        %v2004 = vunpack.c.h.b16 %v1307
        %v2005 = vunpack.c.l.b16 %v1308
        %v2006 = vunpack.c.h.b16 %v1308
        %v2007 = vunpack.c.l.b16 %v1309
        %v2008 = vunpack.c.h.b16 %v1309
        %v2009 = vunpack.c.l.b16 %v1310
        %v2010 = vunpack.c.h.b16 %v1310
        %v2011 = vunpack.c.l.b16 %v1311
        %v2012 = vunpack.c.h.b16 %v1311
        %v2013 = vunpack.c.l.b16 %v1312
        %v2014 = vunpack.c.h.b16 %v1312
        %v2015 = vpack.c.b16 %v1601, %v1599
        %v2016 = vpack.c.b16 %v1602, %v1600
        %v2017 = vpack.c.b16 %v1605, %v1603
        %v2018 = vpack.c.b16 %v1606, %v1604
        %v2019 = vpack.c.b16 %v1609, %v1607
        %v2020 = vpack.c.b16 %v1610, %v1608
        %v2021 = vpack.c.b16 %v1613, %v1611
        %v2022 = vpack.c.b16 %v1614, %v1612
        %v2023 = vpack.c.b16 %v1617, %v1615
        %v2024 = vpack.c.b16 %v1618, %v1616
        %v2025 = vpack.c.b16 %v1621, %v1619
        %v2026 = vpack.c.b16 %v1622, %v1620
        %v2027 = vpack.c.b16 %v1625, %v1623
        %v2028 = vpack.c.b16 %v1626, %v1624
        %v2029 = vpack.c.b16 %v1629, %v1627
        %v2030 = vpack.c.b16 %v1630, %v1628
        %v2031 = vpack.c.b16 %v1633, %v1631
        %v2032 = vpack.c.b16 %v1634, %v1632
        %v2033 = vpack.c.b16 %v1637, %v1635
        %v2034 = vpack.c.b16 %v1638, %v1636
        %v2035 = vpack.c.b16 %v1641, %v1639
        %v2036 = vpack.c.b16 %v1642, %v1640
        %v2037 = vpack.c.b16 %v1645, %v1643
        %v2038 = vpack.c.b16 %v1646, %v1644
        %v2039 = vpack.c.b16 %v1649, %v1647
        %v2040 = vpack.c.b16 %v1650, %v1648
        %v2041 = vpack.c.b16 %v1653, %v1651
        %v2042 = vpack.c.b16 %v1654, %v1652
        %v2043 = vpack.c.b16 %v1657, %v1655
        %v2044 = vpack.c.b16 %v1658, %v1656
        %v2045 = vpack.c.b16 %v1661, %v1659
        %v2046 = vpack.c.b16 %v1662, %v1660
        %v2047 = vpack.c.b16 %v1665, %v1663
        %v2048 = vpack.c.b16 %v1666, %v1664
        %v2049 = vpack.c.b16 %v1669, %v1667
        %v2050 = vpack.c.b16 %v1670, %v1668
        %v2051 = vpack.c.b16 %v1673, %v1671
        %v2052 = vpack.c.b16 %v1674, %v1672
        %v2053 = vpack.c.b16 %v1677, %v1675
        %v2054 = vpack.c.b16 %v1678, %v1676
        %v2055 = vpack.c.b16 %v1681, %v1679
        %v2056 = vpack.c.b16 %v1682, %v1680
        %v2057 = vpack.c.b16 %v1685, %v1683
        %v2058 = vpack.c.b16 %v1686, %v1684
        %v2059 = vpack.c.b16 %v1689, %v1687
        %v2060 = vpack.c.b16 %v1690, %v1688
        %v2061 = vpack.c.b16 %v1693, %v1691
        %v2062 = vpack.c.b16 %v1694, %v1692
        %v2063 = vpack.c.b16 %v1697, %v1695
        %v2064 = vpack.c.b16 %v1698, %v1696
        %v2065 = vpack.c.b16 %v1701, %v1699
        %v2066 = vpack.c.b16 %v1702, %v1700
        %v2067 = vpack.c.b16 %v1705, %v1703
        %v2068 = vpack.c.b16 %v1706, %v1704
        %v2069 = vpack.c.b16 %v1709, %v1707
        %v2070 = vpack.c.b16 %v1710, %v1708
        %v2071 = vpack.c.b16 %v1713, %v1711
        %v2072 = vpack.c.b16 %v1714, %v1712
        %v2073 = vpack.c.b16 %v1717, %v1715
        %v2074 = vpack.c.b16 %v1718, %v1716
        %v2075 = vpack.c.b16 %v1721, %v1719
        %v2076 = vpack.c.b16 %v1722, %v1720
        %v2077 = vpack.c.b16 %v1725, %v1723
        %v2078 = vpack.c.b16 %v1726, %v1724
        %v2079 = vpack.c.b16 %v1729, %v1727
        %v2080 = vpack.c.b16 %v1730, %v1728
        %v2081 = vpack.c.b16 %v1733, %v1731
        %v2082 = vpack.c.b16 %v1734, %v1732
        %v2083 = vpack.c.b16 %v1737, %v1735
        %v2084 = vpack.c.b16 %v1738, %v1736
        %v2085 = vpack.c.b16 %v1741, %v1739
        %v2086 = vpack.c.b16 %v1742, %v1740
        %v2087 = vpack.c.b16 %v1745, %v1743
        %v2088 = vpack.c.b16 %v1746, %v1744
        %v2089 = vpack.c.b16 %v1749, %v1747
        %v2090 = vpack.c.b16 %v1750, %v1748
        %v2091 = vpack.c.b16 %v1753, %v1751
        %v2092 = vpack.c.b16 %v1754, %v1752
        %v2093 = vpack.c.b16 %v1757, %v1755
        %v2094 = vpack.c.b16 %v1758, %v1756
        %v2095 = vpack.c.b16 %v1761, %v1759
        %v2096 = vpack.c.b16 %v1762, %v1760
        %v2097 = vpack.c.b16 %v1765, %v1763
        %v2098 = vpack.c.b16 %v1766, %v1764
        %v2099 = vpack.c.b16 %v1769, %v1767
        %v2100 = vpack.c.b16 %v1770, %v1768
        %v2101 = vpack.c.b16 %v1773, %v1771
        %v2102 = vpack.c.b16 %v1774, %v1772
        %v2103 = vpack.c.b16 %v1777, %v1775
        %v2104 = vpack.c.b16 %v1778, %v1776
        %v2105 = vpack.c.b16 %v1781, %v1779
        %v2106 = vpack.c.b16 %v1782, %v1780
        %v2107 = vpack.c.b16 %v1785, %v1783
        %v2108 = vpack.c.b16 %v1786, %v1784
        %v2109 = vpack.c.b16 %v1789, %v1787
        %v2110 = vpack.c.b16 %v1790, %v1788
        %v2111 = vpack.c.b16 %v1793, %v1791
        %v2112 = vpack.c.b16 %v1794, %v1792
        %v2113 = vpack.c.b16 %v1797, %v1795
        %v2114 = vpack.c.b16 %v1798, %v1796
        %v2115 = vpack.c.b16 %v1801, %v1799
        %v2116 = vpack.c.b16 %v1802, %v1800
        %v2117 = vpack.c.b16 %v1805, %v1803
        %v2118 = vpack.c.b16 %v1806, %v1804
        %v2119 = vpack.c.b16 %v1809, %v1807
        %v2120 = vpack.c.b16 %v1810, %v1808
        %v2121 = vpack.c.b16 %v1813, %v1811
        %v2122 = vpack.c.b16 %v1814, %v1812
        %v2123 = vpack.c.b16 %v1817, %v1815
        %v2124 = vpack.c.b16 %v1818, %v1816
        %v2125 = vpack.c.b16 %v1821, %v1819
        %v2126 = vpack.c.b16 %v1822, %v1820
        %v2127 = vpack.c.b16 %v1825, %v1823
        %v2128 = vpack.c.b16 %v1826, %v1824
        %v2129 = vpack.c.b16 %v1829, %v1827
        %v2130 = vpack.c.b16 %v1830, %v1828
        %v2131 = vpack.c.b16 %v1833, %v1831
        %v2132 = vpack.c.b16 %v1834, %v1832
        %v2133 = vpack.c.b16 %v1837, %v1835
        %v2134 = vpack.c.b16 %v1838, %v1836
        %v2135 = vpack.c.b16 %v1841, %v1839
        %v2136 = vpack.c.b16 %v1842, %v1840
        %v2137 = vpack.c.b16 %v1845, %v1843
        %v2138 = vpack.c.b16 %v1846, %v1844
        %v2139 = vpack.c.b16 %v1849, %v1847
        %v2140 = vpack.c.b16 %v1850, %v1848
        %v2141 = vpack.c.b16 %v1853, %v1851
        %v2142 = vpack.c.b16 %v1854, %v1852
        %v2143 = vpack.c.b16 %v1857, %v1855
        %v2144 = vpack.c.b16 %v1858, %v1856
        %v2145 = vpack.c.b16 %v1861, %v1859
        %v2146 = vpack.c.b16 %v1862, %v1860
        %v2147 = vpack.c.b16 %v1865, %v1863
        %v2148 = vpack.c.b16 %v1866, %v1864
        %v2149 = vpack.c.b16 %v1869, %v1867
        %v2150 = vpack.c.b16 %v1870, %v1868
        %v2151 = vpack.c.b16 %v1873, %v1871
        %v2152 = vpack.c.b16 %v1874, %v1872
        %v2153 = vpack.c.b16 %v1877, %v1875
        %v2154 = vpack.c.b16 %v1878, %v1876
        %v2155 = vpack.c.b16 %v1881, %v1879
        %v2156 = vpack.c.b16 %v1882, %v1880
        %v2157 = vpack.c.b16 %v1885, %v1883
        %v2158 = vpack.c.b16 %v1886, %v1884
        %v2159 = vpack.c.b16 %v1889, %v1887
        %v2160 = vpack.c.b16 %v1890, %v1888
        %v2161 = vpack.c.b16 %v1893, %v1891
        %v2162 = vpack.c.b16 %v1894, %v1892
        %v2163 = vpack.c.b16 %v1897, %v1895
        %v2164 = vpack.c.b16 %v1898, %v1896
        %v2165 = vpack.c.b16 %v1901, %v1899
        %v2166 = vpack.c.b16 %v1902, %v1900
        %v2167 = vpack.c.b16 %v1905, %v1903
        %v2168 = vpack.c.b16 %v1906, %v1904
        %v2169 = vpack.c.b16 %v1909, %v1907
        %v2170 = vpack.c.b16 %v1910, %v1908
        %v2171 = vpack.c.b16 %v1913, %v1911
        %v2172 = vpack.c.b16 %v1914, %v1912
        %v2173 = vpack.c.b16 %v1917, %v1915
        %v2174 = vpack.c.b16 %v1918, %v1916
        %v2175 = vpack.c.b16 %v1921, %v1919
        %v2176 = vpack.c.b16 %v1922, %v1920
        %v2177 = vpack.c.b16 %v1925, %v1923
        %v2178 = vpack.c.b16 %v1926, %v1924
        %v2179 = vpack.c.b16 %v1929, %v1927
        %v2180 = vpack.c.b16 %v1930, %v1928
        %v2181 = vpack.c.b16 %v1933, %v1931
        %v2182 = vpack.c.b16 %v1934, %v1932
        %v2183 = vpack.c.b16 %v1937, %v1935
        %v2184 = vpack.c.b16 %v1938, %v1936
        %v2185 = vpack.c.b16 %v1941, %v1939
        %v2186 = vpack.c.b16 %v1942, %v1940
        %v2187 = vpack.c.b16 %v1945, %v1943
        %v2188 = vpack.c.b16 %v1946, %v1944
        %v2189 = vpack.c.b16 %v1949, %v1947
        %v2190 = vpack.c.b16 %v1950, %v1948
        %v2191 = vpack.c.b16 %v1953, %v1951
        %v2192 = vpack.c.b16 %v1954, %v1952
        %v2193 = vpack.c.b16 %v1957, %v1955
        %v2194 = vpack.c.b16 %v1958, %v1956
        %v2195 = vpack.c.b16 %v1961, %v1959
        %v2196 = vpack.c.b16 %v1962, %v1960
        %v2197 = vpack.c.b16 %v1965, %v1963
        %v2198 = vpack.c.b16 %v1966, %v1964
        %v2199 = vpack.c.b16 %v1969, %v1967
        %v2200 = vpack.c.b16 %v1970, %v1968
        %v2201 = vpack.c.b16 %v1973, %v1971
        %v2202 = vpack.c.b16 %v1974, %v1972
        %v2203 = vpack.c.b16 %v1977, %v1975
        %v2204 = vpack.c.b16 %v1978, %v1976
        %v2205 = vpack.c.b16 %v1981, %v1979
        %v2206 = vpack.c.b16 %v1982, %v1980
        %v2207 = vpack.c.b16 %v1985, %v1983
        %v2208 = vpack.c.b16 %v1986, %v1984
        %v2209 = vpack.c.b16 %v1989, %v1987
        %v2210 = vpack.c.b16 %v1990, %v1988
        %v2211 = vpack.c.b16 %v1993, %v1991
        %v2212 = vpack.c.b16 %v1994, %v1992
        %v2213 = vpack.c.b16 %v1997, %v1995
        %v2214 = vpack.c.b16 %v1998, %v1996
        %v2215 = vpack.c.b16 %v2001, %v1999
        %v2216 = vpack.c.b16 %v2002, %v2000
        %v2217 = vpack.c.b16 %v2005, %v2003
        %v2218 = vpack.c.b16 %v2006, %v2004
        %v2219 = vpack.c.b16 %v2009, %v2007
        %v2220 = vpack.c.b16 %v2010, %v2008
        %v2221 = vpack.c.b16 %v2013, %v2011
        %v2222 = vpack.c.b16 %v2014, %v2012
        %2431 = vmatprep.subr.bf16.mxu0 %v2030
        %2432 = vmatpush1.bf16.msra.mxu0 %v2029
        %2433 = vmatprep.subr.bf16.mxu0 %v2028
        %2434 = vmatpush1.bf16.msra.mxu0 %v2027
        %2435 = vmatprep.subr.bf16.mxu0 %v2026
        %2436 = vmatpush1.bf16.msra.mxu0 %v2025
        %2437 = vmatprep.subr.bf16.mxu0 %v2024
        %2438 = vmatpush1.bf16.msra.mxu0 %v2023
        %2439 = vmatprep.subr.bf16.mxu0 %v2022
        %2440 = vmatpush1.bf16.msra.mxu0 %v2021
        %2441 = vmatprep.subr.bf16.mxu0 %v2020
        %2442 = vmatpush1.bf16.msra.mxu0 %v2019
        %2443 = vmatprep.subr.bf16.mxu0 %v2018
        %2444 = vmatpush1.bf16.msra.mxu0 %v2017
        %2445 = vmatprep.subr.bf16.mxu0 %v2016
        %2446 = vmatpush1.bf16.msra.mxu0 %v2015
        %2447 = vmatprep.subr.bf16.mxu0 %v2046
        %2448 = vmatpush2.bf16.msra.mxu0 %v2045
        %2449 = vmatprep.subr.bf16.mxu0 %v2044
        %2450 = vmatpush2.bf16.msra.mxu0 %v2043
        %2451 = vmatprep.subr.bf16.mxu0 %v2042
        %2452 = vmatpush2.bf16.msra.mxu0 %v2041
        %2453 = vmatprep.subr.bf16.mxu0 %v2040
        %2454 = vmatpush2.bf16.msra.mxu0 %v2039
        %2455 = vmatprep.subr.bf16.mxu0 %v2038
        %2456 = vmatpush2.bf16.msra.mxu0 %v2037
        %2457 = vmatprep.subr.bf16.mxu0 %v2036
        %2458 = vmatpush2.bf16.msra.mxu0 %v2035
        %2459 = vmatprep.subr.bf16.mxu0 %v2034
        %2460 = vmatpush2.bf16.msra.mxu0 %v2033
        %2461 = vmatprep.subr.bf16.mxu0 %v2032
        %2462 = vmatpush2.bf16.msra.mxu0 %v2031
        %2463 = vmatprep.mubr.bf16.mxu0 %v1366
        %2464 = vmatmul.mubr.bf16.gmra.mxu0 %v1365
        %v2465 = vpop.f32.mrf.mxu0
        %v2466 = vadd.f32 %v1318, %v2465
        %v2467 = vpop.f32.mrf.mxu0
        %v2468 = vadd.f32 %v1322, %v2467
        %v2469 = vpop.f32.mrf.mxu0
        %v2470 = vadd.f32 %v1318, %v2469
        %v2471 = vpop.f32.mrf.mxu0
        %v2472 = vadd.f32 %v1322, %v2471
        %2473 = vdwg.mxu0
        %2474 = vmatprep.subr.bf16.mxu0 %v2062
        %2475 = vmatpush1.bf16.msra.mxu0 %v2061
        %2476 = vmatprep.subr.bf16.mxu0 %v2060
        %2477 = vmatpush1.bf16.msra.mxu0 %v2059
        %2478 = vmatprep.subr.bf16.mxu0 %v2058
        %2479 = vmatpush1.bf16.msra.mxu0 %v2057
        %2480 = vmatprep.subr.bf16.mxu0 %v2056
        %2481 = vmatpush1.bf16.msra.mxu0 %v2055
        %2482 = vmatprep.subr.bf16.mxu0 %v2054
        %2483 = vmatpush1.bf16.msra.mxu0 %v2053
        %2484 = vmatprep.subr.bf16.mxu0 %v2052
        %2485 = vmatpush1.bf16.msra.mxu0 %v2051
        %2486 = vmatprep.subr.bf16.mxu0 %v2050
        %2487 = vmatpush1.bf16.msra.mxu0 %v2049
        %2488 = vmatprep.subr.bf16.mxu0 %v2048
        %2489 = vmatpush1.bf16.msra.mxu0 %v2047
        %2490 = vmatprep.subr.bf16.mxu0 %v2078
        %2491 = vmatpush2.bf16.msra.mxu0 %v2077
        %2492 = vmatprep.subr.bf16.mxu0 %v2076
        %2493 = vmatpush2.bf16.msra.mxu0 %v2075
        %2494 = vmatprep.subr.bf16.mxu0 %v2074
        %2495 = vmatpush2.bf16.msra.mxu0 %v2073
        %2496 = vmatprep.subr.bf16.mxu0 %v2072
        %2497 = vmatpush2.bf16.msra.mxu0 %v2071
        %2498 = vmatprep.subr.bf16.mxu0 %v2070
        %2499 = vmatpush2.bf16.msra.mxu0 %v2069
        %2500 = vmatprep.subr.bf16.mxu0 %v2068
        %2501 = vmatpush2.bf16.msra.mxu0 %v2067
        %2502 = vmatprep.subr.bf16.mxu0 %v2066
        %2503 = vmatpush2.bf16.msra.mxu0 %v2065
        %2504 = vmatprep.subr.bf16.mxu0 %v2064
        %2505 = vmatpush2.bf16.msra.mxu0 %v2063
        %2506 = vmatprep.mubr.bf16.mxu0 %v1368
        %2507 = vmatmul.mubr.bf16.gmra.mxu0 %v1367
        %v2508 = vpop.f32.mrf.mxu0
        %v2509 = vadd.f32 %v2466, %v2508
        %v2510 = vpop.f32.mrf.mxu0
        %v2511 = vadd.f32 %v2468, %v2510
        %v2512 = vpop.f32.mrf.mxu0
        %v2513 = vadd.f32 %v2470, %v2512
        %v2514 = vpop.f32.mrf.mxu0
        %v2515 = vadd.f32 %v2472, %v2514
        %2516 = vdwg.mxu0
        %2517 = vmatprep.subr.bf16.mxu0 %v2094
        %2518 = vmatpush1.bf16.msra.mxu0 %v2093
        %2519 = vmatprep.subr.bf16.mxu0 %v2092
        %2520 = vmatpush1.bf16.msra.mxu0 %v2091
        %2521 = vmatprep.subr.bf16.mxu0 %v2090
        %2522 = vmatpush1.bf16.msra.mxu0 %v2089
        %2523 = vmatprep.subr.bf16.mxu0 %v2088
        %2524 = vmatpush1.bf16.msra.mxu0 %v2087
        %2525 = vmatprep.subr.bf16.mxu0 %v2086
        %2526 = vmatpush1.bf16.msra.mxu0 %v2085
        %2527 = vmatprep.subr.bf16.mxu0 %v2084
        %2528 = vmatpush1.bf16.msra.mxu0 %v2083
        %2529 = vmatprep.subr.bf16.mxu0 %v2082
        %2530 = vmatpush1.bf16.msra.mxu0 %v2081
        %2531 = vmatprep.subr.bf16.mxu0 %v2080
        %2532 = vmatpush1.bf16.msra.mxu0 %v2079
        %2533 = vmatprep.subr.bf16.mxu0 %v2110
        %2534 = vmatpush2.bf16.msra.mxu0 %v2109
        %2535 = vmatprep.subr.bf16.mxu0 %v2108
        %2536 = vmatpush2.bf16.msra.mxu0 %v2107
        %2537 = vmatprep.subr.bf16.mxu0 %v2106
        %2538 = vmatpush2.bf16.msra.mxu0 %v2105
        %2539 = vmatprep.subr.bf16.mxu0 %v2104
        %2540 = vmatpush2.bf16.msra.mxu0 %v2103
        %2541 = vmatprep.subr.bf16.mxu0 %v2102
        %2542 = vmatpush2.bf16.msra.mxu0 %v2101
        %2543 = vmatprep.subr.bf16.mxu0 %v2100
        %2544 = vmatpush2.bf16.msra.mxu0 %v2099
        %2545 = vmatprep.subr.bf16.mxu0 %v2098
        %2546 = vmatpush2.bf16.msra.mxu0 %v2097
        %2547 = vmatprep.subr.bf16.mxu0 %v2096
        %2548 = vmatpush2.bf16.msra.mxu0 %v2095
        %2549 = vmatprep.mubr.bf16.mxu0 %v1370
        %2550 = vmatmul.mubr.bf16.gmra.mxu0 %v1369
        %v2551 = vpop.f32.mrf.mxu0
        %v2552 = vadd.f32 %v2509, %v2551
        %v2553 = vpop.f32.mrf.mxu0
        %v2554 = vadd.f32 %v2511, %v2553
        %v2555 = vpop.f32.mrf.mxu0
        %v2556 = vadd.f32 %v2513, %v2555
        %v2557 = vpop.f32.mrf.mxu0
        %v2558 = vadd.f32 %v2515, %v2557
        %2559 = vdwg.mxu0
        %2560 = vmatprep.subr.bf16.mxu0 %v2126
        %2561 = vmatpush1.bf16.msra.mxu0 %v2125
        %2562 = vmatprep.subr.bf16.mxu0 %v2124
        %2563 = vmatpush1.bf16.msra.mxu0 %v2123
        %2564 = vmatprep.subr.bf16.mxu0 %v2122
        %2565 = vmatpush1.bf16.msra.mxu0 %v2121
        %2566 = vmatprep.subr.bf16.mxu0 %v2120
        %2567 = vmatpush1.bf16.msra.mxu0 %v2119
        %2568 = vmatprep.subr.bf16.mxu0 %v2118
        %2569 = vmatpush1.bf16.msra.mxu0 %v2117
        %2570 = vmatprep.subr.bf16.mxu0 %v2116
        %2571 = vmatpush1.bf16.msra.mxu0 %v2115
        %2572 = vmatprep.subr.bf16.mxu0 %v2114
        %2573 = vmatpush1.bf16.msra.mxu0 %v2113
        %2574 = vmatprep.subr.bf16.mxu0 %v2112
        %2575 = vmatpush1.bf16.msra.mxu0 %v2111
        %2576 = vmatprep.subr.bf16.mxu0 %v2142
        %2577 = vmatpush2.bf16.msra.mxu0 %v2141
        %2578 = vmatprep.subr.bf16.mxu0 %v2140
        %2579 = vmatpush2.bf16.msra.mxu0 %v2139
        %2580 = vmatprep.subr.bf16.mxu0 %v2138
        %2581 = vmatpush2.bf16.msra.mxu0 %v2137
        %2582 = vmatprep.subr.bf16.mxu0 %v2136
        %2583 = vmatpush2.bf16.msra.mxu0 %v2135
        %2584 = vmatprep.subr.bf16.mxu0 %v2134
        %2585 = vmatpush2.bf16.msra.mxu0 %v2133
        %2586 = vmatprep.subr.bf16.mxu0 %v2132
        %2587 = vmatpush2.bf16.msra.mxu0 %v2131
        %2588 = vmatprep.subr.bf16.mxu0 %v2130
        %2589 = vmatpush2.bf16.msra.mxu0 %v2129
        %2590 = vmatprep.subr.bf16.mxu0 %v2128
        %2591 = vmatpush2.bf16.msra.mxu0 %v2127
        %2592 = vmatprep.mubr.bf16.mxu0 %v1372
        %2593 = vmatmul.mubr.bf16.gmra.mxu0 %v1371
        %v2594 = vpop.f32.mrf.mxu0
        %v2595 = vadd.f32 %v2552, %v2594
        %v2596 = vpop.f32.mrf.mxu0
        %v2597 = vadd.f32 %v2554, %v2596
        %v2598 = vpop.f32.mrf.mxu0
        %v2599 = vadd.f32 %v2556, %v2598
        %v2600 = vpop.f32.mrf.mxu0
        %v2601 = vadd.f32 %v2558, %v2600
        %2602 = vdwg.mxu0
        %2603 = vmatprep.subr.bf16.mxu0 %v2158
        %2604 = vmatpush1.bf16.msra.mxu0 %v2157
        %2605 = vmatprep.subr.bf16.mxu0 %v2156
        %2606 = vmatpush1.bf16.msra.mxu0 %v2155
        %2607 = vmatprep.subr.bf16.mxu0 %v2154
        %2608 = vmatpush1.bf16.msra.mxu0 %v2153
        %2609 = vmatprep.subr.bf16.mxu0 %v2152
        %2610 = vmatpush1.bf16.msra.mxu0 %v2151
        %2611 = vmatprep.subr.bf16.mxu0 %v2150
        %2612 = vmatpush1.bf16.msra.mxu0 %v2149
        %2613 = vmatprep.subr.bf16.mxu0 %v2148
        %2614 = vmatpush1.bf16.msra.mxu0 %v2147
        %2615 = vmatprep.subr.bf16.mxu0 %v2146
        %2616 = vmatpush1.bf16.msra.mxu0 %v2145
        %2617 = vmatprep.subr.bf16.mxu0 %v2144
        %2618 = vmatpush1.bf16.msra.mxu0 %v2143
        %2619 = vmatprep.subr.bf16.mxu0 %v2174
        %2620 = vmatpush2.bf16.msra.mxu0 %v2173
        %2621 = vmatprep.subr.bf16.mxu0 %v2172
        %2622 = vmatpush2.bf16.msra.mxu0 %v2171
        %2623 = vmatprep.subr.bf16.mxu0 %v2170
        %2624 = vmatpush2.bf16.msra.mxu0 %v2169
        %2625 = vmatprep.subr.bf16.mxu0 %v2168
        %2626 = vmatpush2.bf16.msra.mxu0 %v2167
        %2627 = vmatprep.subr.bf16.mxu0 %v2166
        %2628 = vmatpush2.bf16.msra.mxu0 %v2165
        %2629 = vmatprep.subr.bf16.mxu0 %v2164
        %2630 = vmatpush2.bf16.msra.mxu0 %v2163
        %2631 = vmatprep.subr.bf16.mxu0 %v2162
        %2632 = vmatpush2.bf16.msra.mxu0 %v2161
        %2633 = vmatprep.subr.bf16.mxu0 %v2160
        %2634 = vmatpush2.bf16.msra.mxu0 %v2159
        %2635 = vmatprep.mubr.bf16.mxu0 %v1374
        %2636 = vmatmul.mubr.bf16.gmra.mxu0 %v1373
        %v2637 = vpop.f32.mrf.mxu0
        %v2638 = vadd.f32 %v2595, %v2637
        %v2639 = vpop.f32.mrf.mxu0
        %v2640 = vadd.f32 %v2597, %v2639
        %v2641 = vpop.f32.mrf.mxu0
        %v2642 = vadd.f32 %v2599, %v2641
        %v2643 = vpop.f32.mrf.mxu0
        %v2644 = vadd.f32 %v2601, %v2643
        %2645 = vdwg.mxu0
        %2646 = vmatprep.subr.bf16.mxu0 %v2190
        %2647 = vmatpush1.bf16.msra.mxu0 %v2189
        %2648 = vmatprep.subr.bf16.mxu0 %v2188
        %2649 = vmatpush1.bf16.msra.mxu0 %v2187
        %2650 = vmatprep.subr.bf16.mxu0 %v2186
        %2651 = vmatpush1.bf16.msra.mxu0 %v2185
        %2652 = vmatprep.subr.bf16.mxu0 %v2184
        %2653 = vmatpush1.bf16.msra.mxu0 %v2183
        %2654 = vmatprep.subr.bf16.mxu0 %v2182
        %2655 = vmatpush1.bf16.msra.mxu0 %v2181
        %2656 = vmatprep.subr.bf16.mxu0 %v2180
        %2657 = vmatpush1.bf16.msra.mxu0 %v2179
        %2658 = vmatprep.subr.bf16.mxu0 %v2178
        %2659 = vmatpush1.bf16.msra.mxu0 %v2177
        %2660 = vmatprep.subr.bf16.mxu0 %v2176
        %2661 = vmatpush1.bf16.msra.mxu0 %v2175
        %2662 = vmatprep.subr.bf16.mxu0 %v2206
        %2663 = vmatpush2.bf16.msra.mxu0 %v2205
        %2664 = vmatprep.subr.bf16.mxu0 %v2204
        %2665 = vmatpush2.bf16.msra.mxu0 %v2203
        %2666 = vmatprep.subr.bf16.mxu0 %v2202
        %2667 = vmatpush2.bf16.msra.mxu0 %v2201
        %2668 = vmatprep.subr.bf16.mxu0 %v2200
        %2669 = vmatpush2.bf16.msra.mxu0 %v2199
        %2670 = vmatprep.subr.bf16.mxu0 %v2198
        %2671 = vmatpush2.bf16.msra.mxu0 %v2197
        %2672 = vmatprep.subr.bf16.mxu0 %v2196
        %2673 = vmatpush2.bf16.msra.mxu0 %v2195
        %2674 = vmatprep.subr.bf16.mxu0 %v2194
        %2675 = vmatpush2.bf16.msra.mxu0 %v2193
        %2676 = vmatprep.subr.bf16.mxu0 %v2192
        %2677 = vmatpush2.bf16.msra.mxu0 %v2191
        %2678 = vmatprep.mubr.bf16.mxu0 %v1376
        %2679 = vmatmul.mubr.bf16.gmra.mxu0 %v1375
        %v2680 = vpop.f32.mrf.mxu0
        %v2681 = vadd.f32 %v2638, %v2680
        %v2682 = vpop.f32.mrf.mxu0
        %v2683 = vadd.f32 %v2640, %v2682
        %v2684 = vpop.f32.mrf.mxu0
        %v2685 = vadd.f32 %v2642, %v2684
        %v2686 = vpop.f32.mrf.mxu0
        %v2687 = vadd.f32 %v2644, %v2686
        %2688 = vdwg.mxu0
        %2689 = vmatprep.subr.bf16.mxu0 %v2222
        %2690 = vmatpush1.bf16.msra.mxu0 %v2221
        %2691 = vmatprep.subr.bf16.mxu0 %v2220
        %2692 = vmatpush1.bf16.msra.mxu0 %v2219
        %2693 = vmatprep.subr.bf16.mxu0 %v2218
        %2694 = vmatpush1.bf16.msra.mxu0 %v2217
        %2695 = vmatprep.subr.bf16.mxu0 %v2216
        %2696 = vmatpush1.bf16.msra.mxu0 %v2215
        %2697 = vmatprep.subr.bf16.mxu0 %v2214
        %2698 = vmatpush1.bf16.msra.mxu0 %v2213
        %2699 = vmatprep.subr.bf16.mxu0 %v2212
        %2700 = vmatpush1.bf16.msra.mxu0 %v2211
        %2701 = vmatprep.subr.bf16.mxu0 %v2210
        %2702 = vmatpush1.bf16.msra.mxu0 %v2209
        %2703 = vmatprep.subr.bf16.mxu0 %v2208
        %2704 = vmatpush1.bf16.msra.mxu0 %v2207
        %2705 = vmatprep.subr.bf16.mxu0 0
        %2706 = vmatpush2.bf16.msra.mxu0 0
        %2707 = vmatprep.subr.bf16.mxu0 0
        %2708 = vmatpush2.bf16.msra.mxu0 0
        %2709 = vmatprep.subr.bf16.mxu0 0
        %2710 = vmatpush2.bf16.msra.mxu0 0
        %2711 = vmatprep.subr.bf16.mxu0 0
        %2712 = vmatpush2.bf16.msra.mxu0 0
        %2713 = vmatprep.subr.bf16.mxu0 0
        %2714 = vmatpush2.bf16.msra.mxu0 0
        %2715 = vmatprep.subr.bf16.mxu0 0
        %2716 = vmatpush2.bf16.msra.mxu0 0
        %2717 = vmatprep.subr.bf16.mxu0 0
        %2718 = vmatpush2.bf16.msra.mxu0 0
        %2719 = vmatprep.subr.bf16.mxu0 0
        %2720 = vmatpush2.bf16.msra.mxu0 0
        %2721 = vmatprep.mubr.bf16.mxu0 0
        %2722 = vmatmul.mubr.bf16.gmra.mxu0 %v1377
        %v2723 = vpop.f32.mrf.mxu0
        %v2724 = vadd.f32 %v2681, %v2723
        %v2725 = vpop.f32.mrf.mxu0
        %v2726 = vadd.f32 %v2683, %v2725
        %v2727 = vpop.f32.mrf.mxu0
        %v2728 = vadd.f32 %v2685, %v2727
        %v2729 = vpop.f32.mrf.mxu0
        %v2730 = vadd.f32 %v2687, %v2729
        %2731 = vdwg.mxu0
        %v2732 = vpack.c.bf16 %v2728, %v2724
        %v2733 = vpack.c.bf16 %v2730, %v2726
        %v2736 = vunpack.c.l.b16 %v2732
        %v2737 = vunpack.c.l.b16 %v2733
        %v2738 = vunpack.c.h.b16 %v2732
        %v2739 = vunpack.c.h.b16 %v2733
        %v2740 = vpack.c.b16 %v2737, %v2736
        %v2741 = vpack.c.b16 %v2739, %v2738
        %2744 = vst [vmem:[%s1074] sm:$0xff] %v2740
        %2745 = vst [vmem:[%s1074 + $0x8] sm:$0xff] %v2741
        %s2746 = sand.u32 %s114, 1
        %s2747 = sand.u32 %s114, 1
        %s2748 = smul.addr %s2747, 16
        %s2749 = scalar_lea.vmem [#allocation3], %s2748
        // Predicated region
        $region71: #{hybrid_qnn_forward.10} parent=65 // pred_check
          %p2750 = pneg %p124
        $region72: #{hybrid_qnn_forward.10} parent=65 // pred_check_branch
          %2752 = sbr.rel (%p2750) target = $region74
        $region73: #{hybrid_qnn_forward.10} parent=65 // pred_region
          %s2753 = smul.u32 2, %s18
          %s2754 = smul.u32 2, %s19
          %s2755 = smul.addr %s2753, 4
          %s2756 = sadd.s32 %s2754, %s2755
          %s2757 = smul.addr %s2756, 4
          %s2758 = scalar_lea.vmem %s3, %s2757
          // Predicated region
          $region75: #{hybrid_qnn_forward.10} parent=73 // pred_check
            _
          $region76: #{hybrid_qnn_forward.10} parent=73 // pred_check_branch
            %2760 = sbr.rel (0) target = $region78
          $region77: #{hybrid_qnn_forward.10} parent=73 // pred_region
            // Predicated region
            $region79: #{hybrid_qnn_forward.10} parent=77 // pred_check
              _
            $region80: #{hybrid_qnn_forward.10} parent=77 // pred_check_branch
              %2762 = sbr.rel (0) target = $region82
            $region81: #{hybrid_qnn_forward.10} parent=77 // pred_region
              // Predicated region
              $region94: #{hybrid_qnn_forward.10} parent=81 // pred_check
                _
              $region95: #{hybrid_qnn_forward.10} parent=81 // pred_check_branch
                %2780 = sbr.rel (0) target = $region97
              $region96: #{hybrid_qnn_forward.10} parent=81 // pred_region
                loop: start=0, step=1, limit=1
                $region98: #{hybrid_qnn_forward.10} parent=96 // loop_pre_header
                  _
                $region99: #{hybrid_qnn_forward.10} parent=96 // loop_header
                  %s2782 = sphi 0, %s2786
                  %p2783 = scmp.ge.s32.totalorder %s2782, 1
                  %s2787 = sphi %s2749, %s2749
                  %s2788 = sphi %s2758, %s2758
                $region100: #{hybrid_qnn_forward.10} parent=96 // loop_header_branch
                  %2785 = sbr.rel (%p2783) target = $region104
                $region101: #{hybrid_qnn_forward.10} parent=96 // loop_body
                  %v2789 = vld [vmem:[%s2787] sm:$0xff]
                  %2790 = vst [vmem:[%s2788] sm:$0xff] %v2789
                  %v2791 = vld [vmem:[%s2787 + $0x8] sm:$0xff]
                  %2792 = vst [vmem:[%s2788 + $0x10] sm:$0xff] %v2791
                $region102: #{hybrid_qnn_forward.10} parent=96 // loop_footer
                  %s2786 = sadd.s32 1, %s2782
                $region103: #{hybrid_qnn_forward.10} parent=96 // loop_footer_branch
                  %2781 = sbr.rel target = $region99
                $region104: #{hybrid_qnn_forward.10} parent=96 // loop_exit
                  _
              $region97: #{hybrid_qnn_forward.10} parent=81 // pred_fallthru
                _
              // Predicated region
              $region105: #{hybrid_qnn_forward.10} parent=81 // pred_check
                _
              $region106: #{hybrid_qnn_forward.10} parent=81 // pred_check_branch
                %2794 = sbr.rel target = $region108
              $region107: #{hybrid_qnn_forward.10} parent=81 // pred_region
                _
              $region108: #{hybrid_qnn_forward.10} parent=81 // pred_fallthru
                _
            $region82: #{hybrid_qnn_forward.10} parent=77 // pred_fallthru
              _
            // Predicated region
            $region83: #{hybrid_qnn_forward.10} parent=77 // pred_check
              _
            $region84: #{hybrid_qnn_forward.10} parent=77 // pred_check_branch
              %2764 = sbr.rel target = $region86
            $region85: #{hybrid_qnn_forward.10} parent=77 // pred_region
              %s2766 = ssub.s32 256, 1
              loop: start=0, step=1, limit=1
              $region87: #{hybrid_qnn_forward.10} parent=85 // loop_pre_header
                _
              $region88: #{hybrid_qnn_forward.10} parent=85 // loop_header
                %s2768 = sphi 0, %s2772
                %p2769 = scmp.ge.s32.totalorder %s2768, 1
                %s2773 = sphi %s2749, %s2749
                %s2774 = sphi %s2758, %s2758
              $region89: #{hybrid_qnn_forward.10} parent=85 // loop_header_branch
                %2771 = sbr.rel (%p2769) target = $region93
              $region90: #{hybrid_qnn_forward.10} parent=85 // loop_body
                %v2775 = vld [vmem:[%s2773] sm:%s2766]
                %2776 = vst [vmem:[%s2774] sm:%s2766] %v2775
                %v2777 = vld [vmem:[%s2773 + $0x8] sm:%s2766]
                %2778 = vst [vmem:[%s2774 + $0x10] sm:%s2766] %v2777
              $region91: #{hybrid_qnn_forward.10} parent=85 // loop_footer
                %s2772 = sadd.s32 1, %s2768
              $region92: #{hybrid_qnn_forward.10} parent=85 // loop_footer_branch
                %2767 = sbr.rel target = $region88
              $region93: #{hybrid_qnn_forward.10} parent=85 // loop_exit
                _
            $region86: #{hybrid_qnn_forward.10} parent=77 // pred_fallthru
              _
          $region78: #{hybrid_qnn_forward.10} parent=73 // pred_fallthru
            _
          %2795 = vnop
        $region74: #{hybrid_qnn_forward.10} parent=65 // pred_fallthru
          _
      $region66: #{hybrid_qnn_forward.10} parent=5 // pred_fallthru
        _
      %p2796 = scmp.le.s32.totalorder 2, %s9
      // Predicated region
      $region109: #{hybrid_qnn_forward.10} parent=5 // pred_check
        %p2797 = pneg %p2796
      $region110: #{hybrid_qnn_forward.10} parent=5 // pred_check_branch
        %2799 = sbr.rel (%p2797) target = $region112
      $region111: #{hybrid_qnn_forward.10} parent=5 // pred_region
        %s2800 = ssub.s32 %s9, 2
        // Predicated region
        $region113: #{hybrid_qnn_forward.10} parent=111 // pred_check
          %p2801 = pneg %p130
        $region114: #{hybrid_qnn_forward.10} parent=111 // pred_check_branch
          %2803 = sbr.rel (%p2801) target = $region116
        $region115: #{hybrid_qnn_forward.10} parent=111 // pred_region
          %s2804 = sand.u32 %s115, 1
          %s2805 = sand.u32 %s115, 1
          %s2806 = smul.addr %s2805, 16
          %s2807 = scalar_lea.vmem [#allocation3], %s2806
        $region116: #{hybrid_qnn_forward.10} parent=111 // pred_fallthru
          _
      $region112: #{hybrid_qnn_forward.10} parent=5 // pred_fallthru
        _
    $region6: #{hybrid_qnn_forward.10} parent=1 // loop_footer
      %s13 = sadd.s32 1, %s9
    $region7: #{hybrid_qnn_forward.10} parent=1 // loop_footer_branch
      %8 = sbr.rel target = $region3
    $region8: #{hybrid_qnn_forward.10} parent=1 // loop_exit
      _

</llo_original>
